<compile_context>
chip_gen: v6e
topology: v6e:2x2x1
jax: 0.10.0
libtpu: 0.0.40
codegen_flags: <defaults>
</compile_context>

<pallas_src>
import numpy as np

import jax
import jax.numpy as jnp
from jax.experimental import pallas as pl
from jax.experimental.pallas import tpu as pltpu


# ---------------------------------------------------------------------------
# Tiling constants
# ---------------------------------------------------------------------------
DP = 128                      # padded feature width (lane-dense)
N_ROUND = 512                 # node count padded to a multiple of this
MAX_TM = 512                  # max row tile for the propagation kernel
MAX_TK = 2048                 # max reduction (K) tile over graph nodes
MAX_TM_PROJ = 2048            # max row tile for the projection kernel
VMEM_LIMIT = 48 * 1024 * 1024


def _round_up(x, m):
    return ((x + m - 1) // m) * m


def _pick_tile(n, max_tile, quantum):
    """Largest multiple of `quantum` that divides n and is <= max_tile."""
    t = min(max_tile, n)
    t -= t % quantum
    t = max(t, quantum)
    while n % t != 0:
        t -= quantum
    return t


def _layer_tiles(n_pad):
    return _pick_tile(n_pad, MAX_TM, 256), _pick_tile(n_pad, MAX_TK, 512)


# ---------------------------------------------------------------------------
# Pallas kernels
# ---------------------------------------------------------------------------
def _ngcf_layer_kernel(kidx_ref, kcnt_ref, a_ref, ego_ref, wgc_ref, wbi_ref,
                       bias_ref, new_ego_ref, norm_ref, acc_ref):
    """One NGCF propagation layer.

    grid = (row_tiles, max_nonempty_k_blocks); A_hat blocks are fetched only
    for structurally non-empty tiles (scalar-prefetched schedule), ego is
    fully VMEM-resident, the f32 accumulator lives in VMEM scratch.
    """
    tm, tk = a_ref.shape
    i = pl.program_id(0)
    j = pl.program_id(1)

    @pl.when(j == 0)
    def _():
        acc_ref[...] = jnp.zeros_like(acc_ref)

    # Accumulate only over non-empty A_hat blocks for this row tile.
    @pl.when(j < kcnt_ref[i])
    def _():
        k0 = pl.multiple_of(kidx_ref[i, j] * tk, tk)
        acc_ref[...] += jnp.dot(a_ref[...], ego_ref[pl.ds(k0, tk), :],
                                preferred_element_type=jnp.float32)

    @pl.when(j == pl.num_programs(1) - 1)
    def _():
        side = acc_ref[...]                                  # (tm, DP) f32
        r0 = pl.multiple_of(i * tm, tm)
        ego_row = ego_ref[pl.ds(r0, tm), :].astype(jnp.float32)
        # side @ W_gc + (ego*side) @ W_bi + (b_gc + b_bi)  (two K=128 dots).
        x = (jnp.dot(side, wgc_ref[...], preferred_element_type=jnp.float32)
             + jnp.dot(ego_row * side, wbi_ref[...],
                       preferred_element_type=jnp.float32)
             + bias_ref[...])
        # LeakyReLU(negative_slope=0.2).
        x = jnp.where(x >= 0, x, 0.2 * x)
        new_ego_ref[...] = x.astype(new_ego_ref.dtype)
        # F.normalize(x, p=2, dim=1) -- rsqrt goes to the EUP slot.
        ssq = jnp.sum(x * x, axis=1, keepdims=True)
        norm_ref[...] = (x * jax.lax.rsqrt(jnp.maximum(ssq, 1e-24))
                         ).astype(norm_ref.dtype)


def _proj_kernel(*refs):
    """proj_linear over un-concatenated segments: y = sum_s seg_s @ W_s + b."""
    n_seg = len(refs) - 3
    w_ref = refs[n_seg]
    b_ref = refs[n_seg + 1]
    o_ref = refs[n_seg + 2]
    dp = o_ref.shape[1]
    acc = jnp.zeros(o_ref.shape, jnp.float32)
    for s in range(n_seg):
        acc += jnp.dot(refs[s][...], w_ref[s * dp:(s + 1) * dp, :],
                       preferred_element_type=jnp.float32)
    o_ref[...] = acc + b_ref[...]


# ---------------------------------------------------------------------------
# pallas_call wrappers
# ---------------------------------------------------------------------------
def ngcf_layer(kidx, kcnt, a_hat_bf16, ego_bf16, w_gc, w_bi, bias):
    n_pad = a_hat_bf16.shape[0]
    dp = w_gc.shape[1]
    tm, tk = _layer_tiles(n_pad)
    grid = (n_pad // tm, int(kidx.shape[1]))

    flops = 2 * n_pad * n_pad * dp + 4 * n_pad * dp * dp + 8 * n_pad * dp
    bytes_acc = (2 * n_pad * n_pad          # A_hat bf16 (dense upper bound)
                 + 2 * n_pad * dp           # resident ego bf16
                 + 2 * 2 * n_pad * dp       # two bf16 outputs
                 + 4 * (2 * dp * dp + dp))  # weights / bias

    return pl.pallas_call(
        _ngcf_layer_kernel,
        out_shape=(jax.ShapeDtypeStruct((n_pad, dp), jnp.bfloat16),   # new ego
                   jax.ShapeDtypeStruct((n_pad, dp), jnp.bfloat16)),  # normed
        grid_spec=pltpu.PrefetchScalarGridSpec(
            num_scalar_prefetch=2,
            grid=grid,
            in_specs=[
                # A_hat: row tile i, data-dependent non-empty K block.
                pl.BlockSpec((tm, tk), lambda i, j, ks, kc: (i, ks[i, j])),
                # ego: fully VMEM-resident for the whole layer (one DMA).
                pl.BlockSpec((n_pad, dp), lambda i, j, ks, kc: (0, 0)),
                pl.BlockSpec((dp, dp), lambda i, j, ks, kc: (0, 0)),   # W_gc
                pl.BlockSpec((dp, dp), lambda i, j, ks, kc: (0, 0)),   # W_bi
                pl.BlockSpec((1, dp), lambda i, j, ks, kc: (0, 0)),    # bias
            ],
            out_specs=(
                pl.BlockSpec((tm, dp), lambda i, j, ks, kc: (i, 0)),
                pl.BlockSpec((tm, dp), lambda i, j, ks, kc: (i, 0)),
            ),
            scratch_shapes=[pltpu.VMEM((tm, dp), jnp.float32)],
        ),
        compiler_params=pltpu.CompilerParams(
            dimension_semantics=("parallel", "arbitrary"),
            vmem_limit_bytes=VMEM_LIMIT),
        cost_estimate=pl.CostEstimate(flops=int(flops),
                                      transcendentals=int(n_pad),
                                      bytes_accessed=int(bytes_acc)),
    )(kidx, kcnt, a_hat_bf16, ego_bf16, w_gc, w_bi, bias)


def proj_linear(segments, w_bf16, bias):
    n_pad, dp = segments[0].shape
    n_seg = len(segments)
    tmp = _pick_tile(n_pad, MAX_TM_PROJ, 512)
    grid = (n_pad // tmp,)

    in_specs = ([pl.BlockSpec((tmp, dp), lambda i: (i, 0))
                 for _ in range(n_seg)]
                + [pl.BlockSpec((n_seg * dp, dp), lambda i: (0, 0)),
                   pl.BlockSpec((1, dp), lambda i: (0, 0))])

    return pl.pallas_call(
        _proj_kernel,
        out_shape=jax.ShapeDtypeStruct((n_pad, dp), jnp.float32),
        grid_spec=pltpu.PrefetchScalarGridSpec(
            num_scalar_prefetch=0,
            grid=grid,
            in_specs=in_specs,
            out_specs=pl.BlockSpec((tmp, dp), lambda i: (i, 0)),
        ),
        compiler_params=pltpu.CompilerParams(
            dimension_semantics=("parallel",),
            vmem_limit_bytes=VMEM_LIMIT),
        cost_estimate=pl.CostEstimate(
            flops=int(2 * n_pad * n_seg * dp * dp), transcendentals=0,
            bytes_accessed=int(2 * n_pad * n_seg * dp
                               + 2 * n_seg * dp * dp + 4 * n_pad * dp)),
    )(*segments, w_bf16, bias)


@jax.jit
def ngcf_forward(kidx, kcnt, a_hat_bf16, ego0_bf16, layer_params,
                 proj_w_bf16, proj_b):
    """NGCF.forward(ego_embeddings, drop_flag=False) -- eval-mode dropout."""
    segments = [ego0_bf16]
    ego = ego0_bf16
    for (w_gc, w_bi, bias) in layer_params:
        ego, norm = ngcf_layer(kidx, kcnt, a_hat_bf16, ego, w_gc, w_bi, bias)
        segments.append(norm)
    return proj_linear(segments, proj_w_bf16, proj_b)


# ---------------------------------------------------------------------------
# Host-side glue: padding, adjacency normalization, block-sparsity schedule,
# pure-JAX reference.
# ---------------------------------------------------------------------------
def xavier_uniform(key, shape):
    fan_in, fan_out = shape[0], shape[1]
    limit = (6.0 / (fan_in + fan_out)) ** 0.5
    return jax.random.uniform(key, shape, jnp.float32, -limit, limit)


def normalize_adj_dense(adj):
    """Dense equivalent of normalize_adj(): D^{-1/2} A^T D^{-1/2}."""
    rowsum = adj.sum(axis=1)
    d_inv_sqrt = jnp.where(rowsum > 0, rowsum ** -0.5, 0.0)
    return (adj * d_inv_sqrt[None, :]).T * d_inv_sqrt[None, :]


def block_nnz_schedule(a_pad_f32, tm, tk):
    """Per row-tile list of structurally non-empty A_hat K-blocks.

    Padded entries repeat the previous valid block index so Pallas does not
    re-DMA anything for them; the kernel skips their accumulation via pl.when.
    """
    a = np.asarray(a_pad_f32)
    n_pad = a.shape[0]
    n_row, n_k = n_pad // tm, n_pad // tk
    nz = (np.abs(a.reshape(n_row, tm, n_k, tk)).sum(axis=(1, 3)) > 0)
    counts = nz.sum(axis=1).astype(np.int32)
    max_cnt = max(int(counts.max()), 1)
    kidx = np.zeros((n_row, max_cnt), np.int32)
    for r in range(n_row):
        ks = np.nonzero(nz[r])[0].astype(np.int32)
        if ks.size == 0:
            continue                      # count 0 -> nothing accumulated
        kidx[r, :ks.size] = ks
        kidx[r, ks.size:] = ks[-1]
    return jnp.asarray(kidx), jnp.asarray(counts)


def ngcf_reference(a_hat, ego, layer_params_raw, proj_w, proj_b):
    """Pure-JAX f32 reference of the PyTorch forward (eval mode)."""
    all_emb = [ego]
    e = ego
    for (w_gc, b_gc, w_bi, b_bi) in layer_params_raw:
        side = a_hat @ e
        s = side @ w_gc + b_gc
        b = (e * side) @ w_bi + b_bi
        e = jnp.where(s + b >= 0, s + b, 0.2 * (s + b))
        nrm = jnp.sqrt(jnp.sum(e * e, axis=1, keepdims=True))
        all_emb.append(e / jnp.maximum(nrm, 1e-12))
    cat = jnp.concatenate(all_emb, axis=1)
    return cat @ proj_w.T + proj_b


if __name__ == "__main__":
    # Small synthetic configuration consistent with the module's __init__.
    n_user, n_item = 8, 8
    emb_size = 32              # input_dim
    layers = [32, 16]          # self.layers
    output_dim = 32
    N = n_user + n_item
    N_pad = _round_up(N, N_ROUND)

    key = jax.random.PRNGKey(0)
    keys = jax.random.split(key, 16)

    # Embedding dict (xavier_uniform, deterministic).
    user_emb = xavier_uniform(keys[0], (n_user, emb_size))
    item_emb = xavier_uniform(keys[1], (n_item, emb_size))
    ego_embeddings = jnp.concatenate([user_emb, item_emb], axis=0)   # (N, emb)

    # Per-layer weight dict: W_gc_k, b_gc_k, W_bi_k, b_bi_k (torch layout).
    dims = [emb_size] + layers
    layer_params_raw = []
    kidx_key = 2
    for k in range(len(layers)):
        w_gc = xavier_uniform(keys[kidx_key + 0], (dims[k], dims[k + 1]))
        b_gc = xavier_uniform(keys[kidx_key + 1], (1, dims[k + 1]))
        w_bi = xavier_uniform(keys[kidx_key + 2], (dims[k], dims[k + 1]))
        b_bi = xavier_uniform(keys[kidx_key + 3], (1, dims[k + 1]))
        layer_params_raw.append((w_gc, b_gc, w_bi, b_bi))
        kidx_key += 4

    # proj_linear: Linear(sum(layers) + emb_size, output_dim)  (torch layout).
    proj_in = sum(layers) + emb_size
    proj_w = xavier_uniform(keys[kidx_key], (output_dim, proj_in))
    proj_b = xavier_uniform(keys[kidx_key + 1], (1, output_dim))

    # Synthetic bipartite user-item adjacency, symmetrically normalized.
    r = (jax.random.uniform(keys[kidx_key + 2], (n_user, n_item)) < 0.4)
    r = r.astype(jnp.float32)
    adj = jnp.zeros((N, N), jnp.float32)
    adj = adj.at[:n_user, n_user:].set(r)
    adj = adj.at[n_user:, :n_user].set(r.T)
    a_hat = normalize_adj_dense(adj)

    # ---- Padded / fused parameter construction for the Pallas kernels ------
    a_pad = jnp.zeros((N_pad, N_pad), jnp.float32).at[:N, :N].set(a_hat)
    a_pad_bf16 = a_pad.astype(jnp.bfloat16)

    # Block-sparsity schedule (shared by all layers; same A_hat tiling).
    TM, TK = _layer_tiles(N_pad)
    kblk_idx, kblk_cnt = block_nnz_schedule(a_pad, TM, TK)

    # Embeddings: zero-pad nodes and feature lanes to 128, bf16 stream.
    ego0_bf16 = (jnp.zeros((N_pad, DP), jnp.float32)
                 .at[:N, :emb_size].set(ego_embeddings)).astype(jnp.bfloat16)

    # Per-layer padded weights; biases pre-summed (b_gc + b_bi).
    layer_params_padded = []
    for k, (w_gc, b_gc, w_bi, b_bi) in enumerate(layer_params_raw):
        d_in, d_out = dims[k], dims[k + 1]
        w_gc_p = jnp.zeros((DP, DP), jnp.float32).at[:d_in, :d_out].set(w_gc)
        w_bi_p = jnp.zeros((DP, DP), jnp.float32).at[:d_in, :d_out].set(w_bi)
        b_p = jnp.zeros((1, DP), jnp.float32).at[:, :d_out].set(b_gc + b_bi)
        layer_params_padded.append((w_gc_p, w_bi_p, b_p))

    # Projection: place W^T rows at the padded offsets of each concat segment.
    seg_widths = [emb_size] + layers
    cat_pad_w = (len(layers) + 1) * DP
    proj_w_t = proj_w.T                                    # (proj_in, out)
    proj_w_pad = jnp.zeros((cat_pad_w, DP), jnp.float32)
    src = 0
    for seg_idx, width in enumerate(seg_widths):
        dst = seg_idx * DP
        proj_w_pad = proj_w_pad.at[dst:dst + width, :output_dim].set(
            proj_w_t[src:src + width, :])
        src += width
    proj_w_bf16 = proj_w_pad.astype(jnp.bfloat16)
    proj_b_pad = jnp.zeros((1, DP), jnp.float32).at[:, :output_dim].set(proj_b)

    # ---- Run kernels -------------------------------------------------------
    out_pad = ngcf_forward(kblk_idx, kblk_cnt, a_pad_bf16, ego0_bf16,
                           tuple(layer_params_padded), proj_w_bf16, proj_b_pad)
    out_pad = jax.block_until_ready(out_pad)
    out = out_pad[:N, :output_dim]

    # ---- Checks ------------------------------------------------------------
    assert out.shape == (N, output_dim), out.shape
    assert bool(jnp.all(jnp.isfinite(out)))
    ref = ngcf_reference(a_hat, ego_embeddings, layer_params_raw,
                         proj_w, proj_b)
    assert bool(jnp.allclose(out, ref, rtol=5e-2, atol=5e-2)), (
        float(jnp.max(jnp.abs(out - ref))))
    print("KERNEL_OK")
</pallas_src>

<mosaic_0001>
module attributes {stable_mosaic.version = 11 : i64} {
  func.func @_ngcf_layer_kernel(%arg0: i32, %arg1: i32, %arg2: memref<1x1xi32, #tpu.memory_space<smem>>, %arg3: memref<1xi32, #tpu.memory_space<smem>>, %arg4: memref<512x512xbf16, #tpu.memory_space<vmem>>, %arg5: memref<512x128xbf16, #tpu.memory_space<vmem>>, %arg6: memref<128x128xf32, #tpu.memory_space<vmem>>, %arg7: memref<128x128xf32, #tpu.memory_space<vmem>>, %arg8: memref<1x128xf32, #tpu.memory_space<vmem>>, %arg9: memref<512x128xbf16, #tpu.memory_space<vmem>>, %arg10: memref<512x128xbf16, #tpu.memory_space<vmem>>, %arg11: memref<512x128xf32, #tpu.memory_space<vmem>>) attributes {dimension_semantics = [#tpu.dimension_semantics<parallel>, #tpu.dimension_semantics<arbitrary>], iteration_bounds = array<i64: 1, 1>, scalar_prefetch = 2 : i64, scratch_operands = 1 : i64, tpu.core_type = #tpu.core_type<tc>, window_params = [{transform_indices = @transform_0, window_bounds = array<i64: 512, 512>}, {pipeline_mode = #tpu.pipeline_mode<synchronous>, transform_indices = @transform_1, window_bounds = array<i64: 512, 128>}, {pipeline_mode = #tpu.pipeline_mode<synchronous>, transform_indices = @transform_2, window_bounds = array<i64: 128, 128>}, {pipeline_mode = #tpu.pipeline_mode<synchronous>, transform_indices = @transform_3, window_bounds = array<i64: 128, 128>}, {pipeline_mode = #tpu.pipeline_mode<synchronous>, transform_indices = @transform_4, window_bounds = array<i64: 1, 128>}, {transform_indices = @transform_5, window_bounds = array<i64: 512, 128>}, {transform_indices = @transform_6, window_bounds = array<i64: 512, 128>}]} {
    %c0_i32 = arith.constant 0 : i32
    %0 = arith.cmpi eq, %arg1, %c0_i32 : i32
    %1 = arith.extui %0 : i1 to i32
    %c0_i32_0 = arith.constant 0 : i32
    %2 = arith.cmpi ne, %1, %c0_i32_0 : i32
    scf.if %2 {
      %cst = arith.constant 0.000000e+00 : f32
      %11 = vector.broadcast %cst : f32 to vector<512x128xf32>
      %c0 = arith.constant 0 : index
      %c0_4 = arith.constant 0 : index
      %12 = vector.load %arg11[%c0, %c0_4] : memref<512x128xf32, #tpu.memory_space<vmem>>, vector<512x128xf32>
      tpu.vector_store %arg11[%c0, %c0_4], %11 {strides = array<i32>} : memref<512x128xf32, #tpu.memory_space<vmem>>, vector<512x128xf32>,
    } else {
    }
    %3 = arith.index_cast %arg0 : i32 to index
    %4 = memref.load %arg3[%3] : memref<1xi32, #tpu.memory_space<smem>>
    %5 = arith.cmpi slt, %arg1, %4 : i32
    %6 = arith.extui %5 : i1 to i32
    %c0_i32_1 = arith.constant 0 : i32
    %7 = arith.cmpi ne, %6, %c0_i32_1 : i32
    scf.if %7 {
      %11 = arith.index_cast %arg0 : i32 to index
      %12 = arith.index_cast %arg1 : i32 to index
      %13 = memref.load %arg2[%11, %12] : memref<1x1xi32, #tpu.memory_space<smem>>
      %c512_i32 = arith.constant 512 : i32
      %14 = arith.muli %13, %c512_i32 : i32
      %15 = tpu.assume_multiple %14, 512 : i32
      %c0 = arith.constant 0 : index
      %c0_4 = arith.constant 0 : index
      %16 = vector.load %arg11[%c0, %c0_4] : memref<512x128xf32, #tpu.memory_space<vmem>>, vector<512x128xf32>
      %c0_5 = arith.constant 0 : index
      %c0_6 = arith.constant 0 : index
      %17 = vector.load %arg4[%c0_5, %c0_6] : memref<512x512xbf16, #tpu.memory_space<vmem>>, vector<512x512xbf16>
      %18 = arith.index_cast %15 : i32 to index
      %c0_7 = arith.constant 0 : index
      %19 = vector.load %arg5[%18, %c0_7] : memref<512x128xbf16, #tpu.memory_space<vmem>>, vector<512x128xbf16>
      %cst = arith.constant dense<0.000000e+00> : vector<512x128xf32>
      %20 = tpu.matmul %17, %19, %cst {dimension_numbers = #tpu.dot_dimension_numbers<[1], [0], [0], [1], [0, 0, 1, 1], [], []>} : vector<512x512xbf16>, vector<512x128xbf16>, vector<512x128xf32> -> vector<512x128xf32>
      %21 = arith.addf %16, %20 : vector<512x128xf32>
      %c0_8 = arith.constant 0 : index
      %c0_9 = arith.constant 0 : index
      %22 = vector.load %arg11[%c0_8, %c0_9] : memref<512x128xf32, #tpu.memory_space<vmem>>, vector<512x128xf32>
      tpu.vector_store %arg11[%c0_8, %c0_9], %21 {strides = array<i32>} : memref<512x128xf32, #tpu.memory_space<vmem>>, vector<512x128xf32>,
    } else {
    }
    %c0_i32_2 = arith.constant 0 : i32
    %8 = arith.cmpi eq, %arg1, %c0_i32_2 : i32
    %9 = arith.extui %8 : i1 to i32
    %c0_i32_3 = arith.constant 0 : i32
    %10 = arith.cmpi ne, %9, %c0_i32_3 : i32
    scf.if %10 {
      %c0 = arith.constant 0 : index
      %c0_4 = arith.constant 0 : index
      %11 = vector.load %arg11[%c0, %c0_4] : memref<512x128xf32, #tpu.memory_space<vmem>>, vector<512x128xf32>
      %c512_i32 = arith.constant 512 : i32
      %12 = arith.muli %arg0, %c512_i32 : i32
      %13 = tpu.assume_multiple %12, 512 : i32
      %14 = arith.index_cast %13 : i32 to index
      %c0_5 = arith.constant 0 : index
      %15 = vector.load %arg5[%14, %c0_5] : memref<512x128xbf16, #tpu.memory_space<vmem>>, vector<512x128xbf16>
      %16 = arith.extf %15 : vector<512x128xbf16> to vector<512x128xf32>
      %c0_6 = arith.constant 0 : index
      %c0_7 = arith.constant 0 : index
      %17 = vector.load %arg6[%c0_6, %c0_7] : memref<128x128xf32, #tpu.memory_space<vmem>>, vector<128x128xf32>
      %cst = arith.constant dense<0.000000e+00> : vector<512x128xf32>
      %18 = tpu.matmul %11, %17, %cst {dimension_numbers = #tpu.dot_dimension_numbers<[1], [0], [0], [1], [0, 0, 1, 1], [], []>} : vector<512x128xf32>, vector<128x128xf32>, vector<512x128xf32> -> vector<512x128xf32>
      %19 = arith.mulf %16, %11 : vector<512x128xf32>
      %c0_8 = arith.constant 0 : index
      %c0_9 = arith.constant 0 : index
      %20 = vector.load %arg7[%c0_8, %c0_9] : memref<128x128xf32, #tpu.memory_space<vmem>>, vector<128x128xf32>
      %cst_10 = arith.constant dense<0.000000e+00> : vector<512x128xf32>
      %21 = tpu.matmul %19, %20, %cst_10 {dimension_numbers = #tpu.dot_dimension_numbers<[1], [0], [0], [1], [0, 0, 1, 1], [], []>} : vector<512x128xf32>, vector<128x128xf32>, vector<512x128xf32> -> vector<512x128xf32>
      %22 = arith.addf %18, %21 : vector<512x128xf32>
      %c0_11 = arith.constant 0 : index
      %c0_12 = arith.constant 0 : index
      %23 = vector.load %arg8[%c0_11, %c0_12] : memref<1x128xf32, #tpu.memory_space<vmem>>, vector<1x128xf32>
      %24 = vector.broadcast %23 : vector<1x128xf32> to vector<512x128xf32>
      %25 = arith.addf %22, %24 : vector<512x128xf32>
      %cst_13 = arith.constant 0.000000e+00 : f32
      %26 = vector.broadcast %cst_13 : f32 to vector<512x128xf32>
      %27 = arith.cmpf oge, %25, %26 : vector<512x128xf32>
      %cst_14 = arith.constant 2.000000e-01 : f32
      %28 = vector.broadcast %cst_14 : f32 to vector<512x128xf32>
      %29 = arith.mulf %28, %25 : vector<512x128xf32>
      %30 = arith.select %27, %25, %29 : vector<512x128xi1>, vector<512x128xf32>
      %31 = arith.truncf %30 : vector<512x128xf32> to vector<512x128xbf16>
      %c0_15 = arith.constant 0 : index
      %c0_16 = arith.constant 0 : index
      %32 = vector.load %arg9[%c0_15, %c0_16] : memref<512x128xbf16, #tpu.memory_space<vmem>>, vector<512x128xbf16>
      tpu.vector_store %arg9[%c0_15, %c0_16], %31 {strides = array<i32>} : memref<512x128xbf16, #tpu.memory_space<vmem>>, vector<512x128xbf16>,
      %33 = arith.mulf %30, %30 : vector<512x128xf32>
      %cst_17 = arith.constant dense<0.000000e+00> : vector<512xf32>
      %34 = vector.multi_reduction <add>, %33, %cst_17 [1] : vector<512x128xf32> to vector<512xf32>
      %35 = vector.shape_cast %34 : vector<512xf32> to vector<512x1xf32>
      %cst_18 = arith.constant 1.000000e-24 : f32
      %36 = vector.broadcast %cst_18 : f32 to vector<512x1xf32>
      %37 = arith.maximumf %35, %36 : vector<512x1xf32>
      %38 = math.rsqrt %37 : vector<512x1xf32>
      %39 = vector.broadcast %38 : vector<512x1xf32> to vector<512x128xf32>
      %40 = arith.mulf %30, %39 : vector<512x128xf32>
      %41 = arith.truncf %40 : vector<512x128xf32> to vector<512x128xbf16>
      %c0_19 = arith.constant 0 : index
      %c0_20 = arith.constant 0 : index
      %42 = vector.load %arg10[%c0_19, %c0_20] : memref<512x128xbf16, #tpu.memory_space<vmem>>, vector<512x128xbf16>
      tpu.vector_store %arg10[%c0_19, %c0_20], %41 {strides = array<i32>} : memref<512x128xbf16, #tpu.memory_space<vmem>>, vector<512x128xbf16>,
    } else {
    }
    return
  }
  func.func @transform_0(%arg0: i32, %arg1: i32, %arg2: memref<1x1xi32, #tpu.memory_space<smem>>, %arg3: memref<1xi32, #tpu.memory_space<smem>>) -> (i32, i32) {
    %0 = arith.index_cast %arg0 : i32 to index
    %1 = arith.index_cast %arg1 : i32 to index
    %2 = memref.load %arg2[%0, %1] : memref<1x1xi32, #tpu.memory_space<smem>>
    %c0_i32 = arith.constant 0 : i32
    return %arg0, %2 : i32, i32
  }
  func.func @transform_1(%arg0: i32, %arg1: i32, %arg2: memref<1x1xi32, #tpu.memory_space<smem>>, %arg3: memref<1xi32, #tpu.memory_space<smem>>) -> (i32, i32) {
    %c0_i32 = arith.constant 0 : i32
    %c0_i32_0 = arith.constant 0 : i32
    %c0_i32_1 = arith.constant 0 : i32
    return %c0_i32, %c0_i32_0 : i32, i32
  }
  func.func @transform_2(%arg0: i32, %arg1: i32, %arg2: memref<1x1xi32, #tpu.memory_space<smem>>, %arg3: memref<1xi32, #tpu.memory_space<smem>>) -> (i32, i32) {
    %c0_i32 = arith.constant 0 : i32
    %c0_i32_0 = arith.constant 0 : i32
    %c0_i32_1 = arith.constant 0 : i32
    return %c0_i32, %c0_i32_0 : i32, i32
  }
  func.func @transform_3(%arg0: i32, %arg1: i32, %arg2: memref<1x1xi32, #tpu.memory_space<smem>>, %arg3: memref<1xi32, #tpu.memory_space<smem>>) -> (i32, i32) {
    %c0_i32 = arith.constant 0 : i32
    %c0_i32_0 = arith.constant 0 : i32
    %c0_i32_1 = arith.constant 0 : i32
    return %c0_i32, %c0_i32_0 : i32, i32
  }
  func.func @transform_4(%arg0: i32, %arg1: i32, %arg2: memref<1x1xi32, #tpu.memory_space<smem>>, %arg3: memref<1xi32, #tpu.memory_space<smem>>) -> (i32, i32) {
    %c0_i32 = arith.constant 0 : i32
    %c0_i32_0 = arith.constant 0 : i32
    %c0_i32_1 = arith.constant 0 : i32
    return %c0_i32, %c0_i32_0 : i32, i32
  }
  func.func @transform_5(%arg0: i32, %arg1: i32, %arg2: memref<1x1xi32, #tpu.memory_space<smem>>, %arg3: memref<1xi32, #tpu.memory_space<smem>>) -> (i32, i32) {
    %c0_i32 = arith.constant 0 : i32
    %c0_i32_0 = arith.constant 0 : i32
    return %arg0, %c0_i32 : i32, i32
  }
  func.func @transform_6(%arg0: i32, %arg1: i32, %arg2: memref<1x1xi32, #tpu.memory_space<smem>>, %arg3: memref<1xi32, #tpu.memory_space<smem>>) -> (i32, i32) {
    %c0_i32 = arith.constant 0 : i32
    %c0_i32_0 = arith.constant 0 : i32
    return %arg0, %c0_i32 : i32, i32
  }
}

module attributes {stable_mosaic.version = 11 : i64} {
  func.func @_ngcf_layer_kernel(%arg0: i32, %arg1: i32, %arg2: memref<1x1xi32, #tpu.memory_space<smem>>, %arg3: memref<1xi32, #tpu.memory_space<smem>>, %arg4: memref<512x512xbf16, #tpu.memory_space<vmem>>, %arg5: memref<512x128xbf16, #tpu.memory_space<vmem>>, %arg6: memref<128x128xf32, #tpu.memory_space<vmem>>, %arg7: memref<128x128xf32, #tpu.memory_space<vmem>>, %arg8: memref<1x128xf32, #tpu.memory_space<vmem>>, %arg9: memref<512x128xbf16, #tpu.memory_space<vmem>>, %arg10: memref<512x128xbf16, #tpu.memory_space<vmem>>, %arg11: memref<512x128xf32, #tpu.memory_space<vmem>>) attributes {dimension_semantics = [#tpu.dimension_semantics<parallel>, #tpu.dimension_semantics<arbitrary>], iteration_bounds = array<i64: 1, 1>, scalar_prefetch = 2 : i64, scratch_operands = 1 : i64, tpu.core_type = #tpu.core_type<tc>, window_params = [{transform_indices = @transform_0, window_bounds = array<i64: 512, 512>}, {pipeline_mode = #tpu.pipeline_mode<synchronous>, transform_indices = @transform_1, window_bounds = array<i64: 512, 128>}, {pipeline_mode = #tpu.pipeline_mode<synchronous>, transform_indices = @transform_2, window_bounds = array<i64: 128, 128>}, {pipeline_mode = #tpu.pipeline_mode<synchronous>, transform_indices = @transform_3, window_bounds = array<i64: 128, 128>}, {pipeline_mode = #tpu.pipeline_mode<synchronous>, transform_indices = @transform_4, window_bounds = array<i64: 1, 128>}, {transform_indices = @transform_5, window_bounds = array<i64: 512, 128>}, {transform_indices = @transform_6, window_bounds = array<i64: 512, 128>}]} {
    %c0_i32 = arith.constant 0 : i32
    %0 = arith.cmpi eq, %arg1, %c0_i32 : i32
    %1 = arith.extui %0 : i1 to i32
    %c0_i32_0 = arith.constant 0 : i32
    %2 = arith.cmpi ne, %1, %c0_i32_0 : i32
    scf.if %2 {
      %cst = arith.constant 0.000000e+00 : f32
      %11 = vector.broadcast %cst : f32 to vector<512x128xf32>
      %c0 = arith.constant 0 : index
      %c0_4 = arith.constant 0 : index
      %12 = vector.load %arg11[%c0, %c0_4] : memref<512x128xf32, #tpu.memory_space<vmem>>, vector<512x128xf32>
      tpu.vector_store %arg11[%c0, %c0_4], %11 {strides = array<i32>} : memref<512x128xf32, #tpu.memory_space<vmem>>, vector<512x128xf32>,
    } else {
    }
    %3 = arith.index_cast %arg0 : i32 to index
    %4 = memref.load %arg3[%3] : memref<1xi32, #tpu.memory_space<smem>>
    %5 = arith.cmpi slt, %arg1, %4 : i32
    %6 = arith.extui %5 : i1 to i32
    %c0_i32_1 = arith.constant 0 : i32
    %7 = arith.cmpi ne, %6, %c0_i32_1 : i32
    scf.if %7 {
      %11 = arith.index_cast %arg0 : i32 to index
      %12 = arith.index_cast %arg1 : i32 to index
      %13 = memref.load %arg2[%11, %12] : memref<1x1xi32, #tpu.memory_space<smem>>
      %c512_i32 = arith.constant 512 : i32
      %14 = arith.muli %13, %c512_i32 : i32
      %15 = tpu.assume_multiple %14, 512 : i32
      %c0 = arith.constant 0 : index
      %c0_4 = arith.constant 0 : index
      %16 = vector.load %arg11[%c0, %c0_4] : memref<512x128xf32, #tpu.memory_space<vmem>>, vector<512x128xf32>
      %c0_5 = arith.constant 0 : index
      %c0_6 = arith.constant 0 : index
      %17 = vector.load %arg4[%c0_5, %c0_6] : memref<512x512xbf16, #tpu.memory_space<vmem>>, vector<512x512xbf16>
      %18 = arith.index_cast %15 : i32 to index
      %c0_7 = arith.constant 0 : index
      %19 = vector.load %arg5[%18, %c0_7] : memref<512x128xbf16, #tpu.memory_space<vmem>>, vector<512x128xbf16>
      %cst = arith.constant dense<0.000000e+00> : vector<512x128xf32>
      %20 = tpu.matmul %17, %19, %cst {dimension_numbers = #tpu.dot_dimension_numbers<[1], [0], [0], [1], [0, 0, 1, 1], [], []>} : vector<512x512xbf16>, vector<512x128xbf16>, vector<512x128xf32> -> vector<512x128xf32>
      %21 = arith.addf %16, %20 : vector<512x128xf32>
      %c0_8 = arith.constant 0 : index
      %c0_9 = arith.constant 0 : index
      %22 = vector.load %arg11[%c0_8, %c0_9] : memref<512x128xf32, #tpu.memory_space<vmem>>, vector<512x128xf32>
      tpu.vector_store %arg11[%c0_8, %c0_9], %21 {strides = array<i32>} : memref<512x128xf32, #tpu.memory_space<vmem>>, vector<512x128xf32>,
    } else {
    }
    %c0_i32_2 = arith.constant 0 : i32
    %8 = arith.cmpi eq, %arg1, %c0_i32_2 : i32
    %9 = arith.extui %8 : i1 to i32
    %c0_i32_3 = arith.constant 0 : i32
    %10 = arith.cmpi ne, %9, %c0_i32_3 : i32
    scf.if %10 {
      %c0 = arith.constant 0 : index
      %c0_4 = arith.constant 0 : index
      %11 = vector.load %arg11[%c0, %c0_4] : memref<512x128xf32, #tpu.memory_space<vmem>>, vector<512x128xf32>
      %c512_i32 = arith.constant 512 : i32
      %12 = arith.muli %arg0, %c512_i32 : i32
      %13 = tpu.assume_multiple %12, 512 : i32
      %14 = arith.index_cast %13 : i32 to index
      %c0_5 = arith.constant 0 : index
      %15 = vector.load %arg5[%14, %c0_5] : memref<512x128xbf16, #tpu.memory_space<vmem>>, vector<512x128xbf16>
      %16 = arith.extf %15 : vector<512x128xbf16> to vector<512x128xf32>
      %c0_6 = arith.constant 0 : index
      %c0_7 = arith.constant 0 : index
      %17 = vector.load %arg6[%c0_6, %c0_7] : memref<128x128xf32, #tpu.memory_space<vmem>>, vector<128x128xf32>
      %cst = arith.constant dense<0.000000e+00> : vector<512x128xf32>
      %18 = tpu.matmul %11, %17, %cst {dimension_numbers = #tpu.dot_dimension_numbers<[1], [0], [0], [1], [0, 0, 1, 1], [], []>} : vector<512x128xf32>, vector<128x128xf32>, vector<512x128xf32> -> vector<512x128xf32>
      %19 = arith.mulf %16, %11 : vector<512x128xf32>
      %c0_8 = arith.constant 0 : index
      %c0_9 = arith.constant 0 : index
      %20 = vector.load %arg7[%c0_8, %c0_9] : memref<128x128xf32, #tpu.memory_space<vmem>>, vector<128x128xf32>
      %cst_10 = arith.constant dense<0.000000e+00> : vector<512x128xf32>
      %21 = tpu.matmul %19, %20, %cst_10 {dimension_numbers = #tpu.dot_dimension_numbers<[1], [0], [0], [1], [0, 0, 1, 1], [], []>} : vector<512x128xf32>, vector<128x128xf32>, vector<512x128xf32> -> vector<512x128xf32>
      %22 = arith.addf %18, %21 : vector<512x128xf32>
      %c0_11 = arith.constant 0 : index
      %c0_12 = arith.constant 0 : index
      %23 = vector.load %arg8[%c0_11, %c0_12] : memref<1x128xf32, #tpu.memory_space<vmem>>, vector<1x128xf32>
      %24 = vector.broadcast %23 : vector<1x128xf32> to vector<512x128xf32>
      %25 = arith.addf %22, %24 : vector<512x128xf32>
      %cst_13 = arith.constant 0.000000e+00 : f32
      %26 = vector.broadcast %cst_13 : f32 to vector<512x128xf32>
      %27 = arith.cmpf oge, %25, %26 : vector<512x128xf32>
      %cst_14 = arith.constant 2.000000e-01 : f32
      %28 = vector.broadcast %cst_14 : f32 to vector<512x128xf32>
      %29 = arith.mulf %28, %25 : vector<512x128xf32>
      %30 = arith.select %27, %25, %29 : vector<512x128xi1>, vector<512x128xf32>
      %31 = arith.truncf %30 : vector<512x128xf32> to vector<512x128xbf16>
      %c0_15 = arith.constant 0 : index
      %c0_16 = arith.constant 0 : index
      %32 = vector.load %arg9[%c0_15, %c0_16] : memref<512x128xbf16, #tpu.memory_space<vmem>>, vector<512x128xbf16>
      tpu.vector_store %arg9[%c0_15, %c0_16], %31 {strides = array<i32>} : memref<512x128xbf16, #tpu.memory_space<vmem>>, vector<512x128xbf16>,
      %33 = arith.mulf %30, %30 : vector<512x128xf32>
      %cst_17 = arith.constant dense<0.000000e+00> : vector<512xf32>
      %34 = vector.multi_reduction <add>, %33, %cst_17 [1] : vector<512x128xf32> to vector<512xf32>
      %35 = vector.shape_cast %34 : vector<512xf32> to vector<512x1xf32>
      %cst_18 = arith.constant 1.000000e-24 : f32
      %36 = vector.broadcast %cst_18 : f32 to vector<512x1xf32>
      %37 = arith.maximumf %35, %36 : vector<512x1xf32>
      %38 = math.rsqrt %37 : vector<512x1xf32>
      %39 = vector.broadcast %38 : vector<512x1xf32> to vector<512x128xf32>
      %40 = arith.mulf %30, %39 : vector<512x128xf32>
      %41 = arith.truncf %40 : vector<512x128xf32> to vector<512x128xbf16>
      %c0_19 = arith.constant 0 : index
      %c0_20 = arith.constant 0 : index
      %42 = vector.load %arg10[%c0_19, %c0_20] : memref<512x128xbf16, #tpu.memory_space<vmem>>, vector<512x128xbf16>
      tpu.vector_store %arg10[%c0_19, %c0_20], %41 {strides = array<i32>} : memref<512x128xbf16, #tpu.memory_space<vmem>>, vector<512x128xbf16>,
    } else {
    }
    return
  }
  func.func @transform_0(%arg0: i32, %arg1: i32, %arg2: memref<1x1xi32, #tpu.memory_space<smem>>, %arg3: memref<1xi32, #tpu.memory_space<smem>>) -> (i32, i32) {
    %0 = arith.index_cast %arg0 : i32 to index
    %1 = arith.index_cast %arg1 : i32 to index
    %2 = memref.load %arg2[%0, %1] : memref<1x1xi32, #tpu.memory_space<smem>>
    %c0_i32 = arith.constant 0 : i32
    return %arg0, %2 : i32, i32
  }
  func.func @transform_1(%arg0: i32, %arg1: i32, %arg2: memref<1x1xi32, #tpu.memory_space<smem>>, %arg3: memref<1xi32, #tpu.memory_space<smem>>) -> (i32, i32) {
    %c0_i32 = arith.constant 0 : i32
    %c0_i32_0 = arith.constant 0 : i32
    %c0_i32_1 = arith.constant 0 : i32
    return %c0_i32, %c0_i32_0 : i32, i32
  }
  func.func @transform_2(%arg0: i32, %arg1: i32, %arg2: memref<1x1xi32, #tpu.memory_space<smem>>, %arg3: memref<1xi32, #tpu.memory_space<smem>>) -> (i32, i32) {
    %c0_i32 = arith.constant 0 : i32
    %c0_i32_0 = arith.constant 0 : i32
    %c0_i32_1 = arith.constant 0 : i32
    return %c0_i32, %c0_i32_0 : i32, i32
  }
  func.func @transform_3(%arg0: i32, %arg1: i32, %arg2: memref<1x1xi32, #tpu.memory_space<smem>>, %arg3: memref<1xi32, #tpu.memory_space<smem>>) -> (i32, i32) {
    %c0_i32 = arith.constant 0 : i32
    %c0_i32_0 = arith.constant 0 : i32
    %c0_i32_1 = arith.constant 0 : i32
    return %c0_i32, %c0_i32_0 : i32, i32
  }
  func.func @transform_4(%arg0: i32, %arg1: i32, %arg2: memref<1x1xi32, #tpu.memory_space<smem>>, %arg3: memref<1xi32, #tpu.memory_space<smem>>) -> (i32, i32) {
    %c0_i32 = arith.constant 0 : i32
    %c0_i32_0 = arith.constant 0 : i32
    %c0_i32_1 = arith.constant 0 : i32
    return %c0_i32, %c0_i32_0 : i32, i32
  }
  func.func @transform_5(%arg0: i32, %arg1: i32, %arg2: memref<1x1xi32, #tpu.memory_space<smem>>, %arg3: memref<1xi32, #tpu.memory_space<smem>>) -> (i32, i32) {
    %c0_i32 = arith.constant 0 : i32
    %c0_i32_0 = arith.constant 0 : i32
    return %arg0, %c0_i32 : i32, i32
  }
  func.func @transform_6(%arg0: i32, %arg1: i32, %arg2: memref<1x1xi32, #tpu.memory_space<smem>>, %arg3: memref<1xi32, #tpu.memory_space<smem>>) -> (i32, i32) {
    %c0_i32 = arith.constant 0 : i32
    %c0_i32_0 = arith.constant 0 : i32
    return %arg0, %c0_i32 : i32, i32
  }
}

module attributes {stable_mosaic.version = 11 : i64} {
  func.func @_proj_kernel(%arg0: i32, %arg1: memref<512x128xbf16, #tpu.memory_space<vmem>>, %arg2: memref<512x128xbf16, #tpu.memory_space<vmem>>, %arg3: memref<512x128xbf16, #tpu.memory_space<vmem>>, %arg4: memref<384x128xbf16, #tpu.memory_space<vmem>>, %arg5: memref<1x128xf32, #tpu.memory_space<vmem>>, %arg6: memref<512x128xf32, #tpu.memory_space<vmem>>) attributes {dimension_semantics = [#tpu.dimension_semantics<parallel>], iteration_bounds = array<i64: 1>, scalar_prefetch = 0 : i64, scratch_operands = 0 : i64, tpu.core_type = #tpu.core_type<tc>, window_params = [{transform_indices = @transform_0, window_bounds = array<i64: 512, 128>}, {transform_indices = @transform_1, window_bounds = array<i64: 512, 128>}, {transform_indices = @transform_2, window_bounds = array<i64: 512, 128>}, {pipeline_mode = #tpu.pipeline_mode<synchronous>, transform_indices = @transform_3, window_bounds = array<i64: 384, 128>}, {pipeline_mode = #tpu.pipeline_mode<synchronous>, transform_indices = @transform_4, window_bounds = array<i64: 1, 128>}, {transform_indices = @transform_5, window_bounds = array<i64: 512, 128>}]} {
    %cst = arith.constant 0.000000e+00 : f32
    %0 = vector.broadcast %cst : f32 to vector<512x128xf32>
    %c0 = arith.constant 0 : index
    %c0_0 = arith.constant 0 : index
    %1 = vector.load %arg1[%c0, %c0_0] : memref<512x128xbf16, #tpu.memory_space<vmem>>, vector<512x128xbf16>
    %c0_1 = arith.constant 0 : index
    %c0_2 = arith.constant 0 : index
    %2 = vector.load %arg4[%c0_1, %c0_2] : memref<384x128xbf16, #tpu.memory_space<vmem>>, vector<128x128xbf16>
    %cst_3 = arith.constant dense<0.000000e+00> : vector<512x128xf32>
    %3 = tpu.matmul %1, %2, %cst_3 {dimension_numbers = #tpu.dot_dimension_numbers<[1], [0], [0], [1], [0, 0, 1, 1], [], []>} : vector<512x128xbf16>, vector<128x128xbf16>, vector<512x128xf32> -> vector<512x128xf32>
    %4 = arith.addf %0, %3 : vector<512x128xf32>
    %c0_4 = arith.constant 0 : index
    %c0_5 = arith.constant 0 : index
    %5 = vector.load %arg2[%c0_4, %c0_5] : memref<512x128xbf16, #tpu.memory_space<vmem>>, vector<512x128xbf16>
    %c128 = arith.constant 128 : index
    %c0_6 = arith.constant 0 : index
    %6 = vector.load %arg4[%c128, %c0_6] : memref<384x128xbf16, #tpu.memory_space<vmem>>, vector<128x128xbf16>
    %cst_7 = arith.constant dense<0.000000e+00> : vector<512x128xf32>
    %7 = tpu.matmul %5, %6, %cst_7 {dimension_numbers = #tpu.dot_dimension_numbers<[1], [0], [0], [1], [0, 0, 1, 1], [], []>} : vector<512x128xbf16>, vector<128x128xbf16>, vector<512x128xf32> -> vector<512x128xf32>
    %8 = arith.addf %4, %7 : vector<512x128xf32>
    %c0_8 = arith.constant 0 : index
    %c0_9 = arith.constant 0 : index
    %9 = vector.load %arg3[%c0_8, %c0_9] : memref<512x128xbf16, #tpu.memory_space<vmem>>, vector<512x128xbf16>
    %c256 = arith.constant 256 : index
    %c0_10 = arith.constant 0 : index
    %10 = vector.load %arg4[%c256, %c0_10] : memref<384x128xbf16, #tpu.memory_space<vmem>>, vector<128x128xbf16>
    %cst_11 = arith.constant dense<0.000000e+00> : vector<512x128xf32>
    %11 = tpu.matmul %9, %10, %cst_11 {dimension_numbers = #tpu.dot_dimension_numbers<[1], [0], [0], [1], [0, 0, 1, 1], [], []>} : vector<512x128xbf16>, vector<128x128xbf16>, vector<512x128xf32> -> vector<512x128xf32>
    %12 = arith.addf %8, %11 : vector<512x128xf32>
    %c0_12 = arith.constant 0 : index
    %c0_13 = arith.constant 0 : index
    %13 = vector.load %arg5[%c0_12, %c0_13] : memref<1x128xf32, #tpu.memory_space<vmem>>, vector<1x128xf32>
    %14 = vector.broadcast %13 : vector<1x128xf32> to vector<512x128xf32>
    %15 = arith.addf %12, %14 : vector<512x128xf32>
    %c0_14 = arith.constant 0 : index
    %c0_15 = arith.constant 0 : index
    %16 = vector.load %arg6[%c0_14, %c0_15] : memref<512x128xf32, #tpu.memory_space<vmem>>, vector<512x128xf32>
    tpu.vector_store %arg6[%c0_14, %c0_15], %15 {strides = array<i32>} : memref<512x128xf32, #tpu.memory_space<vmem>>, vector<512x128xf32>,
    return
  }
  func.func @transform_0(%arg0: i32) -> (i32, i32) {
    %c0_i32 = arith.constant 0 : i32
    %c0_i32_0 = arith.constant 0 : i32
    return %arg0, %c0_i32 : i32, i32
  }
  func.func @transform_1(%arg0: i32) -> (i32, i32) {
    %c0_i32 = arith.constant 0 : i32
    %c0_i32_0 = arith.constant 0 : i32
    return %arg0, %c0_i32 : i32, i32
  }
  func.func @transform_2(%arg0: i32) -> (i32, i32) {
    %c0_i32 = arith.constant 0 : i32
    %c0_i32_0 = arith.constant 0 : i32
    return %arg0, %c0_i32 : i32, i32
  }
  func.func @transform_3(%arg0: i32) -> (i32, i32) {
    %c0_i32 = arith.constant 0 : i32
    %c0_i32_0 = arith.constant 0 : i32
    %c0_i32_1 = arith.constant 0 : i32
    return %c0_i32, %c0_i32_0 : i32, i32
  }
  func.func @transform_4(%arg0: i32) -> (i32, i32) {
    %c0_i32 = arith.constant 0 : i32
    %c0_i32_0 = arith.constant 0 : i32
    %c0_i32_1 = arith.constant 0 : i32
    return %c0_i32, %c0_i32_0 : i32, i32
  }
  func.func @transform_5(%arg0: i32) -> (i32, i32) {
    %c0_i32 = arith.constant 0 : i32
    %c0_i32_0 = arith.constant 0 : i32
    return %arg0, %c0_i32 : i32, i32
  }
}

</mosaic_0001>

<llo_original>
// kernel: ngcf_forward.5
$region0: #{ngcf_forward.5}
  #allocation0 [shape = 'u32[]', space=smem, size = 0x4, offset = 0x4, fixed_abs, tag = 'smem constant byte address 0x4 - core index']
  #allocation1 [shape = 'u32[144,128]{1,0:T(1,128)}', space=vmem, size = 0x12000, scoped, tag = 'internal scratch']
  %s0 = inlined_call_operand.vmem [shape: bf16[512,128], index: 0, kind: input, shape index: {}]
  %s1 = inlined_call_operand.vmem [shape: bf16[512,128], index: 1, kind: input, shape index: {}]
  %s2 = inlined_call_operand.vmem [shape: bf16[512,128], index: 2, kind: input, shape index: {}]
  %s3 = inlined_call_operand.vmem [shape: bf16[384,128], index: 3, kind: input, shape index: {}]
  %s4 = inlined_call_operand.vmem [shape: f32[1,128], index: 4, kind: input, shape index: {}]
  %s5 = inlined_call_operand.hbm [shape: f32[512,128], index: 5, kind: output, shape index: {}]
  %s6 = sld [smem:[#allocation0]]
  $region30: #{ngcf_forward.5} parent=0
    _
  %s8 = ssub.s32 1, %s6
  %s9 = scalar_select 0, %s8, %s6
  $region1: #{ngcf_forward.5} parent=0
    #allocation2 [shape = 'u8[262144]{0}', space=vmem, size = 0x40000, scoped, tag = 'output window, operand 0, single buffered']
    #allocation3 [shape = 's32[1]{0}', space=sflag, size = 0x4, scoped, tag = 'scoped memory for ngcf_forward.5']
    %10 = vsyncpa [#allocation3], 0
    // Predicated region
    $region2: #{ngcf_forward.5} parent=1 // pred_check
      _
    $region3: #{ngcf_forward.5} parent=1 // pred_check_branch
      %12 = sbr.rel (0) target = $region5
    $region4: #{ngcf_forward.5} parent=1 // pred_region
      _
    $region5: #{ngcf_forward.5} parent=1 // pred_fallthru
      _
    // Predicated region
    $region6: #{ngcf_forward.5} parent=1 // pred_check
      _
    $region7: #{ngcf_forward.5} parent=1 // pred_check_branch
      %14 = sbr.rel (0) target = $region9
    $region8: #{ngcf_forward.5} parent=1 // pred_region
      _
    $region9: #{ngcf_forward.5} parent=1 // pred_fallthru
      _
    // Predicated region
    $region10: #{ngcf_forward.5} parent=1 // pred_check
      _
    $region11: #{ngcf_forward.5} parent=1 // pred_check_branch
      %16 = sbr.rel (0) target = $region13
    $region12: #{ngcf_forward.5} parent=1 // pred_region
      _
    $region13: #{ngcf_forward.5} parent=1 // pred_fallthru
      _
    // Predicated region
    $region14: #{ngcf_forward.5} parent=1 // pred_check
      _
    $region15: #{ngcf_forward.5} parent=1 // pred_check_branch
      %18 = sbr.rel (0) target = $region17
    $region16: #{ngcf_forward.5} parent=1 // pred_region
      _
    $region17: #{ngcf_forward.5} parent=1 // pred_fallthru
      _
    // Predicated region
    $region18: #{ngcf_forward.5} parent=1 // pred_check
      _
    $region19: #{ngcf_forward.5} parent=1 // pred_check_branch
      %20 = sbr.rel (0) target = $region21
    $region20: #{ngcf_forward.5} parent=1 // pred_region
      _
    $region21: #{ngcf_forward.5} parent=1 // pred_fallthru
      _
    %v22 = vld [vmem:[%s0] sm:$0xf]
    %v23 = vld [vmem:[%s0 + $0x4] sm:$0xf]
    %v24 = vld [vmem:[%s0 + $0x8] sm:$0xf]
    %v25 = vld [vmem:[%s0 + $0xc] sm:$0xf]
    %v26 = vld [vmem:[%s0 + $0x10] sm:$0xf]
    %v27 = vld [vmem:[%s0 + $0x14] sm:$0xf]
    %v28 = vld [vmem:[%s0 + $0x18] sm:$0xf]
    %v29 = vld [vmem:[%s0 + $0x1c] sm:$0xf]
    %v30 = vld [vmem:[%s0 + $0x20] sm:$0xf]
    %v31 = vld [vmem:[%s0 + $0x24] sm:$0xf]
    %v32 = vld [vmem:[%s0 + $0x28] sm:$0xf]
    %v33 = vld [vmem:[%s0 + $0x2c] sm:$0xf]
    %v34 = vld [vmem:[%s0 + $0x30] sm:$0xf]
    %v35 = vld [vmem:[%s0 + $0x34] sm:$0xf]
    %v36 = vld [vmem:[%s0 + $0x38] sm:$0xf]
    %v37 = vld [vmem:[%s0 + $0x3c] sm:$0xf]
    %v38 = vld [vmem:[%s0 + $0x40] sm:$0xf]
    %v39 = vld [vmem:[%s0 + $0x44] sm:$0xf]
    %v40 = vld [vmem:[%s0 + $0x48] sm:$0xf]
    %v41 = vld [vmem:[%s0 + $0x4c] sm:$0xf]
    %v42 = vld [vmem:[%s0 + $0x50] sm:$0xf]
    %v43 = vld [vmem:[%s0 + $0x54] sm:$0xf]
    %v44 = vld [vmem:[%s0 + $0x58] sm:$0xf]
    %v45 = vld [vmem:[%s0 + $0x5c] sm:$0xf]
    %v46 = vld [vmem:[%s0 + $0x60] sm:$0xf]
    %v47 = vld [vmem:[%s0 + $0x64] sm:$0xf]
    %v48 = vld [vmem:[%s0 + $0x68] sm:$0xf]
    %v49 = vld [vmem:[%s0 + $0x6c] sm:$0xf]
    %v50 = vld [vmem:[%s0 + $0x70] sm:$0xf]
    %v51 = vld [vmem:[%s0 + $0x74] sm:$0xf]
    %v52 = vld [vmem:[%s0 + $0x78] sm:$0xf]
    %v53 = vld [vmem:[%s0 + $0x7c] sm:$0xf]
    %v54 = vld [vmem:[%s0 + $0x80] sm:$0xf]
    %v55 = vld [vmem:[%s0 + $0x84] sm:$0xf]
    %v56 = vld [vmem:[%s0 + $0x88] sm:$0xf]
    %v57 = vld [vmem:[%s0 + $0x8c] sm:$0xf]
    %v58 = vld [vmem:[%s0 + $0x90] sm:$0xf]
    %v59 = vld [vmem:[%s0 + $0x94] sm:$0xf]
    %v60 = vld [vmem:[%s0 + $0x98] sm:$0xf]
    %v61 = vld [vmem:[%s0 + $0x9c] sm:$0xf]
    %v62 = vld [vmem:[%s0 + $0xa0] sm:$0xf]
    %v63 = vld [vmem:[%s0 + $0xa4] sm:$0xf]
    %v64 = vld [vmem:[%s0 + $0xa8] sm:$0xf]
    %v65 = vld [vmem:[%s0 + $0xac] sm:$0xf]
    %v66 = vld [vmem:[%s0 + $0xb0] sm:$0xf]
    %v67 = vld [vmem:[%s0 + $0xb4] sm:$0xf]
    %v68 = vld [vmem:[%s0 + $0xb8] sm:$0xf]
    %v69 = vld [vmem:[%s0 + $0xbc] sm:$0xf]
    %v70 = vld [vmem:[%s0 + $0xc0] sm:$0xf]
    %v71 = vld [vmem:[%s0 + $0xc4] sm:$0xf]
    %v72 = vld [vmem:[%s0 + $0xc8] sm:$0xf]
    %v73 = vld [vmem:[%s0 + $0xcc] sm:$0xf]
    %v74 = vld [vmem:[%s0 + $0xd0] sm:$0xf]
    %v75 = vld [vmem:[%s0 + $0xd4] sm:$0xf]
    %v76 = vld [vmem:[%s0 + $0xd8] sm:$0xf]
    %v77 = vld [vmem:[%s0 + $0xdc] sm:$0xf]
    %v78 = vld [vmem:[%s0 + $0xe0] sm:$0xf]
    %v79 = vld [vmem:[%s0 + $0xe4] sm:$0xf]
    %v80 = vld [vmem:[%s0 + $0xe8] sm:$0xf]
    %v81 = vld [vmem:[%s0 + $0xec] sm:$0xf]
    %v82 = vld [vmem:[%s0 + $0xf0] sm:$0xf]
    %v83 = vld [vmem:[%s0 + $0xf4] sm:$0xf]
    %v84 = vld [vmem:[%s0 + $0xf8] sm:$0xf]
    %v85 = vld [vmem:[%s0 + $0xfc] sm:$0xf]
    %v86 = vld [vmem:[%s3] sm:$0xf]
    %v87 = vld [vmem:[%s3 + $0x4] sm:$0xf]
    %v88 = vld [vmem:[%s3 + $0x8] sm:$0xf]
    %v89 = vld [vmem:[%s3 + $0xc] sm:$0xf]
    %v90 = vld [vmem:[%s3 + $0x10] sm:$0xf]
    %v91 = vld [vmem:[%s3 + $0x14] sm:$0xf]
    %v92 = vld [vmem:[%s3 + $0x18] sm:$0xf]
    %v93 = vld [vmem:[%s3 + $0x1c] sm:$0xf]
    %v94 = vld [vmem:[%s3 + $0x20] sm:$0xf]
    %v95 = vld [vmem:[%s3 + $0x24] sm:$0xf]
    %v96 = vld [vmem:[%s3 + $0x28] sm:$0xf]
    %v97 = vld [vmem:[%s3 + $0x2c] sm:$0xf]
    %v98 = vld [vmem:[%s3 + $0x30] sm:$0xf]
    %v99 = vld [vmem:[%s3 + $0x34] sm:$0xf]
    %v100 = vld [vmem:[%s3 + $0x38] sm:$0xf]
    %v101 = vld [vmem:[%s3 + $0x3c] sm:$0xf]
    %v102 = vld [vmem:[%s1] sm:$0xf]
    %v103 = vld [vmem:[%s1 + $0x4] sm:$0xf]
    %v104 = vld [vmem:[%s1 + $0x8] sm:$0xf]
    %v105 = vld [vmem:[%s1 + $0xc] sm:$0xf]
    %v106 = vld [vmem:[%s1 + $0x10] sm:$0xf]
    %v107 = vld [vmem:[%s1 + $0x14] sm:$0xf]
    %v108 = vld [vmem:[%s1 + $0x18] sm:$0xf]
    %v109 = vld [vmem:[%s1 + $0x1c] sm:$0xf]
    %v110 = vld [vmem:[%s1 + $0x20] sm:$0xf]
    %v111 = vld [vmem:[%s1 + $0x24] sm:$0xf]
    %v112 = vld [vmem:[%s1 + $0x28] sm:$0xf]
    %v113 = vld [vmem:[%s1 + $0x2c] sm:$0xf]
    %v114 = vld [vmem:[%s1 + $0x30] sm:$0xf]
    %v115 = vld [vmem:[%s1 + $0x34] sm:$0xf]
    %v116 = vld [vmem:[%s1 + $0x38] sm:$0xf]
    %v117 = vld [vmem:[%s1 + $0x3c] sm:$0xf]
    %v118 = vld [vmem:[%s1 + $0x40] sm:$0xf]
    %v119 = vld [vmem:[%s1 + $0x44] sm:$0xf]
    %v120 = vld [vmem:[%s1 + $0x48] sm:$0xf]
    %v121 = vld [vmem:[%s1 + $0x4c] sm:$0xf]
    %v122 = vld [vmem:[%s1 + $0x50] sm:$0xf]
    %v123 = vld [vmem:[%s1 + $0x54] sm:$0xf]
    %v124 = vld [vmem:[%s1 + $0x58] sm:$0xf]
    %v125 = vld [vmem:[%s1 + $0x5c] sm:$0xf]
    %v126 = vld [vmem:[%s1 + $0x60] sm:$0xf]
    %v127 = vld [vmem:[%s1 + $0x64] sm:$0xf]
    %v128 = vld [vmem:[%s1 + $0x68] sm:$0xf]
    %v129 = vld [vmem:[%s1 + $0x6c] sm:$0xf]
    %v130 = vld [vmem:[%s1 + $0x70] sm:$0xf]
    %v131 = vld [vmem:[%s1 + $0x74] sm:$0xf]
    %v132 = vld [vmem:[%s1 + $0x78] sm:$0xf]
    %v133 = vld [vmem:[%s1 + $0x7c] sm:$0xf]
    %v134 = vld [vmem:[%s1 + $0x80] sm:$0xf]
    %v135 = vld [vmem:[%s1 + $0x84] sm:$0xf]
    %v136 = vld [vmem:[%s1 + $0x88] sm:$0xf]
    %v137 = vld [vmem:[%s1 + $0x8c] sm:$0xf]
    %v138 = vld [vmem:[%s1 + $0x90] sm:$0xf]
    %v139 = vld [vmem:[%s1 + $0x94] sm:$0xf]
    %v140 = vld [vmem:[%s1 + $0x98] sm:$0xf]
    %v141 = vld [vmem:[%s1 + $0x9c] sm:$0xf]
    %v142 = vld [vmem:[%s1 + $0xa0] sm:$0xf]
    %v143 = vld [vmem:[%s1 + $0xa4] sm:$0xf]
    %v144 = vld [vmem:[%s1 + $0xa8] sm:$0xf]
    %v145 = vld [vmem:[%s1 + $0xac] sm:$0xf]
    %v146 = vld [vmem:[%s1 + $0xb0] sm:$0xf]
    %v147 = vld [vmem:[%s1 + $0xb4] sm:$0xf]
    %v148 = vld [vmem:[%s1 + $0xb8] sm:$0xf]
    %v149 = vld [vmem:[%s1 + $0xbc] sm:$0xf]
    %v150 = vld [vmem:[%s1 + $0xc0] sm:$0xf]
    %v151 = vld [vmem:[%s1 + $0xc4] sm:$0xf]
    %v152 = vld [vmem:[%s1 + $0xc8] sm:$0xf]
    %v153 = vld [vmem:[%s1 + $0xcc] sm:$0xf]
    %v154 = vld [vmem:[%s1 + $0xd0] sm:$0xf]
    %v155 = vld [vmem:[%s1 + $0xd4] sm:$0xf]
    %v156 = vld [vmem:[%s1 + $0xd8] sm:$0xf]
    %v157 = vld [vmem:[%s1 + $0xdc] sm:$0xf]
    %v158 = vld [vmem:[%s1 + $0xe0] sm:$0xf]
    %v159 = vld [vmem:[%s1 + $0xe4] sm:$0xf]
    %v160 = vld [vmem:[%s1 + $0xe8] sm:$0xf]
    %v161 = vld [vmem:[%s1 + $0xec] sm:$0xf]
    %v162 = vld [vmem:[%s1 + $0xf0] sm:$0xf]
    %v163 = vld [vmem:[%s1 + $0xf4] sm:$0xf]
    %v164 = vld [vmem:[%s1 + $0xf8] sm:$0xf]
    %v165 = vld [vmem:[%s1 + $0xfc] sm:$0xf]
    %v166 = vld [vmem:[%s3 + $0x40] sm:$0xf]
    %v167 = vld [vmem:[%s3 + $0x44] sm:$0xf]
    %v168 = vld [vmem:[%s3 + $0x48] sm:$0xf]
    %v169 = vld [vmem:[%s3 + $0x4c] sm:$0xf]
    %v170 = vld [vmem:[%s3 + $0x50] sm:$0xf]
    %v171 = vld [vmem:[%s3 + $0x54] sm:$0xf]
    %v172 = vld [vmem:[%s3 + $0x58] sm:$0xf]
    %v173 = vld [vmem:[%s3 + $0x5c] sm:$0xf]
    %v174 = vld [vmem:[%s3 + $0x60] sm:$0xf]
    %v175 = vld [vmem:[%s3 + $0x64] sm:$0xf]
    %v176 = vld [vmem:[%s3 + $0x68] sm:$0xf]
    %v177 = vld [vmem:[%s3 + $0x6c] sm:$0xf]
    %v178 = vld [vmem:[%s3 + $0x70] sm:$0xf]
    %v179 = vld [vmem:[%s3 + $0x74] sm:$0xf]
    %v180 = vld [vmem:[%s3 + $0x78] sm:$0xf]
    %v181 = vld [vmem:[%s3 + $0x7c] sm:$0xf]
    %v246 = vunpack.c.l.b16 %v102
    %v247 = vunpack.c.l.b16 %v103
    %v248 = vunpack.c.l.b16 %v104
    %v249 = vunpack.c.l.b16 %v105
    %v250 = vunpack.c.l.b16 %v106
    %v251 = vunpack.c.l.b16 %v107
    %v252 = vunpack.c.l.b16 %v108
    %v253 = vunpack.c.l.b16 %v109
    %v254 = vunpack.c.l.b16 %v110
    %v255 = vunpack.c.l.b16 %v111
    %v256 = vunpack.c.l.b16 %v112
    %v257 = vunpack.c.l.b16 %v113
    %v258 = vunpack.c.l.b16 %v114
    %v259 = vunpack.c.l.b16 %v115
    %v260 = vunpack.c.l.b16 %v116
    %v261 = vunpack.c.l.b16 %v117
    %v262 = vunpack.c.l.b16 %v118
    %v263 = vunpack.c.l.b16 %v119
    %v264 = vunpack.c.l.b16 %v120
    %v265 = vunpack.c.l.b16 %v121
    %v266 = vunpack.c.l.b16 %v122
    %v267 = vunpack.c.l.b16 %v123
    %v268 = vunpack.c.l.b16 %v124
    %v269 = vunpack.c.l.b16 %v125
    %v270 = vunpack.c.l.b16 %v126
    %v271 = vunpack.c.l.b16 %v127
    %v272 = vunpack.c.l.b16 %v128
    %v273 = vunpack.c.l.b16 %v129
    %v274 = vunpack.c.l.b16 %v130
    %v275 = vunpack.c.l.b16 %v131
    %v276 = vunpack.c.l.b16 %v132
    %v277 = vunpack.c.l.b16 %v133
    %v278 = vunpack.c.l.b16 %v134
    %v279 = vunpack.c.l.b16 %v135
    %v280 = vunpack.c.l.b16 %v136
    %v281 = vunpack.c.l.b16 %v137
    %v282 = vunpack.c.l.b16 %v138
    %v283 = vunpack.c.l.b16 %v139
    %v284 = vunpack.c.l.b16 %v140
    %v285 = vunpack.c.l.b16 %v141
    %v286 = vunpack.c.l.b16 %v142
    %v287 = vunpack.c.l.b16 %v143
    %v288 = vunpack.c.l.b16 %v144
    %v289 = vunpack.c.l.b16 %v145
    %v290 = vunpack.c.l.b16 %v146
    %v291 = vunpack.c.l.b16 %v147
    %v292 = vunpack.c.l.b16 %v148
    %v293 = vunpack.c.l.b16 %v149
    %v294 = vunpack.c.l.b16 %v150
    %v295 = vunpack.c.l.b16 %v151
    %v296 = vunpack.c.l.b16 %v152
    %v297 = vunpack.c.l.b16 %v153
    %v298 = vunpack.c.l.b16 %v154
    %v299 = vunpack.c.l.b16 %v155
    %v300 = vunpack.c.l.b16 %v156
    %v301 = vunpack.c.l.b16 %v157
    %v302 = vunpack.c.l.b16 %v158
    %v303 = vunpack.c.l.b16 %v159
    %v304 = vunpack.c.l.b16 %v160
    %v305 = vunpack.c.l.b16 %v161
    %v306 = vunpack.c.l.b16 %v162
    %v307 = vunpack.c.l.b16 %v163
    %v308 = vunpack.c.l.b16 %v164
    %v309 = vunpack.c.l.b16 %v165
    %v310 = vpack.c.b16 %v247, %v246
    %v311 = vpack.c.b16 %v249, %v248
    %v312 = vpack.c.b16 %v251, %v250
    %v313 = vpack.c.b16 %v253, %v252
    %v314 = vpack.c.b16 %v255, %v254
    %v315 = vpack.c.b16 %v257, %v256
    %v316 = vpack.c.b16 %v259, %v258
    %v317 = vpack.c.b16 %v261, %v260
    %v318 = vpack.c.b16 %v263, %v262
    %v319 = vpack.c.b16 %v265, %v264
    %v320 = vpack.c.b16 %v267, %v266
    %v321 = vpack.c.b16 %v269, %v268
    %v322 = vpack.c.b16 %v271, %v270
    %v323 = vpack.c.b16 %v273, %v272
    %v324 = vpack.c.b16 %v275, %v274
    %v325 = vpack.c.b16 %v277, %v276
    %v326 = vpack.c.b16 %v279, %v278
    %v327 = vpack.c.b16 %v281, %v280
    %v328 = vpack.c.b16 %v283, %v282
    %v329 = vpack.c.b16 %v285, %v284
    %v330 = vpack.c.b16 %v287, %v286
    %v331 = vpack.c.b16 %v289, %v288
    %v332 = vpack.c.b16 %v291, %v290
    %v333 = vpack.c.b16 %v293, %v292
    %v334 = vpack.c.b16 %v295, %v294
    %v335 = vpack.c.b16 %v297, %v296
    %v336 = vpack.c.b16 %v299, %v298
    %v337 = vpack.c.b16 %v301, %v300
    %v338 = vpack.c.b16 %v303, %v302
    %v339 = vpack.c.b16 %v305, %v304
    %v340 = vpack.c.b16 %v307, %v306
    %v341 = vpack.c.b16 %v309, %v308
    %v390 = vunpack.c.l.b16 %v166
    %v391 = vunpack.c.l.b16 %v167
    %v392 = vunpack.c.l.b16 %v168
    %v393 = vunpack.c.l.b16 %v169
    %v394 = vunpack.c.l.b16 %v170
    %v395 = vunpack.c.l.b16 %v171
    %v396 = vunpack.c.l.b16 %v172
    %v397 = vunpack.c.l.b16 %v173
    %v398 = vunpack.c.l.b16 %v174
    %v399 = vunpack.c.l.b16 %v175
    %v400 = vunpack.c.l.b16 %v176
    %v401 = vunpack.c.l.b16 %v177
    %v402 = vunpack.c.l.b16 %v178
    %v403 = vunpack.c.l.b16 %v179
    %v404 = vunpack.c.l.b16 %v180
    %v405 = vunpack.c.l.b16 %v181
    %v406 = vpack.c.b16 %v391, %v390
    %v407 = vpack.c.b16 %v393, %v392
    %v408 = vpack.c.b16 %v395, %v394
    %v409 = vpack.c.b16 %v397, %v396
    %v410 = vpack.c.b16 %v399, %v398
    %v411 = vpack.c.b16 %v401, %v400
    %v412 = vpack.c.b16 %v403, %v402
    %v413 = vpack.c.b16 %v405, %v404
    %422 = vmatprep.subr.bf16.mxu0 0
    %423 = vmatpush1.bf16.msra.mxu0 %v413
    %424 = vmatprep.subr.bf16.mxu0 0
    %425 = vmatpush1.bf16.msra.mxu0 %v412
    %426 = vmatprep.subr.bf16.mxu0 0
    %427 = vmatpush1.bf16.msra.mxu0 %v411
    %428 = vmatprep.subr.bf16.mxu0 0
    %429 = vmatpush1.bf16.msra.mxu0 %v410
    %430 = vmatprep.subr.bf16.mxu0 0
    %431 = vmatpush1.bf16.msra.mxu0 %v409
    %432 = vmatprep.subr.bf16.mxu0 0
    %433 = vmatpush1.bf16.msra.mxu0 %v408
    %434 = vmatprep.subr.bf16.mxu0 0
    %435 = vmatpush1.bf16.msra.mxu0 %v407
    %436 = vmatprep.subr.bf16.mxu0 0
    %437 = vmatpush1.bf16.msra.mxu0 %v406
    %438 = vmatprep.subr.bf16.mxu0 0
    %439 = vmatpush2.bf16.msra.mxu0 0
    %440 = vmatprep.subr.bf16.mxu0 0
    %441 = vmatpush2.bf16.msra.mxu0 0
    %442 = vmatprep.subr.bf16.mxu0 0
    %443 = vmatpush2.bf16.msra.mxu0 0
    %444 = vmatprep.subr.bf16.mxu0 0
    %445 = vmatpush2.bf16.msra.mxu0 0
    %446 = vmatprep.subr.bf16.mxu0 0
    %447 = vmatpush2.bf16.msra.mxu0 0
    %448 = vmatprep.subr.bf16.mxu0 0
    %449 = vmatpush2.bf16.msra.mxu0 0
    %450 = vmatprep.subr.bf16.mxu0 0
    %451 = vmatpush2.bf16.msra.mxu0 0
    %452 = vmatprep.subr.bf16.mxu0 0
    %453 = vmatpush2.bf16.msra.mxu0 0
    %454 = vmatprep.mubr.bf16.mxu0 0
    %455 = vmatmul.mubr.bf16.gmra.mxu0 %v310
    %v456 = vpop.f32.mrf.mxu0
    %v457 = vadd.f32 0.0, %v456
    %v458 = vpop.f32.mrf.mxu0
    %v459 = vpop.f32.mrf.mxu0
    %v460 = vadd.f32 0.0, %v459
    %v461 = vpop.f32.mrf.mxu0
    %462 = vmatprep.mubr.bf16.mxu0 0
    %463 = vmatmul.mubr.bf16.gmra.mxu0 %v311
    %v464 = vpop.f32.mrf.mxu0
    %v465 = vadd.f32 0.0, %v464
    %v466 = vpop.f32.mrf.mxu0
    %v467 = vpop.f32.mrf.mxu0
    %v468 = vadd.f32 0.0, %v467
    %v469 = vpop.f32.mrf.mxu0
    %470 = vmatprep.mubr.bf16.mxu0 0
    %471 = vmatmul.mubr.bf16.gmra.mxu0 %v312
    %v472 = vpop.f32.mrf.mxu0
    %v473 = vadd.f32 0.0, %v472
    %v474 = vpop.f32.mrf.mxu0
    %v475 = vpop.f32.mrf.mxu0
    %v476 = vadd.f32 0.0, %v475
    %v477 = vpop.f32.mrf.mxu0
    %478 = vmatprep.mubr.bf16.mxu0 0
    %479 = vmatmul.mubr.bf16.gmra.mxu0 %v313
    %v480 = vpop.f32.mrf.mxu0
    %v481 = vadd.f32 0.0, %v480
    %v482 = vpop.f32.mrf.mxu0
    %v483 = vpop.f32.mrf.mxu0
    %v484 = vadd.f32 0.0, %v483
    %v485 = vpop.f32.mrf.mxu0
    %486 = vmatprep.mubr.bf16.mxu0 0
    %487 = vmatmul.mubr.bf16.gmra.mxu0 %v314
    %v488 = vpop.f32.mrf.mxu0
    %v489 = vadd.f32 0.0, %v488
    %v490 = vpop.f32.mrf.mxu0
    %v491 = vpop.f32.mrf.mxu0
    %v492 = vadd.f32 0.0, %v491
    %v493 = vpop.f32.mrf.mxu0
    %494 = vmatprep.mubr.bf16.mxu0 0
    %495 = vmatmul.mubr.bf16.gmra.mxu0 %v315
    %v496 = vpop.f32.mrf.mxu0
    %v497 = vadd.f32 0.0, %v496
    %v498 = vpop.f32.mrf.mxu0
    %v499 = vpop.f32.mrf.mxu0
    %v500 = vadd.f32 0.0, %v499
    %v501 = vpop.f32.mrf.mxu0
    %502 = vmatprep.mubr.bf16.mxu0 0
    %503 = vmatmul.mubr.bf16.gmra.mxu0 %v316
    %v504 = vpop.f32.mrf.mxu0
    %v505 = vadd.f32 0.0, %v504
    %v506 = vpop.f32.mrf.mxu0
    %v507 = vpop.f32.mrf.mxu0
    %v508 = vadd.f32 0.0, %v507
    %v509 = vpop.f32.mrf.mxu0
    %510 = vmatprep.mubr.bf16.mxu0 0
    %511 = vmatmul.mubr.bf16.gmra.mxu0 %v317
    %v512 = vpop.f32.mrf.mxu0
    %v513 = vadd.f32 0.0, %v512
    %v514 = vpop.f32.mrf.mxu0
    %v515 = vpop.f32.mrf.mxu0
    %v516 = vadd.f32 0.0, %v515
    %v517 = vpop.f32.mrf.mxu0
    %518 = vmatprep.mubr.bf16.mxu0 0
    %519 = vmatmul.mubr.bf16.gmra.mxu0 %v318
    %v520 = vpop.f32.mrf.mxu0
    %v521 = vadd.f32 0.0, %v520
    %v522 = vpop.f32.mrf.mxu0
    %v523 = vpop.f32.mrf.mxu0
    %v524 = vadd.f32 0.0, %v523
    %v525 = vpop.f32.mrf.mxu0
    %526 = vmatprep.mubr.bf16.mxu0 0
    %527 = vmatmul.mubr.bf16.gmra.mxu0 %v319
    %v528 = vpop.f32.mrf.mxu0
    %v529 = vadd.f32 0.0, %v528
    %v530 = vpop.f32.mrf.mxu0
    %v531 = vpop.f32.mrf.mxu0
    %v532 = vadd.f32 0.0, %v531
    %v533 = vpop.f32.mrf.mxu0
    %534 = vmatprep.mubr.bf16.mxu0 0
    %535 = vmatmul.mubr.bf16.gmra.mxu0 %v320
    %v536 = vpop.f32.mrf.mxu0
    %v537 = vadd.f32 0.0, %v536
    %v538 = vpop.f32.mrf.mxu0
    %v539 = vpop.f32.mrf.mxu0
    %v540 = vadd.f32 0.0, %v539
    %v541 = vpop.f32.mrf.mxu0
    %542 = vmatprep.mubr.bf16.mxu0 0
    %543 = vmatmul.mubr.bf16.gmra.mxu0 %v321
    %v544 = vpop.f32.mrf.mxu0
    %v545 = vadd.f32 0.0, %v544
    %v546 = vpop.f32.mrf.mxu0
    %v547 = vpop.f32.mrf.mxu0
    %v548 = vadd.f32 0.0, %v547
    %v549 = vpop.f32.mrf.mxu0
    %550 = vmatprep.mubr.bf16.mxu0 0
    %551 = vmatmul.mubr.bf16.gmra.mxu0 %v322
    %v552 = vpop.f32.mrf.mxu0
    %v553 = vadd.f32 0.0, %v552
    %v554 = vpop.f32.mrf.mxu0
    %v555 = vpop.f32.mrf.mxu0
    %v556 = vadd.f32 0.0, %v555
    %v557 = vpop.f32.mrf.mxu0
    %558 = vmatprep.mubr.bf16.mxu0 0
    %559 = vmatmul.mubr.bf16.gmra.mxu0 %v323
    %v560 = vpop.f32.mrf.mxu0
    %v561 = vadd.f32 0.0, %v560
    %v562 = vpop.f32.mrf.mxu0
    %v563 = vpop.f32.mrf.mxu0
    %v564 = vadd.f32 0.0, %v563
    %v565 = vpop.f32.mrf.mxu0
    %566 = vmatprep.mubr.bf16.mxu0 0
    %567 = vmatmul.mubr.bf16.gmra.mxu0 %v324
    %v568 = vpop.f32.mrf.mxu0
    %v569 = vadd.f32 0.0, %v568
    %v570 = vpop.f32.mrf.mxu0
    %v571 = vpop.f32.mrf.mxu0
    %v572 = vadd.f32 0.0, %v571
    %v573 = vpop.f32.mrf.mxu0
    %574 = vmatprep.mubr.bf16.mxu0 0
    %575 = vmatmul.mubr.bf16.gmra.mxu0 %v325
    %v576 = vpop.f32.mrf.mxu0
    %v577 = vadd.f32 0.0, %v576
    %v578 = vpop.f32.mrf.mxu0
    %v579 = vpop.f32.mrf.mxu0
    %v580 = vadd.f32 0.0, %v579
    %v581 = vpop.f32.mrf.mxu0
    %582 = vmatprep.mubr.bf16.mxu0 0
    %583 = vmatmul.mubr.bf16.gmra.mxu0 %v326
    %v584 = vpop.f32.mrf.mxu0
    %v585 = vadd.f32 0.0, %v584
    %v586 = vpop.f32.mrf.mxu0
    %v587 = vpop.f32.mrf.mxu0
    %v588 = vadd.f32 0.0, %v587
    %v589 = vpop.f32.mrf.mxu0
    %590 = vmatprep.mubr.bf16.mxu0 0
    %591 = vmatmul.mubr.bf16.gmra.mxu0 %v327
    %v592 = vpop.f32.mrf.mxu0
    %v593 = vadd.f32 0.0, %v592
    %v594 = vpop.f32.mrf.mxu0
    %v595 = vpop.f32.mrf.mxu0
    %v596 = vadd.f32 0.0, %v595
    %v597 = vpop.f32.mrf.mxu0
    %598 = vmatprep.mubr.bf16.mxu0 0
    %599 = vmatmul.mubr.bf16.gmra.mxu0 %v328
    %v600 = vpop.f32.mrf.mxu0
    %v601 = vadd.f32 0.0, %v600
    %v602 = vpop.f32.mrf.mxu0
    %v603 = vpop.f32.mrf.mxu0
    %v604 = vadd.f32 0.0, %v603
    %v605 = vpop.f32.mrf.mxu0
    %606 = vmatprep.mubr.bf16.mxu0 0
    %607 = vmatmul.mubr.bf16.gmra.mxu0 %v329
    %v608 = vpop.f32.mrf.mxu0
    %v609 = vadd.f32 0.0, %v608
    %v610 = vpop.f32.mrf.mxu0
    %v611 = vpop.f32.mrf.mxu0
    %v612 = vadd.f32 0.0, %v611
    %v613 = vpop.f32.mrf.mxu0
    %614 = vmatprep.mubr.bf16.mxu0 0
    %615 = vmatmul.mubr.bf16.gmra.mxu0 %v330
    %v616 = vpop.f32.mrf.mxu0
    %v617 = vadd.f32 0.0, %v616
    %v618 = vpop.f32.mrf.mxu0
    %v619 = vpop.f32.mrf.mxu0
    %v620 = vadd.f32 0.0, %v619
    %v621 = vpop.f32.mrf.mxu0
    %622 = vmatprep.mubr.bf16.mxu0 0
    %623 = vmatmul.mubr.bf16.gmra.mxu0 %v331
    %v624 = vpop.f32.mrf.mxu0
    %v625 = vadd.f32 0.0, %v624
    %v626 = vpop.f32.mrf.mxu0
    %v627 = vpop.f32.mrf.mxu0
    %v628 = vadd.f32 0.0, %v627
    %v629 = vpop.f32.mrf.mxu0
    %630 = vmatprep.mubr.bf16.mxu0 0
    %631 = vmatmul.mubr.bf16.gmra.mxu0 %v332
    %v632 = vpop.f32.mrf.mxu0
    %v633 = vadd.f32 0.0, %v632
    %v634 = vpop.f32.mrf.mxu0
    %v635 = vpop.f32.mrf.mxu0
    %v636 = vadd.f32 0.0, %v635
    %v637 = vpop.f32.mrf.mxu0
    %638 = vmatprep.mubr.bf16.mxu0 0
    %639 = vmatmul.mubr.bf16.gmra.mxu0 %v333
    %v640 = vpop.f32.mrf.mxu0
    %v641 = vadd.f32 0.0, %v640
    %v642 = vpop.f32.mrf.mxu0
    %v643 = vpop.f32.mrf.mxu0
    %v644 = vadd.f32 0.0, %v643
    %v645 = vpop.f32.mrf.mxu0
    %646 = vmatprep.mubr.bf16.mxu0 0
    %647 = vmatmul.mubr.bf16.gmra.mxu0 %v334
    %v648 = vpop.f32.mrf.mxu0
    %v649 = vadd.f32 0.0, %v648
    %v650 = vpop.f32.mrf.mxu0
    %v651 = vpop.f32.mrf.mxu0
    %v652 = vadd.f32 0.0, %v651
    %v653 = vpop.f32.mrf.mxu0
    %654 = vmatprep.mubr.bf16.mxu0 0
    %655 = vmatmul.mubr.bf16.gmra.mxu0 %v335
    %v656 = vpop.f32.mrf.mxu0
    %v657 = vadd.f32 0.0, %v656
    %v658 = vpop.f32.mrf.mxu0
    %v659 = vpop.f32.mrf.mxu0
    %v660 = vadd.f32 0.0, %v659
    %v661 = vpop.f32.mrf.mxu0
    %662 = vmatprep.mubr.bf16.mxu0 0
    %663 = vmatmul.mubr.bf16.gmra.mxu0 %v336
    %v664 = vpop.f32.mrf.mxu0
    %v665 = vadd.f32 0.0, %v664
    %v666 = vpop.f32.mrf.mxu0
    %v667 = vpop.f32.mrf.mxu0
    %v668 = vadd.f32 0.0, %v667
    %v669 = vpop.f32.mrf.mxu0
    %670 = vmatprep.mubr.bf16.mxu0 0
    %671 = vmatmul.mubr.bf16.gmra.mxu0 %v337
    %v672 = vpop.f32.mrf.mxu0
    %v673 = vadd.f32 0.0, %v672
    %v674 = vpop.f32.mrf.mxu0
    %v675 = vpop.f32.mrf.mxu0
    %v676 = vadd.f32 0.0, %v675
    %v677 = vpop.f32.mrf.mxu0
    %678 = vmatprep.mubr.bf16.mxu0 0
    %679 = vmatmul.mubr.bf16.gmra.mxu0 %v338
    %v680 = vpop.f32.mrf.mxu0
    %v681 = vadd.f32 0.0, %v680
    %v682 = vpop.f32.mrf.mxu0
    %v683 = vpop.f32.mrf.mxu0
    %v684 = vadd.f32 0.0, %v683
    %v685 = vpop.f32.mrf.mxu0
    %686 = vmatprep.mubr.bf16.mxu0 0
    %687 = vmatmul.mubr.bf16.gmra.mxu0 %v339
    %v688 = vpop.f32.mrf.mxu0
    %v689 = vadd.f32 0.0, %v688
    %v690 = vpop.f32.mrf.mxu0
    %v691 = vpop.f32.mrf.mxu0
    %v692 = vadd.f32 0.0, %v691
    %v693 = vpop.f32.mrf.mxu0
    %694 = vmatprep.mubr.bf16.mxu0 0
    %695 = vmatmul.mubr.bf16.gmra.mxu0 %v340
    %v696 = vpop.f32.mrf.mxu0
    %v697 = vadd.f32 0.0, %v696
    %v698 = vpop.f32.mrf.mxu0
    %v699 = vpop.f32.mrf.mxu0
    %v700 = vadd.f32 0.0, %v699
    %v701 = vpop.f32.mrf.mxu0
    %702 = vmatprep.mubr.bf16.mxu0 0
    %703 = vmatmul.mubr.bf16.gmra.mxu0 %v341
    %v704 = vpop.f32.mrf.mxu0
    %v705 = vadd.f32 0.0, %v704
    %v706 = vpop.f32.mrf.mxu0
    %v707 = vpop.f32.mrf.mxu0
    %v708 = vadd.f32 0.0, %v707
    %v709 = vpop.f32.mrf.mxu0
    %710 = vdwg.mxu0
    %v775 = vunpack.c.l.b16 %v22
    %v776 = vunpack.c.l.b16 %v23
    %v777 = vunpack.c.l.b16 %v24
    %v778 = vunpack.c.l.b16 %v25
    %v779 = vunpack.c.l.b16 %v26
    %v780 = vunpack.c.l.b16 %v27
    %v781 = vunpack.c.l.b16 %v28
    %v782 = vunpack.c.l.b16 %v29
    %v783 = vunpack.c.l.b16 %v30
    %v784 = vunpack.c.l.b16 %v31
    %v785 = vunpack.c.l.b16 %v32
    %v786 = vunpack.c.l.b16 %v33
    %v787 = vunpack.c.l.b16 %v34
    %v788 = vunpack.c.l.b16 %v35
    %v789 = vunpack.c.l.b16 %v36
    %v790 = vunpack.c.l.b16 %v37
    %v791 = vunpack.c.l.b16 %v38
    %v792 = vunpack.c.l.b16 %v39
    %v793 = vunpack.c.l.b16 %v40
    %v794 = vunpack.c.l.b16 %v41
    %v795 = vunpack.c.l.b16 %v42
    %v796 = vunpack.c.l.b16 %v43
    %v797 = vunpack.c.l.b16 %v44
    %v798 = vunpack.c.l.b16 %v45
    %v799 = vunpack.c.l.b16 %v46
    %v800 = vunpack.c.l.b16 %v47
    %v801 = vunpack.c.l.b16 %v48
    %v802 = vunpack.c.l.b16 %v49
    %v803 = vunpack.c.l.b16 %v50
    %v804 = vunpack.c.l.b16 %v51
    %v805 = vunpack.c.l.b16 %v52
    %v806 = vunpack.c.l.b16 %v53
    %v807 = vunpack.c.l.b16 %v54
    %v808 = vunpack.c.l.b16 %v55
    %v809 = vunpack.c.l.b16 %v56
    %v810 = vunpack.c.l.b16 %v57
    %v811 = vunpack.c.l.b16 %v58
    %v812 = vunpack.c.l.b16 %v59
    %v813 = vunpack.c.l.b16 %v60
    %v814 = vunpack.c.l.b16 %v61
    %v815 = vunpack.c.l.b16 %v62
    %v816 = vunpack.c.l.b16 %v63
    %v817 = vunpack.c.l.b16 %v64
    %v818 = vunpack.c.l.b16 %v65
    %v819 = vunpack.c.l.b16 %v66
    %v820 = vunpack.c.l.b16 %v67
    %v821 = vunpack.c.l.b16 %v68
    %v822 = vunpack.c.l.b16 %v69
    %v823 = vunpack.c.l.b16 %v70
    %v824 = vunpack.c.l.b16 %v71
    %v825 = vunpack.c.l.b16 %v72
    %v826 = vunpack.c.l.b16 %v73
    %v827 = vunpack.c.l.b16 %v74
    %v828 = vunpack.c.l.b16 %v75
    %v829 = vunpack.c.l.b16 %v76
    %v830 = vunpack.c.l.b16 %v77
    %v831 = vunpack.c.l.b16 %v78
    %v832 = vunpack.c.l.b16 %v79
    %v833 = vunpack.c.l.b16 %v80
    %v834 = vunpack.c.l.b16 %v81
    %v835 = vunpack.c.l.b16 %v82
    %v836 = vunpack.c.l.b16 %v83
    %v837 = vunpack.c.l.b16 %v84
    %v838 = vunpack.c.l.b16 %v85
    %v839 = vpack.c.b16 %v776, %v775
    %v840 = vpack.c.b16 %v778, %v777
    %v841 = vpack.c.b16 %v780, %v779
    %v842 = vpack.c.b16 %v782, %v781
    %v843 = vpack.c.b16 %v784, %v783
    %v844 = vpack.c.b16 %v786, %v785
    %v845 = vpack.c.b16 %v788, %v787
    %v846 = vpack.c.b16 %v790, %v789
    %v847 = vpack.c.b16 %v792, %v791
    %v848 = vpack.c.b16 %v794, %v793
    %v849 = vpack.c.b16 %v796, %v795
    %v850 = vpack.c.b16 %v798, %v797
    %v851 = vpack.c.b16 %v800, %v799
    %v852 = vpack.c.b16 %v802, %v801
    %v853 = vpack.c.b16 %v804, %v803
    %v854 = vpack.c.b16 %v806, %v805
    %v855 = vpack.c.b16 %v808, %v807
    %v856 = vpack.c.b16 %v810, %v809
    %v857 = vpack.c.b16 %v812, %v811
    %v858 = vpack.c.b16 %v814, %v813
    %v859 = vpack.c.b16 %v816, %v815
    %v860 = vpack.c.b16 %v818, %v817
    %v861 = vpack.c.b16 %v820, %v819
    %v862 = vpack.c.b16 %v822, %v821
    %v863 = vpack.c.b16 %v824, %v823
    %v864 = vpack.c.b16 %v826, %v825
    %v865 = vpack.c.b16 %v828, %v827
    %v866 = vpack.c.b16 %v830, %v829
    %v867 = vpack.c.b16 %v832, %v831
    %v868 = vpack.c.b16 %v834, %v833
    %v869 = vpack.c.b16 %v836, %v835
    %v870 = vpack.c.b16 %v838, %v837
    %v919 = vunpack.c.l.b16 %v86
    %v920 = vunpack.c.l.b16 %v87
    %v921 = vunpack.c.l.b16 %v88
    %v922 = vunpack.c.l.b16 %v89
    %v923 = vunpack.c.l.b16 %v90
    %v924 = vunpack.c.l.b16 %v91
    %v925 = vunpack.c.l.b16 %v92
    %v926 = vunpack.c.l.b16 %v93
    %v927 = vunpack.c.l.b16 %v94
    %v928 = vunpack.c.l.b16 %v95
    %v929 = vunpack.c.l.b16 %v96
    %v930 = vunpack.c.l.b16 %v97
    %v931 = vunpack.c.l.b16 %v98
    %v932 = vunpack.c.l.b16 %v99
    %v933 = vunpack.c.l.b16 %v100
    %v934 = vunpack.c.l.b16 %v101
    %v935 = vpack.c.b16 %v920, %v919
    %v936 = vpack.c.b16 %v922, %v921
    %v937 = vpack.c.b16 %v924, %v923
    %v938 = vpack.c.b16 %v926, %v925
    %v939 = vpack.c.b16 %v928, %v927
    %v940 = vpack.c.b16 %v930, %v929
    %v941 = vpack.c.b16 %v932, %v931
    %v942 = vpack.c.b16 %v934, %v933
    %951 = vmatprep.subr.bf16.mxu0 0
    %952 = vmatpush1.bf16.msra.mxu0 %v942
    %953 = vmatprep.subr.bf16.mxu0 0
    %954 = vmatpush1.bf16.msra.mxu0 %v941
    %955 = vmatprep.subr.bf16.mxu0 0
    %956 = vmatpush1.bf16.msra.mxu0 %v940
    %957 = vmatprep.subr.bf16.mxu0 0
    %958 = vmatpush1.bf16.msra.mxu0 %v939
    %959 = vmatprep.subr.bf16.mxu0 0
    %960 = vmatpush1.bf16.msra.mxu0 %v938
    %961 = vmatprep.subr.bf16.mxu0 0
    %962 = vmatpush1.bf16.msra.mxu0 %v937
    %963 = vmatprep.subr.bf16.mxu0 0
    %964 = vmatpush1.bf16.msra.mxu0 %v936
    %965 = vmatprep.subr.bf16.mxu0 0
    %966 = vmatpush1.bf16.msra.mxu0 %v935
    %967 = vmatprep.subr.bf16.mxu0 0
    %968 = vmatpush2.bf16.msra.mxu0 0
    %969 = vmatprep.subr.bf16.mxu0 0
    %970 = vmatpush2.bf16.msra.mxu0 0
    %971 = vmatprep.subr.bf16.mxu0 0
    %972 = vmatpush2.bf16.msra.mxu0 0
    %973 = vmatprep.subr.bf16.mxu0 0
    %974 = vmatpush2.bf16.msra.mxu0 0
    %975 = vmatprep.subr.bf16.mxu0 0
    %976 = vmatpush2.bf16.msra.mxu0 0
    %977 = vmatprep.subr.bf16.mxu0 0
    %978 = vmatpush2.bf16.msra.mxu0 0
    %979 = vmatprep.subr.bf16.mxu0 0
    %980 = vmatpush2.bf16.msra.mxu0 0
    %981 = vmatprep.subr.bf16.mxu0 0
    %982 = vmatpush2.bf16.msra.mxu0 0
    %983 = vmatprep.mubr.bf16.mxu0 0
    %984 = vmatmul.mubr.bf16.gmra.mxu0 %v839
    %v985 = vpop.f32.mrf.mxu0
    %v986 = vadd.f32 %v457, %v985
    %v987 = vpop.f32.mrf.mxu0
    %v988 = vpop.f32.mrf.mxu0
    %v989 = vadd.f32 %v460, %v988
    %v990 = vpop.f32.mrf.mxu0
    %991 = vmatprep.mubr.bf16.mxu0 0
    %992 = vmatmul.mubr.bf16.gmra.mxu0 %v840
    %v993 = vpop.f32.mrf.mxu0
    %v994 = vadd.f32 %v465, %v993
    %v995 = vpop.f32.mrf.mxu0
    %v996 = vpop.f32.mrf.mxu0
    %v997 = vadd.f32 %v468, %v996
    %v998 = vpop.f32.mrf.mxu0
    %999 = vmatprep.mubr.bf16.mxu0 0
    %1000 = vmatmul.mubr.bf16.gmra.mxu0 %v841
    %v1001 = vpop.f32.mrf.mxu0
    %v1002 = vadd.f32 %v473, %v1001
    %v1003 = vpop.f32.mrf.mxu0
    %v1004 = vpop.f32.mrf.mxu0
    %v1005 = vadd.f32 %v476, %v1004
    %v1006 = vpop.f32.mrf.mxu0
    %1007 = vmatprep.mubr.bf16.mxu0 0
    %1008 = vmatmul.mubr.bf16.gmra.mxu0 %v842
    %v1009 = vpop.f32.mrf.mxu0
    %v1010 = vadd.f32 %v481, %v1009
    %v1011 = vpop.f32.mrf.mxu0
    %v1012 = vpop.f32.mrf.mxu0
    %v1013 = vadd.f32 %v484, %v1012
    %v1014 = vpop.f32.mrf.mxu0
    %1015 = vmatprep.mubr.bf16.mxu0 0
    %1016 = vmatmul.mubr.bf16.gmra.mxu0 %v843
    %v1017 = vpop.f32.mrf.mxu0
    %v1018 = vadd.f32 %v489, %v1017
    %v1019 = vpop.f32.mrf.mxu0
    %v1020 = vpop.f32.mrf.mxu0
    %v1021 = vadd.f32 %v492, %v1020
    %v1022 = vpop.f32.mrf.mxu0
    %1023 = vmatprep.mubr.bf16.mxu0 0
    %1024 = vmatmul.mubr.bf16.gmra.mxu0 %v844
    %v1025 = vpop.f32.mrf.mxu0
    %v1026 = vadd.f32 %v497, %v1025
    %v1027 = vpop.f32.mrf.mxu0
    %v1028 = vpop.f32.mrf.mxu0
    %v1029 = vadd.f32 %v500, %v1028
    %v1030 = vpop.f32.mrf.mxu0
    %1031 = vmatprep.mubr.bf16.mxu0 0
    %1032 = vmatmul.mubr.bf16.gmra.mxu0 %v845
    %v1033 = vpop.f32.mrf.mxu0
    %v1034 = vadd.f32 %v505, %v1033
    %v1035 = vpop.f32.mrf.mxu0
    %v1036 = vpop.f32.mrf.mxu0
    %v1037 = vadd.f32 %v508, %v1036
    %v1038 = vpop.f32.mrf.mxu0
    %1039 = vmatprep.mubr.bf16.mxu0 0
    %1040 = vmatmul.mubr.bf16.gmra.mxu0 %v846
    %v1041 = vpop.f32.mrf.mxu0
    %v1042 = vadd.f32 %v513, %v1041
    %v1043 = vpop.f32.mrf.mxu0
    %v1044 = vpop.f32.mrf.mxu0
    %v1045 = vadd.f32 %v516, %v1044
    %v1046 = vpop.f32.mrf.mxu0
    %1047 = vmatprep.mubr.bf16.mxu0 0
    %1048 = vmatmul.mubr.bf16.gmra.mxu0 %v847
    %v1049 = vpop.f32.mrf.mxu0
    %v1050 = vadd.f32 %v521, %v1049
    %v1051 = vpop.f32.mrf.mxu0
    %v1052 = vpop.f32.mrf.mxu0
    %v1053 = vadd.f32 %v524, %v1052
    %v1054 = vpop.f32.mrf.mxu0
    %1055 = vmatprep.mubr.bf16.mxu0 0
    %1056 = vmatmul.mubr.bf16.gmra.mxu0 %v848
    %v1057 = vpop.f32.mrf.mxu0
    %v1058 = vadd.f32 %v529, %v1057
    %v1059 = vpop.f32.mrf.mxu0
    %v1060 = vpop.f32.mrf.mxu0
    %v1061 = vadd.f32 %v532, %v1060
    %v1062 = vpop.f32.mrf.mxu0
    %1063 = vmatprep.mubr.bf16.mxu0 0
    %1064 = vmatmul.mubr.bf16.gmra.mxu0 %v849
    %v1065 = vpop.f32.mrf.mxu0
    %v1066 = vadd.f32 %v537, %v1065
    %v1067 = vpop.f32.mrf.mxu0
    %v1068 = vpop.f32.mrf.mxu0
    %v1069 = vadd.f32 %v540, %v1068
    %v1070 = vpop.f32.mrf.mxu0
    %1071 = vmatprep.mubr.bf16.mxu0 0
    %1072 = vmatmul.mubr.bf16.gmra.mxu0 %v850
    %v1073 = vpop.f32.mrf.mxu0
    %v1074 = vadd.f32 %v545, %v1073
    %v1075 = vpop.f32.mrf.mxu0
    %v1076 = vpop.f32.mrf.mxu0
    %v1077 = vadd.f32 %v548, %v1076
    %v1078 = vpop.f32.mrf.mxu0
    %1079 = vmatprep.mubr.bf16.mxu0 0
    %1080 = vmatmul.mubr.bf16.gmra.mxu0 %v851
    %v1081 = vpop.f32.mrf.mxu0
    %v1082 = vadd.f32 %v553, %v1081
    %v1083 = vpop.f32.mrf.mxu0
    %v1084 = vpop.f32.mrf.mxu0
    %v1085 = vadd.f32 %v556, %v1084
    %v1086 = vpop.f32.mrf.mxu0
    %1087 = vmatprep.mubr.bf16.mxu0 0
    %1088 = vmatmul.mubr.bf16.gmra.mxu0 %v852
    %v1089 = vpop.f32.mrf.mxu0
    %v1090 = vadd.f32 %v561, %v1089
    %v1091 = vpop.f32.mrf.mxu0
    %v1092 = vpop.f32.mrf.mxu0
    %v1093 = vadd.f32 %v564, %v1092
    %v1094 = vpop.f32.mrf.mxu0
    %1095 = vmatprep.mubr.bf16.mxu0 0
    %1096 = vmatmul.mubr.bf16.gmra.mxu0 %v853
    %v1097 = vpop.f32.mrf.mxu0
    %v1098 = vadd.f32 %v569, %v1097
    %v1099 = vpop.f32.mrf.mxu0
    %v1100 = vpop.f32.mrf.mxu0
    %v1101 = vadd.f32 %v572, %v1100
    %v1102 = vpop.f32.mrf.mxu0
    %1103 = vmatprep.mubr.bf16.mxu0 0
    %1104 = vmatmul.mubr.bf16.gmra.mxu0 %v854
    %v1105 = vpop.f32.mrf.mxu0
    %v1106 = vadd.f32 %v577, %v1105
    %v1107 = vpop.f32.mrf.mxu0
    %v1108 = vpop.f32.mrf.mxu0
    %v1109 = vadd.f32 %v580, %v1108
    %v1110 = vpop.f32.mrf.mxu0
    %1111 = vmatprep.mubr.bf16.mxu0 0
    %1112 = vmatmul.mubr.bf16.gmra.mxu0 %v855
    %v1113 = vpop.f32.mrf.mxu0
    %v1114 = vadd.f32 %v585, %v1113
    %v1115 = vpop.f32.mrf.mxu0
    %v1116 = vpop.f32.mrf.mxu0
    %v1117 = vadd.f32 %v588, %v1116
    %v1118 = vpop.f32.mrf.mxu0
    %1119 = vmatprep.mubr.bf16.mxu0 0
    %1120 = vmatmul.mubr.bf16.gmra.mxu0 %v856
    %v1121 = vpop.f32.mrf.mxu0
    %v1122 = vadd.f32 %v593, %v1121
    %v1123 = vpop.f32.mrf.mxu0
    %v1124 = vpop.f32.mrf.mxu0
    %v1125 = vadd.f32 %v596, %v1124
    %v1126 = vpop.f32.mrf.mxu0
    %1127 = vmatprep.mubr.bf16.mxu0 0
    %1128 = vmatmul.mubr.bf16.gmra.mxu0 %v857
    %v1129 = vpop.f32.mrf.mxu0
    %v1130 = vadd.f32 %v601, %v1129
    %v1131 = vpop.f32.mrf.mxu0
    %v1132 = vpop.f32.mrf.mxu0
    %v1133 = vadd.f32 %v604, %v1132
    %v1134 = vpop.f32.mrf.mxu0
    %1135 = vmatprep.mubr.bf16.mxu0 0
    %1136 = vmatmul.mubr.bf16.gmra.mxu0 %v858
    %v1137 = vpop.f32.mrf.mxu0
    %v1138 = vadd.f32 %v609, %v1137
    %v1139 = vpop.f32.mrf.mxu0
    %v1140 = vpop.f32.mrf.mxu0
    %v1141 = vadd.f32 %v612, %v1140
    %v1142 = vpop.f32.mrf.mxu0
    %1143 = vmatprep.mubr.bf16.mxu0 0
    %1144 = vmatmul.mubr.bf16.gmra.mxu0 %v859
    %v1145 = vpop.f32.mrf.mxu0
    %v1146 = vadd.f32 %v617, %v1145
    %v1147 = vpop.f32.mrf.mxu0
    %v1148 = vpop.f32.mrf.mxu0
    %v1149 = vadd.f32 %v620, %v1148
    %v1150 = vpop.f32.mrf.mxu0
    %1151 = vmatprep.mubr.bf16.mxu0 0
    %1152 = vmatmul.mubr.bf16.gmra.mxu0 %v860
    %v1153 = vpop.f32.mrf.mxu0
    %v1154 = vadd.f32 %v625, %v1153
    %v1155 = vpop.f32.mrf.mxu0
    %v1156 = vpop.f32.mrf.mxu0
    %v1157 = vadd.f32 %v628, %v1156
    %v1158 = vpop.f32.mrf.mxu0
    %1159 = vmatprep.mubr.bf16.mxu0 0
    %1160 = vmatmul.mubr.bf16.gmra.mxu0 %v861
    %v1161 = vpop.f32.mrf.mxu0
    %v1162 = vadd.f32 %v633, %v1161
    %v1163 = vpop.f32.mrf.mxu0
    %v1164 = vpop.f32.mrf.mxu0
    %v1165 = vadd.f32 %v636, %v1164
    %v1166 = vpop.f32.mrf.mxu0
    %1167 = vmatprep.mubr.bf16.mxu0 0
    %1168 = vmatmul.mubr.bf16.gmra.mxu0 %v862
    %v1169 = vpop.f32.mrf.mxu0
    %v1170 = vadd.f32 %v641, %v1169
    %v1171 = vpop.f32.mrf.mxu0
    %v1172 = vpop.f32.mrf.mxu0
    %v1173 = vadd.f32 %v644, %v1172
    %v1174 = vpop.f32.mrf.mxu0
    %1175 = vmatprep.mubr.bf16.mxu0 0
    %1176 = vmatmul.mubr.bf16.gmra.mxu0 %v863
    %v1177 = vpop.f32.mrf.mxu0
    %v1178 = vadd.f32 %v649, %v1177
    %v1179 = vpop.f32.mrf.mxu0
    %v1180 = vpop.f32.mrf.mxu0
    %v1181 = vadd.f32 %v652, %v1180
    %v1182 = vpop.f32.mrf.mxu0
    %1183 = vmatprep.mubr.bf16.mxu0 0
    %1184 = vmatmul.mubr.bf16.gmra.mxu0 %v864
    %v1185 = vpop.f32.mrf.mxu0
    %v1186 = vadd.f32 %v657, %v1185
    %v1187 = vpop.f32.mrf.mxu0
    %v1188 = vpop.f32.mrf.mxu0
    %v1189 = vadd.f32 %v660, %v1188
    %v1190 = vpop.f32.mrf.mxu0
    %1191 = vmatprep.mubr.bf16.mxu0 0
    %1192 = vmatmul.mubr.bf16.gmra.mxu0 %v865
    %v1193 = vpop.f32.mrf.mxu0
    %v1194 = vadd.f32 %v665, %v1193
    %v1195 = vpop.f32.mrf.mxu0
    %v1196 = vpop.f32.mrf.mxu0
    %v1197 = vadd.f32 %v668, %v1196
    %v1198 = vpop.f32.mrf.mxu0
    %1199 = vmatprep.mubr.bf16.mxu0 0
    %1200 = vmatmul.mubr.bf16.gmra.mxu0 %v866
    %v1201 = vpop.f32.mrf.mxu0
    %v1202 = vadd.f32 %v673, %v1201
    %v1203 = vpop.f32.mrf.mxu0
    %v1204 = vpop.f32.mrf.mxu0
    %v1205 = vadd.f32 %v676, %v1204
    %v1206 = vpop.f32.mrf.mxu0
    %1207 = vmatprep.mubr.bf16.mxu0 0
    %1208 = vmatmul.mubr.bf16.gmra.mxu0 %v867
    %v1209 = vpop.f32.mrf.mxu0
    %v1210 = vadd.f32 %v681, %v1209
    %v1211 = vpop.f32.mrf.mxu0
    %v1212 = vpop.f32.mrf.mxu0
    %v1213 = vadd.f32 %v684, %v1212
    %v1214 = vpop.f32.mrf.mxu0
    %1215 = vmatprep.mubr.bf16.mxu0 0
    %1216 = vmatmul.mubr.bf16.gmra.mxu0 %v868
    %v1217 = vpop.f32.mrf.mxu0
    %v1218 = vadd.f32 %v689, %v1217
    %v1219 = vpop.f32.mrf.mxu0
    %v1220 = vpop.f32.mrf.mxu0
    %v1221 = vadd.f32 %v692, %v1220
    %v1222 = vpop.f32.mrf.mxu0
    %1223 = vmatprep.mubr.bf16.mxu0 0
    %1224 = vmatmul.mubr.bf16.gmra.mxu0 %v869
    %v1225 = vpop.f32.mrf.mxu0
    %v1226 = vadd.f32 %v697, %v1225
    %v1227 = vpop.f32.mrf.mxu0
    %v1228 = vpop.f32.mrf.mxu0
    %v1229 = vadd.f32 %v700, %v1228
    %v1230 = vpop.f32.mrf.mxu0
    %1231 = vmatprep.mubr.bf16.mxu0 0
    %1232 = vmatmul.mubr.bf16.gmra.mxu0 %v870
    %v1233 = vpop.f32.mrf.mxu0
    %v1234 = vadd.f32 %v705, %v1233
    %v1235 = vpop.f32.mrf.mxu0
    %v1236 = vpop.f32.mrf.mxu0
    %v1237 = vadd.f32 %v708, %v1236
    %v1238 = vpop.f32.mrf.mxu0
    %1239 = vdwg.mxu0
    %v1240 = vld [vmem:[%s2] sm:$0xf]
    %v1241 = vld [vmem:[%s2 + $0x4] sm:$0xf]
    %v1242 = vld [vmem:[%s2 + $0x8] sm:$0xf]
    %v1243 = vld [vmem:[%s2 + $0xc] sm:$0xf]
    %v1244 = vld [vmem:[%s2 + $0x10] sm:$0xf]
    %v1245 = vld [vmem:[%s2 + $0x14] sm:$0xf]
    %v1246 = vld [vmem:[%s2 + $0x18] sm:$0xf]
    %v1247 = vld [vmem:[%s2 + $0x1c] sm:$0xf]
    %v1248 = vld [vmem:[%s2 + $0x20] sm:$0xf]
    %v1249 = vld [vmem:[%s2 + $0x24] sm:$0xf]
    %v1250 = vld [vmem:[%s2 + $0x28] sm:$0xf]
    %v1251 = vld [vmem:[%s2 + $0x2c] sm:$0xf]
    %v1252 = vld [vmem:[%s2 + $0x30] sm:$0xf]
    %v1253 = vld [vmem:[%s2 + $0x34] sm:$0xf]
    %v1254 = vld [vmem:[%s2 + $0x38] sm:$0xf]
    %v1255 = vld [vmem:[%s2 + $0x3c] sm:$0xf]
    %v1256 = vld [vmem:[%s2 + $0x40] sm:$0xf]
    %v1257 = vld [vmem:[%s2 + $0x44] sm:$0xf]
    %v1258 = vld [vmem:[%s2 + $0x48] sm:$0xf]
    %v1259 = vld [vmem:[%s2 + $0x4c] sm:$0xf]
    %v1260 = vld [vmem:[%s2 + $0x50] sm:$0xf]
    %v1261 = vld [vmem:[%s2 + $0x54] sm:$0xf]
    %v1262 = vld [vmem:[%s2 + $0x58] sm:$0xf]
    %v1263 = vld [vmem:[%s2 + $0x5c] sm:$0xf]
    %v1264 = vld [vmem:[%s2 + $0x60] sm:$0xf]
    %v1265 = vld [vmem:[%s2 + $0x64] sm:$0xf]
    %v1266 = vld [vmem:[%s2 + $0x68] sm:$0xf]
    %v1267 = vld [vmem:[%s2 + $0x6c] sm:$0xf]
    %v1268 = vld [vmem:[%s2 + $0x70] sm:$0xf]
    %v1269 = vld [vmem:[%s2 + $0x74] sm:$0xf]
    %v1270 = vld [vmem:[%s2 + $0x78] sm:$0xf]
    %v1271 = vld [vmem:[%s2 + $0x7c] sm:$0xf]
    %v1272 = vld [vmem:[%s2 + $0x80] sm:$0xf]
    %v1273 = vld [vmem:[%s2 + $0x84] sm:$0xf]
    %v1274 = vld [vmem:[%s2 + $0x88] sm:$0xf]
    %v1275 = vld [vmem:[%s2 + $0x8c] sm:$0xf]
    %v1276 = vld [vmem:[%s2 + $0x90] sm:$0xf]
    %v1277 = vld [vmem:[%s2 + $0x94] sm:$0xf]
    %v1278 = vld [vmem:[%s2 + $0x98] sm:$0xf]
    %v1279 = vld [vmem:[%s2 + $0x9c] sm:$0xf]
    %v1280 = vld [vmem:[%s2 + $0xa0] sm:$0xf]
    %v1281 = vld [vmem:[%s2 + $0xa4] sm:$0xf]
    %v1282 = vld [vmem:[%s2 + $0xa8] sm:$0xf]
    %v1283 = vld [vmem:[%s2 + $0xac] sm:$0xf]
    %v1284 = vld [vmem:[%s2 + $0xb0] sm:$0xf]
    %v1285 = vld [vmem:[%s2 + $0xb4] sm:$0xf]
    %v1286 = vld [vmem:[%s2 + $0xb8] sm:$0xf]
    %v1287 = vld [vmem:[%s2 + $0xbc] sm:$0xf]
    %v1288 = vld [vmem:[%s2 + $0xc0] sm:$0xf]
    %v1289 = vld [vmem:[%s2 + $0xc4] sm:$0xf]
    %v1290 = vld [vmem:[%s2 + $0xc8] sm:$0xf]
    %v1291 = vld [vmem:[%s2 + $0xcc] sm:$0xf]
    %v1292 = vld [vmem:[%s2 + $0xd0] sm:$0xf]
    %v1293 = vld [vmem:[%s2 + $0xd4] sm:$0xf]
    %v1294 = vld [vmem:[%s2 + $0xd8] sm:$0xf]
    %v1295 = vld [vmem:[%s2 + $0xdc] sm:$0xf]
    %v1296 = vld [vmem:[%s2 + $0xe0] sm:$0xf]
    %v1297 = vld [vmem:[%s2 + $0xe4] sm:$0xf]
    %v1298 = vld [vmem:[%s2 + $0xe8] sm:$0xf]
    %v1299 = vld [vmem:[%s2 + $0xec] sm:$0xf]
    %v1300 = vld [vmem:[%s2 + $0xf0] sm:$0xf]
    %v1301 = vld [vmem:[%s2 + $0xf4] sm:$0xf]
    %v1302 = vld [vmem:[%s2 + $0xf8] sm:$0xf]
    %v1303 = vld [vmem:[%s2 + $0xfc] sm:$0xf]
    %v1304 = vld [vmem:[%s3 + $0x80] sm:$0xf]
    %v1305 = vld [vmem:[%s3 + $0x84] sm:$0xf]
    %v1306 = vld [vmem:[%s3 + $0x88] sm:$0xf]
    %v1307 = vld [vmem:[%s3 + $0x8c] sm:$0xf]
    %v1308 = vld [vmem:[%s3 + $0x90] sm:$0xf]
    %v1309 = vld [vmem:[%s3 + $0x94] sm:$0xf]
    %v1310 = vld [vmem:[%s3 + $0x98] sm:$0xf]
    %v1311 = vld [vmem:[%s3 + $0x9c] sm:$0xf]
    %v1312 = vld [vmem:[%s3 + $0xa0] sm:$0xf]
    %v1313 = vld [vmem:[%s3 + $0xa4] sm:$0xf]
    %v1314 = vld [vmem:[%s3 + $0xa8] sm:$0xf]
    %v1315 = vld [vmem:[%s3 + $0xac] sm:$0xf]
    %v1316 = vld [vmem:[%s3 + $0xb0] sm:$0xf]
    %v1317 = vld [vmem:[%s3 + $0xb4] sm:$0xf]
    %v1318 = vld [vmem:[%s3 + $0xb8] sm:$0xf]
    %v1319 = vld [vmem:[%s3 + $0xbc] sm:$0xf]
    %v1384 = vunpack.c.l.b16 %v1240
    %v1385 = vunpack.c.l.b16 %v1241
    %v1386 = vunpack.c.l.b16 %v1242
    %v1387 = vunpack.c.l.b16 %v1243
    %v1388 = vunpack.c.l.b16 %v1244
    %v1389 = vunpack.c.l.b16 %v1245
    %v1390 = vunpack.c.l.b16 %v1246
    %v1391 = vunpack.c.l.b16 %v1247
    %v1392 = vunpack.c.l.b16 %v1248
    %v1393 = vunpack.c.l.b16 %v1249
    %v1394 = vunpack.c.l.b16 %v1250
    %v1395 = vunpack.c.l.b16 %v1251
    %v1396 = vunpack.c.l.b16 %v1252
    %v1397 = vunpack.c.l.b16 %v1253
    %v1398 = vunpack.c.l.b16 %v1254
    %v1399 = vunpack.c.l.b16 %v1255
    %v1400 = vunpack.c.l.b16 %v1256
    %v1401 = vunpack.c.l.b16 %v1257
    %v1402 = vunpack.c.l.b16 %v1258
    %v1403 = vunpack.c.l.b16 %v1259
    %v1404 = vunpack.c.l.b16 %v1260
    %v1405 = vunpack.c.l.b16 %v1261
    %v1406 = vunpack.c.l.b16 %v1262
    %v1407 = vunpack.c.l.b16 %v1263
    %v1408 = vunpack.c.l.b16 %v1264
    %v1409 = vunpack.c.l.b16 %v1265
    %v1410 = vunpack.c.l.b16 %v1266
    %v1411 = vunpack.c.l.b16 %v1267
    %v1412 = vunpack.c.l.b16 %v1268
    %v1413 = vunpack.c.l.b16 %v1269
    %v1414 = vunpack.c.l.b16 %v1270
    %v1415 = vunpack.c.l.b16 %v1271
    %v1416 = vunpack.c.l.b16 %v1272
    %v1417 = vunpack.c.l.b16 %v1273
    %v1418 = vunpack.c.l.b16 %v1274
    %v1419 = vunpack.c.l.b16 %v1275
    %v1420 = vunpack.c.l.b16 %v1276
    %v1421 = vunpack.c.l.b16 %v1277
    %v1422 = vunpack.c.l.b16 %v1278
    %v1423 = vunpack.c.l.b16 %v1279
    %v1424 = vunpack.c.l.b16 %v1280
    %v1425 = vunpack.c.l.b16 %v1281
    %v1426 = vunpack.c.l.b16 %v1282
    %v1427 = vunpack.c.l.b16 %v1283
    %v1428 = vunpack.c.l.b16 %v1284
    %v1429 = vunpack.c.l.b16 %v1285
    %v1430 = vunpack.c.l.b16 %v1286
    %v1431 = vunpack.c.l.b16 %v1287
    %v1432 = vunpack.c.l.b16 %v1288
    %v1433 = vunpack.c.l.b16 %v1289
    %v1434 = vunpack.c.l.b16 %v1290
    %v1435 = vunpack.c.l.b16 %v1291
    %v1436 = vunpack.c.l.b16 %v1292
    %v1437 = vunpack.c.l.b16 %v1293
    %v1438 = vunpack.c.l.b16 %v1294
    %v1439 = vunpack.c.l.b16 %v1295
    %v1440 = vunpack.c.l.b16 %v1296
    %v1441 = vunpack.c.l.b16 %v1297
    %v1442 = vunpack.c.l.b16 %v1298
    %v1443 = vunpack.c.l.b16 %v1299
    %v1444 = vunpack.c.l.b16 %v1300
    %v1445 = vunpack.c.l.b16 %v1301
    %v1446 = vunpack.c.l.b16 %v1302
    %v1447 = vunpack.c.l.b16 %v1303
    %v1448 = vpack.c.b16 %v1385, %v1384
    %v1449 = vpack.c.b16 %v1387, %v1386
    %v1450 = vpack.c.b16 %v1389, %v1388
    %v1451 = vpack.c.b16 %v1391, %v1390
    %v1452 = vpack.c.b16 %v1393, %v1392
    %v1453 = vpack.c.b16 %v1395, %v1394
    %v1454 = vpack.c.b16 %v1397, %v1396
    %v1455 = vpack.c.b16 %v1399, %v1398
    %v1456 = vpack.c.b16 %v1401, %v1400
    %v1457 = vpack.c.b16 %v1403, %v1402
    %v1458 = vpack.c.b16 %v1405, %v1404
    %v1459 = vpack.c.b16 %v1407, %v1406
    %v1460 = vpack.c.b16 %v1409, %v1408
    %v1461 = vpack.c.b16 %v1411, %v1410
    %v1462 = vpack.c.b16 %v1413, %v1412
    %v1463 = vpack.c.b16 %v1415, %v1414
    %v1464 = vpack.c.b16 %v1417, %v1416
    %v1465 = vpack.c.b16 %v1419, %v1418
    %v1466 = vpack.c.b16 %v1421, %v1420
    %v1467 = vpack.c.b16 %v1423, %v1422
    %v1468 = vpack.c.b16 %v1425, %v1424
    %v1469 = vpack.c.b16 %v1427, %v1426
    %v1470 = vpack.c.b16 %v1429, %v1428
    %v1471 = vpack.c.b16 %v1431, %v1430
    %v1472 = vpack.c.b16 %v1433, %v1432
    %v1473 = vpack.c.b16 %v1435, %v1434
    %v1474 = vpack.c.b16 %v1437, %v1436
    %v1475 = vpack.c.b16 %v1439, %v1438
    %v1476 = vpack.c.b16 %v1441, %v1440
    %v1477 = vpack.c.b16 %v1443, %v1442
    %v1478 = vpack.c.b16 %v1445, %v1444
    %v1479 = vpack.c.b16 %v1447, %v1446
    %v1528 = vunpack.c.l.b16 %v1304
    %v1529 = vunpack.c.l.b16 %v1305
    %v1530 = vunpack.c.l.b16 %v1306
    %v1531 = vunpack.c.l.b16 %v1307
    %v1532 = vunpack.c.l.b16 %v1308
    %v1533 = vunpack.c.l.b16 %v1309
    %v1534 = vunpack.c.l.b16 %v1310
    %v1535 = vunpack.c.l.b16 %v1311
    %v1536 = vunpack.c.l.b16 %v1312
    %v1537 = vunpack.c.l.b16 %v1313
    %v1538 = vunpack.c.l.b16 %v1314
    %v1539 = vunpack.c.l.b16 %v1315
    %v1540 = vunpack.c.l.b16 %v1316
    %v1541 = vunpack.c.l.b16 %v1317
    %v1542 = vunpack.c.l.b16 %v1318
    %v1543 = vunpack.c.l.b16 %v1319
    %v1544 = vpack.c.b16 %v1529, %v1528
    %v1545 = vpack.c.b16 %v1531, %v1530
    %v1546 = vpack.c.b16 %v1533, %v1532
    %v1547 = vpack.c.b16 %v1535, %v1534
    %v1548 = vpack.c.b16 %v1537, %v1536
    %v1549 = vpack.c.b16 %v1539, %v1538
    %v1550 = vpack.c.b16 %v1541, %v1540
    %v1551 = vpack.c.b16 %v1543, %v1542
    %1560 = vmatprep.subr.bf16.mxu0 0
    %1561 = vmatpush1.bf16.msra.mxu0 %v1551
    %1562 = vmatprep.subr.bf16.mxu0 0
    %1563 = vmatpush1.bf16.msra.mxu0 %v1550
    %1564 = vmatprep.subr.bf16.mxu0 0
    %1565 = vmatpush1.bf16.msra.mxu0 %v1549
    %1566 = vmatprep.subr.bf16.mxu0 0
    %1567 = vmatpush1.bf16.msra.mxu0 %v1548
    %1568 = vmatprep.subr.bf16.mxu0 0
    %1569 = vmatpush1.bf16.msra.mxu0 %v1547
    %1570 = vmatprep.subr.bf16.mxu0 0
    %1571 = vmatpush1.bf16.msra.mxu0 %v1546
    %1572 = vmatprep.subr.bf16.mxu0 0
    %1573 = vmatpush1.bf16.msra.mxu0 %v1545
    %1574 = vmatprep.subr.bf16.mxu0 0
    %1575 = vmatpush1.bf16.msra.mxu0 %v1544
    %1576 = vmatprep.subr.bf16.mxu0 0
    %1577 = vmatpush2.bf16.msra.mxu0 0
    %1578 = vmatprep.subr.bf16.mxu0 0
    %1579 = vmatpush2.bf16.msra.mxu0 0
    %1580 = vmatprep.subr.bf16.mxu0 0
    %1581 = vmatpush2.bf16.msra.mxu0 0
    %1582 = vmatprep.subr.bf16.mxu0 0
    %1583 = vmatpush2.bf16.msra.mxu0 0
    %1584 = vmatprep.subr.bf16.mxu0 0
    %1585 = vmatpush2.bf16.msra.mxu0 0
    %1586 = vmatprep.subr.bf16.mxu0 0
    %1587 = vmatpush2.bf16.msra.mxu0 0
    %1588 = vmatprep.subr.bf16.mxu0 0
    %1589 = vmatpush2.bf16.msra.mxu0 0
    %1590 = vmatprep.subr.bf16.mxu0 0
    %1591 = vmatpush2.bf16.msra.mxu0 0
    %1592 = vmatprep.mubr.bf16.mxu0 0
    %1593 = vmatmul.mubr.bf16.gmra.mxu0 %v1448
    %v1594 = vpop.f32.mrf.mxu0
    %v1595 = vadd.f32 0.0, %v1594
    %v1596 = vpop.f32.mrf.mxu0
    %v1597 = vpop.f32.mrf.mxu0
    %v1598 = vadd.f32 0.0, %v1597
    %v1599 = vpop.f32.mrf.mxu0
    %1600 = vmatprep.mubr.bf16.mxu0 0
    %1601 = vmatmul.mubr.bf16.gmra.mxu0 %v1449
    %v1602 = vpop.f32.mrf.mxu0
    %v1603 = vadd.f32 0.0, %v1602
    %v1604 = vpop.f32.mrf.mxu0
    %v1605 = vpop.f32.mrf.mxu0
    %v1606 = vadd.f32 0.0, %v1605
    %v1607 = vpop.f32.mrf.mxu0
    %1608 = vmatprep.mubr.bf16.mxu0 0
    %1609 = vmatmul.mubr.bf16.gmra.mxu0 %v1450
    %v1610 = vpop.f32.mrf.mxu0
    %v1611 = vadd.f32 0.0, %v1610
    %v1612 = vpop.f32.mrf.mxu0
    %v1613 = vpop.f32.mrf.mxu0
    %v1614 = vadd.f32 0.0, %v1613
    %v1615 = vpop.f32.mrf.mxu0
    %1616 = vmatprep.mubr.bf16.mxu0 0
    %1617 = vmatmul.mubr.bf16.gmra.mxu0 %v1451
    %v1618 = vpop.f32.mrf.mxu0
    %v1619 = vadd.f32 0.0, %v1618
    %v1620 = vpop.f32.mrf.mxu0
    %v1621 = vpop.f32.mrf.mxu0
    %v1622 = vadd.f32 0.0, %v1621
    %v1623 = vpop.f32.mrf.mxu0
    %1624 = vmatprep.mubr.bf16.mxu0 0
    %1625 = vmatmul.mubr.bf16.gmra.mxu0 %v1452
    %v1626 = vpop.f32.mrf.mxu0
    %v1627 = vadd.f32 0.0, %v1626
    %v1628 = vpop.f32.mrf.mxu0
    %v1629 = vpop.f32.mrf.mxu0
    %v1630 = vadd.f32 0.0, %v1629
    %v1631 = vpop.f32.mrf.mxu0
    %1632 = vmatprep.mubr.bf16.mxu0 0
    %1633 = vmatmul.mubr.bf16.gmra.mxu0 %v1453
    %v1634 = vpop.f32.mrf.mxu0
    %v1635 = vadd.f32 0.0, %v1634
    %v1636 = vpop.f32.mrf.mxu0
    %v1637 = vpop.f32.mrf.mxu0
    %v1638 = vadd.f32 0.0, %v1637
    %v1639 = vpop.f32.mrf.mxu0
    %1640 = vmatprep.mubr.bf16.mxu0 0
    %1641 = vmatmul.mubr.bf16.gmra.mxu0 %v1454
    %v1642 = vpop.f32.mrf.mxu0
    %v1643 = vadd.f32 0.0, %v1642
    %v1644 = vpop.f32.mrf.mxu0
    %v1645 = vpop.f32.mrf.mxu0
    %v1646 = vadd.f32 0.0, %v1645
    %v1647 = vpop.f32.mrf.mxu0
    %1648 = vmatprep.mubr.bf16.mxu0 0
    %1649 = vmatmul.mubr.bf16.gmra.mxu0 %v1455
    %v1650 = vpop.f32.mrf.mxu0
    %v1651 = vadd.f32 0.0, %v1650
    %v1652 = vpop.f32.mrf.mxu0
    %v1653 = vpop.f32.mrf.mxu0
    %v1654 = vadd.f32 0.0, %v1653
    %v1655 = vpop.f32.mrf.mxu0
    %1656 = vmatprep.mubr.bf16.mxu0 0
    %1657 = vmatmul.mubr.bf16.gmra.mxu0 %v1456
    %v1658 = vpop.f32.mrf.mxu0
    %v1659 = vadd.f32 0.0, %v1658
    %v1660 = vpop.f32.mrf.mxu0
    %v1661 = vpop.f32.mrf.mxu0
    %v1662 = vadd.f32 0.0, %v1661
    %v1663 = vpop.f32.mrf.mxu0
    %1664 = vmatprep.mubr.bf16.mxu0 0
    %1665 = vmatmul.mubr.bf16.gmra.mxu0 %v1457
    %v1666 = vpop.f32.mrf.mxu0
    %v1667 = vadd.f32 0.0, %v1666
    %v1668 = vpop.f32.mrf.mxu0
    %v1669 = vpop.f32.mrf.mxu0
    %v1670 = vadd.f32 0.0, %v1669
    %v1671 = vpop.f32.mrf.mxu0
    %1672 = vmatprep.mubr.bf16.mxu0 0
    %1673 = vmatmul.mubr.bf16.gmra.mxu0 %v1458
    %v1674 = vpop.f32.mrf.mxu0
    %v1675 = vadd.f32 0.0, %v1674
    %v1676 = vpop.f32.mrf.mxu0
    %v1677 = vpop.f32.mrf.mxu0
    %v1678 = vadd.f32 0.0, %v1677
    %v1679 = vpop.f32.mrf.mxu0
    %1680 = vmatprep.mubr.bf16.mxu0 0
    %1681 = vmatmul.mubr.bf16.gmra.mxu0 %v1459
    %v1682 = vpop.f32.mrf.mxu0
    %v1683 = vadd.f32 0.0, %v1682
    %v1684 = vpop.f32.mrf.mxu0
    %v1685 = vpop.f32.mrf.mxu0
    %v1686 = vadd.f32 0.0, %v1685
    %v1687 = vpop.f32.mrf.mxu0
    %1688 = vmatprep.mubr.bf16.mxu0 0
    %1689 = vmatmul.mubr.bf16.gmra.mxu0 %v1460
    %v1690 = vpop.f32.mrf.mxu0
    %v1691 = vadd.f32 0.0, %v1690
    %v1692 = vpop.f32.mrf.mxu0
    %v1693 = vpop.f32.mrf.mxu0
    %v1694 = vadd.f32 0.0, %v1693
    %v1695 = vpop.f32.mrf.mxu0
    %1696 = vmatprep.mubr.bf16.mxu0 0
    %1697 = vmatmul.mubr.bf16.gmra.mxu0 %v1461
    %v1698 = vpop.f32.mrf.mxu0
    %v1699 = vadd.f32 0.0, %v1698
    %v1700 = vpop.f32.mrf.mxu0
    %v1701 = vpop.f32.mrf.mxu0
    %v1702 = vadd.f32 0.0, %v1701
    %v1703 = vpop.f32.mrf.mxu0
    %1704 = vmatprep.mubr.bf16.mxu0 0
    %1705 = vmatmul.mubr.bf16.gmra.mxu0 %v1462
    %v1706 = vpop.f32.mrf.mxu0
    %v1707 = vadd.f32 0.0, %v1706
    %v1708 = vpop.f32.mrf.mxu0
    %v1709 = vpop.f32.mrf.mxu0
    %v1710 = vadd.f32 0.0, %v1709
    %v1711 = vpop.f32.mrf.mxu0
    %1712 = vmatprep.mubr.bf16.mxu0 0
    %1713 = vmatmul.mubr.bf16.gmra.mxu0 %v1463
    %v1714 = vpop.f32.mrf.mxu0
    %v1715 = vadd.f32 0.0, %v1714
    %v1716 = vpop.f32.mrf.mxu0
    %v1717 = vpop.f32.mrf.mxu0
    %v1718 = vadd.f32 0.0, %v1717
    %v1719 = vpop.f32.mrf.mxu0
    %1720 = vmatprep.mubr.bf16.mxu0 0
    %1721 = vmatmul.mubr.bf16.gmra.mxu0 %v1464
    %v1722 = vpop.f32.mrf.mxu0
    %v1723 = vadd.f32 0.0, %v1722
    %v1724 = vpop.f32.mrf.mxu0
    %v1725 = vpop.f32.mrf.mxu0
    %v1726 = vadd.f32 0.0, %v1725
    %v1727 = vpop.f32.mrf.mxu0
    %1728 = vmatprep.mubr.bf16.mxu0 0
    %1729 = vmatmul.mubr.bf16.gmra.mxu0 %v1465
    %v1730 = vpop.f32.mrf.mxu0
    %v1731 = vadd.f32 0.0, %v1730
    %v1732 = vpop.f32.mrf.mxu0
    %v1733 = vpop.f32.mrf.mxu0
    %v1734 = vadd.f32 0.0, %v1733
    %v1735 = vpop.f32.mrf.mxu0
    %1736 = vmatprep.mubr.bf16.mxu0 0
    %1737 = vmatmul.mubr.bf16.gmra.mxu0 %v1466
    %v1738 = vpop.f32.mrf.mxu0
    %v1739 = vadd.f32 0.0, %v1738
    %v1740 = vpop.f32.mrf.mxu0
    %v1741 = vpop.f32.mrf.mxu0
    %v1742 = vadd.f32 0.0, %v1741
    %v1743 = vpop.f32.mrf.mxu0
    %1744 = vmatprep.mubr.bf16.mxu0 0
    %1745 = vmatmul.mubr.bf16.gmra.mxu0 %v1467
    %v1746 = vpop.f32.mrf.mxu0
    %v1747 = vadd.f32 0.0, %v1746
    %v1748 = vpop.f32.mrf.mxu0
    %v1749 = vpop.f32.mrf.mxu0
    %v1750 = vadd.f32 0.0, %v1749
    %v1751 = vpop.f32.mrf.mxu0
    %1752 = vmatprep.mubr.bf16.mxu0 0
    %1753 = vmatmul.mubr.bf16.gmra.mxu0 %v1468
    %v1754 = vpop.f32.mrf.mxu0
    %v1755 = vadd.f32 0.0, %v1754
    %v1756 = vpop.f32.mrf.mxu0
    %v1757 = vpop.f32.mrf.mxu0
    %v1758 = vadd.f32 0.0, %v1757
    %v1759 = vpop.f32.mrf.mxu0
    %1760 = vmatprep.mubr.bf16.mxu0 0
    %1761 = vmatmul.mubr.bf16.gmra.mxu0 %v1469
    %v1762 = vpop.f32.mrf.mxu0
    %v1763 = vadd.f32 0.0, %v1762
    %v1764 = vpop.f32.mrf.mxu0
    %v1765 = vpop.f32.mrf.mxu0
    %v1766 = vadd.f32 0.0, %v1765
    %v1767 = vpop.f32.mrf.mxu0
    %1768 = vmatprep.mubr.bf16.mxu0 0
    %1769 = vmatmul.mubr.bf16.gmra.mxu0 %v1470
    %v1770 = vpop.f32.mrf.mxu0
    %v1771 = vadd.f32 0.0, %v1770
    %v1772 = vpop.f32.mrf.mxu0
    %v1773 = vpop.f32.mrf.mxu0
    %v1774 = vadd.f32 0.0, %v1773
    %v1775 = vpop.f32.mrf.mxu0
    %1776 = vmatprep.mubr.bf16.mxu0 0
    %1777 = vmatmul.mubr.bf16.gmra.mxu0 %v1471
    %v1778 = vpop.f32.mrf.mxu0
    %v1779 = vadd.f32 0.0, %v1778
    %v1780 = vpop.f32.mrf.mxu0
    %v1781 = vpop.f32.mrf.mxu0
    %v1782 = vadd.f32 0.0, %v1781
    %v1783 = vpop.f32.mrf.mxu0
    %1784 = vmatprep.mubr.bf16.mxu0 0
    %1785 = vmatmul.mubr.bf16.gmra.mxu0 %v1472
    %v1786 = vpop.f32.mrf.mxu0
    %v1787 = vadd.f32 0.0, %v1786
    %v1788 = vpop.f32.mrf.mxu0
    %v1789 = vpop.f32.mrf.mxu0
    %v1790 = vadd.f32 0.0, %v1789
    %v1791 = vpop.f32.mrf.mxu0
    %1792 = vmatprep.mubr.bf16.mxu0 0
    %1793 = vmatmul.mubr.bf16.gmra.mxu0 %v1473
    %v1794 = vpop.f32.mrf.mxu0
    %v1795 = vadd.f32 0.0, %v1794
    %v1796 = vpop.f32.mrf.mxu0
    %v1797 = vpop.f32.mrf.mxu0
    %v1798 = vadd.f32 0.0, %v1797
    %v1799 = vpop.f32.mrf.mxu0
    %1800 = vmatprep.mubr.bf16.mxu0 0
    %1801 = vmatmul.mubr.bf16.gmra.mxu0 %v1474
    %v1802 = vpop.f32.mrf.mxu0
    %v1803 = vadd.f32 0.0, %v1802
    %v1804 = vpop.f32.mrf.mxu0
    %v1805 = vpop.f32.mrf.mxu0
    %v1806 = vadd.f32 0.0, %v1805
    %v1807 = vpop.f32.mrf.mxu0
    %1808 = vmatprep.mubr.bf16.mxu0 0
    %1809 = vmatmul.mubr.bf16.gmra.mxu0 %v1475
    %v1810 = vpop.f32.mrf.mxu0
    %v1811 = vadd.f32 0.0, %v1810
    %v1812 = vpop.f32.mrf.mxu0
    %v1813 = vpop.f32.mrf.mxu0
    %v1814 = vadd.f32 0.0, %v1813
    %v1815 = vpop.f32.mrf.mxu0
    %1816 = vmatprep.mubr.bf16.mxu0 0
    %1817 = vmatmul.mubr.bf16.gmra.mxu0 %v1476
    %v1818 = vpop.f32.mrf.mxu0
    %v1819 = vadd.f32 0.0, %v1818
    %v1820 = vpop.f32.mrf.mxu0
    %v1821 = vpop.f32.mrf.mxu0
    %v1822 = vadd.f32 0.0, %v1821
    %v1823 = vpop.f32.mrf.mxu0
    %1824 = vmatprep.mubr.bf16.mxu0 0
    %1825 = vmatmul.mubr.bf16.gmra.mxu0 %v1477
    %v1826 = vpop.f32.mrf.mxu0
    %v1827 = vadd.f32 0.0, %v1826
    %v1828 = vpop.f32.mrf.mxu0
    %v1829 = vpop.f32.mrf.mxu0
    %v1830 = vadd.f32 0.0, %v1829
    %v1831 = vpop.f32.mrf.mxu0
    %1832 = vmatprep.mubr.bf16.mxu0 0
    %1833 = vmatmul.mubr.bf16.gmra.mxu0 %v1478
    %v1834 = vpop.f32.mrf.mxu0
    %v1835 = vadd.f32 0.0, %v1834
    %v1836 = vpop.f32.mrf.mxu0
    %v1837 = vpop.f32.mrf.mxu0
    %v1838 = vadd.f32 0.0, %v1837
    %v1839 = vpop.f32.mrf.mxu0
    %1840 = vmatprep.mubr.bf16.mxu0 0
    %1841 = vmatmul.mubr.bf16.gmra.mxu0 %v1479
    %v1842 = vpop.f32.mrf.mxu0
    %v1843 = vadd.f32 0.0, %v1842
    %v1844 = vpop.f32.mrf.mxu0
    %v1845 = vpop.f32.mrf.mxu0
    %v1846 = vadd.f32 0.0, %v1845
    %v1847 = vpop.f32.mrf.mxu0
    %1848 = vdwg.mxu0
    %v1849 = vadd.f32 %v986, %v1595
    %v1850 = vadd.f32 %v989, %v1598
    %v1851 = vadd.f32 %v994, %v1603
    %v1852 = vadd.f32 %v997, %v1606
    %v1853 = vadd.f32 %v1002, %v1611
    %v1854 = vadd.f32 %v1005, %v1614
    %v1855 = vadd.f32 %v1010, %v1619
    %v1856 = vadd.f32 %v1013, %v1622
    %v1857 = vadd.f32 %v1018, %v1627
    %v1858 = vadd.f32 %v1021, %v1630
    %v1859 = vadd.f32 %v1026, %v1635
    %v1860 = vadd.f32 %v1029, %v1638
    %v1861 = vadd.f32 %v1034, %v1643
    %v1862 = vadd.f32 %v1037, %v1646
    %v1863 = vadd.f32 %v1042, %v1651
    %v1864 = vadd.f32 %v1045, %v1654
    %v1865 = vadd.f32 %v1050, %v1659
    %v1866 = vadd.f32 %v1053, %v1662
    %v1867 = vadd.f32 %v1058, %v1667
    %v1868 = vadd.f32 %v1061, %v1670
    %v1869 = vadd.f32 %v1066, %v1675
    %v1870 = vadd.f32 %v1069, %v1678
    %v1871 = vadd.f32 %v1074, %v1683
    %v1872 = vadd.f32 %v1077, %v1686
    %v1873 = vadd.f32 %v1082, %v1691
    %v1874 = vadd.f32 %v1085, %v1694
    %v1875 = vadd.f32 %v1090, %v1699
    %v1876 = vadd.f32 %v1093, %v1702
    %v1877 = vadd.f32 %v1098, %v1707
    %v1878 = vadd.f32 %v1101, %v1710
    %v1879 = vadd.f32 %v1106, %v1715
    %v1880 = vadd.f32 %v1109, %v1718
    %v1881 = vadd.f32 %v1114, %v1723
    %v1882 = vadd.f32 %v1117, %v1726
    %v1883 = vadd.f32 %v1122, %v1731
    %v1884 = vadd.f32 %v1125, %v1734
    %v1885 = vadd.f32 %v1130, %v1739
    %v1886 = vadd.f32 %v1133, %v1742
    %v1887 = vadd.f32 %v1138, %v1747
    %v1888 = vadd.f32 %v1141, %v1750
    %v1889 = vadd.f32 %v1146, %v1755
    %v1890 = vadd.f32 %v1149, %v1758
    %v1891 = vadd.f32 %v1154, %v1763
    %v1892 = vadd.f32 %v1157, %v1766
    %v1893 = vadd.f32 %v1162, %v1771
    %v1894 = vadd.f32 %v1165, %v1774
    %v1895 = vadd.f32 %v1170, %v1779
    %v1896 = vadd.f32 %v1173, %v1782
    %v1897 = vadd.f32 %v1178, %v1787
    %v1898 = vadd.f32 %v1181, %v1790
    %v1899 = vadd.f32 %v1186, %v1795
    %v1900 = vadd.f32 %v1189, %v1798
    %v1901 = vadd.f32 %v1194, %v1803
    %v1902 = vadd.f32 %v1197, %v1806
    %v1903 = vadd.f32 %v1202, %v1811
    %v1904 = vadd.f32 %v1205, %v1814
    %v1905 = vadd.f32 %v1210, %v1819
    %v1906 = vadd.f32 %v1213, %v1822
    %v1907 = vadd.f32 %v1218, %v1827
    %v1908 = vadd.f32 %v1221, %v1830
    %v1909 = vadd.f32 %v1226, %v1835
    %v1910 = vadd.f32 %v1229, %v1838
    %v1911 = vadd.f32 %v1234, %v1843
    %v1912 = vadd.f32 %v1237, %v1846
    %v1913 = vld [vmem:[%s4] sm:$0x1]
    %v1915 = vlaneseq
    %v1916 = vshrl.u32 %v1915, 7
    %v1917 = vsub.s32 0, %v1916
    %v1918 = vrot.slane %v1913, %v1917
    %v1920 = vadd.f32 %v1849, %v1918
    %v1921 = vadd.f32 %v1850, %v1918
    %v1922 = vadd.f32 %v1851, %v1918
    %v1923 = vadd.f32 %v1852, %v1918
    %v1924 = vadd.f32 %v1853, %v1918
    %v1925 = vadd.f32 %v1854, %v1918
    %v1926 = vadd.f32 %v1855, %v1918
    %v1927 = vadd.f32 %v1856, %v1918
    %v1928 = vadd.f32 %v1857, %v1918
    %v1929 = vadd.f32 %v1858, %v1918
    %v1930 = vadd.f32 %v1859, %v1918
    %v1931 = vadd.f32 %v1860, %v1918
    %v1932 = vadd.f32 %v1861, %v1918
    %v1933 = vadd.f32 %v1862, %v1918
    %v1934 = vadd.f32 %v1863, %v1918
    %v1935 = vadd.f32 %v1864, %v1918
    %v1936 = vadd.f32 %v1865, %v1918
    %v1937 = vadd.f32 %v1866, %v1918
    %v1938 = vadd.f32 %v1867, %v1918
    %v1939 = vadd.f32 %v1868, %v1918
    %v1940 = vadd.f32 %v1869, %v1918
    %v1941 = vadd.f32 %v1870, %v1918
    %v1942 = vadd.f32 %v1871, %v1918
    %v1943 = vadd.f32 %v1872, %v1918
    %v1944 = vadd.f32 %v1873, %v1918
    %v1945 = vadd.f32 %v1874, %v1918
    %v1946 = vadd.f32 %v1875, %v1918
    %v1947 = vadd.f32 %v1876, %v1918
    %v1948 = vadd.f32 %v1877, %v1918
    %v1949 = vadd.f32 %v1878, %v1918
    %v1950 = vadd.f32 %v1879, %v1918
    %v1951 = vadd.f32 %v1880, %v1918
    %v1952 = vadd.f32 %v1881, %v1918
    %v1953 = vadd.f32 %v1882, %v1918
    %v1954 = vadd.f32 %v1883, %v1918
    %v1955 = vadd.f32 %v1884, %v1918
    %v1956 = vadd.f32 %v1885, %v1918
    %v1957 = vadd.f32 %v1886, %v1918
    %v1958 = vadd.f32 %v1887, %v1918
    %v1959 = vadd.f32 %v1888, %v1918
    %v1960 = vadd.f32 %v1889, %v1918
    %v1961 = vadd.f32 %v1890, %v1918
    %v1962 = vadd.f32 %v1891, %v1918
    %v1963 = vadd.f32 %v1892, %v1918
    %v1964 = vadd.f32 %v1893, %v1918
    %v1965 = vadd.f32 %v1894, %v1918
    %v1966 = vadd.f32 %v1895, %v1918
    %v1967 = vadd.f32 %v1896, %v1918
    %v1968 = vadd.f32 %v1897, %v1918
    %v1969 = vadd.f32 %v1898, %v1918
    %v1970 = vadd.f32 %v1899, %v1918
    %v1971 = vadd.f32 %v1900, %v1918
    %v1972 = vadd.f32 %v1901, %v1918
    %v1973 = vadd.f32 %v1902, %v1918
    %v1974 = vadd.f32 %v1903, %v1918
    %v1975 = vadd.f32 %v1904, %v1918
    %v1976 = vadd.f32 %v1905, %v1918
    %v1977 = vadd.f32 %v1906, %v1918
    %v1978 = vadd.f32 %v1907, %v1918
    %v1979 = vadd.f32 %v1908, %v1918
    %v1980 = vadd.f32 %v1909, %v1918
    %v1981 = vadd.f32 %v1910, %v1918
    %v1982 = vadd.f32 %v1911, %v1918
    %v1983 = vadd.f32 %v1912, %v1918
    %1984 = vst [vmem:[#allocation2] sm:$0xff] %v1920
    %1985 = vst [vmem:[#allocation2 + $0x8] sm:$0xff] %v1921
    %1986 = vst [vmem:[#allocation2 + $0x10] sm:$0xff] %v1922
    %1987 = vst [vmem:[#allocation2 + $0x18] sm:$0xff] %v1923
    %1988 = vst [vmem:[#allocation2 + $0x20] sm:$0xff] %v1924
    %1989 = vst [vmem:[#allocation2 + $0x28] sm:$0xff] %v1925
    %1990 = vst [vmem:[#allocation2 + $0x30] sm:$0xff] %v1926
    %1991 = vst [vmem:[#allocation2 + $0x38] sm:$0xff] %v1927
    %1992 = vst [vmem:[#allocation2 + $0x40] sm:$0xff] %v1928
    %1993 = vst [vmem:[#allocation2 + $0x48] sm:$0xff] %v1929
    %1994 = vst [vmem:[#allocation2 + $0x50] sm:$0xff] %v1930
    %1995 = vst [vmem:[#allocation2 + $0x58] sm:$0xff] %v1931
    %1996 = vst [vmem:[#allocation2 + $0x60] sm:$0xff] %v1932
    %1997 = vst [vmem:[#allocation2 + $0x68] sm:$0xff] %v1933
    %1998 = vst [vmem:[#allocation2 + $0x70] sm:$0xff] %v1934
    %1999 = vst [vmem:[#allocation2 + $0x78] sm:$0xff] %v1935
    %2000 = vst [vmem:[#allocation2 + $0x80] sm:$0xff] %v1936
    %2001 = vst [vmem:[#allocation2 + $0x88] sm:$0xff] %v1937
    %2002 = vst [vmem:[#allocation2 + $0x90] sm:$0xff] %v1938
    %2003 = vst [vmem:[#allocation2 + $0x98] sm:$0xff] %v1939
    %2004 = vst [vmem:[#allocation2 + $0xa0] sm:$0xff] %v1940
    %2005 = vst [vmem:[#allocation2 + $0xa8] sm:$0xff] %v1941
    %2006 = vst [vmem:[#allocation2 + $0xb0] sm:$0xff] %v1942
    %2007 = vst [vmem:[#allocation2 + $0xb8] sm:$0xff] %v1943
    %2008 = vst [vmem:[#allocation2 + $0xc0] sm:$0xff] %v1944
    %2009 = vst [vmem:[#allocation2 + $0xc8] sm:$0xff] %v1945
    %2010 = vst [vmem:[#allocation2 + $0xd0] sm:$0xff] %v1946
    %2011 = vst [vmem:[#allocation2 + $0xd8] sm:$0xff] %v1947
    %2012 = vst [vmem:[#allocation2 + $0xe0] sm:$0xff] %v1948
    %2013 = vst [vmem:[#allocation2 + $0xe8] sm:$0xff] %v1949
    %2014 = vst [vmem:[#allocation2 + $0xf0] sm:$0xff] %v1950
    %2015 = vst [vmem:[#allocation2 + $0xf8] sm:$0xff] %v1951
    %2016 = vst [vmem:[#allocation2 + $0x100] sm:$0xff] %v1952
    %2017 = vst [vmem:[#allocation2 + $0x108] sm:$0xff] %v1953
    %2018 = vst [vmem:[#allocation2 + $0x110] sm:$0xff] %v1954
    %2019 = vst [vmem:[#allocation2 + $0x118] sm:$0xff] %v1955
    %2020 = vst [vmem:[#allocation2 + $0x120] sm:$0xff] %v1956
    %2021 = vst [vmem:[#allocation2 + $0x128] sm:$0xff] %v1957
    %2022 = vst [vmem:[#allocation2 + $0x130] sm:$0xff] %v1958
    %2023 = vst [vmem:[#allocation2 + $0x138] sm:$0xff] %v1959
    %2024 = vst [vmem:[#allocation2 + $0x140] sm:$0xff] %v1960
    %2025 = vst [vmem:[#allocation2 + $0x148] sm:$0xff] %v1961
    %2026 = vst [vmem:[#allocation2 + $0x150] sm:$0xff] %v1962
    %2027 = vst [vmem:[#allocation2 + $0x158] sm:$0xff] %v1963
    %2028 = vst [vmem:[#allocation2 + $0x160] sm:$0xff] %v1964
    %2029 = vst [vmem:[#allocation2 + $0x168] sm:$0xff] %v1965
    %2030 = vst [vmem:[#allocation2 + $0x170] sm:$0xff] %v1966
    %2031 = vst [vmem:[#allocation2 + $0x178] sm:$0xff] %v1967
    %2032 = vst [vmem:[#allocation2 + $0x180] sm:$0xff] %v1968
    %2033 = vst [vmem:[#allocation2 + $0x188] sm:$0xff] %v1969
    %2034 = vst [vmem:[#allocation2 + $0x190] sm:$0xff] %v1970
    %2035 = vst [vmem:[#allocation2 + $0x198] sm:$0xff] %v1971
    %2036 = vst [vmem:[#allocation2 + $0x1a0] sm:$0xff] %v1972
    %2037 = vst [vmem:[#allocation2 + $0x1a8] sm:$0xff] %v1973
    %2038 = vst [vmem:[#allocation2 + $0x1b0] sm:$0xff] %v1974
    %2039 = vst [vmem:[#allocation2 + $0x1b8] sm:$0xff] %v1975
    %2040 = vst [vmem:[#allocation2 + $0x1c0] sm:$0xff] %v1976
    %2041 = vst [vmem:[#allocation2 + $0x1c8] sm:$0xff] %v1977
    %2042 = vst [vmem:[#allocation2 + $0x1d0] sm:$0xff] %v1978
    %2043 = vst [vmem:[#allocation2 + $0x1d8] sm:$0xff] %v1979
    %2044 = vst [vmem:[#allocation2 + $0x1e0] sm:$0xff] %v1980
    %2045 = vst [vmem:[#allocation2 + $0x1e8] sm:$0xff] %v1981
    %2046 = vst [vmem:[#allocation2 + $0x1f0] sm:$0xff] %v1982
    %2047 = vst [vmem:[#allocation2 + $0x1f8] sm:$0xff] %v1983
    // Predicated region
    $region22: #{ngcf_forward.5} parent=1 // pred_check
      _
    $region23: #{ngcf_forward.5} parent=1 // pred_check_branch
      %2049 = sbr.rel (0) target = $region25
    $region24: #{ngcf_forward.5} parent=1 // pred_region
      %s2051 = ssub.s32 8192, 8192
      %2052 = vsyncadd [#allocation3], %s2051
      %s2053 = sshll.u32 [#allocation2], 4
      %s2054 = int_to_ptr.vmem [resolvable:$true] %s2053
      %2059 = dma.vmem_to_hbm [thread:$0]  %s2054, 8192, %s5, [#allocation3], 128, 128, 8
    $region25: #{ngcf_forward.5} parent=1 // pred_fallthru
      _
    // Predicated region
    $region26: #{ngcf_forward.5} parent=1 // pred_check
      _
    $region27: #{ngcf_forward.5} parent=1 // pred_check_branch
      %2061 = sbr.rel (0) target = $region29
    $region28: #{ngcf_forward.5} parent=1 // pred_region
      %2062 = dma.done [#allocation3], 8192
    $region29: #{ngcf_forward.5} parent=1 // pred_fallthru
      _
    %2063 = vsyncpa [#allocation3], 1

// kernel: ngcf_forward.3
$region0: #{ngcf_forward.3}
  #allocation0 [shape = 'u32[]', space=smem, size = 0x4, offset = 0x4, fixed_abs, tag = 'smem constant byte address 0x4 - core index']
  #allocation1 [shape = 'u32[144,128]{1,0:T(1,128)}', space=vmem, size = 0x12000, scoped, tag = 'internal scratch']
  #allocation2 [shape = 'f32[512,128]{1,0:T(8,128)}', space=vmem, size = 0x40000, scoped, tag = 'scratch operand']
  #allocation3 [shape = 's32[1]{0}', space=sflag, size = 0x4, scoped, tag = 'scoped memory for ngcf_forward.3']
  #allocation4 [shape = 's32[1,1]{1,0:T(1,128)S(6)}', space=smem, size = 0x200, scoped, tag = 'prefetched SMEM operand 0']
  #allocation5 [shape = 's32[1]{0:T(128)S(6)}', space=smem, size = 0x200, scoped, tag = 'prefetched SMEM operand 1']
  %s0 = inlined_call_operand.<no memory space> [shape: s32[1,1], index: 0, kind: input, shape index: {}]
  %s1 = inlined_call_operand.<no memory space> [shape: s32[1], index: 1, kind: input, shape index: {}]
  %s2 = inlined_call_operand.hbm [shape: bf16[512,512], index: 2, kind: input, shape index: {}]
  %s3 = inlined_call_operand.hbm [shape: bf16[512,128], index: 3, kind: input, shape index: {}]
  %s4 = inlined_call_operand.hbm [shape: f32[128,128], index: 4, kind: input, shape index: {}]
  %s5 = inlined_call_operand.hbm [shape: f32[128,128], index: 5, kind: input, shape index: {}]
  %s6 = inlined_call_operand.hbm [shape: f32[1,128], index: 6, kind: input, shape index: {}]
  %s7 = inlined_call_operand.vmem [shape: bf16[512,128], index: 7, kind: output, shape index: {0}]
  %s8 = inlined_call_operand.vmem [shape: bf16[512,128], index: 8, kind: output, shape index: {1}]
  %9 = xla_tuple %s7, %s8
  %s10 = sld [smem:[#allocation0]]
  $region70: #{ngcf_forward.3} parent=0
    _
  %s12 = ssub.s32 1, %s10
  %s13 = scalar_select 0, %s12, %s10
  %14 = sst [smem:[#allocation4]] %s0
  %15 = sst [smem:[#allocation5]] %s1
  $region1: #{ngcf_forward.3} parent=0
    #allocation6 [shape = 'u8[524288]{0}', space=vmem, size = 0x80000, scoped, tag = 'input window, operand 2, single buffered']
    #allocation7 [shape = 's32[1]{0}', space=sflag, size = 0x4, scoped, tag = 'scoped memory for ngcf_forward.3']
    #allocation8 [shape = 'u8[131072]{0}', space=vmem, size = 0x20000, scoped, tag = 'input window, operand 3, single buffered']
    #allocation9 [shape = 's32[1]{0}', space=sflag, size = 0x4, scoped, tag = 'scoped memory for ngcf_forward.3']
    #allocation10 [shape = 'u8[65536]{0}', space=vmem, size = 0x10000, scoped, tag = 'input window, operand 4, single buffered']
    #allocation11 [shape = 'u8[65536]{0}', space=vmem, size = 0x10000, scoped, tag = 'input window, operand 5, single buffered']
    #allocation12 [shape = 's32[1]{0}', space=sflag, size = 0x4, scoped, tag = 'scoped memory for ngcf_forward.3']
    #allocation13 [shape = 'u8[512]{0}', space=vmem, size = 0x400, scoped, tag = 'input window, operand 6, single buffered']
    %16 = vsyncpa [#allocation7], 0
    %17 = vsyncpa [#allocation9], 0
    %18 = vsyncpa [#allocation12], 0
    // Predicated region
    $region2: #{ngcf_forward.3} parent=1 // pred_check
      _
    $region3: #{ngcf_forward.3} parent=1 // pred_check_branch
      %20 = sbr.rel (0) target = $region5
    $region4: #{ngcf_forward.3} parent=1 // pred_region
      %s21 = sadd.s32 0, 0
      %s22 = smul.u32 %s21, 128
      %s23 = sadd.s32 %s22, 0
      %s24 = sld [smem:[#allocation4 + %s23]]
      %s25 = smul.u32 4, %s24
      %s27 = ssub.s32 16384, 16384
      %28 = vsyncadd [#allocation7], %s27
      %s29 = smul.addr %s25, 64
      %s30 = scalar_lea.hbm %s2, %s29
      %s31 = sshll.u32 [#allocation6], 4
      %s32 = int_to_ptr.vmem [resolvable:$true] %s31
      %37 = dma.hbm_to_vmem [thread:$0]  %s30, 16384, %s32, [#allocation7], 256, 256, 16
    $region5: #{ngcf_forward.3} parent=1 // pred_fallthru
      _
    // Predicated region
    $region6: #{ngcf_forward.3} parent=1 // pred_check
      _
    $region7: #{ngcf_forward.3} parent=1 // pred_check_branch
      %39 = sbr.rel (0) target = $region9
    $region8: #{ngcf_forward.3} parent=1 // pred_region
      %s41 = ssub.s32 4096, 4096
      %42 = vsyncadd [#allocation9], %s41
      %s43 = sshll.u32 [#allocation8], 4
      %s44 = int_to_ptr.vmem [resolvable:$true] %s43
      %49 = dma.hbm_to_vmem [thread:$0]  %s3, 4096, %s44, [#allocation9], 64, 64, 4
    $region9: #{ngcf_forward.3} parent=1 // pred_fallthru
      _
    // Predicated region
    $region10: #{ngcf_forward.3} parent=1 // pred_check
      _
    $region11: #{ngcf_forward.3} parent=1 // pred_check_branch
      %51 = sbr.rel (0) target = $region13
    $region12: #{ngcf_forward.3} parent=1 // pred_region
      %s53 = ssub.s32 2048, 2048
      %54 = vsyncadd [#allocation9], %s53
      %s55 = sshll.u32 [#allocation10], 4
      %s56 = int_to_ptr.vmem [resolvable:$true] %s55
      %61 = dma.hbm_to_vmem [thread:$0]  %s4, 2048, %s56, [#allocation9], 128, 128, 8
    $region13: #{ngcf_forward.3} parent=1 // pred_fallthru
      _
    // Predicated region
    $region14: #{ngcf_forward.3} parent=1 // pred_check
      _
    $region15: #{ngcf_forward.3} parent=1 // pred_check_branch
      %63 = sbr.rel (0) target = $region17
    $region16: #{ngcf_forward.3} parent=1 // pred_region
      %s65 = ssub.s32 2048, 2048
      %66 = vsyncadd [#allocation12], %s65
      %s67 = sshll.u32 [#allocation11], 4
      %s68 = int_to_ptr.vmem [resolvable:$true] %s67
      %73 = dma.hbm_to_vmem [thread:$0]  %s5, 2048, %s68, [#allocation12], 128, 128, 8
    $region17: #{ngcf_forward.3} parent=1 // pred_fallthru
      _
    // Predicated region
    $region18: #{ngcf_forward.3} parent=1 // pred_check
      _
    $region19: #{ngcf_forward.3} parent=1 // pred_check_branch
      %75 = sbr.rel (0) target = $region21
    $region20: #{ngcf_forward.3} parent=1 // pred_region
      %s77 = ssub.s32 16, 16
      %78 = vsyncadd [#allocation12], %s77
      %s80 = sshll.u32 [#allocation13], 4
      %s81 = int_to_ptr.vmem [resolvable:$true] %s80
      %83 = dma.hbm_to_vmem [thread:$0]  %s6, 16, %s81, [#allocation12]
    $region21: #{ngcf_forward.3} parent=1 // pred_fallthru
      _
    // Predicated region
    $region22: #{ngcf_forward.3} parent=1 // pred_check
      _
    $region23: #{ngcf_forward.3} parent=1 // pred_check_branch
      %85 = sbr.rel (0) target = $region25
    $region24: #{ngcf_forward.3} parent=1 // pred_region
      %86 = dma.done [#allocation7], 16384
    $region25: #{ngcf_forward.3} parent=1 // pred_fallthru
      _
    // Predicated region
    $region26: #{ngcf_forward.3} parent=1 // pred_check
      _
    $region27: #{ngcf_forward.3} parent=1 // pred_check_branch
      %88 = sbr.rel (0) target = $region29
    $region28: #{ngcf_forward.3} parent=1 // pred_region
      %89 = dma.done [#allocation9], 4096
    $region29: #{ngcf_forward.3} parent=1 // pred_fallthru
      _
    // Predicated region
    $region30: #{ngcf_forward.3} parent=1 // pred_check
      _
    $region31: #{ngcf_forward.3} parent=1 // pred_check_branch
      %91 = sbr.rel (0) target = $region33
    $region32: #{ngcf_forward.3} parent=1 // pred_region
      %92 = dma.done [#allocation9], 2048
    $region33: #{ngcf_forward.3} parent=1 // pred_fallthru
      _
    // Predicated region
    $region34: #{ngcf_forward.3} parent=1 // pred_check
      _
    $region35: #{ngcf_forward.3} parent=1 // pred_check_branch
      %94 = sbr.rel (0) target = $region37
    $region36: #{ngcf_forward.3} parent=1 // pred_region
      %95 = dma.done [#allocation12], 2048
    $region37: #{ngcf_forward.3} parent=1 // pred_fallthru
      _
    // Predicated region
    $region38: #{ngcf_forward.3} parent=1 // pred_check
      _
    $region39: #{ngcf_forward.3} parent=1 // pred_check_branch
      %97 = sbr.rel (0) target = $region41
    $region40: #{ngcf_forward.3} parent=1 // pred_region
      %98 = dma.done [#allocation12], 16
    $region41: #{ngcf_forward.3} parent=1 // pred_fallthru
      _
    %s99 = sadd.s32 0, 0
    %s100 = smul.u32 %s99, 128
    %s101 = sadd.s32 %s100, 0
    %s102 = sld [smem:[#allocation4 + %s101]]
    %s103 = smul.u32 4, %s102
    %p105 = scmp.eq.s32.totalorder 0, 0
    // Predicated region
    $region42: #{ngcf_forward.3} parent=1 // pred_check
      %p106 = pneg %p105
    $region43: #{ngcf_forward.3} parent=1 // pred_check_branch
      %108 = sbr.rel (%p106) target = $region45
    $region44: #{ngcf_forward.3} parent=1 // pred_region
      %109 = vst [vmem:[#allocation2] sm:$0xff] 0.0
      %110 = vst [vmem:[#allocation2 + $0x8] sm:$0xff] 0.0
      %111 = vst [vmem:[#allocation2 + $0x10] sm:$0xff] 0.0
      %112 = vst [vmem:[#allocation2 + $0x18] sm:$0xff] 0.0
      %113 = vst [vmem:[#allocation2 + $0x20] sm:$0xff] 0.0
      %114 = vst [vmem:[#allocation2 + $0x28] sm:$0xff] 0.0
      %115 = vst [vmem:[#allocation2 + $0x30] sm:$0xff] 0.0
      %116 = vst [vmem:[#allocation2 + $0x38] sm:$0xff] 0.0
      %117 = vst [vmem:[#allocation2 + $0x40] sm:$0xff] 0.0
      %118 = vst [vmem:[#allocation2 + $0x48] sm:$0xff] 0.0
      %119 = vst [vmem:[#allocation2 + $0x50] sm:$0xff] 0.0
      %120 = vst [vmem:[#allocation2 + $0x58] sm:$0xff] 0.0
      %121 = vst [vmem:[#allocation2 + $0x60] sm:$0xff] 0.0
      %122 = vst [vmem:[#allocation2 + $0x68] sm:$0xff] 0.0
      %123 = vst [vmem:[#allocation2 + $0x70] sm:$0xff] 0.0
      %124 = vst [vmem:[#allocation2 + $0x78] sm:$0xff] 0.0
      %125 = vst [vmem:[#allocation2 + $0x80] sm:$0xff] 0.0
      %126 = vst [vmem:[#allocation2 + $0x88] sm:$0xff] 0.0
      %127 = vst [vmem:[#allocation2 + $0x90] sm:$0xff] 0.0
      %128 = vst [vmem:[#allocation2 + $0x98] sm:$0xff] 0.0
      %129 = vst [vmem:[#allocation2 + $0xa0] sm:$0xff] 0.0
      %130 = vst [vmem:[#allocation2 + $0xa8] sm:$0xff] 0.0
      %131 = vst [vmem:[#allocation2 + $0xb0] sm:$0xff] 0.0
      %132 = vst [vmem:[#allocation2 + $0xb8] sm:$0xff] 0.0
      %133 = vst [vmem:[#allocation2 + $0xc0] sm:$0xff] 0.0
      %134 = vst [vmem:[#allocation2 + $0xc8] sm:$0xff] 0.0
      %135 = vst [vmem:[#allocation2 + $0xd0] sm:$0xff] 0.0
      %136 = vst [vmem:[#allocation2 + $0xd8] sm:$0xff] 0.0
      %137 = vst [vmem:[#allocation2 + $0xe0] sm:$0xff] 0.0
      %138 = vst [vmem:[#allocation2 + $0xe8] sm:$0xff] 0.0
      %139 = vst [vmem:[#allocation2 + $0xf0] sm:$0xff] 0.0
      %140 = vst [vmem:[#allocation2 + $0xf8] sm:$0xff] 0.0
      %141 = vst [vmem:[#allocation2 + $0x100] sm:$0xff] 0.0
      %142 = vst [vmem:[#allocation2 + $0x108] sm:$0xff] 0.0
      %143 = vst [vmem:[#allocation2 + $0x110] sm:$0xff] 0.0
      %144 = vst [vmem:[#allocation2 + $0x118] sm:$0xff] 0.0
      %145 = vst [vmem:[#allocation2 + $0x120] sm:$0xff] 0.0
      %146 = vst [vmem:[#allocation2 + $0x128] sm:$0xff] 0.0
      %147 = vst [vmem:[#allocation2 + $0x130] sm:$0xff] 0.0
      %148 = vst [vmem:[#allocation2 + $0x138] sm:$0xff] 0.0
      %149 = vst [vmem:[#allocation2 + $0x140] sm:$0xff] 0.0
      %150 = vst [vmem:[#allocation2 + $0x148] sm:$0xff] 0.0
      %151 = vst [vmem:[#allocation2 + $0x150] sm:$0xff] 0.0
      %152 = vst [vmem:[#allocation2 + $0x158] sm:$0xff] 0.0
      %153 = vst [vmem:[#allocation2 + $0x160] sm:$0xff] 0.0
      %154 = vst [vmem:[#allocation2 + $0x168] sm:$0xff] 0.0
      %155 = vst [vmem:[#allocation2 + $0x170] sm:$0xff] 0.0
      %156 = vst [vmem:[#allocation2 + $0x178] sm:$0xff] 0.0
      %157 = vst [vmem:[#allocation2 + $0x180] sm:$0xff] 0.0
      %158 = vst [vmem:[#allocation2 + $0x188] sm:$0xff] 0.0
      %159 = vst [vmem:[#allocation2 + $0x190] sm:$0xff] 0.0
      %160 = vst [vmem:[#allocation2 + $0x198] sm:$0xff] 0.0
      %161 = vst [vmem:[#allocation2 + $0x1a0] sm:$0xff] 0.0
      %162 = vst [vmem:[#allocation2 + $0x1a8] sm:$0xff] 0.0
      %163 = vst [vmem:[#allocation2 + $0x1b0] sm:$0xff] 0.0
      %164 = vst [vmem:[#allocation2 + $0x1b8] sm:$0xff] 0.0
      %165 = vst [vmem:[#allocation2 + $0x1c0] sm:$0xff] 0.0
      %166 = vst [vmem:[#allocation2 + $0x1c8] sm:$0xff] 0.0
      %167 = vst [vmem:[#allocation2 + $0x1d0] sm:$0xff] 0.0
      %168 = vst [vmem:[#allocation2 + $0x1d8] sm:$0xff] 0.0
      %169 = vst [vmem:[#allocation2 + $0x1e0] sm:$0xff] 0.0
      %170 = vst [vmem:[#allocation2 + $0x1e8] sm:$0xff] 0.0
      %171 = vst [vmem:[#allocation2 + $0x1f0] sm:$0xff] 0.0
      %172 = vst [vmem:[#allocation2 + $0x1f8] sm:$0xff] 0.0
    $region45: #{ngcf_forward.3} parent=1 // pred_fallthru
      _
    %s173 = sld [smem:[#allocation5]]
    %p174 = scmp.lt.s32.totalorder 0, %s173
    // Predicated region
    $region46: #{ngcf_forward.3} parent=1 // pred_check
      %p175 = pneg %p174
    $region47: #{ngcf_forward.3} parent=1 // pred_check_branch
      %177 = sbr.rel (%p175) target = $region49
    $region48: #{ngcf_forward.3} parent=1 // pred_region
      %s178 = sadd.s32 0, 0
      %s179 = smul.u32 %s178, 128
      %s180 = sadd.s32 %s179, 0
      %s181 = sld [smem:[#allocation4 + %s180]]
      %s182 = smul.u32 %s181, 512
      %v183 = vld [vmem:[#allocation2] sm:$0xff]
      %v184 = vld [vmem:[#allocation2 + $0x8] sm:$0xff]
      %v185 = vld [vmem:[#allocation2 + $0x10] sm:$0xff]
      %v186 = vld [vmem:[#allocation2 + $0x18] sm:$0xff]
      %v187 = vld [vmem:[#allocation2 + $0x20] sm:$0xff]
      %v188 = vld [vmem:[#allocation2 + $0x28] sm:$0xff]
      %v189 = vld [vmem:[#allocation2 + $0x30] sm:$0xff]
      %v190 = vld [vmem:[#allocation2 + $0x38] sm:$0xff]
      %v191 = vld [vmem:[#allocation2 + $0x40] sm:$0xff]
      %v192 = vld [vmem:[#allocation2 + $0x48] sm:$0xff]
      %v193 = vld [vmem:[#allocation2 + $0x50] sm:$0xff]
      %v194 = vld [vmem:[#allocation2 + $0x58] sm:$0xff]
      %v195 = vld [vmem:[#allocation2 + $0x60] sm:$0xff]
      %v196 = vld [vmem:[#allocation2 + $0x68] sm:$0xff]
      %v197 = vld [vmem:[#allocation2 + $0x70] sm:$0xff]
      %v198 = vld [vmem:[#allocation2 + $0x78] sm:$0xff]
      %v199 = vld [vmem:[#allocation2 + $0x80] sm:$0xff]
      %v200 = vld [vmem:[#allocation2 + $0x88] sm:$0xff]
      %v201 = vld [vmem:[#allocation2 + $0x90] sm:$0xff]
      %v202 = vld [vmem:[#allocation2 + $0x98] sm:$0xff]
      %v203 = vld [vmem:[#allocation2 + $0xa0] sm:$0xff]
      %v204 = vld [vmem:[#allocation2 + $0xa8] sm:$0xff]
      %v205 = vld [vmem:[#allocation2 + $0xb0] sm:$0xff]
      %v206 = vld [vmem:[#allocation2 + $0xb8] sm:$0xff]
      %v207 = vld [vmem:[#allocation2 + $0xc0] sm:$0xff]
      %v208 = vld [vmem:[#allocation2 + $0xc8] sm:$0xff]
      %v209 = vld [vmem:[#allocation2 + $0xd0] sm:$0xff]
      %v210 = vld [vmem:[#allocation2 + $0xd8] sm:$0xff]
      %v211 = vld [vmem:[#allocation2 + $0xe0] sm:$0xff]
      %v212 = vld [vmem:[#allocation2 + $0xe8] sm:$0xff]
      %v213 = vld [vmem:[#allocation2 + $0xf0] sm:$0xff]
      %v214 = vld [vmem:[#allocation2 + $0xf8] sm:$0xff]
      %v215 = vld [vmem:[#allocation2 + $0x100] sm:$0xff]
      %v216 = vld [vmem:[#allocation2 + $0x108] sm:$0xff]
      %v217 = vld [vmem:[#allocation2 + $0x110] sm:$0xff]
      %v218 = vld [vmem:[#allocation2 + $0x118] sm:$0xff]
      %v219 = vld [vmem:[#allocation2 + $0x120] sm:$0xff]
      %v220 = vld [vmem:[#allocation2 + $0x128] sm:$0xff]
      %v221 = vld [vmem:[#allocation2 + $0x130] sm:$0xff]
      %v222 = vld [vmem:[#allocation2 + $0x138] sm:$0xff]
      %v223 = vld [vmem:[#allocation2 + $0x140] sm:$0xff]
      %v224 = vld [vmem:[#allocation2 + $0x148] sm:$0xff]
      %v225 = vld [vmem:[#allocation2 + $0x150] sm:$0xff]
      %v226 = vld [vmem:[#allocation2 + $0x158] sm:$0xff]
      %v227 = vld [vmem:[#allocation2 + $0x160] sm:$0xff]
      %v228 = vld [vmem:[#allocation2 + $0x168] sm:$0xff]
      %v229 = vld [vmem:[#allocation2 + $0x170] sm:$0xff]
      %v230 = vld [vmem:[#allocation2 + $0x178] sm:$0xff]
      %v231 = vld [vmem:[#allocation2 + $0x180] sm:$0xff]
      %v232 = vld [vmem:[#allocation2 + $0x188] sm:$0xff]
      %v233 = vld [vmem:[#allocation2 + $0x190] sm:$0xff]
      %v234 = vld [vmem:[#allocation2 + $0x198] sm:$0xff]
      %v235 = vld [vmem:[#allocation2 + $0x1a0] sm:$0xff]
      %v236 = vld [vmem:[#allocation2 + $0x1a8] sm:$0xff]
      %v237 = vld [vmem:[#allocation2 + $0x1b0] sm:$0xff]
      %v238 = vld [vmem:[#allocation2 + $0x1b8] sm:$0xff]
      %v239 = vld [vmem:[#allocation2 + $0x1c0] sm:$0xff]
      %v240 = vld [vmem:[#allocation2 + $0x1c8] sm:$0xff]
      %v241 = vld [vmem:[#allocation2 + $0x1d0] sm:$0xff]
      %v242 = vld [vmem:[#allocation2 + $0x1d8] sm:$0xff]
      %v243 = vld [vmem:[#allocation2 + $0x1e0] sm:$0xff]
      %v244 = vld [vmem:[#allocation2 + $0x1e8] sm:$0xff]
      %v245 = vld [vmem:[#allocation2 + $0x1f0] sm:$0xff]
      %v246 = vld [vmem:[#allocation2 + $0x1f8] sm:$0xff]
      %v247 = vld [vmem:[#allocation6] sm:$0xff]
      %v248 = vld [vmem:[#allocation6 + $0x8] sm:$0xff]
      %v249 = vld [vmem:[#allocation6 + $0x10] sm:$0xff]
      %v250 = vld [vmem:[#allocation6 + $0x18] sm:$0xff]
      %v251 = vld [vmem:[#allocation6 + $0x20] sm:$0xff]
      %v252 = vld [vmem:[#allocation6 + $0x28] sm:$0xff]
      %v253 = vld [vmem:[#allocation6 + $0x30] sm:$0xff]
      %v254 = vld [vmem:[#allocation6 + $0x38] sm:$0xff]
      %v255 = vld [vmem:[#allocation6 + $0x40] sm:$0xff]
      %v256 = vld [vmem:[#allocation6 + $0x48] sm:$0xff]
      %v257 = vld [vmem:[#allocation6 + $0x50] sm:$0xff]
      %v258 = vld [vmem:[#allocation6 + $0x58] sm:$0xff]
      %v259 = vld [vmem:[#allocation6 + $0x60] sm:$0xff]
      %v260 = vld [vmem:[#allocation6 + $0x68] sm:$0xff]
      %v261 = vld [vmem:[#allocation6 + $0x70] sm:$0xff]
      %v262 = vld [vmem:[#allocation6 + $0x78] sm:$0xff]
      %v263 = vld [vmem:[#allocation6 + $0x80] sm:$0xff]
      %v264 = vld [vmem:[#allocation6 + $0x88] sm:$0xff]
      %v265 = vld [vmem:[#allocation6 + $0x90] sm:$0xff]
      %v266 = vld [vmem:[#allocation6 + $0x98] sm:$0xff]
      %v267 = vld [vmem:[#allocation6 + $0xa0] sm:$0xff]
      %v268 = vld [vmem:[#allocation6 + $0xa8] sm:$0xff]
      %v269 = vld [vmem:[#allocation6 + $0xb0] sm:$0xff]
      %v270 = vld [vmem:[#allocation6 + $0xb8] sm:$0xff]
      %v271 = vld [vmem:[#allocation6 + $0xc0] sm:$0xff]
      %v272 = vld [vmem:[#allocation6 + $0xc8] sm:$0xff]
      %v273 = vld [vmem:[#allocation6 + $0xd0] sm:$0xff]
      %v274 = vld [vmem:[#allocation6 + $0xd8] sm:$0xff]
      %v275 = vld [vmem:[#allocation6 + $0xe0] sm:$0xff]
      %v276 = vld [vmem:[#allocation6 + $0xe8] sm:$0xff]
      %v277 = vld [vmem:[#allocation6 + $0xf0] sm:$0xff]
      %v278 = vld [vmem:[#allocation6 + $0xf8] sm:$0xff]
      %v279 = vld [vmem:[#allocation6 + $0x100] sm:$0xff]
      %v280 = vld [vmem:[#allocation6 + $0x108] sm:$0xff]
      %v281 = vld [vmem:[#allocation6 + $0x110] sm:$0xff]
      %v282 = vld [vmem:[#allocation6 + $0x118] sm:$0xff]
      %v283 = vld [vmem:[#allocation6 + $0x120] sm:$0xff]
      %v284 = vld [vmem:[#allocation6 + $0x128] sm:$0xff]
      %v285 = vld [vmem:[#allocation6 + $0x130] sm:$0xff]
      %v286 = vld [vmem:[#allocation6 + $0x138] sm:$0xff]
      %v287 = vld [vmem:[#allocation6 + $0x140] sm:$0xff]
      %v288 = vld [vmem:[#allocation6 + $0x148] sm:$0xff]
      %v289 = vld [vmem:[#allocation6 + $0x150] sm:$0xff]
      %v290 = vld [vmem:[#allocation6 + $0x158] sm:$0xff]
      %v291 = vld [vmem:[#allocation6 + $0x160] sm:$0xff]
      %v292 = vld [vmem:[#allocation6 + $0x168] sm:$0xff]
      %v293 = vld [vmem:[#allocation6 + $0x170] sm:$0xff]
      %v294 = vld [vmem:[#allocation6 + $0x178] sm:$0xff]
      %v295 = vld [vmem:[#allocation6 + $0x180] sm:$0xff]
      %v296 = vld [vmem:[#allocation6 + $0x188] sm:$0xff]
      %v297 = vld [vmem:[#allocation6 + $0x190] sm:$0xff]
      %v298 = vld [vmem:[#allocation6 + $0x198] sm:$0xff]
      %v299 = vld [vmem:[#allocation6 + $0x1a0] sm:$0xff]
      %v300 = vld [vmem:[#allocation6 + $0x1a8] sm:$0xff]
      %v301 = vld [vmem:[#allocation6 + $0x1b0] sm:$0xff]
      %v302 = vld [vmem:[#allocation6 + $0x1b8] sm:$0xff]
      %v303 = vld [vmem:[#allocation6 + $0x1c0] sm:$0xff]
      %v304 = vld [vmem:[#allocation6 + $0x1c8] sm:$0xff]
      %v305 = vld [vmem:[#allocation6 + $0x1d0] sm:$0xff]
      %v306 = vld [vmem:[#allocation6 + $0x1d8] sm:$0xff]
      %v307 = vld [vmem:[#allocation6 + $0x1e0] sm:$0xff]
      %v308 = vld [vmem:[#allocation6 + $0x1e8] sm:$0xff]
      %v309 = vld [vmem:[#allocation6 + $0x1f0] sm:$0xff]
      %v310 = vld [vmem:[#allocation6 + $0x1f8] sm:$0xff]
      %v311 = vld [vmem:[#allocation6 + $0x200] sm:$0xff]
      %v312 = vld [vmem:[#allocation6 + $0x208] sm:$0xff]
      %v313 = vld [vmem:[#allocation6 + $0x210] sm:$0xff]
      %v314 = vld [vmem:[#allocation6 + $0x218] sm:$0xff]
      %v315 = vld [vmem:[#allocation6 + $0x220] sm:$0xff]
      %v316 = vld [vmem:[#allocation6 + $0x228] sm:$0xff]
      %v317 = vld [vmem:[#allocation6 + $0x230] sm:$0xff]
      %v318 = vld [vmem:[#allocation6 + $0x238] sm:$0xff]
      %v319 = vld [vmem:[#allocation6 + $0x240] sm:$0xff]
      %v320 = vld [vmem:[#allocation6 + $0x248] sm:$0xff]
      %v321 = vld [vmem:[#allocation6 + $0x250] sm:$0xff]
      %v322 = vld [vmem:[#allocation6 + $0x258] sm:$0xff]
      %v323 = vld [vmem:[#allocation6 + $0x260] sm:$0xff]
      %v324 = vld [vmem:[#allocation6 + $0x268] sm:$0xff]
      %v325 = vld [vmem:[#allocation6 + $0x270] sm:$0xff]
      %v326 = vld [vmem:[#allocation6 + $0x278] sm:$0xff]
      %v327 = vld [vmem:[#allocation6 + $0x280] sm:$0xff]
      %v328 = vld [vmem:[#allocation6 + $0x288] sm:$0xff]
      %v329 = vld [vmem:[#allocation6 + $0x290] sm:$0xff]
      %v330 = vld [vmem:[#allocation6 + $0x298] sm:$0xff]
      %v331 = vld [vmem:[#allocation6 + $0x2a0] sm:$0xff]
      %v332 = vld [vmem:[#allocation6 + $0x2a8] sm:$0xff]
      %v333 = vld [vmem:[#allocation6 + $0x2b0] sm:$0xff]
      %v334 = vld [vmem:[#allocation6 + $0x2b8] sm:$0xff]
      %v335 = vld [vmem:[#allocation6 + $0x2c0] sm:$0xff]
      %v336 = vld [vmem:[#allocation6 + $0x2c8] sm:$0xff]
      %v337 = vld [vmem:[#allocation6 + $0x2d0] sm:$0xff]
      %v338 = vld [vmem:[#allocation6 + $0x2d8] sm:$0xff]
      %v339 = vld [vmem:[#allocation6 + $0x2e0] sm:$0xff]
      %v340 = vld [vmem:[#allocation6 + $0x2e8] sm:$0xff]
      %v341 = vld [vmem:[#allocation6 + $0x2f0] sm:$0xff]
      %v342 = vld [vmem:[#allocation6 + $0x2f8] sm:$0xff]
      %v343 = vld [vmem:[#allocation6 + $0x300] sm:$0xff]
      %v344 = vld [vmem:[#allocation6 + $0x308] sm:$0xff]
      %v345 = vld [vmem:[#allocation6 + $0x310] sm:$0xff]
      %v346 = vld [vmem:[#allocation6 + $0x318] sm:$0xff]
      %v347 = vld [vmem:[#allocation6 + $0x320] sm:$0xff]
      %v348 = vld [vmem:[#allocation6 + $0x328] sm:$0xff]
      %v349 = vld [vmem:[#allocation6 + $0x330] sm:$0xff]
      %v350 = vld [vmem:[#allocation6 + $0x338] sm:$0xff]
      %v351 = vld [vmem:[#allocation6 + $0x340] sm:$0xff]
      %v352 = vld [vmem:[#allocation6 + $0x348] sm:$0xff]
      %v353 = vld [vmem:[#allocation6 + $0x350] sm:$0xff]
      %v354 = vld [vmem:[#allocation6 + $0x358] sm:$0xff]
      %v355 = vld [vmem:[#allocation6 + $0x360] sm:$0xff]
      %v356 = vld [vmem:[#allocation6 + $0x368] sm:$0xff]
      %v357 = vld [vmem:[#allocation6 + $0x370] sm:$0xff]
      %v358 = vld [vmem:[#allocation6 + $0x378] sm:$0xff]
      %v359 = vld [vmem:[#allocation6 + $0x380] sm:$0xff]
      %v360 = vld [vmem:[#allocation6 + $0x388] sm:$0xff]
      %v361 = vld [vmem:[#allocation6 + $0x390] sm:$0xff]
      %v362 = vld [vmem:[#allocation6 + $0x398] sm:$0xff]
      %v363 = vld [vmem:[#allocation6 + $0x3a0] sm:$0xff]
      %v364 = vld [vmem:[#allocation6 + $0x3a8] sm:$0xff]
      %v365 = vld [vmem:[#allocation6 + $0x3b0] sm:$0xff]
      %v366 = vld [vmem:[#allocation6 + $0x3b8] sm:$0xff]
      %v367 = vld [vmem:[#allocation6 + $0x3c0] sm:$0xff]
      %v368 = vld [vmem:[#allocation6 + $0x3c8] sm:$0xff]
      %v369 = vld [vmem:[#allocation6 + $0x3d0] sm:$0xff]
      %v370 = vld [vmem:[#allocation6 + $0x3d8] sm:$0xff]
      %v371 = vld [vmem:[#allocation6 + $0x3e0] sm:$0xff]
      %v372 = vld [vmem:[#allocation6 + $0x3e8] sm:$0xff]
      %v373 = vld [vmem:[#allocation6 + $0x3f0] sm:$0xff]
      %v374 = vld [vmem:[#allocation6 + $0x3f8] sm:$0xff]
      %s375 = sshra.s32 %s182, 3
      %s376 = sand.u32 %s182, 7
      %s377 = smul.addr %s375, 4
      %s378 = scalar_lea.vmem [#allocation8], %s377
      %v379 = vld [vmem:[%s378] sm:$0xf]
      %v380 = vld [vmem:[%s378 + $0x4] sm:$0xf]
      %v381 = vld [vmem:[%s378 + $0x8] sm:$0xf]
      %v382 = vld [vmem:[%s378 + $0xc] sm:$0xf]
      %v383 = vld [vmem:[%s378 + $0x10] sm:$0xf]
      %v384 = vld [vmem:[%s378 + $0x14] sm:$0xf]
      %v385 = vld [vmem:[%s378 + $0x18] sm:$0xf]
      %v386 = vld [vmem:[%s378 + $0x1c] sm:$0xf]
      %v387 = vld [vmem:[%s378 + $0x20] sm:$0xf]
      %v388 = vld [vmem:[%s378 + $0x24] sm:$0xf]
      %v389 = vld [vmem:[%s378 + $0x28] sm:$0xf]
      %v390 = vld [vmem:[%s378 + $0x2c] sm:$0xf]
      %v391 = vld [vmem:[%s378 + $0x30] sm:$0xf]
      %v392 = vld [vmem:[%s378 + $0x34] sm:$0xf]
      %v393 = vld [vmem:[%s378 + $0x38] sm:$0xf]
      %v394 = vld [vmem:[%s378 + $0x3c] sm:$0xf]
      %v395 = vld [vmem:[%s378 + $0x40] sm:$0xf]
      %v396 = vld [vmem:[%s378 + $0x44] sm:$0xf]
      %v397 = vld [vmem:[%s378 + $0x48] sm:$0xf]
      %v398 = vld [vmem:[%s378 + $0x4c] sm:$0xf]
      %v399 = vld [vmem:[%s378 + $0x50] sm:$0xf]
      %v400 = vld [vmem:[%s378 + $0x54] sm:$0xf]
      %v401 = vld [vmem:[%s378 + $0x58] sm:$0xf]
      %v402 = vld [vmem:[%s378 + $0x5c] sm:$0xf]
      %v403 = vld [vmem:[%s378 + $0x60] sm:$0xf]
      %v404 = vld [vmem:[%s378 + $0x64] sm:$0xf]
      %v405 = vld [vmem:[%s378 + $0x68] sm:$0xf]
      %v406 = vld [vmem:[%s378 + $0x6c] sm:$0xf]
      %v407 = vld [vmem:[%s378 + $0x70] sm:$0xf]
      %v408 = vld [vmem:[%s378 + $0x74] sm:$0xf]
      %v409 = vld [vmem:[%s378 + $0x78] sm:$0xf]
      %v410 = vld [vmem:[%s378 + $0x7c] sm:$0xf]
      %v411 = vld [vmem:[%s378 + $0x80] sm:$0xf]
      %v412 = vld [vmem:[%s378 + $0x84] sm:$0xf]
      %v413 = vld [vmem:[%s378 + $0x88] sm:$0xf]
      %v414 = vld [vmem:[%s378 + $0x8c] sm:$0xf]
      %v415 = vld [vmem:[%s378 + $0x90] sm:$0xf]
      %v416 = vld [vmem:[%s378 + $0x94] sm:$0xf]
      %v417 = vld [vmem:[%s378 + $0x98] sm:$0xf]
      %v418 = vld [vmem:[%s378 + $0x9c] sm:$0xf]
      %v419 = vld [vmem:[%s378 + $0xa0] sm:$0xf]
      %v420 = vld [vmem:[%s378 + $0xa4] sm:$0xf]
      %v421 = vld [vmem:[%s378 + $0xa8] sm:$0xf]
      %v422 = vld [vmem:[%s378 + $0xac] sm:$0xf]
      %v423 = vld [vmem:[%s378 + $0xb0] sm:$0xf]
      %v424 = vld [vmem:[%s378 + $0xb4] sm:$0xf]
      %v425 = vld [vmem:[%s378 + $0xb8] sm:$0xf]
      %v426 = vld [vmem:[%s378 + $0xbc] sm:$0xf]
      %v427 = vld [vmem:[%s378 + $0xc0] sm:$0xf]
      %v428 = vld [vmem:[%s378 + $0xc4] sm:$0xf]
      %v429 = vld [vmem:[%s378 + $0xc8] sm:$0xf]
      %v430 = vld [vmem:[%s378 + $0xcc] sm:$0xf]
      %v431 = vld [vmem:[%s378 + $0xd0] sm:$0xf]
      %v432 = vld [vmem:[%s378 + $0xd4] sm:$0xf]
      %v433 = vld [vmem:[%s378 + $0xd8] sm:$0xf]
      %v434 = vld [vmem:[%s378 + $0xdc] sm:$0xf]
      %v435 = vld [vmem:[%s378 + $0xe0] sm:$0xf]
      %v436 = vld [vmem:[%s378 + $0xe4] sm:$0xf]
      %v437 = vld [vmem:[%s378 + $0xe8] sm:$0xf]
      %v438 = vld [vmem:[%s378 + $0xec] sm:$0xf]
      %v439 = vld [vmem:[%s378 + $0xf0] sm:$0xf]
      %v440 = vld [vmem:[%s378 + $0xf4] sm:$0xf]
      %v441 = vld [vmem:[%s378 + $0xf8] sm:$0xf]
      %v442 = vld [vmem:[%s378 + $0xfc] sm:$0xf]
      %v571 = vunpack.c.l.b16 %v247
      %v572 = vunpack.c.h.b16 %v247
      %v573 = vunpack.c.l.b16 %v248
      %v574 = vunpack.c.h.b16 %v248
      %v575 = vunpack.c.l.b16 %v249
      %v576 = vunpack.c.h.b16 %v249
      %v577 = vunpack.c.l.b16 %v250
      %v578 = vunpack.c.h.b16 %v250
      %v579 = vunpack.c.l.b16 %v251
      %v580 = vunpack.c.h.b16 %v251
      %v581 = vunpack.c.l.b16 %v252
      %v582 = vunpack.c.h.b16 %v252
      %v583 = vunpack.c.l.b16 %v253
      %v584 = vunpack.c.h.b16 %v253
      %v585 = vunpack.c.l.b16 %v254
      %v586 = vunpack.c.h.b16 %v254
      %v587 = vunpack.c.l.b16 %v255
      %v588 = vunpack.c.h.b16 %v255
      %v589 = vunpack.c.l.b16 %v256
      %v590 = vunpack.c.h.b16 %v256
      %v591 = vunpack.c.l.b16 %v257
      %v592 = vunpack.c.h.b16 %v257
      %v593 = vunpack.c.l.b16 %v258
      %v594 = vunpack.c.h.b16 %v258
      %v595 = vunpack.c.l.b16 %v259
      %v596 = vunpack.c.h.b16 %v259
      %v597 = vunpack.c.l.b16 %v260
      %v598 = vunpack.c.h.b16 %v260
      %v599 = vunpack.c.l.b16 %v261
      %v600 = vunpack.c.h.b16 %v261
      %v601 = vunpack.c.l.b16 %v262
      %v602 = vunpack.c.h.b16 %v262
      %v603 = vunpack.c.l.b16 %v263
      %v604 = vunpack.c.h.b16 %v263
      %v605 = vunpack.c.l.b16 %v264
      %v606 = vunpack.c.h.b16 %v264
      %v607 = vunpack.c.l.b16 %v265
      %v608 = vunpack.c.h.b16 %v265
      %v609 = vunpack.c.l.b16 %v266
      %v610 = vunpack.c.h.b16 %v266
      %v611 = vunpack.c.l.b16 %v267
      %v612 = vunpack.c.h.b16 %v267
      %v613 = vunpack.c.l.b16 %v268
      %v614 = vunpack.c.h.b16 %v268
      %v615 = vunpack.c.l.b16 %v269
      %v616 = vunpack.c.h.b16 %v269
      %v617 = vunpack.c.l.b16 %v270
      %v618 = vunpack.c.h.b16 %v270
      %v619 = vunpack.c.l.b16 %v271
      %v620 = vunpack.c.h.b16 %v271
      %v621 = vunpack.c.l.b16 %v272
      %v622 = vunpack.c.h.b16 %v272
      %v623 = vunpack.c.l.b16 %v273
      %v624 = vunpack.c.h.b16 %v273
      %v625 = vunpack.c.l.b16 %v274
      %v626 = vunpack.c.h.b16 %v274
      %v627 = vunpack.c.l.b16 %v275
      %v628 = vunpack.c.h.b16 %v275
      %v629 = vunpack.c.l.b16 %v276
      %v630 = vunpack.c.h.b16 %v276
      %v631 = vunpack.c.l.b16 %v277
      %v632 = vunpack.c.h.b16 %v277
      %v633 = vunpack.c.l.b16 %v278
      %v634 = vunpack.c.h.b16 %v278
      %v635 = vunpack.c.l.b16 %v279
      %v636 = vunpack.c.h.b16 %v279
      %v637 = vunpack.c.l.b16 %v280
      %v638 = vunpack.c.h.b16 %v280
      %v639 = vunpack.c.l.b16 %v281
      %v640 = vunpack.c.h.b16 %v281
      %v641 = vunpack.c.l.b16 %v282
      %v642 = vunpack.c.h.b16 %v282
      %v643 = vunpack.c.l.b16 %v283
      %v644 = vunpack.c.h.b16 %v283
      %v645 = vunpack.c.l.b16 %v284
      %v646 = vunpack.c.h.b16 %v284
      %v647 = vunpack.c.l.b16 %v285
      %v648 = vunpack.c.h.b16 %v285
      %v649 = vunpack.c.l.b16 %v286
      %v650 = vunpack.c.h.b16 %v286
      %v651 = vunpack.c.l.b16 %v287
      %v652 = vunpack.c.h.b16 %v287
      %v653 = vunpack.c.l.b16 %v288
      %v654 = vunpack.c.h.b16 %v288
      %v655 = vunpack.c.l.b16 %v289
      %v656 = vunpack.c.h.b16 %v289
      %v657 = vunpack.c.l.b16 %v290
      %v658 = vunpack.c.h.b16 %v290
      %v659 = vunpack.c.l.b16 %v291
      %v660 = vunpack.c.h.b16 %v291
      %v661 = vunpack.c.l.b16 %v292
      %v662 = vunpack.c.h.b16 %v292
      %v663 = vunpack.c.l.b16 %v293
      %v664 = vunpack.c.h.b16 %v293
      %v665 = vunpack.c.l.b16 %v294
      %v666 = vunpack.c.h.b16 %v294
      %v667 = vunpack.c.l.b16 %v295
      %v668 = vunpack.c.h.b16 %v295
      %v669 = vunpack.c.l.b16 %v296
      %v670 = vunpack.c.h.b16 %v296
      %v671 = vunpack.c.l.b16 %v297
      %v672 = vunpack.c.h.b16 %v297
      %v673 = vunpack.c.l.b16 %v298
      %v674 = vunpack.c.h.b16 %v298
      %v675 = vunpack.c.l.b16 %v299
      %v676 = vunpack.c.h.b16 %v299
      %v677 = vunpack.c.l.b16 %v300
      %v678 = vunpack.c.h.b16 %v300
      %v679 = vunpack.c.l.b16 %v301
      %v680 = vunpack.c.h.b16 %v301
      %v681 = vunpack.c.l.b16 %v302
      %v682 = vunpack.c.h.b16 %v302
      %v683 = vunpack.c.l.b16 %v303
      %v684 = vunpack.c.h.b16 %v303
      %v685 = vunpack.c.l.b16 %v304
      %v686 = vunpack.c.h.b16 %v304
      %v687 = vunpack.c.l.b16 %v305
      %v688 = vunpack.c.h.b16 %v305
      %v689 = vunpack.c.l.b16 %v306
      %v690 = vunpack.c.h.b16 %v306
      %v691 = vunpack.c.l.b16 %v307
      %v692 = vunpack.c.h.b16 %v307
      %v693 = vunpack.c.l.b16 %v308
      %v694 = vunpack.c.h.b16 %v308
      %v695 = vunpack.c.l.b16 %v309
      %v696 = vunpack.c.h.b16 %v309
      %v697 = vunpack.c.l.b16 %v310
      %v698 = vunpack.c.h.b16 %v310
      %v699 = vunpack.c.l.b16 %v311
      %v700 = vunpack.c.h.b16 %v311
      %v701 = vunpack.c.l.b16 %v312
      %v702 = vunpack.c.h.b16 %v312
      %v703 = vunpack.c.l.b16 %v313
      %v704 = vunpack.c.h.b16 %v313
      %v705 = vunpack.c.l.b16 %v314
      %v706 = vunpack.c.h.b16 %v314
      %v707 = vunpack.c.l.b16 %v315
      %v708 = vunpack.c.h.b16 %v315
      %v709 = vunpack.c.l.b16 %v316
      %v710 = vunpack.c.h.b16 %v316
      %v711 = vunpack.c.l.b16 %v317
      %v712 = vunpack.c.h.b16 %v317
      %v713 = vunpack.c.l.b16 %v318
      %v714 = vunpack.c.h.b16 %v318
      %v715 = vunpack.c.l.b16 %v319
      %v716 = vunpack.c.h.b16 %v319
      %v717 = vunpack.c.l.b16 %v320
      %v718 = vunpack.c.h.b16 %v320
      %v719 = vunpack.c.l.b16 %v321
      %v720 = vunpack.c.h.b16 %v321
      %v721 = vunpack.c.l.b16 %v322
      %v722 = vunpack.c.h.b16 %v322
      %v723 = vunpack.c.l.b16 %v323
      %v724 = vunpack.c.h.b16 %v323
      %v725 = vunpack.c.l.b16 %v324
      %v726 = vunpack.c.h.b16 %v324
      %v727 = vunpack.c.l.b16 %v325
      %v728 = vunpack.c.h.b16 %v325
      %v729 = vunpack.c.l.b16 %v326
      %v730 = vunpack.c.h.b16 %v326
      %v731 = vunpack.c.l.b16 %v327
      %v732 = vunpack.c.h.b16 %v327
      %v733 = vunpack.c.l.b16 %v328
      %v734 = vunpack.c.h.b16 %v328
      %v735 = vunpack.c.l.b16 %v329
      %v736 = vunpack.c.h.b16 %v329
      %v737 = vunpack.c.l.b16 %v330
      %v738 = vunpack.c.h.b16 %v330
      %v739 = vunpack.c.l.b16 %v331
      %v740 = vunpack.c.h.b16 %v331
      %v741 = vunpack.c.l.b16 %v332
      %v742 = vunpack.c.h.b16 %v332
      %v743 = vunpack.c.l.b16 %v333
      %v744 = vunpack.c.h.b16 %v333
      %v745 = vunpack.c.l.b16 %v334
      %v746 = vunpack.c.h.b16 %v334
      %v747 = vunpack.c.l.b16 %v335
      %v748 = vunpack.c.h.b16 %v335
      %v749 = vunpack.c.l.b16 %v336
      %v750 = vunpack.c.h.b16 %v336
      %v751 = vunpack.c.l.b16 %v337
      %v752 = vunpack.c.h.b16 %v337
      %v753 = vunpack.c.l.b16 %v338
      %v754 = vunpack.c.h.b16 %v338
      %v755 = vunpack.c.l.b16 %v339
      %v756 = vunpack.c.h.b16 %v339
      %v757 = vunpack.c.l.b16 %v340
      %v758 = vunpack.c.h.b16 %v340
      %v759 = vunpack.c.l.b16 %v341
      %v760 = vunpack.c.h.b16 %v341
      %v761 = vunpack.c.l.b16 %v342
      %v762 = vunpack.c.h.b16 %v342
      %v763 = vunpack.c.l.b16 %v343
      %v764 = vunpack.c.h.b16 %v343
      %v765 = vunpack.c.l.b16 %v344
      %v766 = vunpack.c.h.b16 %v344
      %v767 = vunpack.c.l.b16 %v345
      %v768 = vunpack.c.h.b16 %v345
      %v769 = vunpack.c.l.b16 %v346
      %v770 = vunpack.c.h.b16 %v346
      %v771 = vunpack.c.l.b16 %v347
      %v772 = vunpack.c.h.b16 %v347
      %v773 = vunpack.c.l.b16 %v348
      %v774 = vunpack.c.h.b16 %v348
      %v775 = vunpack.c.l.b16 %v349
      %v776 = vunpack.c.h.b16 %v349
      %v777 = vunpack.c.l.b16 %v350
      %v778 = vunpack.c.h.b16 %v350
      %v779 = vunpack.c.l.b16 %v351
      %v780 = vunpack.c.h.b16 %v351
      %v781 = vunpack.c.l.b16 %v352
      %v782 = vunpack.c.h.b16 %v352
      %v783 = vunpack.c.l.b16 %v353
      %v784 = vunpack.c.h.b16 %v353
      %v785 = vunpack.c.l.b16 %v354
      %v786 = vunpack.c.h.b16 %v354
      %v787 = vunpack.c.l.b16 %v355
      %v788 = vunpack.c.h.b16 %v355
      %v789 = vunpack.c.l.b16 %v356
      %v790 = vunpack.c.h.b16 %v356
      %v791 = vunpack.c.l.b16 %v357
      %v792 = vunpack.c.h.b16 %v357
      %v793 = vunpack.c.l.b16 %v358
      %v794 = vunpack.c.h.b16 %v358
      %v795 = vunpack.c.l.b16 %v359
      %v796 = vunpack.c.h.b16 %v359
      %v797 = vunpack.c.l.b16 %v360
      %v798 = vunpack.c.h.b16 %v360
      %v799 = vunpack.c.l.b16 %v361
      %v800 = vunpack.c.h.b16 %v361
      %v801 = vunpack.c.l.b16 %v362
      %v802 = vunpack.c.h.b16 %v362
      %v803 = vunpack.c.l.b16 %v363
      %v804 = vunpack.c.h.b16 %v363
      %v805 = vunpack.c.l.b16 %v364
      %v806 = vunpack.c.h.b16 %v364
      %v807 = vunpack.c.l.b16 %v365
      %v808 = vunpack.c.h.b16 %v365
      %v809 = vunpack.c.l.b16 %v366
      %v810 = vunpack.c.h.b16 %v366
      %v811 = vunpack.c.l.b16 %v367
      %v812 = vunpack.c.h.b16 %v367
      %v813 = vunpack.c.l.b16 %v368
      %v814 = vunpack.c.h.b16 %v368
      %v815 = vunpack.c.l.b16 %v369
      %v816 = vunpack.c.h.b16 %v369
      %v817 = vunpack.c.l.b16 %v370
      %v818 = vunpack.c.h.b16 %v370
      %v819 = vunpack.c.l.b16 %v371
      %v820 = vunpack.c.h.b16 %v371
      %v821 = vunpack.c.l.b16 %v372
      %v822 = vunpack.c.h.b16 %v372
      %v823 = vunpack.c.l.b16 %v373
      %v824 = vunpack.c.h.b16 %v373
      %v825 = vunpack.c.l.b16 %v374
      %v826 = vunpack.c.h.b16 %v374
      %v827 = vpack.c.b16 %v575, %v571
      %v828 = vpack.c.b16 %v576, %v572
      %v829 = vpack.c.b16 %v577, %v573
      %v830 = vpack.c.b16 %v578, %v574
      %v831 = vpack.c.b16 %v583, %v579
      %v832 = vpack.c.b16 %v584, %v580
      %v833 = vpack.c.b16 %v585, %v581
      %v834 = vpack.c.b16 %v586, %v582
      %v835 = vpack.c.b16 %v591, %v587
      %v836 = vpack.c.b16 %v592, %v588
      %v837 = vpack.c.b16 %v593, %v589
      %v838 = vpack.c.b16 %v594, %v590
      %v839 = vpack.c.b16 %v599, %v595
      %v840 = vpack.c.b16 %v600, %v596
      %v841 = vpack.c.b16 %v601, %v597
      %v842 = vpack.c.b16 %v602, %v598
      %v843 = vpack.c.b16 %v607, %v603
      %v844 = vpack.c.b16 %v608, %v604
      %v845 = vpack.c.b16 %v609, %v605
      %v846 = vpack.c.b16 %v610, %v606
      %v847 = vpack.c.b16 %v615, %v611
      %v848 = vpack.c.b16 %v616, %v612
      %v849 = vpack.c.b16 %v617, %v613
      %v850 = vpack.c.b16 %v618, %v614
      %v851 = vpack.c.b16 %v623, %v619
      %v852 = vpack.c.b16 %v624, %v620
      %v853 = vpack.c.b16 %v625, %v621
      %v854 = vpack.c.b16 %v626, %v622
      %v855 = vpack.c.b16 %v631, %v627
      %v856 = vpack.c.b16 %v632, %v628
      %v857 = vpack.c.b16 %v633, %v629
      %v858 = vpack.c.b16 %v634, %v630
      %v859 = vpack.c.b16 %v639, %v635
      %v860 = vpack.c.b16 %v640, %v636
      %v861 = vpack.c.b16 %v641, %v637
      %v862 = vpack.c.b16 %v642, %v638
      %v863 = vpack.c.b16 %v647, %v643
      %v864 = vpack.c.b16 %v648, %v644
      %v865 = vpack.c.b16 %v649, %v645
      %v866 = vpack.c.b16 %v650, %v646
      %v867 = vpack.c.b16 %v655, %v651
      %v868 = vpack.c.b16 %v656, %v652
      %v869 = vpack.c.b16 %v657, %v653
      %v870 = vpack.c.b16 %v658, %v654
      %v871 = vpack.c.b16 %v663, %v659
      %v872 = vpack.c.b16 %v664, %v660
      %v873 = vpack.c.b16 %v665, %v661
      %v874 = vpack.c.b16 %v666, %v662
      %v875 = vpack.c.b16 %v671, %v667
      %v876 = vpack.c.b16 %v672, %v668
      %v877 = vpack.c.b16 %v673, %v669
      %v878 = vpack.c.b16 %v674, %v670
      %v879 = vpack.c.b16 %v679, %v675
      %v880 = vpack.c.b16 %v680, %v676
      %v881 = vpack.c.b16 %v681, %v677
      %v882 = vpack.c.b16 %v682, %v678
      %v883 = vpack.c.b16 %v687, %v683
      %v884 = vpack.c.b16 %v688, %v684
      %v885 = vpack.c.b16 %v689, %v685
      %v886 = vpack.c.b16 %v690, %v686
      %v887 = vpack.c.b16 %v695, %v691
      %v888 = vpack.c.b16 %v696, %v692
      %v889 = vpack.c.b16 %v697, %v693
      %v890 = vpack.c.b16 %v698, %v694
      %v891 = vpack.c.b16 %v703, %v699
      %v892 = vpack.c.b16 %v704, %v700
      %v893 = vpack.c.b16 %v705, %v701
      %v894 = vpack.c.b16 %v706, %v702
      %v895 = vpack.c.b16 %v711, %v707
      %v896 = vpack.c.b16 %v712, %v708
      %v897 = vpack.c.b16 %v713, %v709
      %v898 = vpack.c.b16 %v714, %v710
      %v899 = vpack.c.b16 %v719, %v715
      %v900 = vpack.c.b16 %v720, %v716
      %v901 = vpack.c.b16 %v721, %v717
      %v902 = vpack.c.b16 %v722, %v718
      %v903 = vpack.c.b16 %v727, %v723
      %v904 = vpack.c.b16 %v728, %v724
      %v905 = vpack.c.b16 %v729, %v725
      %v906 = vpack.c.b16 %v730, %v726
      %v907 = vpack.c.b16 %v735, %v731
      %v908 = vpack.c.b16 %v736, %v732
      %v909 = vpack.c.b16 %v737, %v733
      %v910 = vpack.c.b16 %v738, %v734
      %v911 = vpack.c.b16 %v743, %v739
      %v912 = vpack.c.b16 %v744, %v740
      %v913 = vpack.c.b16 %v745, %v741
      %v914 = vpack.c.b16 %v746, %v742
      %v915 = vpack.c.b16 %v751, %v747
      %v916 = vpack.c.b16 %v752, %v748
      %v917 = vpack.c.b16 %v753, %v749
      %v918 = vpack.c.b16 %v754, %v750
      %v919 = vpack.c.b16 %v759, %v755
      %v920 = vpack.c.b16 %v760, %v756
      %v921 = vpack.c.b16 %v761, %v757
      %v922 = vpack.c.b16 %v762, %v758
      %v923 = vpack.c.b16 %v767, %v763
      %v924 = vpack.c.b16 %v768, %v764
      %v925 = vpack.c.b16 %v769, %v765
      %v926 = vpack.c.b16 %v770, %v766
      %v927 = vpack.c.b16 %v775, %v771
      %v928 = vpack.c.b16 %v776, %v772
      %v929 = vpack.c.b16 %v777, %v773
      %v930 = vpack.c.b16 %v778, %v774
      %v931 = vpack.c.b16 %v783, %v779
      %v932 = vpack.c.b16 %v784, %v780
      %v933 = vpack.c.b16 %v785, %v781
      %v934 = vpack.c.b16 %v786, %v782
      %v935 = vpack.c.b16 %v791, %v787
      %v936 = vpack.c.b16 %v792, %v788
      %v937 = vpack.c.b16 %v793, %v789
      %v938 = vpack.c.b16 %v794, %v790
      %v939 = vpack.c.b16 %v799, %v795
      %v940 = vpack.c.b16 %v800, %v796
      %v941 = vpack.c.b16 %v801, %v797
      %v942 = vpack.c.b16 %v802, %v798
      %v943 = vpack.c.b16 %v807, %v803
      %v944 = vpack.c.b16 %v808, %v804
      %v945 = vpack.c.b16 %v809, %v805
      %v946 = vpack.c.b16 %v810, %v806
      %v947 = vpack.c.b16 %v815, %v811
      %v948 = vpack.c.b16 %v816, %v812
      %v949 = vpack.c.b16 %v817, %v813
      %v950 = vpack.c.b16 %v818, %v814
      %v951 = vpack.c.b16 %v823, %v819
      %v952 = vpack.c.b16 %v824, %v820
      %v953 = vpack.c.b16 %v825, %v821
      %v954 = vpack.c.b16 %v826, %v822
      %v1147 = vunpack.c.l.b16 %v379
      %v1148 = vunpack.c.l.b16 %v380
      %v1149 = vunpack.c.l.b16 %v381
      %v1150 = vunpack.c.l.b16 %v382
      %v1151 = vunpack.c.l.b16 %v383
      %v1152 = vunpack.c.l.b16 %v384
      %v1153 = vunpack.c.l.b16 %v385
      %v1154 = vunpack.c.l.b16 %v386
      %v1155 = vunpack.c.l.b16 %v387
      %v1156 = vunpack.c.l.b16 %v388
      %v1157 = vunpack.c.l.b16 %v389
      %v1158 = vunpack.c.l.b16 %v390
      %v1159 = vunpack.c.l.b16 %v391
      %v1160 = vunpack.c.l.b16 %v392
      %v1161 = vunpack.c.l.b16 %v393
      %v1162 = vunpack.c.l.b16 %v394
      %v1163 = vunpack.c.l.b16 %v395
      %v1164 = vunpack.c.l.b16 %v396
      %v1165 = vunpack.c.l.b16 %v397
      %v1166 = vunpack.c.l.b16 %v398
      %v1167 = vunpack.c.l.b16 %v399
      %v1168 = vunpack.c.l.b16 %v400
      %v1169 = vunpack.c.l.b16 %v401
      %v1170 = vunpack.c.l.b16 %v402
      %v1171 = vunpack.c.l.b16 %v403
      %v1172 = vunpack.c.l.b16 %v404
      %v1173 = vunpack.c.l.b16 %v405
      %v1174 = vunpack.c.l.b16 %v406
      %v1175 = vunpack.c.l.b16 %v407
      %v1176 = vunpack.c.l.b16 %v408
      %v1177 = vunpack.c.l.b16 %v409
      %v1178 = vunpack.c.l.b16 %v410
      %v1179 = vunpack.c.l.b16 %v411
      %v1180 = vunpack.c.l.b16 %v412
      %v1181 = vunpack.c.l.b16 %v413
      %v1182 = vunpack.c.l.b16 %v414
      %v1183 = vunpack.c.l.b16 %v415
      %v1184 = vunpack.c.l.b16 %v416
      %v1185 = vunpack.c.l.b16 %v417
      %v1186 = vunpack.c.l.b16 %v418
      %v1187 = vunpack.c.l.b16 %v419
      %v1188 = vunpack.c.l.b16 %v420
      %v1189 = vunpack.c.l.b16 %v421
      %v1190 = vunpack.c.l.b16 %v422
      %v1191 = vunpack.c.l.b16 %v423
      %v1192 = vunpack.c.l.b16 %v424
      %v1193 = vunpack.c.l.b16 %v425
      %v1194 = vunpack.c.l.b16 %v426
      %v1195 = vunpack.c.l.b16 %v427
      %v1196 = vunpack.c.l.b16 %v428
      %v1197 = vunpack.c.l.b16 %v429
      %v1198 = vunpack.c.l.b16 %v430
      %v1199 = vunpack.c.l.b16 %v431
      %v1200 = vunpack.c.l.b16 %v432
      %v1201 = vunpack.c.l.b16 %v433
      %v1202 = vunpack.c.l.b16 %v434
      %v1203 = vunpack.c.l.b16 %v435
      %v1204 = vunpack.c.l.b16 %v436
      %v1205 = vunpack.c.l.b16 %v437
      %v1206 = vunpack.c.l.b16 %v438
      %v1207 = vunpack.c.l.b16 %v439
      %v1208 = vunpack.c.l.b16 %v440
      %v1209 = vunpack.c.l.b16 %v441
      %v1210 = vunpack.c.l.b16 %v442
      %v1211 = vpack.c.b16 %v1148, %v1147
      %v1212 = vpack.c.b16 %v1150, %v1149
      %v1213 = vpack.c.b16 %v1152, %v1151
      %v1214 = vpack.c.b16 %v1154, %v1153
      %v1215 = vpack.c.b16 %v1156, %v1155
      %v1216 = vpack.c.b16 %v1158, %v1157
      %v1217 = vpack.c.b16 %v1160, %v1159
      %v1218 = vpack.c.b16 %v1162, %v1161
      %v1219 = vpack.c.b16 %v1164, %v1163
      %v1220 = vpack.c.b16 %v1166, %v1165
      %v1221 = vpack.c.b16 %v1168, %v1167
      %v1222 = vpack.c.b16 %v1170, %v1169
      %v1223 = vpack.c.b16 %v1172, %v1171
      %v1224 = vpack.c.b16 %v1174, %v1173
      %v1225 = vpack.c.b16 %v1176, %v1175
      %v1226 = vpack.c.b16 %v1178, %v1177
      %v1227 = vpack.c.b16 %v1180, %v1179
      %v1228 = vpack.c.b16 %v1182, %v1181
      %v1229 = vpack.c.b16 %v1184, %v1183
      %v1230 = vpack.c.b16 %v1186, %v1185
      %v1231 = vpack.c.b16 %v1188, %v1187
      %v1232 = vpack.c.b16 %v1190, %v1189
      %v1233 = vpack.c.b16 %v1192, %v1191
      %v1234 = vpack.c.b16 %v1194, %v1193
      %v1235 = vpack.c.b16 %v1196, %v1195
      %v1236 = vpack.c.b16 %v1198, %v1197
      %v1237 = vpack.c.b16 %v1200, %v1199
      %v1238 = vpack.c.b16 %v1202, %v1201
      %v1239 = vpack.c.b16 %v1204, %v1203
      %v1240 = vpack.c.b16 %v1206, %v1205
      %v1241 = vpack.c.b16 %v1208, %v1207
      %v1242 = vpack.c.b16 %v1210, %v1209
      %1275 = vmatprep.subr.bf16.mxu0 0
      %1276 = vmatpush1.bf16.msra.mxu0 %v1218
      %1277 = vmatprep.subr.bf16.mxu0 0
      %1278 = vmatpush1.bf16.msra.mxu0 %v1217
      %1279 = vmatprep.subr.bf16.mxu0 0
      %1280 = vmatpush1.bf16.msra.mxu0 %v1216
      %1281 = vmatprep.subr.bf16.mxu0 0
      %1282 = vmatpush1.bf16.msra.mxu0 %v1215
      %1283 = vmatprep.subr.bf16.mxu0 0
      %1284 = vmatpush1.bf16.msra.mxu0 %v1214
      %1285 = vmatprep.subr.bf16.mxu0 0
      %1286 = vmatpush1.bf16.msra.mxu0 %v1213
      %1287 = vmatprep.subr.bf16.mxu0 0
      %1288 = vmatpush1.bf16.msra.mxu0 %v1212
      %1289 = vmatprep.subr.bf16.mxu0 0
      %1290 = vmatpush1.bf16.msra.mxu0 %v1211
      %1291 = vmatprep.subr.bf16.mxu0 0
      %1292 = vmatpush2.bf16.msra.mxu0 %v1226
      %1293 = vmatprep.subr.bf16.mxu0 0
      %1294 = vmatpush2.bf16.msra.mxu0 %v1225
      %1295 = vmatprep.subr.bf16.mxu0 0
      %1296 = vmatpush2.bf16.msra.mxu0 %v1224
      %1297 = vmatprep.subr.bf16.mxu0 0
      %1298 = vmatpush2.bf16.msra.mxu0 %v1223
      %1299 = vmatprep.subr.bf16.mxu0 0
      %1300 = vmatpush2.bf16.msra.mxu0 %v1222
      %1301 = vmatprep.subr.bf16.mxu0 0
      %1302 = vmatpush2.bf16.msra.mxu0 %v1221
      %1303 = vmatprep.subr.bf16.mxu0 0
      %1304 = vmatpush2.bf16.msra.mxu0 %v1220
      %1305 = vmatprep.subr.bf16.mxu0 0
      %1306 = vmatpush2.bf16.msra.mxu0 %v1219
      %1307 = vmatprep.mubr.bf16.mxu0 %v828
      %1308 = vmatmul.mubr.bf16.gmra.mxu0 %v827
      %v1309 = vpop.f32.mrf.mxu0
      %v1310 = vadd.f32 0.0, %v1309
      %v1311 = vpop.f32.mrf.mxu0
      %v1312 = vpop.f32.mrf.mxu0
      %v1313 = vadd.f32 0.0, %v1312
      %v1314 = vpop.f32.mrf.mxu0
      %1315 = vmatprep.mubr.bf16.mxu0 %v832
      %1316 = vmatmul.mubr.bf16.gmra.mxu0 %v831
      %v1317 = vpop.f32.mrf.mxu0
      %v1318 = vadd.f32 0.0, %v1317
      %v1319 = vpop.f32.mrf.mxu0
      %v1320 = vpop.f32.mrf.mxu0
      %v1321 = vadd.f32 0.0, %v1320
      %v1322 = vpop.f32.mrf.mxu0
      %1323 = vmatprep.mubr.bf16.mxu0 %v836
      %1324 = vmatmul.mubr.bf16.gmra.mxu0 %v835
      %v1325 = vpop.f32.mrf.mxu0
      %v1326 = vadd.f32 0.0, %v1325
      %v1327 = vpop.f32.mrf.mxu0
      %v1328 = vpop.f32.mrf.mxu0
      %v1329 = vadd.f32 0.0, %v1328
      %v1330 = vpop.f32.mrf.mxu0
      %1331 = vmatprep.mubr.bf16.mxu0 %v840
      %1332 = vmatmul.mubr.bf16.gmra.mxu0 %v839
      %v1333 = vpop.f32.mrf.mxu0
      %v1334 = vadd.f32 0.0, %v1333
      %v1335 = vpop.f32.mrf.mxu0
      %v1336 = vpop.f32.mrf.mxu0
      %v1337 = vadd.f32 0.0, %v1336
      %v1338 = vpop.f32.mrf.mxu0
      %1339 = vmatprep.mubr.bf16.mxu0 %v844
      %1340 = vmatmul.mubr.bf16.gmra.mxu0 %v843
      %v1341 = vpop.f32.mrf.mxu0
      %v1342 = vadd.f32 0.0, %v1341
      %v1343 = vpop.f32.mrf.mxu0
      %v1344 = vpop.f32.mrf.mxu0
      %v1345 = vadd.f32 0.0, %v1344
      %v1346 = vpop.f32.mrf.mxu0
      %1347 = vmatprep.mubr.bf16.mxu0 %v848
      %1348 = vmatmul.mubr.bf16.gmra.mxu0 %v847
      %v1349 = vpop.f32.mrf.mxu0
      %v1350 = vadd.f32 0.0, %v1349
      %v1351 = vpop.f32.mrf.mxu0
      %v1352 = vpop.f32.mrf.mxu0
      %v1353 = vadd.f32 0.0, %v1352
      %v1354 = vpop.f32.mrf.mxu0
      %1355 = vmatprep.mubr.bf16.mxu0 %v852
      %1356 = vmatmul.mubr.bf16.gmra.mxu0 %v851
      %v1357 = vpop.f32.mrf.mxu0
      %v1358 = vadd.f32 0.0, %v1357
      %v1359 = vpop.f32.mrf.mxu0
      %v1360 = vpop.f32.mrf.mxu0
      %v1361 = vadd.f32 0.0, %v1360
      %v1362 = vpop.f32.mrf.mxu0
      %1363 = vmatprep.mubr.bf16.mxu0 %v856
      %1364 = vmatmul.mubr.bf16.gmra.mxu0 %v855
      %v1365 = vpop.f32.mrf.mxu0
      %v1366 = vadd.f32 0.0, %v1365
      %v1367 = vpop.f32.mrf.mxu0
      %v1368 = vpop.f32.mrf.mxu0
      %v1369 = vadd.f32 0.0, %v1368
      %v1370 = vpop.f32.mrf.mxu0
      %1371 = vmatprep.mubr.bf16.mxu0 %v860
      %1372 = vmatmul.mubr.bf16.gmra.mxu0 %v859
      %v1373 = vpop.f32.mrf.mxu0
      %v1374 = vadd.f32 0.0, %v1373
      %v1375 = vpop.f32.mrf.mxu0
      %v1376 = vpop.f32.mrf.mxu0
      %v1377 = vadd.f32 0.0, %v1376
      %v1378 = vpop.f32.mrf.mxu0
      %1379 = vmatprep.mubr.bf16.mxu0 %v864
      %1380 = vmatmul.mubr.bf16.gmra.mxu0 %v863
      %v1381 = vpop.f32.mrf.mxu0
      %v1382 = vadd.f32 0.0, %v1381
      %v1383 = vpop.f32.mrf.mxu0
      %v1384 = vpop.f32.mrf.mxu0
      %v1385 = vadd.f32 0.0, %v1384
      %v1386 = vpop.f32.mrf.mxu0
      %1387 = vmatprep.mubr.bf16.mxu0 %v868
      %1388 = vmatmul.mubr.bf16.gmra.mxu0 %v867
      %v1389 = vpop.f32.mrf.mxu0
      %v1390 = vadd.f32 0.0, %v1389
      %v1391 = vpop.f32.mrf.mxu0
      %v1392 = vpop.f32.mrf.mxu0
      %v1393 = vadd.f32 0.0, %v1392
      %v1394 = vpop.f32.mrf.mxu0
      %1395 = vmatprep.mubr.bf16.mxu0 %v872
      %1396 = vmatmul.mubr.bf16.gmra.mxu0 %v871
      %v1397 = vpop.f32.mrf.mxu0
      %v1398 = vadd.f32 0.0, %v1397
      %v1399 = vpop.f32.mrf.mxu0
      %v1400 = vpop.f32.mrf.mxu0
      %v1401 = vadd.f32 0.0, %v1400
      %v1402 = vpop.f32.mrf.mxu0
      %1403 = vmatprep.mubr.bf16.mxu0 %v876
      %1404 = vmatmul.mubr.bf16.gmra.mxu0 %v875
      %v1405 = vpop.f32.mrf.mxu0
      %v1406 = vadd.f32 0.0, %v1405
      %v1407 = vpop.f32.mrf.mxu0
      %v1408 = vpop.f32.mrf.mxu0
      %v1409 = vadd.f32 0.0, %v1408
      %v1410 = vpop.f32.mrf.mxu0
      %1411 = vmatprep.mubr.bf16.mxu0 %v880
      %1412 = vmatmul.mubr.bf16.gmra.mxu0 %v879
      %v1413 = vpop.f32.mrf.mxu0
      %v1414 = vadd.f32 0.0, %v1413
      %v1415 = vpop.f32.mrf.mxu0
      %v1416 = vpop.f32.mrf.mxu0
      %v1417 = vadd.f32 0.0, %v1416
      %v1418 = vpop.f32.mrf.mxu0
      %1419 = vmatprep.mubr.bf16.mxu0 %v884
      %1420 = vmatmul.mubr.bf16.gmra.mxu0 %v883
      %v1421 = vpop.f32.mrf.mxu0
      %v1422 = vadd.f32 0.0, %v1421
      %v1423 = vpop.f32.mrf.mxu0
      %v1424 = vpop.f32.mrf.mxu0
      %v1425 = vadd.f32 0.0, %v1424
      %v1426 = vpop.f32.mrf.mxu0
      %1427 = vmatprep.mubr.bf16.mxu0 %v888
      %1428 = vmatmul.mubr.bf16.gmra.mxu0 %v887
      %v1429 = vpop.f32.mrf.mxu0
      %v1430 = vadd.f32 0.0, %v1429
      %v1431 = vpop.f32.mrf.mxu0
      %v1432 = vpop.f32.mrf.mxu0
      %v1433 = vadd.f32 0.0, %v1432
      %v1434 = vpop.f32.mrf.mxu0
      %1435 = vmatprep.mubr.bf16.mxu0 %v892
      %1436 = vmatmul.mubr.bf16.gmra.mxu0 %v891
      %v1437 = vpop.f32.mrf.mxu0
      %v1438 = vadd.f32 0.0, %v1437
      %v1439 = vpop.f32.mrf.mxu0
      %v1440 = vpop.f32.mrf.mxu0
      %v1441 = vadd.f32 0.0, %v1440
      %v1442 = vpop.f32.mrf.mxu0
      %1443 = vmatprep.mubr.bf16.mxu0 %v896
      %1444 = vmatmul.mubr.bf16.gmra.mxu0 %v895
      %v1445 = vpop.f32.mrf.mxu0
      %v1446 = vadd.f32 0.0, %v1445
      %v1447 = vpop.f32.mrf.mxu0
      %v1448 = vpop.f32.mrf.mxu0
      %v1449 = vadd.f32 0.0, %v1448
      %v1450 = vpop.f32.mrf.mxu0
      %1451 = vmatprep.mubr.bf16.mxu0 %v900
      %1452 = vmatmul.mubr.bf16.gmra.mxu0 %v899
      %v1453 = vpop.f32.mrf.mxu0
      %v1454 = vadd.f32 0.0, %v1453
      %v1455 = vpop.f32.mrf.mxu0
      %v1456 = vpop.f32.mrf.mxu0
      %v1457 = vadd.f32 0.0, %v1456
      %v1458 = vpop.f32.mrf.mxu0
      %1459 = vmatprep.mubr.bf16.mxu0 %v904
      %1460 = vmatmul.mubr.bf16.gmra.mxu0 %v903
      %v1461 = vpop.f32.mrf.mxu0
      %v1462 = vadd.f32 0.0, %v1461
      %v1463 = vpop.f32.mrf.mxu0
      %v1464 = vpop.f32.mrf.mxu0
      %v1465 = vadd.f32 0.0, %v1464
      %v1466 = vpop.f32.mrf.mxu0
      %1467 = vmatprep.mubr.bf16.mxu0 %v908
      %1468 = vmatmul.mubr.bf16.gmra.mxu0 %v907
      %v1469 = vpop.f32.mrf.mxu0
      %v1470 = vadd.f32 0.0, %v1469
      %v1471 = vpop.f32.mrf.mxu0
      %v1472 = vpop.f32.mrf.mxu0
      %v1473 = vadd.f32 0.0, %v1472
      %v1474 = vpop.f32.mrf.mxu0
      %1475 = vmatprep.mubr.bf16.mxu0 %v912
      %1476 = vmatmul.mubr.bf16.gmra.mxu0 %v911
      %v1477 = vpop.f32.mrf.mxu0
      %v1478 = vadd.f32 0.0, %v1477
      %v1479 = vpop.f32.mrf.mxu0
      %v1480 = vpop.f32.mrf.mxu0
      %v1481 = vadd.f32 0.0, %v1480
      %v1482 = vpop.f32.mrf.mxu0
      %1483 = vmatprep.mubr.bf16.mxu0 %v916
      %1484 = vmatmul.mubr.bf16.gmra.mxu0 %v915
      %v1485 = vpop.f32.mrf.mxu0
      %v1486 = vadd.f32 0.0, %v1485
      %v1487 = vpop.f32.mrf.mxu0
      %v1488 = vpop.f32.mrf.mxu0
      %v1489 = vadd.f32 0.0, %v1488
      %v1490 = vpop.f32.mrf.mxu0
      %1491 = vmatprep.mubr.bf16.mxu0 %v920
      %1492 = vmatmul.mubr.bf16.gmra.mxu0 %v919
      %v1493 = vpop.f32.mrf.mxu0
      %v1494 = vadd.f32 0.0, %v1493
      %v1495 = vpop.f32.mrf.mxu0
      %v1496 = vpop.f32.mrf.mxu0
      %v1497 = vadd.f32 0.0, %v1496
      %v1498 = vpop.f32.mrf.mxu0
      %1499 = vmatprep.mubr.bf16.mxu0 %v924
      %1500 = vmatmul.mubr.bf16.gmra.mxu0 %v923
      %v1501 = vpop.f32.mrf.mxu0
      %v1502 = vadd.f32 0.0, %v1501
      %v1503 = vpop.f32.mrf.mxu0
      %v1504 = vpop.f32.mrf.mxu0
      %v1505 = vadd.f32 0.0, %v1504
      %v1506 = vpop.f32.mrf.mxu0
      %1507 = vmatprep.mubr.bf16.mxu0 %v928
      %1508 = vmatmul.mubr.bf16.gmra.mxu0 %v927
      %v1509 = vpop.f32.mrf.mxu0
      %v1510 = vadd.f32 0.0, %v1509
      %v1511 = vpop.f32.mrf.mxu0
      %v1512 = vpop.f32.mrf.mxu0
      %v1513 = vadd.f32 0.0, %v1512
      %v1514 = vpop.f32.mrf.mxu0
      %1515 = vmatprep.mubr.bf16.mxu0 %v932
      %1516 = vmatmul.mubr.bf16.gmra.mxu0 %v931
      %v1517 = vpop.f32.mrf.mxu0
      %v1518 = vadd.f32 0.0, %v1517
      %v1519 = vpop.f32.mrf.mxu0
      %v1520 = vpop.f32.mrf.mxu0
      %v1521 = vadd.f32 0.0, %v1520
      %v1522 = vpop.f32.mrf.mxu0
      %1523 = vmatprep.mubr.bf16.mxu0 %v936
      %1524 = vmatmul.mubr.bf16.gmra.mxu0 %v935
      %v1525 = vpop.f32.mrf.mxu0
      %v1526 = vadd.f32 0.0, %v1525
      %v1527 = vpop.f32.mrf.mxu0
      %v1528 = vpop.f32.mrf.mxu0
      %v1529 = vadd.f32 0.0, %v1528
      %v1530 = vpop.f32.mrf.mxu0
      %1531 = vmatprep.mubr.bf16.mxu0 %v940
      %1532 = vmatmul.mubr.bf16.gmra.mxu0 %v939
      %v1533 = vpop.f32.mrf.mxu0
      %v1534 = vadd.f32 0.0, %v1533
      %v1535 = vpop.f32.mrf.mxu0
      %v1536 = vpop.f32.mrf.mxu0
      %v1537 = vadd.f32 0.0, %v1536
      %v1538 = vpop.f32.mrf.mxu0
      %1539 = vmatprep.mubr.bf16.mxu0 %v944
      %1540 = vmatmul.mubr.bf16.gmra.mxu0 %v943
      %v1541 = vpop.f32.mrf.mxu0
      %v1542 = vadd.f32 0.0, %v1541
      %v1543 = vpop.f32.mrf.mxu0
      %v1544 = vpop.f32.mrf.mxu0
      %v1545 = vadd.f32 0.0, %v1544
      %v1546 = vpop.f32.mrf.mxu0
      %1547 = vmatprep.mubr.bf16.mxu0 %v948
      %1548 = vmatmul.mubr.bf16.gmra.mxu0 %v947
      %v1549 = vpop.f32.mrf.mxu0
      %v1550 = vadd.f32 0.0, %v1549
      %v1551 = vpop.f32.mrf.mxu0
      %v1552 = vpop.f32.mrf.mxu0
      %v1553 = vadd.f32 0.0, %v1552
      %v1554 = vpop.f32.mrf.mxu0
      %1555 = vmatprep.mubr.bf16.mxu0 %v952
      %1556 = vmatmul.mubr.bf16.gmra.mxu0 %v951
      %v1557 = vpop.f32.mrf.mxu0
      %v1558 = vadd.f32 0.0, %v1557
      %v1559 = vpop.f32.mrf.mxu0
      %v1560 = vpop.f32.mrf.mxu0
      %v1561 = vadd.f32 0.0, %v1560
      %v1562 = vpop.f32.mrf.mxu0
      %1563 = vdwg.mxu0
      %1564 = vmatprep.subr.bf16.mxu0 0
      %1565 = vmatpush1.bf16.msra.mxu0 %v1234
      %1566 = vmatprep.subr.bf16.mxu0 0
      %1567 = vmatpush1.bf16.msra.mxu0 %v1233
      %1568 = vmatprep.subr.bf16.mxu0 0
      %1569 = vmatpush1.bf16.msra.mxu0 %v1232
      %1570 = vmatprep.subr.bf16.mxu0 0
      %1571 = vmatpush1.bf16.msra.mxu0 %v1231
      %1572 = vmatprep.subr.bf16.mxu0 0
      %1573 = vmatpush1.bf16.msra.mxu0 %v1230
      %1574 = vmatprep.subr.bf16.mxu0 0
      %1575 = vmatpush1.bf16.msra.mxu0 %v1229
      %1576 = vmatprep.subr.bf16.mxu0 0
      %1577 = vmatpush1.bf16.msra.mxu0 %v1228
      %1578 = vmatprep.subr.bf16.mxu0 0
      %1579 = vmatpush1.bf16.msra.mxu0 %v1227
      %1580 = vmatprep.subr.bf16.mxu0 0
      %1581 = vmatpush2.bf16.msra.mxu0 %v1242
      %1582 = vmatprep.subr.bf16.mxu0 0
      %1583 = vmatpush2.bf16.msra.mxu0 %v1241
      %1584 = vmatprep.subr.bf16.mxu0 0
      %1585 = vmatpush2.bf16.msra.mxu0 %v1240
      %1586 = vmatprep.subr.bf16.mxu0 0
      %1587 = vmatpush2.bf16.msra.mxu0 %v1239
      %1588 = vmatprep.subr.bf16.mxu0 0
      %1589 = vmatpush2.bf16.msra.mxu0 %v1238
      %1590 = vmatprep.subr.bf16.mxu0 0
      %1591 = vmatpush2.bf16.msra.mxu0 %v1237
      %1592 = vmatprep.subr.bf16.mxu0 0
      %1593 = vmatpush2.bf16.msra.mxu0 %v1236
      %1594 = vmatprep.subr.bf16.mxu0 0
      %1595 = vmatpush2.bf16.msra.mxu0 %v1235
      %1596 = vmatprep.mubr.bf16.mxu0 %v830
      %1597 = vmatmul.mubr.bf16.gmra.mxu0 %v829
      %v1598 = vpop.f32.mrf.mxu0
      %v1599 = vadd.f32 %v1310, %v1598
      %v1600 = vpop.f32.mrf.mxu0
      %v1601 = vpop.f32.mrf.mxu0
      %v1602 = vadd.f32 %v1313, %v1601
      %v1603 = vpop.f32.mrf.mxu0
      %1604 = vmatprep.mubr.bf16.mxu0 %v834
      %1605 = vmatmul.mubr.bf16.gmra.mxu0 %v833
      %v1606 = vpop.f32.mrf.mxu0
      %v1607 = vadd.f32 %v1318, %v1606
      %v1608 = vpop.f32.mrf.mxu0
      %v1609 = vpop.f32.mrf.mxu0
      %v1610 = vadd.f32 %v1321, %v1609
      %v1611 = vpop.f32.mrf.mxu0
      %1612 = vmatprep.mubr.bf16.mxu0 %v838
      %1613 = vmatmul.mubr.bf16.gmra.mxu0 %v837
      %v1614 = vpop.f32.mrf.mxu0
      %v1615 = vadd.f32 %v1326, %v1614
      %v1616 = vpop.f32.mrf.mxu0
      %v1617 = vpop.f32.mrf.mxu0
      %v1618 = vadd.f32 %v1329, %v1617
      %v1619 = vpop.f32.mrf.mxu0
      %1620 = vmatprep.mubr.bf16.mxu0 %v842
      %1621 = vmatmul.mubr.bf16.gmra.mxu0 %v841
      %v1622 = vpop.f32.mrf.mxu0
      %v1623 = vadd.f32 %v1334, %v1622
      %v1624 = vpop.f32.mrf.mxu0
      %v1625 = vpop.f32.mrf.mxu0
      %v1626 = vadd.f32 %v1337, %v1625
      %v1627 = vpop.f32.mrf.mxu0
      %1628 = vmatprep.mubr.bf16.mxu0 %v846
      %1629 = vmatmul.mubr.bf16.gmra.mxu0 %v845
      %v1630 = vpop.f32.mrf.mxu0
      %v1631 = vadd.f32 %v1342, %v1630
      %v1632 = vpop.f32.mrf.mxu0
      %v1633 = vpop.f32.mrf.mxu0
      %v1634 = vadd.f32 %v1345, %v1633
      %v1635 = vpop.f32.mrf.mxu0
      %1636 = vmatprep.mubr.bf16.mxu0 %v850
      %1637 = vmatmul.mubr.bf16.gmra.mxu0 %v849
      %v1638 = vpop.f32.mrf.mxu0
      %v1639 = vadd.f32 %v1350, %v1638
      %v1640 = vpop.f32.mrf.mxu0
      %v1641 = vpop.f32.mrf.mxu0
      %v1642 = vadd.f32 %v1353, %v1641
      %v1643 = vpop.f32.mrf.mxu0
      %1644 = vmatprep.mubr.bf16.mxu0 %v854
      %1645 = vmatmul.mubr.bf16.gmra.mxu0 %v853
      %v1646 = vpop.f32.mrf.mxu0
      %v1647 = vadd.f32 %v1358, %v1646
      %v1648 = vpop.f32.mrf.mxu0
      %v1649 = vpop.f32.mrf.mxu0
      %v1650 = vadd.f32 %v1361, %v1649
      %v1651 = vpop.f32.mrf.mxu0
      %1652 = vmatprep.mubr.bf16.mxu0 %v858
      %1653 = vmatmul.mubr.bf16.gmra.mxu0 %v857
      %v1654 = vpop.f32.mrf.mxu0
      %v1655 = vadd.f32 %v1366, %v1654
      %v1656 = vpop.f32.mrf.mxu0
      %v1657 = vpop.f32.mrf.mxu0
      %v1658 = vadd.f32 %v1369, %v1657
      %v1659 = vpop.f32.mrf.mxu0
      %1660 = vmatprep.mubr.bf16.mxu0 %v862
      %1661 = vmatmul.mubr.bf16.gmra.mxu0 %v861
      %v1662 = vpop.f32.mrf.mxu0
      %v1663 = vadd.f32 %v1374, %v1662
      %v1664 = vpop.f32.mrf.mxu0
      %v1665 = vpop.f32.mrf.mxu0
      %v1666 = vadd.f32 %v1377, %v1665
      %v1667 = vpop.f32.mrf.mxu0
      %1668 = vmatprep.mubr.bf16.mxu0 %v866
      %1669 = vmatmul.mubr.bf16.gmra.mxu0 %v865
      %v1670 = vpop.f32.mrf.mxu0
      %v1671 = vadd.f32 %v1382, %v1670
      %v1672 = vpop.f32.mrf.mxu0
      %v1673 = vpop.f32.mrf.mxu0
      %v1674 = vadd.f32 %v1385, %v1673
      %v1675 = vpop.f32.mrf.mxu0
      %1676 = vmatprep.mubr.bf16.mxu0 %v870
      %1677 = vmatmul.mubr.bf16.gmra.mxu0 %v869
      %v1678 = vpop.f32.mrf.mxu0
      %v1679 = vadd.f32 %v1390, %v1678
      %v1680 = vpop.f32.mrf.mxu0
      %v1681 = vpop.f32.mrf.mxu0
      %v1682 = vadd.f32 %v1393, %v1681
      %v1683 = vpop.f32.mrf.mxu0
      %1684 = vmatprep.mubr.bf16.mxu0 %v874
      %1685 = vmatmul.mubr.bf16.gmra.mxu0 %v873
      %v1686 = vpop.f32.mrf.mxu0
      %v1687 = vadd.f32 %v1398, %v1686
      %v1688 = vpop.f32.mrf.mxu0
      %v1689 = vpop.f32.mrf.mxu0
      %v1690 = vadd.f32 %v1401, %v1689
      %v1691 = vpop.f32.mrf.mxu0
      %1692 = vmatprep.mubr.bf16.mxu0 %v878
      %1693 = vmatmul.mubr.bf16.gmra.mxu0 %v877
      %v1694 = vpop.f32.mrf.mxu0
      %v1695 = vadd.f32 %v1406, %v1694
      %v1696 = vpop.f32.mrf.mxu0
      %v1697 = vpop.f32.mrf.mxu0
      %v1698 = vadd.f32 %v1409, %v1697
      %v1699 = vpop.f32.mrf.mxu0
      %1700 = vmatprep.mubr.bf16.mxu0 %v882
      %1701 = vmatmul.mubr.bf16.gmra.mxu0 %v881
      %v1702 = vpop.f32.mrf.mxu0
      %v1703 = vadd.f32 %v1414, %v1702
      %v1704 = vpop.f32.mrf.mxu0
      %v1705 = vpop.f32.mrf.mxu0
      %v1706 = vadd.f32 %v1417, %v1705
      %v1707 = vpop.f32.mrf.mxu0
      %1708 = vmatprep.mubr.bf16.mxu0 %v886
      %1709 = vmatmul.mubr.bf16.gmra.mxu0 %v885
      %v1710 = vpop.f32.mrf.mxu0
      %v1711 = vadd.f32 %v1422, %v1710
      %v1712 = vpop.f32.mrf.mxu0
      %v1713 = vpop.f32.mrf.mxu0
      %v1714 = vadd.f32 %v1425, %v1713
      %v1715 = vpop.f32.mrf.mxu0
      %1716 = vmatprep.mubr.bf16.mxu0 %v890
      %1717 = vmatmul.mubr.bf16.gmra.mxu0 %v889
      %v1718 = vpop.f32.mrf.mxu0
      %v1719 = vadd.f32 %v1430, %v1718
      %v1720 = vpop.f32.mrf.mxu0
      %v1721 = vpop.f32.mrf.mxu0
      %v1722 = vadd.f32 %v1433, %v1721
      %v1723 = vpop.f32.mrf.mxu0
      %1724 = vmatprep.mubr.bf16.mxu0 %v894
      %1725 = vmatmul.mubr.bf16.gmra.mxu0 %v893
      %v1726 = vpop.f32.mrf.mxu0
      %v1727 = vadd.f32 %v1438, %v1726
      %v1728 = vpop.f32.mrf.mxu0
      %v1729 = vpop.f32.mrf.mxu0
      %v1730 = vadd.f32 %v1441, %v1729
      %v1731 = vpop.f32.mrf.mxu0
      %1732 = vmatprep.mubr.bf16.mxu0 %v898
      %1733 = vmatmul.mubr.bf16.gmra.mxu0 %v897
      %v1734 = vpop.f32.mrf.mxu0
      %v1735 = vadd.f32 %v1446, %v1734
      %v1736 = vpop.f32.mrf.mxu0
      %v1737 = vpop.f32.mrf.mxu0
      %v1738 = vadd.f32 %v1449, %v1737
      %v1739 = vpop.f32.mrf.mxu0
      %1740 = vmatprep.mubr.bf16.mxu0 %v902
      %1741 = vmatmul.mubr.bf16.gmra.mxu0 %v901
      %v1742 = vpop.f32.mrf.mxu0
      %v1743 = vadd.f32 %v1454, %v1742
      %v1744 = vpop.f32.mrf.mxu0
      %v1745 = vpop.f32.mrf.mxu0
      %v1746 = vadd.f32 %v1457, %v1745
      %v1747 = vpop.f32.mrf.mxu0
      %1748 = vmatprep.mubr.bf16.mxu0 %v906
      %1749 = vmatmul.mubr.bf16.gmra.mxu0 %v905
      %v1750 = vpop.f32.mrf.mxu0
      %v1751 = vadd.f32 %v1462, %v1750
      %v1752 = vpop.f32.mrf.mxu0
      %v1753 = vpop.f32.mrf.mxu0
      %v1754 = vadd.f32 %v1465, %v1753
      %v1755 = vpop.f32.mrf.mxu0
      %1756 = vmatprep.mubr.bf16.mxu0 %v910
      %1757 = vmatmul.mubr.bf16.gmra.mxu0 %v909
      %v1758 = vpop.f32.mrf.mxu0
      %v1759 = vadd.f32 %v1470, %v1758
      %v1760 = vpop.f32.mrf.mxu0
      %v1761 = vpop.f32.mrf.mxu0
      %v1762 = vadd.f32 %v1473, %v1761
      %v1763 = vpop.f32.mrf.mxu0
      %1764 = vmatprep.mubr.bf16.mxu0 %v914
      %1765 = vmatmul.mubr.bf16.gmra.mxu0 %v913
      %v1766 = vpop.f32.mrf.mxu0
      %v1767 = vadd.f32 %v1478, %v1766
      %v1768 = vpop.f32.mrf.mxu0
      %v1769 = vpop.f32.mrf.mxu0
      %v1770 = vadd.f32 %v1481, %v1769
      %v1771 = vpop.f32.mrf.mxu0
      %1772 = vmatprep.mubr.bf16.mxu0 %v918
      %1773 = vmatmul.mubr.bf16.gmra.mxu0 %v917
      %v1774 = vpop.f32.mrf.mxu0
      %v1775 = vadd.f32 %v1486, %v1774
      %v1776 = vpop.f32.mrf.mxu0
      %v1777 = vpop.f32.mrf.mxu0
      %v1778 = vadd.f32 %v1489, %v1777
      %v1779 = vpop.f32.mrf.mxu0
      %1780 = vmatprep.mubr.bf16.mxu0 %v922
      %1781 = vmatmul.mubr.bf16.gmra.mxu0 %v921
      %v1782 = vpop.f32.mrf.mxu0
      %v1783 = vadd.f32 %v1494, %v1782
      %v1784 = vpop.f32.mrf.mxu0
      %v1785 = vpop.f32.mrf.mxu0
      %v1786 = vadd.f32 %v1497, %v1785
      %v1787 = vpop.f32.mrf.mxu0
      %1788 = vmatprep.mubr.bf16.mxu0 %v926
      %1789 = vmatmul.mubr.bf16.gmra.mxu0 %v925
      %v1790 = vpop.f32.mrf.mxu0
      %v1791 = vadd.f32 %v1502, %v1790
      %v1792 = vpop.f32.mrf.mxu0
      %v1793 = vpop.f32.mrf.mxu0
      %v1794 = vadd.f32 %v1505, %v1793
      %v1795 = vpop.f32.mrf.mxu0
      %1796 = vmatprep.mubr.bf16.mxu0 %v930
      %1797 = vmatmul.mubr.bf16.gmra.mxu0 %v929
      %v1798 = vpop.f32.mrf.mxu0
      %v1799 = vadd.f32 %v1510, %v1798
      %v1800 = vpop.f32.mrf.mxu0
      %v1801 = vpop.f32.mrf.mxu0
      %v1802 = vadd.f32 %v1513, %v1801
      %v1803 = vpop.f32.mrf.mxu0
      %1804 = vmatprep.mubr.bf16.mxu0 %v934
      %1805 = vmatmul.mubr.bf16.gmra.mxu0 %v933
      %v1806 = vpop.f32.mrf.mxu0
      %v1807 = vadd.f32 %v1518, %v1806
      %v1808 = vpop.f32.mrf.mxu0
      %v1809 = vpop.f32.mrf.mxu0
      %v1810 = vadd.f32 %v1521, %v1809
      %v1811 = vpop.f32.mrf.mxu0
      %1812 = vmatprep.mubr.bf16.mxu0 %v938
      %1813 = vmatmul.mubr.bf16.gmra.mxu0 %v937
      %v1814 = vpop.f32.mrf.mxu0
      %v1815 = vadd.f32 %v1526, %v1814
      %v1816 = vpop.f32.mrf.mxu0
      %v1817 = vpop.f32.mrf.mxu0
      %v1818 = vadd.f32 %v1529, %v1817
      %v1819 = vpop.f32.mrf.mxu0
      %1820 = vmatprep.mubr.bf16.mxu0 %v942
      %1821 = vmatmul.mubr.bf16.gmra.mxu0 %v941
      %v1822 = vpop.f32.mrf.mxu0
      %v1823 = vadd.f32 %v1534, %v1822
      %v1824 = vpop.f32.mrf.mxu0
      %v1825 = vpop.f32.mrf.mxu0
      %v1826 = vadd.f32 %v1537, %v1825
      %v1827 = vpop.f32.mrf.mxu0
      %1828 = vmatprep.mubr.bf16.mxu0 %v946
      %1829 = vmatmul.mubr.bf16.gmra.mxu0 %v945
      %v1830 = vpop.f32.mrf.mxu0
      %v1831 = vadd.f32 %v1542, %v1830
      %v1832 = vpop.f32.mrf.mxu0
      %v1833 = vpop.f32.mrf.mxu0
      %v1834 = vadd.f32 %v1545, %v1833
      %v1835 = vpop.f32.mrf.mxu0
      %1836 = vmatprep.mubr.bf16.mxu0 %v950
      %1837 = vmatmul.mubr.bf16.gmra.mxu0 %v949
      %v1838 = vpop.f32.mrf.mxu0
      %v1839 = vadd.f32 %v1550, %v1838
      %v1840 = vpop.f32.mrf.mxu0
      %v1841 = vpop.f32.mrf.mxu0
      %v1842 = vadd.f32 %v1553, %v1841
      %v1843 = vpop.f32.mrf.mxu0
      %1844 = vmatprep.mubr.bf16.mxu0 %v954
      %1845 = vmatmul.mubr.bf16.gmra.mxu0 %v953
      %v1846 = vpop.f32.mrf.mxu0
      %v1847 = vadd.f32 %v1558, %v1846
      %v1848 = vpop.f32.mrf.mxu0
      %v1849 = vpop.f32.mrf.mxu0
      %v1850 = vadd.f32 %v1561, %v1849
      %v1851 = vpop.f32.mrf.mxu0
      %1852 = vdwg.mxu0
      %v1853 = vadd.f32 %v183, %v1599
      %v1854 = vadd.f32 %v184, %v1602
      %v1855 = vadd.f32 %v185, %v1607
      %v1856 = vadd.f32 %v186, %v1610
      %v1857 = vadd.f32 %v187, %v1615
      %v1858 = vadd.f32 %v188, %v1618
      %v1859 = vadd.f32 %v189, %v1623
      %v1860 = vadd.f32 %v190, %v1626
      %v1861 = vadd.f32 %v191, %v1631
      %v1862 = vadd.f32 %v192, %v1634
      %v1863 = vadd.f32 %v193, %v1639
      %v1864 = vadd.f32 %v194, %v1642
      %v1865 = vadd.f32 %v195, %v1647
      %v1866 = vadd.f32 %v196, %v1650
      %v1867 = vadd.f32 %v197, %v1655
      %v1868 = vadd.f32 %v198, %v1658
      %v1869 = vadd.f32 %v199, %v1663
      %v1870 = vadd.f32 %v200, %v1666
      %v1871 = vadd.f32 %v201, %v1671
      %v1872 = vadd.f32 %v202, %v1674
      %v1873 = vadd.f32 %v203, %v1679
      %v1874 = vadd.f32 %v204, %v1682
      %v1875 = vadd.f32 %v205, %v1687
      %v1876 = vadd.f32 %v206, %v1690
      %v1877 = vadd.f32 %v207, %v1695
      %v1878 = vadd.f32 %v208, %v1698
      %v1879 = vadd.f32 %v209, %v1703
      %v1880 = vadd.f32 %v210, %v1706
      %v1881 = vadd.f32 %v211, %v1711
      %v1882 = vadd.f32 %v212, %v1714
      %v1883 = vadd.f32 %v213, %v1719
      %v1884 = vadd.f32 %v214, %v1722
      %v1885 = vadd.f32 %v215, %v1727
      %v1886 = vadd.f32 %v216, %v1730
      %v1887 = vadd.f32 %v217, %v1735
      %v1888 = vadd.f32 %v218, %v1738
      %v1889 = vadd.f32 %v219, %v1743
      %v1890 = vadd.f32 %v220, %v1746
      %v1891 = vadd.f32 %v221, %v1751
      %v1892 = vadd.f32 %v222, %v1754
      %v1893 = vadd.f32 %v223, %v1759
      %v1894 = vadd.f32 %v224, %v1762
      %v1895 = vadd.f32 %v225, %v1767
      %v1896 = vadd.f32 %v226, %v1770
      %v1897 = vadd.f32 %v227, %v1775
      %v1898 = vadd.f32 %v228, %v1778
      %v1899 = vadd.f32 %v229, %v1783
      %v1900 = vadd.f32 %v230, %v1786
      %v1901 = vadd.f32 %v231, %v1791
      %v1902 = vadd.f32 %v232, %v1794
      %v1903 = vadd.f32 %v233, %v1799
      %v1904 = vadd.f32 %v234, %v1802
      %v1905 = vadd.f32 %v235, %v1807
      %v1906 = vadd.f32 %v236, %v1810
      %v1907 = vadd.f32 %v237, %v1815
      %v1908 = vadd.f32 %v238, %v1818
      %v1909 = vadd.f32 %v239, %v1823
      %v1910 = vadd.f32 %v240, %v1826
      %v1911 = vadd.f32 %v241, %v1831
      %v1912 = vadd.f32 %v242, %v1834
      %v1913 = vadd.f32 %v243, %v1839
      %v1914 = vadd.f32 %v244, %v1842
      %v1915 = vadd.f32 %v245, %v1847
      %v1916 = vadd.f32 %v246, %v1850
      %1917 = vst [vmem:[#allocation2] sm:$0xff] %v1853
      %1918 = vst [vmem:[#allocation2 + $0x8] sm:$0xff] %v1854
      %1919 = vst [vmem:[#allocation2 + $0x10] sm:$0xff] %v1855
      %1920 = vst [vmem:[#allocation2 + $0x18] sm:$0xff] %v1856
      %1921 = vst [vmem:[#allocation2 + $0x20] sm:$0xff] %v1857
      %1922 = vst [vmem:[#allocation2 + $0x28] sm:$0xff] %v1858
      %1923 = vst [vmem:[#allocation2 + $0x30] sm:$0xff] %v1859
      %1924 = vst [vmem:[#allocation2 + $0x38] sm:$0xff] %v1860
      %1925 = vst [vmem:[#allocation2 + $0x40] sm:$0xff] %v1861
      %1926 = vst [vmem:[#allocation2 + $0x48] sm:$0xff] %v1862
      %1927 = vst [vmem:[#allocation2 + $0x50] sm:$0xff] %v1863
      %1928 = vst [vmem:[#allocation2 + $0x58] sm:$0xff] %v1864
      %1929 = vst [vmem:[#allocation2 + $0x60] sm:$0xff] %v1865
      %1930 = vst [vmem:[#allocation2 + $0x68] sm:$0xff] %v1866
      %1931 = vst [vmem:[#allocation2 + $0x70] sm:$0xff] %v1867
      %1932 = vst [vmem:[#allocation2 + $0x78] sm:$0xff] %v1868
      %1933 = vst [vmem:[#allocation2 + $0x80] sm:$0xff] %v1869
      %1934 = vst [vmem:[#allocation2 + $0x88] sm:$0xff] %v1870
      %1935 = vst [vmem:[#allocation2 + $0x90] sm:$0xff] %v1871
      %1936 = vst [vmem:[#allocation2 + $0x98] sm:$0xff] %v1872
      %1937 = vst [vmem:[#allocation2 + $0xa0] sm:$0xff] %v1873
      %1938 = vst [vmem:[#allocation2 + $0xa8] sm:$0xff] %v1874
      %1939 = vst [vmem:[#allocation2 + $0xb0] sm:$0xff] %v1875
      %1940 = vst [vmem:[#allocation2 + $0xb8] sm:$0xff] %v1876
      %1941 = vst [vmem:[#allocation2 + $0xc0] sm:$0xff] %v1877
      %1942 = vst [vmem:[#allocation2 + $0xc8] sm:$0xff] %v1878
      %1943 = vst [vmem:[#allocation2 + $0xd0] sm:$0xff] %v1879
      %1944 = vst [vmem:[#allocation2 + $0xd8] sm:$0xff] %v1880
      %1945 = vst [vmem:[#allocation2 + $0xe0] sm:$0xff] %v1881
      %1946 = vst [vmem:[#allocation2 + $0xe8] sm:$0xff] %v1882
      %1947 = vst [vmem:[#allocation2 + $0xf0] sm:$0xff] %v1883
      %1948 = vst [vmem:[#allocation2 + $0xf8] sm:$0xff] %v1884
      %1949 = vst [vmem:[#allocation2 + $0x100] sm:$0xff] %v1885
      %1950 = vst [vmem:[#allocation2 + $0x108] sm:$0xff] %v1886
      %1951 = vst [vmem:[#allocation2 + $0x110] sm:$0xff] %v1887
      %1952 = vst [vmem:[#allocation2 + $0x118] sm:$0xff] %v1888
      %1953 = vst [vmem:[#allocation2 + $0x120] sm:$0xff] %v1889
      %1954 = vst [vmem:[#allocation2 + $0x128] sm:$0xff] %v1890
      %1955 = vst [vmem:[#allocation2 + $0x130] sm:$0xff] %v1891
      %1956 = vst [vmem:[#allocation2 + $0x138] sm:$0xff] %v1892
      %1957 = vst [vmem:[#allocation2 + $0x140] sm:$0xff] %v1893
      %1958 = vst [vmem:[#allocation2 + $0x148] sm:$0xff] %v1894
      %1959 = vst [vmem:[#allocation2 + $0x150] sm:$0xff] %v1895
      %1960 = vst [vmem:[#allocation2 + $0x158] sm:$0xff] %v1896
      %1961 = vst [vmem:[#allocation2 + $0x160] sm:$0xff] %v1897
      %1962 = vst [vmem:[#allocation2 + $0x168] sm:$0xff] %v1898
      %1963 = vst [vmem:[#allocation2 + $0x170] sm:$0xff] %v1899
      %1964 = vst [vmem:[#allocation2 + $0x178] sm:$0xff] %v1900
      %1965 = vst [vmem:[#allocation2 + $0x180] sm:$0xff] %v1901
      %1966 = vst [vmem:[#allocation2 + $0x188] sm:$0xff] %v1902
      %1967 = vst [vmem:[#allocation2 + $0x190] sm:$0xff] %v1903
      %1968 = vst [vmem:[#allocation2 + $0x198] sm:$0xff] %v1904
      %1969 = vst [vmem:[#allocation2 + $0x1a0] sm:$0xff] %v1905
      %1970 = vst [vmem:[#allocation2 + $0x1a8] sm:$0xff] %v1906
      %1971 = vst [vmem:[#allocation2 + $0x1b0] sm:$0xff] %v1907
      %1972 = vst [vmem:[#allocation2 + $0x1b8] sm:$0xff] %v1908
      %1973 = vst [vmem:[#allocation2 + $0x1c0] sm:$0xff] %v1909
      %1974 = vst [vmem:[#allocation2 + $0x1c8] sm:$0xff] %v1910
      %1975 = vst [vmem:[#allocation2 + $0x1d0] sm:$0xff] %v1911
      %1976 = vst [vmem:[#allocation2 + $0x1d8] sm:$0xff] %v1912
      %1977 = vst [vmem:[#allocation2 + $0x1e0] sm:$0xff] %v1913
      %1978 = vst [vmem:[#allocation2 + $0x1e8] sm:$0xff] %v1914
      %1979 = vst [vmem:[#allocation2 + $0x1f0] sm:$0xff] %v1915
      %1980 = vst [vmem:[#allocation2 + $0x1f8] sm:$0xff] %v1916
    $region49: #{ngcf_forward.3} parent=1 // pred_fallthru
      _
    // Predicated region
    $region50: #{ngcf_forward.3} parent=1 // pred_check
      %p1981 = pneg %p105
    $region51: #{ngcf_forward.3} parent=1 // pred_check_branch
      %1983 = sbr.rel (%p1981) target = $region53
    $region52: #{ngcf_forward.3} parent=1 // pred_region
      %v1984 = vld [vmem:[#allocation2] sm:$0xff]
      %v1985 = vld [vmem:[#allocation2 + $0x8] sm:$0xff]
      %v1986 = vld [vmem:[#allocation2 + $0x10] sm:$0xff]
      %v1987 = vld [vmem:[#allocation2 + $0x18] sm:$0xff]
      %v1988 = vld [vmem:[#allocation2 + $0x20] sm:$0xff]
      %v1989 = vld [vmem:[#allocation2 + $0x28] sm:$0xff]
      %v1990 = vld [vmem:[#allocation2 + $0x30] sm:$0xff]
      %v1991 = vld [vmem:[#allocation2 + $0x38] sm:$0xff]
      %v1992 = vld [vmem:[#allocation2 + $0x40] sm:$0xff]
      %v1993 = vld [vmem:[#allocation2 + $0x48] sm:$0xff]
      %v1994 = vld [vmem:[#allocation2 + $0x50] sm:$0xff]
      %v1995 = vld [vmem:[#allocation2 + $0x58] sm:$0xff]
      %v1996 = vld [vmem:[#allocation2 + $0x60] sm:$0xff]
      %v1997 = vld [vmem:[#allocation2 + $0x68] sm:$0xff]
      %v1998 = vld [vmem:[#allocation2 + $0x70] sm:$0xff]
      %v1999 = vld [vmem:[#allocation2 + $0x78] sm:$0xff]
      %v2000 = vld [vmem:[#allocation2 + $0x80] sm:$0xff]
      %v2001 = vld [vmem:[#allocation2 + $0x88] sm:$0xff]
      %v2002 = vld [vmem:[#allocation2 + $0x90] sm:$0xff]
      %v2003 = vld [vmem:[#allocation2 + $0x98] sm:$0xff]
      %v2004 = vld [vmem:[#allocation2 + $0xa0] sm:$0xff]
      %v2005 = vld [vmem:[#allocation2 + $0xa8] sm:$0xff]
      %v2006 = vld [vmem:[#allocation2 + $0xb0] sm:$0xff]
      %v2007 = vld [vmem:[#allocation2 + $0xb8] sm:$0xff]
      %v2008 = vld [vmem:[#allocation2 + $0xc0] sm:$0xff]
      %v2009 = vld [vmem:[#allocation2 + $0xc8] sm:$0xff]
      %v2010 = vld [vmem:[#allocation2 + $0xd0] sm:$0xff]
      %v2011 = vld [vmem:[#allocation2 + $0xd8] sm:$0xff]
      %v2012 = vld [vmem:[#allocation2 + $0xe0] sm:$0xff]
      %v2013 = vld [vmem:[#allocation2 + $0xe8] sm:$0xff]
      %v2014 = vld [vmem:[#allocation2 + $0xf0] sm:$0xff]
      %v2015 = vld [vmem:[#allocation2 + $0xf8] sm:$0xff]
      %v2016 = vld [vmem:[#allocation2 + $0x100] sm:$0xff]
      %v2017 = vld [vmem:[#allocation2 + $0x108] sm:$0xff]
      %v2018 = vld [vmem:[#allocation2 + $0x110] sm:$0xff]
      %v2019 = vld [vmem:[#allocation2 + $0x118] sm:$0xff]
      %v2020 = vld [vmem:[#allocation2 + $0x120] sm:$0xff]
      %v2021 = vld [vmem:[#allocation2 + $0x128] sm:$0xff]
      %v2022 = vld [vmem:[#allocation2 + $0x130] sm:$0xff]
      %v2023 = vld [vmem:[#allocation2 + $0x138] sm:$0xff]
      %v2024 = vld [vmem:[#allocation2 + $0x140] sm:$0xff]
      %v2025 = vld [vmem:[#allocation2 + $0x148] sm:$0xff]
      %v2026 = vld [vmem:[#allocation2 + $0x150] sm:$0xff]
      %v2027 = vld [vmem:[#allocation2 + $0x158] sm:$0xff]
      %v2028 = vld [vmem:[#allocation2 + $0x160] sm:$0xff]
      %v2029 = vld [vmem:[#allocation2 + $0x168] sm:$0xff]
      %v2030 = vld [vmem:[#allocation2 + $0x170] sm:$0xff]
      %v2031 = vld [vmem:[#allocation2 + $0x178] sm:$0xff]
      %v2032 = vld [vmem:[#allocation2 + $0x180] sm:$0xff]
      %v2033 = vld [vmem:[#allocation2 + $0x188] sm:$0xff]
      %v2034 = vld [vmem:[#allocation2 + $0x190] sm:$0xff]
      %v2035 = vld [vmem:[#allocation2 + $0x198] sm:$0xff]
      %v2036 = vld [vmem:[#allocation2 + $0x1a0] sm:$0xff]
      %v2037 = vld [vmem:[#allocation2 + $0x1a8] sm:$0xff]
      %v2038 = vld [vmem:[#allocation2 + $0x1b0] sm:$0xff]
      %v2039 = vld [vmem:[#allocation2 + $0x1b8] sm:$0xff]
      %v2040 = vld [vmem:[#allocation2 + $0x1c0] sm:$0xff]
      %v2041 = vld [vmem:[#allocation2 + $0x1c8] sm:$0xff]
      %v2042 = vld [vmem:[#allocation2 + $0x1d0] sm:$0xff]
      %v2043 = vld [vmem:[#allocation2 + $0x1d8] sm:$0xff]
      %v2044 = vld [vmem:[#allocation2 + $0x1e0] sm:$0xff]
      %v2045 = vld [vmem:[#allocation2 + $0x1e8] sm:$0xff]
      %v2046 = vld [vmem:[#allocation2 + $0x1f0] sm:$0xff]
      %v2047 = vld [vmem:[#allocation2 + $0x1f8] sm:$0xff]
      %s2048 = smul.u32 0, 512
      %s2049 = sshra.s32 %s2048, 3
      %s2050 = sand.u32 %s2048, 7
      %s2051 = smul.addr %s2049, 4
      %s2052 = scalar_lea.vmem [#allocation8], %s2051
      %v2053 = vld [vmem:[%s2052] sm:$0xf]
      %v2054 = vld [vmem:[%s2052 + $0x4] sm:$0xf]
      %v2055 = vld [vmem:[%s2052 + $0x8] sm:$0xf]
      %v2056 = vld [vmem:[%s2052 + $0xc] sm:$0xf]
      %v2057 = vld [vmem:[%s2052 + $0x10] sm:$0xf]
      %v2058 = vld [vmem:[%s2052 + $0x14] sm:$0xf]
      %v2059 = vld [vmem:[%s2052 + $0x18] sm:$0xf]
      %v2060 = vld [vmem:[%s2052 + $0x1c] sm:$0xf]
      %v2061 = vld [vmem:[%s2052 + $0x20] sm:$0xf]
      %v2062 = vld [vmem:[%s2052 + $0x24] sm:$0xf]
      %v2063 = vld [vmem:[%s2052 + $0x28] sm:$0xf]
      %v2064 = vld [vmem:[%s2052 + $0x2c] sm:$0xf]
      %v2065 = vld [vmem:[%s2052 + $0x30] sm:$0xf]
      %v2066 = vld [vmem:[%s2052 + $0x34] sm:$0xf]
      %v2067 = vld [vmem:[%s2052 + $0x38] sm:$0xf]
      %v2068 = vld [vmem:[%s2052 + $0x3c] sm:$0xf]
      %v2069 = vld [vmem:[%s2052 + $0x40] sm:$0xf]
      %v2070 = vld [vmem:[%s2052 + $0x44] sm:$0xf]
      %v2071 = vld [vmem:[%s2052 + $0x48] sm:$0xf]
      %v2072 = vld [vmem:[%s2052 + $0x4c] sm:$0xf]
      %v2073 = vld [vmem:[%s2052 + $0x50] sm:$0xf]
      %v2074 = vld [vmem:[%s2052 + $0x54] sm:$0xf]
      %v2075 = vld [vmem:[%s2052 + $0x58] sm:$0xf]
      %v2076 = vld [vmem:[%s2052 + $0x5c] sm:$0xf]
      %v2077 = vld [vmem:[%s2052 + $0x60] sm:$0xf]
      %v2078 = vld [vmem:[%s2052 + $0x64] sm:$0xf]
      %v2079 = vld [vmem:[%s2052 + $0x68] sm:$0xf]
      %v2080 = vld [vmem:[%s2052 + $0x6c] sm:$0xf]
      %v2081 = vld [vmem:[%s2052 + $0x70] sm:$0xf]
      %v2082 = vld [vmem:[%s2052 + $0x74] sm:$0xf]
      %v2083 = vld [vmem:[%s2052 + $0x78] sm:$0xf]
      %v2084 = vld [vmem:[%s2052 + $0x7c] sm:$0xf]
      %v2085 = vld [vmem:[%s2052 + $0x80] sm:$0xf]
      %v2086 = vld [vmem:[%s2052 + $0x84] sm:$0xf]
      %v2087 = vld [vmem:[%s2052 + $0x88] sm:$0xf]
      %v2088 = vld [vmem:[%s2052 + $0x8c] sm:$0xf]
      %v2089 = vld [vmem:[%s2052 + $0x90] sm:$0xf]
      %v2090 = vld [vmem:[%s2052 + $0x94] sm:$0xf]
      %v2091 = vld [vmem:[%s2052 + $0x98] sm:$0xf]
      %v2092 = vld [vmem:[%s2052 + $0x9c] sm:$0xf]
      %v2093 = vld [vmem:[%s2052 + $0xa0] sm:$0xf]
      %v2094 = vld [vmem:[%s2052 + $0xa4] sm:$0xf]
      %v2095 = vld [vmem:[%s2052 + $0xa8] sm:$0xf]
      %v2096 = vld [vmem:[%s2052 + $0xac] sm:$0xf]
      %v2097 = vld [vmem:[%s2052 + $0xb0] sm:$0xf]
      %v2098 = vld [vmem:[%s2052 + $0xb4] sm:$0xf]
      %v2099 = vld [vmem:[%s2052 + $0xb8] sm:$0xf]
      %v2100 = vld [vmem:[%s2052 + $0xbc] sm:$0xf]
      %v2101 = vld [vmem:[%s2052 + $0xc0] sm:$0xf]
      %v2102 = vld [vmem:[%s2052 + $0xc4] sm:$0xf]
      %v2103 = vld [vmem:[%s2052 + $0xc8] sm:$0xf]
      %v2104 = vld [vmem:[%s2052 + $0xcc] sm:$0xf]
      %v2105 = vld [vmem:[%s2052 + $0xd0] sm:$0xf]
      %v2106 = vld [vmem:[%s2052 + $0xd4] sm:$0xf]
      %v2107 = vld [vmem:[%s2052 + $0xd8] sm:$0xf]
      %v2108 = vld [vmem:[%s2052 + $0xdc] sm:$0xf]
      %v2109 = vld [vmem:[%s2052 + $0xe0] sm:$0xf]
      %v2110 = vld [vmem:[%s2052 + $0xe4] sm:$0xf]
      %v2111 = vld [vmem:[%s2052 + $0xe8] sm:$0xf]
      %v2112 = vld [vmem:[%s2052 + $0xec] sm:$0xf]
      %v2113 = vld [vmem:[%s2052 + $0xf0] sm:$0xf]
      %v2114 = vld [vmem:[%s2052 + $0xf4] sm:$0xf]
      %v2115 = vld [vmem:[%s2052 + $0xf8] sm:$0xf]
      %v2116 = vld [vmem:[%s2052 + $0xfc] sm:$0xf]
      %v2117 = vunpack.c.l.bf16 %v2053
      %v2118 = vunpack.c.l.bf16 %v2054
      %v2119 = vunpack.c.l.bf16 %v2055
      %v2120 = vunpack.c.l.bf16 %v2056
      %v2121 = vunpack.c.l.bf16 %v2057
      %v2122 = vunpack.c.l.bf16 %v2058
      %v2123 = vunpack.c.l.bf16 %v2059
      %v2124 = vunpack.c.l.bf16 %v2060
      %v2125 = vunpack.c.l.bf16 %v2061
      %v2126 = vunpack.c.l.bf16 %v2062
      %v2127 = vunpack.c.l.bf16 %v2063
      %v2128 = vunpack.c.l.bf16 %v2064
      %v2129 = vunpack.c.l.bf16 %v2065
      %v2130 = vunpack.c.l.bf16 %v2066
      %v2131 = vunpack.c.l.bf16 %v2067
      %v2132 = vunpack.c.l.bf16 %v2068
      %v2133 = vunpack.c.l.bf16 %v2069
      %v2134 = vunpack.c.l.bf16 %v2070
      %v2135 = vunpack.c.l.bf16 %v2071
      %v2136 = vunpack.c.l.bf16 %v2072
      %v2137 = vunpack.c.l.bf16 %v2073
      %v2138 = vunpack.c.l.bf16 %v2074
      %v2139 = vunpack.c.l.bf16 %v2075
      %v2140 = vunpack.c.l.bf16 %v2076
      %v2141 = vunpack.c.l.bf16 %v2077
      %v2142 = vunpack.c.l.bf16 %v2078
      %v2143 = vunpack.c.l.bf16 %v2079
      %v2144 = vunpack.c.l.bf16 %v2080
      %v2145 = vunpack.c.l.bf16 %v2081
      %v2146 = vunpack.c.l.bf16 %v2082
      %v2147 = vunpack.c.l.bf16 %v2083
      %v2148 = vunpack.c.l.bf16 %v2084
      %v2149 = vunpack.c.l.bf16 %v2085
      %v2150 = vunpack.c.l.bf16 %v2086
      %v2151 = vunpack.c.l.bf16 %v2087
      %v2152 = vunpack.c.l.bf16 %v2088
      %v2153 = vunpack.c.l.bf16 %v2089
      %v2154 = vunpack.c.l.bf16 %v2090
      %v2155 = vunpack.c.l.bf16 %v2091
      %v2156 = vunpack.c.l.bf16 %v2092
      %v2157 = vunpack.c.l.bf16 %v2093
      %v2158 = vunpack.c.l.bf16 %v2094
      %v2159 = vunpack.c.l.bf16 %v2095
      %v2160 = vunpack.c.l.bf16 %v2096
      %v2161 = vunpack.c.l.bf16 %v2097
      %v2162 = vunpack.c.l.bf16 %v2098
      %v2163 = vunpack.c.l.bf16 %v2099
      %v2164 = vunpack.c.l.bf16 %v2100
      %v2165 = vunpack.c.l.bf16 %v2101
      %v2166 = vunpack.c.l.bf16 %v2102
      %v2167 = vunpack.c.l.bf16 %v2103
      %v2168 = vunpack.c.l.bf16 %v2104
      %v2169 = vunpack.c.l.bf16 %v2105
      %v2170 = vunpack.c.l.bf16 %v2106
      %v2171 = vunpack.c.l.bf16 %v2107
      %v2172 = vunpack.c.l.bf16 %v2108
      %v2173 = vunpack.c.l.bf16 %v2109
      %v2174 = vunpack.c.l.bf16 %v2110
      %v2175 = vunpack.c.l.bf16 %v2111
      %v2176 = vunpack.c.l.bf16 %v2112
      %v2177 = vunpack.c.l.bf16 %v2113
      %v2178 = vunpack.c.l.bf16 %v2114
      %v2179 = vunpack.c.l.bf16 %v2115
      %v2180 = vunpack.c.l.bf16 %v2116
      %v2181 = vld [vmem:[#allocation10] sm:$0xff]
      %v2182 = vld [vmem:[#allocation10 + $0x8] sm:$0xff]
      %v2183 = vld [vmem:[#allocation10 + $0x10] sm:$0xff]
      %v2184 = vld [vmem:[#allocation10 + $0x18] sm:$0xff]
      %v2185 = vld [vmem:[#allocation10 + $0x20] sm:$0xff]
      %v2186 = vld [vmem:[#allocation10 + $0x28] sm:$0xff]
      %v2187 = vld [vmem:[#allocation10 + $0x30] sm:$0xff]
      %v2188 = vld [vmem:[#allocation10 + $0x38] sm:$0xff]
      %v2189 = vld [vmem:[#allocation10 + $0x40] sm:$0xff]
      %v2190 = vld [vmem:[#allocation10 + $0x48] sm:$0xff]
      %v2191 = vld [vmem:[#allocation10 + $0x50] sm:$0xff]
      %v2192 = vld [vmem:[#allocation10 + $0x58] sm:$0xff]
      %v2193 = vld [vmem:[#allocation10 + $0x60] sm:$0xff]
      %v2194 = vld [vmem:[#allocation10 + $0x68] sm:$0xff]
      %v2195 = vld [vmem:[#allocation10 + $0x70] sm:$0xff]
      %v2196 = vld [vmem:[#allocation10 + $0x78] sm:$0xff]
      %v2197 = vmul.f32 %v2117, %v1984
      %v2198 = vmul.f32 %v2118, %v1985
      %v2199 = vmul.f32 %v2119, %v1986
      %v2200 = vmul.f32 %v2120, %v1987
      %v2201 = vmul.f32 %v2121, %v1988
      %v2202 = vmul.f32 %v2122, %v1989
      %v2203 = vmul.f32 %v2123, %v1990
      %v2204 = vmul.f32 %v2124, %v1991
      %v2205 = vmul.f32 %v2125, %v1992
      %v2206 = vmul.f32 %v2126, %v1993
      %v2207 = vmul.f32 %v2127, %v1994
      %v2208 = vmul.f32 %v2128, %v1995
      %v2209 = vmul.f32 %v2129, %v1996
      %v2210 = vmul.f32 %v2130, %v1997
      %v2211 = vmul.f32 %v2131, %v1998
      %v2212 = vmul.f32 %v2132, %v1999
      %v2213 = vmul.f32 %v2133, %v2000
      %v2214 = vmul.f32 %v2134, %v2001
      %v2215 = vmul.f32 %v2135, %v2002
      %v2216 = vmul.f32 %v2136, %v2003
      %v2217 = vmul.f32 %v2137, %v2004
      %v2218 = vmul.f32 %v2138, %v2005
      %v2219 = vmul.f32 %v2139, %v2006
      %v2220 = vmul.f32 %v2140, %v2007
      %v2221 = vmul.f32 %v2141, %v2008
      %v2222 = vmul.f32 %v2142, %v2009
      %v2223 = vmul.f32 %v2143, %v2010
      %v2224 = vmul.f32 %v2144, %v2011
      %v2225 = vmul.f32 %v2145, %v2012
      %v2226 = vmul.f32 %v2146, %v2013
      %v2227 = vmul.f32 %v2147, %v2014
      %v2228 = vmul.f32 %v2148, %v2015
      %v2229 = vmul.f32 %v2149, %v2016
      %v2230 = vmul.f32 %v2150, %v2017
      %v2231 = vmul.f32 %v2151, %v2018
      %v2232 = vmul.f32 %v2152, %v2019
      %v2233 = vmul.f32 %v2153, %v2020
      %v2234 = vmul.f32 %v2154, %v2021
      %v2235 = vmul.f32 %v2155, %v2022
      %v2236 = vmul.f32 %v2156, %v2023
      %v2237 = vmul.f32 %v2157, %v2024
      %v2238 = vmul.f32 %v2158, %v2025
      %v2239 = vmul.f32 %v2159, %v2026
      %v2240 = vmul.f32 %v2160, %v2027
      %v2241 = vmul.f32 %v2161, %v2028
      %v2242 = vmul.f32 %v2162, %v2029
      %v2243 = vmul.f32 %v2163, %v2030
      %v2244 = vmul.f32 %v2164, %v2031
      %v2245 = vmul.f32 %v2165, %v2032
      %v2246 = vmul.f32 %v2166, %v2033
      %v2247 = vmul.f32 %v2167, %v2034
      %v2248 = vmul.f32 %v2168, %v2035
      %v2249 = vmul.f32 %v2169, %v2036
      %v2250 = vmul.f32 %v2170, %v2037
      %v2251 = vmul.f32 %v2171, %v2038
      %v2252 = vmul.f32 %v2172, %v2039
      %v2253 = vmul.f32 %v2173, %v2040
      %v2254 = vmul.f32 %v2174, %v2041
      %v2255 = vmul.f32 %v2175, %v2042
      %v2256 = vmul.f32 %v2176, %v2043
      %v2257 = vmul.f32 %v2177, %v2044
      %v2258 = vmul.f32 %v2178, %v2045
      %v2259 = vmul.f32 %v2179, %v2046
      %v2260 = vmul.f32 %v2180, %v2047
      %v2261 = vld [vmem:[#allocation11] sm:$0xff]
      %v2262 = vld [vmem:[#allocation11 + $0x8] sm:$0xff]
      %v2263 = vld [vmem:[#allocation11 + $0x10] sm:$0xff]
      %v2264 = vld [vmem:[#allocation11 + $0x18] sm:$0xff]
      %v2265 = vld [vmem:[#allocation11 + $0x20] sm:$0xff]
      %v2266 = vld [vmem:[#allocation11 + $0x28] sm:$0xff]
      %v2267 = vld [vmem:[#allocation11 + $0x30] sm:$0xff]
      %v2268 = vld [vmem:[#allocation11 + $0x38] sm:$0xff]
      %v2269 = vld [vmem:[#allocation11 + $0x40] sm:$0xff]
      %v2270 = vld [vmem:[#allocation11 + $0x48] sm:$0xff]
      %v2271 = vld [vmem:[#allocation11 + $0x50] sm:$0xff]
      %v2272 = vld [vmem:[#allocation11 + $0x58] sm:$0xff]
      %v2273 = vld [vmem:[#allocation11 + $0x60] sm:$0xff]
      %v2274 = vld [vmem:[#allocation11 + $0x68] sm:$0xff]
      %v2275 = vld [vmem:[#allocation11 + $0x70] sm:$0xff]
      %v2276 = vld [vmem:[#allocation11 + $0x78] sm:$0xff]
      %2277 = vmatprep.subr.mxu0 0.0
      %2278 = vmatpush1.msra.mxu0 %v2276
      %2279 = vmatprep.subr.mxu0 0.0
      %2280 = vmatpush1.msra.mxu0 %v2275
      %2281 = vmatprep.subr.mxu0 0.0
      %2282 = vmatpush1.msra.mxu0 %v2274
      %2283 = vmatprep.subr.mxu0 0.0
      %2284 = vmatpush1.msra.mxu0 %v2273
      %2285 = vmatprep.subr.mxu0 0.0
      %2286 = vmatpush1.msra.mxu0 %v2272
      %2287 = vmatprep.subr.mxu0 0.0
      %2288 = vmatpush1.msra.mxu0 %v2271
      %2289 = vmatprep.subr.mxu0 0.0
      %2290 = vmatpush1.msra.mxu0 %v2270
      %2291 = vmatprep.subr.mxu0 0.0
      %2292 = vmatpush1.msra.mxu0 %v2269
      %2293 = vmatprep.subr.mxu0 0.0
      %2294 = vmatpush1.msra.mxu0 %v2268
      %2295 = vmatprep.subr.mxu0 0.0
      %2296 = vmatpush1.msra.mxu0 %v2267
      %2297 = vmatprep.subr.mxu0 0.0
      %2298 = vmatpush1.msra.mxu0 %v2266
      %2299 = vmatprep.subr.mxu0 0.0
      %2300 = vmatpush1.msra.mxu0 %v2265
      %2301 = vmatprep.subr.mxu0 0.0
      %2302 = vmatpush1.msra.mxu0 %v2264
      %2303 = vmatprep.subr.mxu0 0.0
      %2304 = vmatpush1.msra.mxu0 %v2263
      %2305 = vmatprep.subr.mxu0 0.0
      %2306 = vmatpush1.msra.mxu0 %v2262
      %2307 = vmatprep.subr.mxu0 0.0
      %2308 = vmatpush1.msra.mxu0 %v2261
      %2309 = vmatprep.subr.mxu0 0.0
      %2310 = vmatpush2.msra.mxu0 0.0
      %2311 = vmatprep.subr.mxu0 0.0
      %2312 = vmatpush2.msra.mxu0 0.0
      %2313 = vmatprep.subr.mxu0 0.0
      %2314 = vmatpush2.msra.mxu0 0.0
      %2315 = vmatprep.subr.mxu0 0.0
      %2316 = vmatpush2.msra.mxu0 0.0
      %2317 = vmatprep.subr.mxu0 0.0
      %2318 = vmatpush2.msra.mxu0 0.0
      %2319 = vmatprep.subr.mxu0 0.0
      %2320 = vmatpush2.msra.mxu0 0.0
      %2321 = vmatprep.subr.mxu0 0.0
      %2322 = vmatpush2.msra.mxu0 0.0
      %2323 = vmatprep.subr.mxu0 0.0
      %2324 = vmatpush2.msra.mxu0 0.0
      %2325 = vmatprep.subr.mxu0 0.0
      %2326 = vmatpush2.msra.mxu0 0.0
      %2327 = vmatprep.subr.mxu0 0.0
      %2328 = vmatpush2.msra.mxu0 0.0
      %2329 = vmatprep.subr.mxu0 0.0
      %2330 = vmatpush2.msra.mxu0 0.0
      %2331 = vmatprep.subr.mxu0 0.0
      %2332 = vmatpush2.msra.mxu0 0.0
      %2333 = vmatprep.subr.mxu0 0.0
      %2334 = vmatpush2.msra.mxu0 0.0
      %2335 = vmatprep.subr.mxu0 0.0
      %2336 = vmatpush2.msra.mxu0 0.0
      %2337 = vmatprep.subr.mxu0 0.0
      %2338 = vmatpush2.msra.mxu0 0.0
      %2339 = vmatprep.subr.mxu0 0.0
      %2340 = vmatpush2.msra.mxu0 0.0
      %2341 = vmatprep.mubr.f32.mxu0 0.0
      %2342 = vmatmul.mubr.f32.gmra.mxu0 %v2197
      %v2343 = vpop.f32.mrf.mxu0
      %v2344 = vadd.f32 0.0, %v2343
      %v2345 = vpop.f32.mrf.mxu0
      %2346 = vmatprep.mubr.f32.mxu0 0.0
      %2347 = vmatmul.mubr.f32.gmra.mxu0 %v2198
      %v2348 = vpop.f32.mrf.mxu0
      %v2349 = vadd.f32 0.0, %v2348
      %v2350 = vpop.f32.mrf.mxu0
      %2351 = vmatprep.mubr.f32.mxu0 0.0
      %2352 = vmatmul.mubr.f32.gmra.mxu0 %v2199
      %v2353 = vpop.f32.mrf.mxu0
      %v2354 = vadd.f32 0.0, %v2353
      %v2355 = vpop.f32.mrf.mxu0
      %2356 = vmatprep.mubr.f32.mxu0 0.0
      %2357 = vmatmul.mubr.f32.gmra.mxu0 %v2200
      %v2358 = vpop.f32.mrf.mxu0
      %v2359 = vadd.f32 0.0, %v2358
      %v2360 = vpop.f32.mrf.mxu0
      %2361 = vmatprep.mubr.f32.mxu0 0.0
      %2362 = vmatmul.mubr.f32.gmra.mxu0 %v2201
      %v2363 = vpop.f32.mrf.mxu0
      %v2364 = vadd.f32 0.0, %v2363
      %v2365 = vpop.f32.mrf.mxu0
      %2366 = vmatprep.mubr.f32.mxu0 0.0
      %2367 = vmatmul.mubr.f32.gmra.mxu0 %v2202
      %v2368 = vpop.f32.mrf.mxu0
      %v2369 = vadd.f32 0.0, %v2368
      %v2370 = vpop.f32.mrf.mxu0
      %2371 = vmatprep.mubr.f32.mxu0 0.0
      %2372 = vmatmul.mubr.f32.gmra.mxu0 %v2203
      %v2373 = vpop.f32.mrf.mxu0
      %v2374 = vadd.f32 0.0, %v2373
      %v2375 = vpop.f32.mrf.mxu0
      %2376 = vmatprep.mubr.f32.mxu0 0.0
      %2377 = vmatmul.mubr.f32.gmra.mxu0 %v2204
      %v2378 = vpop.f32.mrf.mxu0
      %v2379 = vadd.f32 0.0, %v2378
      %v2380 = vpop.f32.mrf.mxu0
      %2381 = vmatprep.mubr.f32.mxu0 0.0
      %2382 = vmatmul.mubr.f32.gmra.mxu0 %v2205
      %v2383 = vpop.f32.mrf.mxu0
      %v2384 = vadd.f32 0.0, %v2383
      %v2385 = vpop.f32.mrf.mxu0
      %2386 = vmatprep.mubr.f32.mxu0 0.0
      %2387 = vmatmul.mubr.f32.gmra.mxu0 %v2206
      %v2388 = vpop.f32.mrf.mxu0
      %v2389 = vadd.f32 0.0, %v2388
      %v2390 = vpop.f32.mrf.mxu0
      %2391 = vmatprep.mubr.f32.mxu0 0.0
      %2392 = vmatmul.mubr.f32.gmra.mxu0 %v2207
      %v2393 = vpop.f32.mrf.mxu0
      %v2394 = vadd.f32 0.0, %v2393
      %v2395 = vpop.f32.mrf.mxu0
      %2396 = vmatprep.mubr.f32.mxu0 0.0
      %2397 = vmatmul.mubr.f32.gmra.mxu0 %v2208
      %v2398 = vpop.f32.mrf.mxu0
      %v2399 = vadd.f32 0.0, %v2398
      %v2400 = vpop.f32.mrf.mxu0
      %2401 = vmatprep.mubr.f32.mxu0 0.0
      %2402 = vmatmul.mubr.f32.gmra.mxu0 %v2209
      %v2403 = vpop.f32.mrf.mxu0
      %v2404 = vadd.f32 0.0, %v2403
      %v2405 = vpop.f32.mrf.mxu0
      %2406 = vmatprep.mubr.f32.mxu0 0.0
      %2407 = vmatmul.mubr.f32.gmra.mxu0 %v2210
      %v2408 = vpop.f32.mrf.mxu0
      %v2409 = vadd.f32 0.0, %v2408
      %v2410 = vpop.f32.mrf.mxu0
      %2411 = vmatprep.mubr.f32.mxu0 0.0
      %2412 = vmatmul.mubr.f32.gmra.mxu0 %v2211
      %v2413 = vpop.f32.mrf.mxu0
      %v2414 = vadd.f32 0.0, %v2413
      %v2415 = vpop.f32.mrf.mxu0
      %2416 = vmatprep.mubr.f32.mxu0 0.0
      %2417 = vmatmul.mubr.f32.gmra.mxu0 %v2212
      %v2418 = vpop.f32.mrf.mxu0
      %v2419 = vadd.f32 0.0, %v2418
      %v2420 = vpop.f32.mrf.mxu0
      %2421 = vmatprep.mubr.f32.mxu0 0.0
      %2422 = vmatmul.mubr.f32.gmra.mxu0 %v2213
      %v2423 = vpop.f32.mrf.mxu0
      %v2424 = vadd.f32 0.0, %v2423
      %v2425 = vpop.f32.mrf.mxu0
      %2426 = vmatprep.mubr.f32.mxu0 0.0
      %2427 = vmatmul.mubr.f32.gmra.mxu0 %v2214
      %v2428 = vpop.f32.mrf.mxu0
      %v2429 = vadd.f32 0.0, %v2428
      %v2430 = vpop.f32.mrf.mxu0
      %2431 = vmatprep.mubr.f32.mxu0 0.0
      %2432 = vmatmul.mubr.f32.gmra.mxu0 %v2215
      %v2433 = vpop.f32.mrf.mxu0
      %v2434 = vadd.f32 0.0, %v2433
      %v2435 = vpop.f32.mrf.mxu0
      %2436 = vmatprep.mubr.f32.mxu0 0.0
      %2437 = vmatmul.mubr.f32.gmra.mxu0 %v2216
      %v2438 = vpop.f32.mrf.mxu0
      %v2439 = vadd.f32 0.0, %v2438
      %v2440 = vpop.f32.mrf.mxu0
      %2441 = vmatprep.mubr.f32.mxu0 0.0
      %2442 = vmatmul.mubr.f32.gmra.mxu0 %v2217
      %v2443 = vpop.f32.mrf.mxu0
      %v2444 = vadd.f32 0.0, %v2443
      %v2445 = vpop.f32.mrf.mxu0
      %2446 = vmatprep.mubr.f32.mxu0 0.0
      %2447 = vmatmul.mubr.f32.gmra.mxu0 %v2218
      %v2448 = vpop.f32.mrf.mxu0
      %v2449 = vadd.f32 0.0, %v2448
      %v2450 = vpop.f32.mrf.mxu0
      %2451 = vmatprep.mubr.f32.mxu0 0.0
      %2452 = vmatmul.mubr.f32.gmra.mxu0 %v2219
      %v2453 = vpop.f32.mrf.mxu0
      %v2454 = vadd.f32 0.0, %v2453
      %v2455 = vpop.f32.mrf.mxu0
      %2456 = vmatprep.mubr.f32.mxu0 0.0
      %2457 = vmatmul.mubr.f32.gmra.mxu0 %v2220
      %v2458 = vpop.f32.mrf.mxu0
      %v2459 = vadd.f32 0.0, %v2458
      %v2460 = vpop.f32.mrf.mxu0
      %2461 = vmatprep.mubr.f32.mxu0 0.0
      %2462 = vmatmul.mubr.f32.gmra.mxu0 %v2221
      %v2463 = vpop.f32.mrf.mxu0
      %v2464 = vadd.f32 0.0, %v2463
      %v2465 = vpop.f32.mrf.mxu0
      %2466 = vmatprep.mubr.f32.mxu0 0.0
      %2467 = vmatmul.mubr.f32.gmra.mxu0 %v2222
      %v2468 = vpop.f32.mrf.mxu0
      %v2469 = vadd.f32 0.0, %v2468
      %v2470 = vpop.f32.mrf.mxu0
      %2471 = vmatprep.mubr.f32.mxu0 0.0
      %2472 = vmatmul.mubr.f32.gmra.mxu0 %v2223
      %v2473 = vpop.f32.mrf.mxu0
      %v2474 = vadd.f32 0.0, %v2473
      %v2475 = vpop.f32.mrf.mxu0
      %2476 = vmatprep.mubr.f32.mxu0 0.0
      %2477 = vmatmul.mubr.f32.gmra.mxu0 %v2224
      %v2478 = vpop.f32.mrf.mxu0
      %v2479 = vadd.f32 0.0, %v2478
      %v2480 = vpop.f32.mrf.mxu0
      %2481 = vmatprep.mubr.f32.mxu0 0.0
      %2482 = vmatmul.mubr.f32.gmra.mxu0 %v2225
      %v2483 = vpop.f32.mrf.mxu0
      %v2484 = vadd.f32 0.0, %v2483
      %v2485 = vpop.f32.mrf.mxu0
      %2486 = vmatprep.mubr.f32.mxu0 0.0
      %2487 = vmatmul.mubr.f32.gmra.mxu0 %v2226
      %v2488 = vpop.f32.mrf.mxu0
      %v2489 = vadd.f32 0.0, %v2488
      %v2490 = vpop.f32.mrf.mxu0
      %2491 = vmatprep.mubr.f32.mxu0 0.0
      %2492 = vmatmul.mubr.f32.gmra.mxu0 %v2227
      %v2493 = vpop.f32.mrf.mxu0
      %v2494 = vadd.f32 0.0, %v2493
      %v2495 = vpop.f32.mrf.mxu0
      %2496 = vmatprep.mubr.f32.mxu0 0.0
      %2497 = vmatmul.mubr.f32.gmra.mxu0 %v2228
      %v2498 = vpop.f32.mrf.mxu0
      %v2499 = vadd.f32 0.0, %v2498
      %v2500 = vpop.f32.mrf.mxu0
      %2501 = vmatprep.mubr.f32.mxu0 0.0
      %2502 = vmatmul.mubr.f32.gmra.mxu0 %v2229
      %v2503 = vpop.f32.mrf.mxu0
      %v2504 = vadd.f32 0.0, %v2503
      %v2505 = vpop.f32.mrf.mxu0
      %2506 = vmatprep.mubr.f32.mxu0 0.0
      %2507 = vmatmul.mubr.f32.gmra.mxu0 %v2230
      %v2508 = vpop.f32.mrf.mxu0
      %v2509 = vadd.f32 0.0, %v2508
      %v2510 = vpop.f32.mrf.mxu0
      %2511 = vmatprep.mubr.f32.mxu0 0.0
      %2512 = vmatmul.mubr.f32.gmra.mxu0 %v2231
      %v2513 = vpop.f32.mrf.mxu0
      %v2514 = vadd.f32 0.0, %v2513
      %v2515 = vpop.f32.mrf.mxu0
      %2516 = vmatprep.mubr.f32.mxu0 0.0
      %2517 = vmatmul.mubr.f32.gmra.mxu0 %v2232
      %v2518 = vpop.f32.mrf.mxu0
      %v2519 = vadd.f32 0.0, %v2518
      %v2520 = vpop.f32.mrf.mxu0
      %2521 = vmatprep.mubr.f32.mxu0 0.0
      %2522 = vmatmul.mubr.f32.gmra.mxu0 %v2233
      %v2523 = vpop.f32.mrf.mxu0
      %v2524 = vadd.f32 0.0, %v2523
      %v2525 = vpop.f32.mrf.mxu0
      %2526 = vmatprep.mubr.f32.mxu0 0.0
      %2527 = vmatmul.mubr.f32.gmra.mxu0 %v2234
      %v2528 = vpop.f32.mrf.mxu0
      %v2529 = vadd.f32 0.0, %v2528
      %v2530 = vpop.f32.mrf.mxu0
      %2531 = vmatprep.mubr.f32.mxu0 0.0
      %2532 = vmatmul.mubr.f32.gmra.mxu0 %v2235
      %v2533 = vpop.f32.mrf.mxu0
      %v2534 = vadd.f32 0.0, %v2533
      %v2535 = vpop.f32.mrf.mxu0
      %2536 = vmatprep.mubr.f32.mxu0 0.0
      %2537 = vmatmul.mubr.f32.gmra.mxu0 %v2236
      %v2538 = vpop.f32.mrf.mxu0
      %v2539 = vadd.f32 0.0, %v2538
      %v2540 = vpop.f32.mrf.mxu0
      %2541 = vmatprep.mubr.f32.mxu0 0.0
      %2542 = vmatmul.mubr.f32.gmra.mxu0 %v2237
      %v2543 = vpop.f32.mrf.mxu0
      %v2544 = vadd.f32 0.0, %v2543
      %v2545 = vpop.f32.mrf.mxu0
      %2546 = vmatprep.mubr.f32.mxu0 0.0
      %2547 = vmatmul.mubr.f32.gmra.mxu0 %v2238
      %v2548 = vpop.f32.mrf.mxu0
      %v2549 = vadd.f32 0.0, %v2548
      %v2550 = vpop.f32.mrf.mxu0
      %2551 = vmatprep.mubr.f32.mxu0 0.0
      %2552 = vmatmul.mubr.f32.gmra.mxu0 %v2239
      %v2553 = vpop.f32.mrf.mxu0
      %v2554 = vadd.f32 0.0, %v2553
      %v2555 = vpop.f32.mrf.mxu0
      %2556 = vmatprep.mubr.f32.mxu0 0.0
      %2557 = vmatmul.mubr.f32.gmra.mxu0 %v2240
      %v2558 = vpop.f32.mrf.mxu0
      %v2559 = vadd.f32 0.0, %v2558
      %v2560 = vpop.f32.mrf.mxu0
      %2561 = vmatprep.mubr.f32.mxu0 0.0
      %2562 = vmatmul.mubr.f32.gmra.mxu0 %v2241
      %v2563 = vpop.f32.mrf.mxu0
      %v2564 = vadd.f32 0.0, %v2563
      %v2565 = vpop.f32.mrf.mxu0
      %2566 = vmatprep.mubr.f32.mxu0 0.0
      %2567 = vmatmul.mubr.f32.gmra.mxu0 %v2242
      %v2568 = vpop.f32.mrf.mxu0
      %v2569 = vadd.f32 0.0, %v2568
      %v2570 = vpop.f32.mrf.mxu0
      %2571 = vmatprep.mubr.f32.mxu0 0.0
      %2572 = vmatmul.mubr.f32.gmra.mxu0 %v2243
      %v2573 = vpop.f32.mrf.mxu0
      %v2574 = vadd.f32 0.0, %v2573
      %v2575 = vpop.f32.mrf.mxu0
      %2576 = vmatprep.mubr.f32.mxu0 0.0
      %2577 = vmatmul.mubr.f32.gmra.mxu0 %v2244
      %v2578 = vpop.f32.mrf.mxu0
      %v2579 = vadd.f32 0.0, %v2578
      %v2580 = vpop.f32.mrf.mxu0
      %2581 = vmatprep.mubr.f32.mxu0 0.0
      %2582 = vmatmul.mubr.f32.gmra.mxu0 %v2245
      %v2583 = vpop.f32.mrf.mxu0
      %v2584 = vadd.f32 0.0, %v2583
      %v2585 = vpop.f32.mrf.mxu0
      %2586 = vmatprep.mubr.f32.mxu0 0.0
      %2587 = vmatmul.mubr.f32.gmra.mxu0 %v2246
      %v2588 = vpop.f32.mrf.mxu0
      %v2589 = vadd.f32 0.0, %v2588
      %v2590 = vpop.f32.mrf.mxu0
      %2591 = vmatprep.mubr.f32.mxu0 0.0
      %2592 = vmatmul.mubr.f32.gmra.mxu0 %v2247
      %v2593 = vpop.f32.mrf.mxu0
      %v2594 = vadd.f32 0.0, %v2593
      %v2595 = vpop.f32.mrf.mxu0
      %2596 = vmatprep.mubr.f32.mxu0 0.0
      %2597 = vmatmul.mubr.f32.gmra.mxu0 %v2248
      %v2598 = vpop.f32.mrf.mxu0
      %v2599 = vadd.f32 0.0, %v2598
      %v2600 = vpop.f32.mrf.mxu0
      %2601 = vmatprep.mubr.f32.mxu0 0.0
      %2602 = vmatmul.mubr.f32.gmra.mxu0 %v2249
      %v2603 = vpop.f32.mrf.mxu0
      %v2604 = vadd.f32 0.0, %v2603
      %v2605 = vpop.f32.mrf.mxu0
      %2606 = vmatprep.mubr.f32.mxu0 0.0
      %2607 = vmatmul.mubr.f32.gmra.mxu0 %v2250
      %v2608 = vpop.f32.mrf.mxu0
      %v2609 = vadd.f32 0.0, %v2608
      %v2610 = vpop.f32.mrf.mxu0
      %2611 = vmatprep.mubr.f32.mxu0 0.0
      %2612 = vmatmul.mubr.f32.gmra.mxu0 %v2251
      %v2613 = vpop.f32.mrf.mxu0
      %v2614 = vadd.f32 0.0, %v2613
      %v2615 = vpop.f32.mrf.mxu0
      %2616 = vmatprep.mubr.f32.mxu0 0.0
      %2617 = vmatmul.mubr.f32.gmra.mxu0 %v2252
      %v2618 = vpop.f32.mrf.mxu0
      %v2619 = vadd.f32 0.0, %v2618
      %v2620 = vpop.f32.mrf.mxu0
      %2621 = vmatprep.mubr.f32.mxu0 0.0
      %2622 = vmatmul.mubr.f32.gmra.mxu0 %v2253
      %v2623 = vpop.f32.mrf.mxu0
      %v2624 = vadd.f32 0.0, %v2623
      %v2625 = vpop.f32.mrf.mxu0
      %2626 = vmatprep.mubr.f32.mxu0 0.0
      %2627 = vmatmul.mubr.f32.gmra.mxu0 %v2254
      %v2628 = vpop.f32.mrf.mxu0
      %v2629 = vadd.f32 0.0, %v2628
      %v2630 = vpop.f32.mrf.mxu0
      %2631 = vmatprep.mubr.f32.mxu0 0.0
      %2632 = vmatmul.mubr.f32.gmra.mxu0 %v2255
      %v2633 = vpop.f32.mrf.mxu0
      %v2634 = vadd.f32 0.0, %v2633
      %v2635 = vpop.f32.mrf.mxu0
      %2636 = vmatprep.mubr.f32.mxu0 0.0
      %2637 = vmatmul.mubr.f32.gmra.mxu0 %v2256
      %v2638 = vpop.f32.mrf.mxu0
      %v2639 = vadd.f32 0.0, %v2638
      %v2640 = vpop.f32.mrf.mxu0
      %2641 = vmatprep.mubr.f32.mxu0 0.0
      %2642 = vmatmul.mubr.f32.gmra.mxu0 %v2257
      %v2643 = vpop.f32.mrf.mxu0
      %v2644 = vadd.f32 0.0, %v2643
      %v2645 = vpop.f32.mrf.mxu0
      %2646 = vmatprep.mubr.f32.mxu0 0.0
      %2647 = vmatmul.mubr.f32.gmra.mxu0 %v2258
      %v2648 = vpop.f32.mrf.mxu0
      %v2649 = vadd.f32 0.0, %v2648
      %v2650 = vpop.f32.mrf.mxu0
      %2651 = vmatprep.mubr.f32.mxu0 0.0
      %2652 = vmatmul.mubr.f32.gmra.mxu0 %v2259
      %v2653 = vpop.f32.mrf.mxu0
      %v2654 = vadd.f32 0.0, %v2653
      %v2655 = vpop.f32.mrf.mxu0
      %2656 = vmatprep.mubr.f32.mxu0 0.0
      %2657 = vmatmul.mubr.f32.gmra.mxu0 %v2260
      %v2658 = vpop.f32.mrf.mxu0
      %v2659 = vadd.f32 0.0, %v2658
      %v2660 = vpop.f32.mrf.mxu0
      %2661 = vdwg.mxu0
      %2662 = vmatprep.subr.mxu0 0.0
      %2663 = vmatpush1.msra.mxu0 %v2196
      %2664 = vmatprep.subr.mxu0 0.0
      %2665 = vmatpush1.msra.mxu0 %v2195
      %2666 = vmatprep.subr.mxu0 0.0
      %2667 = vmatpush1.msra.mxu0 %v2194
      %2668 = vmatprep.subr.mxu0 0.0
      %2669 = vmatpush1.msra.mxu0 %v2193
      %2670 = vmatprep.subr.mxu0 0.0
      %2671 = vmatpush1.msra.mxu0 %v2192
      %2672 = vmatprep.subr.mxu0 0.0
      %2673 = vmatpush1.msra.mxu0 %v2191
      %2674 = vmatprep.subr.mxu0 0.0
      %2675 = vmatpush1.msra.mxu0 %v2190
      %2676 = vmatprep.subr.mxu0 0.0
      %2677 = vmatpush1.msra.mxu0 %v2189
      %2678 = vmatprep.subr.mxu0 0.0
      %2679 = vmatpush1.msra.mxu0 %v2188
      %2680 = vmatprep.subr.mxu0 0.0
      %2681 = vmatpush1.msra.mxu0 %v2187
      %2682 = vmatprep.subr.mxu0 0.0
      %2683 = vmatpush1.msra.mxu0 %v2186
      %2684 = vmatprep.subr.mxu0 0.0
      %2685 = vmatpush1.msra.mxu0 %v2185
      %2686 = vmatprep.subr.mxu0 0.0
      %2687 = vmatpush1.msra.mxu0 %v2184
      %2688 = vmatprep.subr.mxu0 0.0
      %2689 = vmatpush1.msra.mxu0 %v2183
      %2690 = vmatprep.subr.mxu0 0.0
      %2691 = vmatpush1.msra.mxu0 %v2182
      %2692 = vmatprep.subr.mxu0 0.0
      %2693 = vmatpush1.msra.mxu0 %v2181
      %2694 = vmatprep.subr.mxu0 0.0
      %2695 = vmatpush2.msra.mxu0 0.0
      %2696 = vmatprep.subr.mxu0 0.0
      %2697 = vmatpush2.msra.mxu0 0.0
      %2698 = vmatprep.subr.mxu0 0.0
      %2699 = vmatpush2.msra.mxu0 0.0
      %2700 = vmatprep.subr.mxu0 0.0
      %2701 = vmatpush2.msra.mxu0 0.0
      %2702 = vmatprep.subr.mxu0 0.0
      %2703 = vmatpush2.msra.mxu0 0.0
      %2704 = vmatprep.subr.mxu0 0.0
      %2705 = vmatpush2.msra.mxu0 0.0
      %2706 = vmatprep.subr.mxu0 0.0
      %2707 = vmatpush2.msra.mxu0 0.0
      %2708 = vmatprep.subr.mxu0 0.0
      %2709 = vmatpush2.msra.mxu0 0.0
      %2710 = vmatprep.subr.mxu0 0.0
      %2711 = vmatpush2.msra.mxu0 0.0
      %2712 = vmatprep.subr.mxu0 0.0
      %2713 = vmatpush2.msra.mxu0 0.0
      %2714 = vmatprep.subr.mxu0 0.0
      %2715 = vmatpush2.msra.mxu0 0.0
      %2716 = vmatprep.subr.mxu0 0.0
      %2717 = vmatpush2.msra.mxu0 0.0
      %2718 = vmatprep.subr.mxu0 0.0
      %2719 = vmatpush2.msra.mxu0 0.0
      %2720 = vmatprep.subr.mxu0 0.0
      %2721 = vmatpush2.msra.mxu0 0.0
      %2722 = vmatprep.subr.mxu0 0.0
      %2723 = vmatpush2.msra.mxu0 0.0
      %2724 = vmatprep.subr.mxu0 0.0
      %2725 = vmatpush2.msra.mxu0 0.0
      %2726 = vmatprep.mubr.f32.mxu0 0.0
      %2727 = vmatmul.mubr.f32.gmra.mxu0 %v1984
      %v2728 = vpop.f32.mrf.mxu0
      %v2729 = vadd.f32 %v2344, %v2728
      %v2730 = vpop.f32.mrf.mxu0
      %2731 = vmatprep.mubr.f32.mxu0 0.0
      %2732 = vmatmul.mubr.f32.gmra.mxu0 %v1985
      %v2733 = vpop.f32.mrf.mxu0
      %v2734 = vadd.f32 %v2349, %v2733
      %v2735 = vpop.f32.mrf.mxu0
      %2736 = vmatprep.mubr.f32.mxu0 0.0
      %2737 = vmatmul.mubr.f32.gmra.mxu0 %v1986
      %v2738 = vpop.f32.mrf.mxu0
      %v2739 = vadd.f32 %v2354, %v2738
      %v2740 = vpop.f32.mrf.mxu0
      %2741 = vmatprep.mubr.f32.mxu0 0.0
      %2742 = vmatmul.mubr.f32.gmra.mxu0 %v1987
      %v2743 = vpop.f32.mrf.mxu0
      %v2744 = vadd.f32 %v2359, %v2743
      %v2745 = vpop.f32.mrf.mxu0
      %2746 = vmatprep.mubr.f32.mxu0 0.0
      %2747 = vmatmul.mubr.f32.gmra.mxu0 %v1988
      %v2748 = vpop.f32.mrf.mxu0
      %v2749 = vadd.f32 %v2364, %v2748
      %v2750 = vpop.f32.mrf.mxu0
      %2751 = vmatprep.mubr.f32.mxu0 0.0
      %2752 = vmatmul.mubr.f32.gmra.mxu0 %v1989
      %v2753 = vpop.f32.mrf.mxu0
      %v2754 = vadd.f32 %v2369, %v2753
      %v2755 = vpop.f32.mrf.mxu0
      %2756 = vmatprep.mubr.f32.mxu0 0.0
      %2757 = vmatmul.mubr.f32.gmra.mxu0 %v1990
      %v2758 = vpop.f32.mrf.mxu0
      %v2759 = vadd.f32 %v2374, %v2758
      %v2760 = vpop.f32.mrf.mxu0
      %2761 = vmatprep.mubr.f32.mxu0 0.0
      %2762 = vmatmul.mubr.f32.gmra.mxu0 %v1991
      %v2763 = vpop.f32.mrf.mxu0
      %v2764 = vadd.f32 %v2379, %v2763
      %v2765 = vpop.f32.mrf.mxu0
      %2766 = vmatprep.mubr.f32.mxu0 0.0
      %2767 = vmatmul.mubr.f32.gmra.mxu0 %v1992
      %v2768 = vpop.f32.mrf.mxu0
      %v2769 = vadd.f32 %v2384, %v2768
      %v2770 = vpop.f32.mrf.mxu0
      %2771 = vmatprep.mubr.f32.mxu0 0.0
      %2772 = vmatmul.mubr.f32.gmra.mxu0 %v1993
      %v2773 = vpop.f32.mrf.mxu0
      %v2774 = vadd.f32 %v2389, %v2773
      %v2775 = vpop.f32.mrf.mxu0
      %2776 = vmatprep.mubr.f32.mxu0 0.0
      %2777 = vmatmul.mubr.f32.gmra.mxu0 %v1994
      %v2778 = vpop.f32.mrf.mxu0
      %v2779 = vadd.f32 %v2394, %v2778
      %v2780 = vpop.f32.mrf.mxu0
      %2781 = vmatprep.mubr.f32.mxu0 0.0
      %2782 = vmatmul.mubr.f32.gmra.mxu0 %v1995
      %v2783 = vpop.f32.mrf.mxu0
      %v2784 = vadd.f32 %v2399, %v2783
      %v2785 = vpop.f32.mrf.mxu0
      %2786 = vmatprep.mubr.f32.mxu0 0.0
      %2787 = vmatmul.mubr.f32.gmra.mxu0 %v1996
      %v2788 = vpop.f32.mrf.mxu0
      %v2789 = vadd.f32 %v2404, %v2788
      %v2790 = vpop.f32.mrf.mxu0
      %2791 = vmatprep.mubr.f32.mxu0 0.0
      %2792 = vmatmul.mubr.f32.gmra.mxu0 %v1997
      %v2793 = vpop.f32.mrf.mxu0
      %v2794 = vadd.f32 %v2409, %v2793
      %v2795 = vpop.f32.mrf.mxu0
      %2796 = vmatprep.mubr.f32.mxu0 0.0
      %2797 = vmatmul.mubr.f32.gmra.mxu0 %v1998
      %v2798 = vpop.f32.mrf.mxu0
      %v2799 = vadd.f32 %v2414, %v2798
      %v2800 = vpop.f32.mrf.mxu0
      %2801 = vmatprep.mubr.f32.mxu0 0.0
      %2802 = vmatmul.mubr.f32.gmra.mxu0 %v1999
      %v2803 = vpop.f32.mrf.mxu0
      %v2804 = vadd.f32 %v2419, %v2803
      %v2805 = vpop.f32.mrf.mxu0
      %2806 = vmatprep.mubr.f32.mxu0 0.0
      %2807 = vmatmul.mubr.f32.gmra.mxu0 %v2000
      %v2808 = vpop.f32.mrf.mxu0
      %v2809 = vadd.f32 %v2424, %v2808
      %v2810 = vpop.f32.mrf.mxu0
      %2811 = vmatprep.mubr.f32.mxu0 0.0
      %2812 = vmatmul.mubr.f32.gmra.mxu0 %v2001
      %v2813 = vpop.f32.mrf.mxu0
      %v2814 = vadd.f32 %v2429, %v2813
      %v2815 = vpop.f32.mrf.mxu0
      %2816 = vmatprep.mubr.f32.mxu0 0.0
      %2817 = vmatmul.mubr.f32.gmra.mxu0 %v2002
      %v2818 = vpop.f32.mrf.mxu0
      %v2819 = vadd.f32 %v2434, %v2818
      %v2820 = vpop.f32.mrf.mxu0
      %2821 = vmatprep.mubr.f32.mxu0 0.0
      %2822 = vmatmul.mubr.f32.gmra.mxu0 %v2003
      %v2823 = vpop.f32.mrf.mxu0
      %v2824 = vadd.f32 %v2439, %v2823
      %v2825 = vpop.f32.mrf.mxu0
      %2826 = vmatprep.mubr.f32.mxu0 0.0
      %2827 = vmatmul.mubr.f32.gmra.mxu0 %v2004
      %v2828 = vpop.f32.mrf.mxu0
      %v2829 = vadd.f32 %v2444, %v2828
      %v2830 = vpop.f32.mrf.mxu0
      %2831 = vmatprep.mubr.f32.mxu0 0.0
      %2832 = vmatmul.mubr.f32.gmra.mxu0 %v2005
      %v2833 = vpop.f32.mrf.mxu0
      %v2834 = vadd.f32 %v2449, %v2833
      %v2835 = vpop.f32.mrf.mxu0
      %2836 = vmatprep.mubr.f32.mxu0 0.0
      %2837 = vmatmul.mubr.f32.gmra.mxu0 %v2006
      %v2838 = vpop.f32.mrf.mxu0
      %v2839 = vadd.f32 %v2454, %v2838
      %v2840 = vpop.f32.mrf.mxu0
      %2841 = vmatprep.mubr.f32.mxu0 0.0
      %2842 = vmatmul.mubr.f32.gmra.mxu0 %v2007
      %v2843 = vpop.f32.mrf.mxu0
      %v2844 = vadd.f32 %v2459, %v2843
      %v2845 = vpop.f32.mrf.mxu0
      %2846 = vmatprep.mubr.f32.mxu0 0.0
      %2847 = vmatmul.mubr.f32.gmra.mxu0 %v2008
      %v2848 = vpop.f32.mrf.mxu0
      %v2849 = vadd.f32 %v2464, %v2848
      %v2850 = vpop.f32.mrf.mxu0
      %2851 = vmatprep.mubr.f32.mxu0 0.0
      %2852 = vmatmul.mubr.f32.gmra.mxu0 %v2009
      %v2853 = vpop.f32.mrf.mxu0
      %v2854 = vadd.f32 %v2469, %v2853
      %v2855 = vpop.f32.mrf.mxu0
      %2856 = vmatprep.mubr.f32.mxu0 0.0
      %2857 = vmatmul.mubr.f32.gmra.mxu0 %v2010
      %v2858 = vpop.f32.mrf.mxu0
      %v2859 = vadd.f32 %v2474, %v2858
      %v2860 = vpop.f32.mrf.mxu0
      %2861 = vmatprep.mubr.f32.mxu0 0.0
      %2862 = vmatmul.mubr.f32.gmra.mxu0 %v2011
      %v2863 = vpop.f32.mrf.mxu0
      %v2864 = vadd.f32 %v2479, %v2863
      %v2865 = vpop.f32.mrf.mxu0
      %2866 = vmatprep.mubr.f32.mxu0 0.0
      %2867 = vmatmul.mubr.f32.gmra.mxu0 %v2012
      %v2868 = vpop.f32.mrf.mxu0
      %v2869 = vadd.f32 %v2484, %v2868
      %v2870 = vpop.f32.mrf.mxu0
      %2871 = vmatprep.mubr.f32.mxu0 0.0
      %2872 = vmatmul.mubr.f32.gmra.mxu0 %v2013
      %v2873 = vpop.f32.mrf.mxu0
      %v2874 = vadd.f32 %v2489, %v2873
      %v2875 = vpop.f32.mrf.mxu0
      %2876 = vmatprep.mubr.f32.mxu0 0.0
      %2877 = vmatmul.mubr.f32.gmra.mxu0 %v2014
      %v2878 = vpop.f32.mrf.mxu0
      %v2879 = vadd.f32 %v2494, %v2878
      %v2880 = vpop.f32.mrf.mxu0
      %2881 = vmatprep.mubr.f32.mxu0 0.0
      %2882 = vmatmul.mubr.f32.gmra.mxu0 %v2015
      %v2883 = vpop.f32.mrf.mxu0
      %v2884 = vadd.f32 %v2499, %v2883
      %v2885 = vpop.f32.mrf.mxu0
      %2886 = vmatprep.mubr.f32.mxu0 0.0
      %2887 = vmatmul.mubr.f32.gmra.mxu0 %v2016
      %v2888 = vpop.f32.mrf.mxu0
      %v2889 = vadd.f32 %v2504, %v2888
      %v2890 = vpop.f32.mrf.mxu0
      %2891 = vmatprep.mubr.f32.mxu0 0.0
      %2892 = vmatmul.mubr.f32.gmra.mxu0 %v2017
      %v2893 = vpop.f32.mrf.mxu0
      %v2894 = vadd.f32 %v2509, %v2893
      %v2895 = vpop.f32.mrf.mxu0
      %2896 = vmatprep.mubr.f32.mxu0 0.0
      %2897 = vmatmul.mubr.f32.gmra.mxu0 %v2018
      %v2898 = vpop.f32.mrf.mxu0
      %v2899 = vadd.f32 %v2514, %v2898
      %v2900 = vpop.f32.mrf.mxu0
      %2901 = vmatprep.mubr.f32.mxu0 0.0
      %2902 = vmatmul.mubr.f32.gmra.mxu0 %v2019
      %v2903 = vpop.f32.mrf.mxu0
      %v2904 = vadd.f32 %v2519, %v2903
      %v2905 = vpop.f32.mrf.mxu0
      %2906 = vmatprep.mubr.f32.mxu0 0.0
      %2907 = vmatmul.mubr.f32.gmra.mxu0 %v2020
      %v2908 = vpop.f32.mrf.mxu0
      %v2909 = vadd.f32 %v2524, %v2908
      %v2910 = vpop.f32.mrf.mxu0
      %2911 = vmatprep.mubr.f32.mxu0 0.0
      %2912 = vmatmul.mubr.f32.gmra.mxu0 %v2021
      %v2913 = vpop.f32.mrf.mxu0
      %v2914 = vadd.f32 %v2529, %v2913
      %v2915 = vpop.f32.mrf.mxu0
      %2916 = vmatprep.mubr.f32.mxu0 0.0
      %2917 = vmatmul.mubr.f32.gmra.mxu0 %v2022
      %v2918 = vpop.f32.mrf.mxu0
      %v2919 = vadd.f32 %v2534, %v2918
      %v2920 = vpop.f32.mrf.mxu0
      %2921 = vmatprep.mubr.f32.mxu0 0.0
      %2922 = vmatmul.mubr.f32.gmra.mxu0 %v2023
      %v2923 = vpop.f32.mrf.mxu0
      %v2924 = vadd.f32 %v2539, %v2923
      %v2925 = vpop.f32.mrf.mxu0
      %2926 = vmatprep.mubr.f32.mxu0 0.0
      %2927 = vmatmul.mubr.f32.gmra.mxu0 %v2024
      %v2928 = vpop.f32.mrf.mxu0
      %v2929 = vadd.f32 %v2544, %v2928
      %v2930 = vpop.f32.mrf.mxu0
      %2931 = vmatprep.mubr.f32.mxu0 0.0
      %2932 = vmatmul.mubr.f32.gmra.mxu0 %v2025
      %v2933 = vpop.f32.mrf.mxu0
      %v2934 = vadd.f32 %v2549, %v2933
      %v2935 = vpop.f32.mrf.mxu0
      %2936 = vmatprep.mubr.f32.mxu0 0.0
      %2937 = vmatmul.mubr.f32.gmra.mxu0 %v2026
      %v2938 = vpop.f32.mrf.mxu0
      %v2939 = vadd.f32 %v2554, %v2938
      %v2940 = vpop.f32.mrf.mxu0
      %2941 = vmatprep.mubr.f32.mxu0 0.0
      %2942 = vmatmul.mubr.f32.gmra.mxu0 %v2027
      %v2943 = vpop.f32.mrf.mxu0
      %v2944 = vadd.f32 %v2559, %v2943
      %v2945 = vpop.f32.mrf.mxu0
      %2946 = vmatprep.mubr.f32.mxu0 0.0
      %2947 = vmatmul.mubr.f32.gmra.mxu0 %v2028
      %v2948 = vpop.f32.mrf.mxu0
      %v2949 = vadd.f32 %v2564, %v2948
      %v2950 = vpop.f32.mrf.mxu0
      %2951 = vmatprep.mubr.f32.mxu0 0.0
      %2952 = vmatmul.mubr.f32.gmra.mxu0 %v2029
      %v2953 = vpop.f32.mrf.mxu0
      %v2954 = vadd.f32 %v2569, %v2953
      %v2955 = vpop.f32.mrf.mxu0
      %2956 = vmatprep.mubr.f32.mxu0 0.0
      %2957 = vmatmul.mubr.f32.gmra.mxu0 %v2030
      %v2958 = vpop.f32.mrf.mxu0
      %v2959 = vadd.f32 %v2574, %v2958
      %v2960 = vpop.f32.mrf.mxu0
      %2961 = vmatprep.mubr.f32.mxu0 0.0
      %2962 = vmatmul.mubr.f32.gmra.mxu0 %v2031
      %v2963 = vpop.f32.mrf.mxu0
      %v2964 = vadd.f32 %v2579, %v2963
      %v2965 = vpop.f32.mrf.mxu0
      %2966 = vmatprep.mubr.f32.mxu0 0.0
      %2967 = vmatmul.mubr.f32.gmra.mxu0 %v2032
      %v2968 = vpop.f32.mrf.mxu0
      %v2969 = vadd.f32 %v2584, %v2968
      %v2970 = vpop.f32.mrf.mxu0
      %2971 = vmatprep.mubr.f32.mxu0 0.0
      %2972 = vmatmul.mubr.f32.gmra.mxu0 %v2033
      %v2973 = vpop.f32.mrf.mxu0
      %v2974 = vadd.f32 %v2589, %v2973
      %v2975 = vpop.f32.mrf.mxu0
      %2976 = vmatprep.mubr.f32.mxu0 0.0
      %2977 = vmatmul.mubr.f32.gmra.mxu0 %v2034
      %v2978 = vpop.f32.mrf.mxu0
      %v2979 = vadd.f32 %v2594, %v2978
      %v2980 = vpop.f32.mrf.mxu0
      %2981 = vmatprep.mubr.f32.mxu0 0.0
      %2982 = vmatmul.mubr.f32.gmra.mxu0 %v2035
      %v2983 = vpop.f32.mrf.mxu0
      %v2984 = vadd.f32 %v2599, %v2983
      %v2985 = vpop.f32.mrf.mxu0
      %2986 = vmatprep.mubr.f32.mxu0 0.0
      %2987 = vmatmul.mubr.f32.gmra.mxu0 %v2036
      %v2988 = vpop.f32.mrf.mxu0
      %v2989 = vadd.f32 %v2604, %v2988
      %v2990 = vpop.f32.mrf.mxu0
      %2991 = vmatprep.mubr.f32.mxu0 0.0
      %2992 = vmatmul.mubr.f32.gmra.mxu0 %v2037
      %v2993 = vpop.f32.mrf.mxu0
      %v2994 = vadd.f32 %v2609, %v2993
      %v2995 = vpop.f32.mrf.mxu0
      %2996 = vmatprep.mubr.f32.mxu0 0.0
      %2997 = vmatmul.mubr.f32.gmra.mxu0 %v2038
      %v2998 = vpop.f32.mrf.mxu0
      %v2999 = vadd.f32 %v2614, %v2998
      %v3000 = vpop.f32.mrf.mxu0
      %3001 = vmatprep.mubr.f32.mxu0 0.0
      %3002 = vmatmul.mubr.f32.gmra.mxu0 %v2039
      %v3003 = vpop.f32.mrf.mxu0
      %v3004 = vadd.f32 %v2619, %v3003
      %v3005 = vpop.f32.mrf.mxu0
      %3006 = vmatprep.mubr.f32.mxu0 0.0
      %3007 = vmatmul.mubr.f32.gmra.mxu0 %v2040
      %v3008 = vpop.f32.mrf.mxu0
      %v3009 = vadd.f32 %v2624, %v3008
      %v3010 = vpop.f32.mrf.mxu0
      %3011 = vmatprep.mubr.f32.mxu0 0.0
      %3012 = vmatmul.mubr.f32.gmra.mxu0 %v2041
      %v3013 = vpop.f32.mrf.mxu0
      %v3014 = vadd.f32 %v2629, %v3013
      %v3015 = vpop.f32.mrf.mxu0
      %3016 = vmatprep.mubr.f32.mxu0 0.0
      %3017 = vmatmul.mubr.f32.gmra.mxu0 %v2042
      %v3018 = vpop.f32.mrf.mxu0
      %v3019 = vadd.f32 %v2634, %v3018
      %v3020 = vpop.f32.mrf.mxu0
      %3021 = vmatprep.mubr.f32.mxu0 0.0
      %3022 = vmatmul.mubr.f32.gmra.mxu0 %v2043
      %v3023 = vpop.f32.mrf.mxu0
      %v3024 = vadd.f32 %v2639, %v3023
      %v3025 = vpop.f32.mrf.mxu0
      %3026 = vmatprep.mubr.f32.mxu0 0.0
      %3027 = vmatmul.mubr.f32.gmra.mxu0 %v2044
      %v3028 = vpop.f32.mrf.mxu0
      %v3029 = vadd.f32 %v2644, %v3028
      %v3030 = vpop.f32.mrf.mxu0
      %3031 = vmatprep.mubr.f32.mxu0 0.0
      %3032 = vmatmul.mubr.f32.gmra.mxu0 %v2045
      %v3033 = vpop.f32.mrf.mxu0
      %v3034 = vadd.f32 %v2649, %v3033
      %v3035 = vpop.f32.mrf.mxu0
      %3036 = vmatprep.mubr.f32.mxu0 0.0
      %3037 = vmatmul.mubr.f32.gmra.mxu0 %v2046
      %v3038 = vpop.f32.mrf.mxu0
      %v3039 = vadd.f32 %v2654, %v3038
      %v3040 = vpop.f32.mrf.mxu0
      %3041 = vmatprep.mubr.f32.mxu0 0.0
      %3042 = vmatmul.mubr.f32.gmra.mxu0 %v2047
      %v3043 = vpop.f32.mrf.mxu0
      %v3044 = vadd.f32 %v2659, %v3043
      %v3045 = vpop.f32.mrf.mxu0
      %3046 = vdwg.mxu0
      %v3047 = vld [vmem:[#allocation13] sm:$0x1]
      %v3049 = vlaneseq
      %v3050 = vshrl.u32 %v3049, 7
      %v3051 = vsub.s32 0, %v3050
      %v3052 = vrot.slane %v3047, %v3051
      %v3054 = vadd.f32 %v2729, %v3052
      %v3055 = vadd.f32 %v2734, %v3052
      %v3056 = vadd.f32 %v2739, %v3052
      %v3057 = vadd.f32 %v2744, %v3052
      %v3058 = vadd.f32 %v2749, %v3052
      %v3059 = vadd.f32 %v2754, %v3052
      %v3060 = vadd.f32 %v2759, %v3052
      %v3061 = vadd.f32 %v2764, %v3052
      %v3062 = vadd.f32 %v2769, %v3052
      %v3063 = vadd.f32 %v2774, %v3052
      %v3064 = vadd.f32 %v2779, %v3052
      %v3065 = vadd.f32 %v2784, %v3052
      %v3066 = vadd.f32 %v2789, %v3052
      %v3067 = vadd.f32 %v2794, %v3052
      %v3068 = vadd.f32 %v2799, %v3052
      %v3069 = vadd.f32 %v2804, %v3052
      %v3070 = vadd.f32 %v2809, %v3052
      %v3071 = vadd.f32 %v2814, %v3052
      %v3072 = vadd.f32 %v2819, %v3052
      %v3073 = vadd.f32 %v2824, %v3052
      %v3074 = vadd.f32 %v2829, %v3052
      %v3075 = vadd.f32 %v2834, %v3052
      %v3076 = vadd.f32 %v2839, %v3052
      %v3077 = vadd.f32 %v2844, %v3052
      %v3078 = vadd.f32 %v2849, %v3052
      %v3079 = vadd.f32 %v2854, %v3052
      %v3080 = vadd.f32 %v2859, %v3052
      %v3081 = vadd.f32 %v2864, %v3052
      %v3082 = vadd.f32 %v2869, %v3052
      %v3083 = vadd.f32 %v2874, %v3052
      %v3084 = vadd.f32 %v2879, %v3052
      %v3085 = vadd.f32 %v2884, %v3052
      %v3086 = vadd.f32 %v2889, %v3052
      %v3087 = vadd.f32 %v2894, %v3052
      %v3088 = vadd.f32 %v2899, %v3052
      %v3089 = vadd.f32 %v2904, %v3052
      %v3090 = vadd.f32 %v2909, %v3052
      %v3091 = vadd.f32 %v2914, %v3052
      %v3092 = vadd.f32 %v2919, %v3052
      %v3093 = vadd.f32 %v2924, %v3052
      %v3094 = vadd.f32 %v2929, %v3052
      %v3095 = vadd.f32 %v2934, %v3052
      %v3096 = vadd.f32 %v2939, %v3052
      %v3097 = vadd.f32 %v2944, %v3052
      %v3098 = vadd.f32 %v2949, %v3052
      %v3099 = vadd.f32 %v2954, %v3052
      %v3100 = vadd.f32 %v2959, %v3052
      %v3101 = vadd.f32 %v2964, %v3052
      %v3102 = vadd.f32 %v2969, %v3052
      %v3103 = vadd.f32 %v2974, %v3052
      %v3104 = vadd.f32 %v2979, %v3052
      %v3105 = vadd.f32 %v2984, %v3052
      %v3106 = vadd.f32 %v2989, %v3052
      %v3107 = vadd.f32 %v2994, %v3052
      %v3108 = vadd.f32 %v2999, %v3052
      %v3109 = vadd.f32 %v3004, %v3052
      %v3110 = vadd.f32 %v3009, %v3052
      %v3111 = vadd.f32 %v3014, %v3052
      %v3112 = vadd.f32 %v3019, %v3052
      %v3113 = vadd.f32 %v3024, %v3052
      %v3114 = vadd.f32 %v3029, %v3052
      %v3115 = vadd.f32 %v3034, %v3052
      %v3116 = vadd.f32 %v3039, %v3052
      %v3117 = vadd.f32 %v3044, %v3052
      %vm3118 = vcmp.ge.f32.partialorder %v3054, 0.0
      %vm3119 = vcmp.ge.f32.partialorder %v3055, 0.0
      %vm3120 = vcmp.ge.f32.partialorder %v3056, 0.0
      %vm3121 = vcmp.ge.f32.partialorder %v3057, 0.0
      %vm3122 = vcmp.ge.f32.partialorder %v3058, 0.0
      %vm3123 = vcmp.ge.f32.partialorder %v3059, 0.0
      %vm3124 = vcmp.ge.f32.partialorder %v3060, 0.0
      %vm3125 = vcmp.ge.f32.partialorder %v3061, 0.0
      %vm3126 = vcmp.ge.f32.partialorder %v3062, 0.0
      %vm3127 = vcmp.ge.f32.partialorder %v3063, 0.0
      %vm3128 = vcmp.ge.f32.partialorder %v3064, 0.0
      %vm3129 = vcmp.ge.f32.partialorder %v3065, 0.0
      %vm3130 = vcmp.ge.f32.partialorder %v3066, 0.0
      %vm3131 = vcmp.ge.f32.partialorder %v3067, 0.0
      %vm3132 = vcmp.ge.f32.partialorder %v3068, 0.0
      %vm3133 = vcmp.ge.f32.partialorder %v3069, 0.0
      %vm3134 = vcmp.ge.f32.partialorder %v3070, 0.0
      %vm3135 = vcmp.ge.f32.partialorder %v3071, 0.0
      %vm3136 = vcmp.ge.f32.partialorder %v3072, 0.0
      %vm3137 = vcmp.ge.f32.partialorder %v3073, 0.0
      %vm3138 = vcmp.ge.f32.partialorder %v3074, 0.0
      %vm3139 = vcmp.ge.f32.partialorder %v3075, 0.0
      %vm3140 = vcmp.ge.f32.partialorder %v3076, 0.0
      %vm3141 = vcmp.ge.f32.partialorder %v3077, 0.0
      %vm3142 = vcmp.ge.f32.partialorder %v3078, 0.0
      %vm3143 = vcmp.ge.f32.partialorder %v3079, 0.0
      %vm3144 = vcmp.ge.f32.partialorder %v3080, 0.0
      %vm3145 = vcmp.ge.f32.partialorder %v3081, 0.0
      %vm3146 = vcmp.ge.f32.partialorder %v3082, 0.0
      %vm3147 = vcmp.ge.f32.partialorder %v3083, 0.0
      %vm3148 = vcmp.ge.f32.partialorder %v3084, 0.0
      %vm3149 = vcmp.ge.f32.partialorder %v3085, 0.0
      %vm3150 = vcmp.ge.f32.partialorder %v3086, 0.0
      %vm3151 = vcmp.ge.f32.partialorder %v3087, 0.0
      %vm3152 = vcmp.ge.f32.partialorder %v3088, 0.0
      %vm3153 = vcmp.ge.f32.partialorder %v3089, 0.0
      %vm3154 = vcmp.ge.f32.partialorder %v3090, 0.0
      %vm3155 = vcmp.ge.f32.partialorder %v3091, 0.0
      %vm3156 = vcmp.ge.f32.partialorder %v3092, 0.0
      %vm3157 = vcmp.ge.f32.partialorder %v3093, 0.0
      %vm3158 = vcmp.ge.f32.partialorder %v3094, 0.0
      %vm3159 = vcmp.ge.f32.partialorder %v3095, 0.0
      %vm3160 = vcmp.ge.f32.partialorder %v3096, 0.0
      %vm3161 = vcmp.ge.f32.partialorder %v3097, 0.0
      %vm3162 = vcmp.ge.f32.partialorder %v3098, 0.0
      %vm3163 = vcmp.ge.f32.partialorder %v3099, 0.0
      %vm3164 = vcmp.ge.f32.partialorder %v3100, 0.0
      %vm3165 = vcmp.ge.f32.partialorder %v3101, 0.0
      %vm3166 = vcmp.ge.f32.partialorder %v3102, 0.0
      %vm3167 = vcmp.ge.f32.partialorder %v3103, 0.0
      %vm3168 = vcmp.ge.f32.partialorder %v3104, 0.0
      %vm3169 = vcmp.ge.f32.partialorder %v3105, 0.0
      %vm3170 = vcmp.ge.f32.partialorder %v3106, 0.0
      %vm3171 = vcmp.ge.f32.partialorder %v3107, 0.0
      %vm3172 = vcmp.ge.f32.partialorder %v3108, 0.0
      %vm3173 = vcmp.ge.f32.partialorder %v3109, 0.0
      %vm3174 = vcmp.ge.f32.partialorder %v3110, 0.0
      %vm3175 = vcmp.ge.f32.partialorder %v3111, 0.0
      %vm3176 = vcmp.ge.f32.partialorder %v3112, 0.0
      %vm3177 = vcmp.ge.f32.partialorder %v3113, 0.0
      %vm3178 = vcmp.ge.f32.partialorder %v3114, 0.0
      %vm3179 = vcmp.ge.f32.partialorder %v3115, 0.0
      %vm3180 = vcmp.ge.f32.partialorder %v3116, 0.0
      %vm3181 = vcmp.ge.f32.partialorder %v3117, 0.0
      %v3182 = vmul.f32 %v3054, 0.2
      %v3183 = vmul.f32 %v3055, 0.2
      %v3184 = vmul.f32 %v3056, 0.2
      %v3185 = vmul.f32 %v3057, 0.2
      %v3186 = vmul.f32 %v3058, 0.2
      %v3187 = vmul.f32 %v3059, 0.2
      %v3188 = vmul.f32 %v3060, 0.2
      %v3189 = vmul.f32 %v3061, 0.2
      %v3190 = vmul.f32 %v3062, 0.2
      %v3191 = vmul.f32 %v3063, 0.2
      %v3192 = vmul.f32 %v3064, 0.2
      %v3193 = vmul.f32 %v3065, 0.2
      %v3194 = vmul.f32 %v3066, 0.2
      %v3195 = vmul.f32 %v3067, 0.2
      %v3196 = vmul.f32 %v3068, 0.2
      %v3197 = vmul.f32 %v3069, 0.2
      %v3198 = vmul.f32 %v3070, 0.2
      %v3199 = vmul.f32 %v3071, 0.2
      %v3200 = vmul.f32 %v3072, 0.2
      %v3201 = vmul.f32 %v3073, 0.2
      %v3202 = vmul.f32 %v3074, 0.2
      %v3203 = vmul.f32 %v3075, 0.2
      %v3204 = vmul.f32 %v3076, 0.2
      %v3205 = vmul.f32 %v3077, 0.2
      %v3206 = vmul.f32 %v3078, 0.2
      %v3207 = vmul.f32 %v3079, 0.2
      %v3208 = vmul.f32 %v3080, 0.2
      %v3209 = vmul.f32 %v3081, 0.2
      %v3210 = vmul.f32 %v3082, 0.2
      %v3211 = vmul.f32 %v3083, 0.2
      %v3212 = vmul.f32 %v3084, 0.2
      %v3213 = vmul.f32 %v3085, 0.2
      %v3214 = vmul.f32 %v3086, 0.2
      %v3215 = vmul.f32 %v3087, 0.2
      %v3216 = vmul.f32 %v3088, 0.2
      %v3217 = vmul.f32 %v3089, 0.2
      %v3218 = vmul.f32 %v3090, 0.2
      %v3219 = vmul.f32 %v3091, 0.2
      %v3220 = vmul.f32 %v3092, 0.2
      %v3221 = vmul.f32 %v3093, 0.2
      %v3222 = vmul.f32 %v3094, 0.2
      %v3223 = vmul.f32 %v3095, 0.2
      %v3224 = vmul.f32 %v3096, 0.2
      %v3225 = vmul.f32 %v3097, 0.2
      %v3226 = vmul.f32 %v3098, 0.2
      %v3227 = vmul.f32 %v3099, 0.2
      %v3228 = vmul.f32 %v3100, 0.2
      %v3229 = vmul.f32 %v3101, 0.2
      %v3230 = vmul.f32 %v3102, 0.2
      %v3231 = vmul.f32 %v3103, 0.2
      %v3232 = vmul.f32 %v3104, 0.2
      %v3233 = vmul.f32 %v3105, 0.2
      %v3234 = vmul.f32 %v3106, 0.2
      %v3235 = vmul.f32 %v3107, 0.2
      %v3236 = vmul.f32 %v3108, 0.2
      %v3237 = vmul.f32 %v3109, 0.2
      %v3238 = vmul.f32 %v3110, 0.2
      %v3239 = vmul.f32 %v3111, 0.2
      %v3240 = vmul.f32 %v3112, 0.2
      %v3241 = vmul.f32 %v3113, 0.2
      %v3242 = vmul.f32 %v3114, 0.2
      %v3243 = vmul.f32 %v3115, 0.2
      %v3244 = vmul.f32 %v3116, 0.2
      %v3245 = vmul.f32 %v3117, 0.2
      %v3246 = vsel %vm3118, %v3054, %v3182
      %v3247 = vsel %vm3119, %v3055, %v3183
      %v3248 = vsel %vm3120, %v3056, %v3184
      %v3249 = vsel %vm3121, %v3057, %v3185
      %v3250 = vsel %vm3122, %v3058, %v3186
      %v3251 = vsel %vm3123, %v3059, %v3187
      %v3252 = vsel %vm3124, %v3060, %v3188
      %v3253 = vsel %vm3125, %v3061, %v3189
      %v3254 = vsel %vm3126, %v3062, %v3190
      %v3255 = vsel %vm3127, %v3063, %v3191
      %v3256 = vsel %vm3128, %v3064, %v3192
      %v3257 = vsel %vm3129, %v3065, %v3193
      %v3258 = vsel %vm3130, %v3066, %v3194
      %v3259 = vsel %vm3131, %v3067, %v3195
      %v3260 = vsel %vm3132, %v3068, %v3196
      %v3261 = vsel %vm3133, %v3069, %v3197
      %v3262 = vsel %vm3134, %v3070, %v3198
      %v3263 = vsel %vm3135, %v3071, %v3199
      %v3264 = vsel %vm3136, %v3072, %v3200
      %v3265 = vsel %vm3137, %v3073, %v3201
      %v3266 = vsel %vm3138, %v3074, %v3202
      %v3267 = vsel %vm3139, %v3075, %v3203
      %v3268 = vsel %vm3140, %v3076, %v3204
      %v3269 = vsel %vm3141, %v3077, %v3205
      %v3270 = vsel %vm3142, %v3078, %v3206
      %v3271 = vsel %vm3143, %v3079, %v3207
      %v3272 = vsel %vm3144, %v3080, %v3208
      %v3273 = vsel %vm3145, %v3081, %v3209
      %v3274 = vsel %vm3146, %v3082, %v3210
      %v3275 = vsel %vm3147, %v3083, %v3211
      %v3276 = vsel %vm3148, %v3084, %v3212
      %v3277 = vsel %vm3149, %v3085, %v3213
      %v3278 = vsel %vm3150, %v3086, %v3214
      %v3279 = vsel %vm3151, %v3087, %v3215
      %v3280 = vsel %vm3152, %v3088, %v3216
      %v3281 = vsel %vm3153, %v3089, %v3217
      %v3282 = vsel %vm3154, %v3090, %v3218
      %v3283 = vsel %vm3155, %v3091, %v3219
      %v3284 = vsel %vm3156, %v3092, %v3220
      %v3285 = vsel %vm3157, %v3093, %v3221
      %v3286 = vsel %vm3158, %v3094, %v3222
      %v3287 = vsel %vm3159, %v3095, %v3223
      %v3288 = vsel %vm3160, %v3096, %v3224
      %v3289 = vsel %vm3161, %v3097, %v3225
      %v3290 = vsel %vm3162, %v3098, %v3226
      %v3291 = vsel %vm3163, %v3099, %v3227
      %v3292 = vsel %vm3164, %v3100, %v3228
      %v3293 = vsel %vm3165, %v3101, %v3229
      %v3294 = vsel %vm3166, %v3102, %v3230
      %v3295 = vsel %vm3167, %v3103, %v3231
      %v3296 = vsel %vm3168, %v3104, %v3232
      %v3297 = vsel %vm3169, %v3105, %v3233
      %v3298 = vsel %vm3170, %v3106, %v3234
      %v3299 = vsel %vm3171, %v3107, %v3235
      %v3300 = vsel %vm3172, %v3108, %v3236
      %v3301 = vsel %vm3173, %v3109, %v3237
      %v3302 = vsel %vm3174, %v3110, %v3238
      %v3303 = vsel %vm3175, %v3111, %v3239
      %v3304 = vsel %vm3176, %v3112, %v3240
      %v3305 = vsel %vm3177, %v3113, %v3241
      %v3306 = vsel %vm3178, %v3114, %v3242
      %v3307 = vsel %vm3179, %v3115, %v3243
      %v3308 = vsel %vm3180, %v3116, %v3244
      %v3309 = vsel %vm3181, %v3117, %v3245
      %v3310 = vpack.c.bf16 %v3247, %v3246
      %v3311 = vpack.c.bf16 %v3249, %v3248
      %v3312 = vpack.c.bf16 %v3251, %v3250
      %v3313 = vpack.c.bf16 %v3253, %v3252
      %v3314 = vpack.c.bf16 %v3255, %v3254
      %v3315 = vpack.c.bf16 %v3257, %v3256
      %v3316 = vpack.c.bf16 %v3259, %v3258
      %v3317 = vpack.c.bf16 %v3261, %v3260
      %v3318 = vpack.c.bf16 %v3263, %v3262
      %v3319 = vpack.c.bf16 %v3265, %v3264
      %v3320 = vpack.c.bf16 %v3267, %v3266
      %v3321 = vpack.c.bf16 %v3269, %v3268
      %v3322 = vpack.c.bf16 %v3271, %v3270
      %v3323 = vpack.c.bf16 %v3273, %v3272
      %v3324 = vpack.c.bf16 %v3275, %v3274
      %v3325 = vpack.c.bf16 %v3277, %v3276
      %v3326 = vpack.c.bf16 %v3279, %v3278
      %v3327 = vpack.c.bf16 %v3281, %v3280
      %v3328 = vpack.c.bf16 %v3283, %v3282
      %v3329 = vpack.c.bf16 %v3285, %v3284
      %v3330 = vpack.c.bf16 %v3287, %v3286
      %v3331 = vpack.c.bf16 %v3289, %v3288
      %v3332 = vpack.c.bf16 %v3291, %v3290
      %v3333 = vpack.c.bf16 %v3293, %v3292
      %v3334 = vpack.c.bf16 %v3295, %v3294
      %v3335 = vpack.c.bf16 %v3297, %v3296
      %v3336 = vpack.c.bf16 %v3299, %v3298
      %v3337 = vpack.c.bf16 %v3301, %v3300
      %v3338 = vpack.c.bf16 %v3303, %v3302
      %v3339 = vpack.c.bf16 %v3305, %v3304
      %v3340 = vpack.c.bf16 %v3307, %v3306
      %v3341 = vpack.c.bf16 %v3309, %v3308
      %v3374 = vunpack.c.l.b16 %v3310
      %v3375 = vunpack.c.h.b16 %v3310
      %v3376 = vunpack.c.l.b16 %v3311
      %v3377 = vunpack.c.h.b16 %v3311
      %v3378 = vunpack.c.l.b16 %v3312
      %v3379 = vunpack.c.h.b16 %v3312
      %v3380 = vunpack.c.l.b16 %v3313
      %v3381 = vunpack.c.h.b16 %v3313
      %v3382 = vunpack.c.l.b16 %v3314
      %v3383 = vunpack.c.h.b16 %v3314
      %v3384 = vunpack.c.l.b16 %v3315
      %v3385 = vunpack.c.h.b16 %v3315
      %v3386 = vunpack.c.l.b16 %v3316
      %v3387 = vunpack.c.h.b16 %v3316
      %v3388 = vunpack.c.l.b16 %v3317
      %v3389 = vunpack.c.h.b16 %v3317
      %v3390 = vunpack.c.l.b16 %v3318
      %v3391 = vunpack.c.h.b16 %v3318
      %v3392 = vunpack.c.l.b16 %v3319
      %v3393 = vunpack.c.h.b16 %v3319
      %v3394 = vunpack.c.l.b16 %v3320
      %v3395 = vunpack.c.h.b16 %v3320
      %v3396 = vunpack.c.l.b16 %v3321
      %v3397 = vunpack.c.h.b16 %v3321
      %v3398 = vunpack.c.l.b16 %v3322
      %v3399 = vunpack.c.h.b16 %v3322
      %v3400 = vunpack.c.l.b16 %v3323
      %v3401 = vunpack.c.h.b16 %v3323
      %v3402 = vunpack.c.l.b16 %v3324
      %v3403 = vunpack.c.h.b16 %v3324
      %v3404 = vunpack.c.l.b16 %v3325
      %v3405 = vunpack.c.h.b16 %v3325
      %v3406 = vunpack.c.l.b16 %v3326
      %v3407 = vunpack.c.h.b16 %v3326
      %v3408 = vunpack.c.l.b16 %v3327
      %v3409 = vunpack.c.h.b16 %v3327
      %v3410 = vunpack.c.l.b16 %v3328
      %v3411 = vunpack.c.h.b16 %v3328
      %v3412 = vunpack.c.l.b16 %v3329
      %v3413 = vunpack.c.h.b16 %v3329
      %v3414 = vunpack.c.l.b16 %v3330
      %v3415 = vunpack.c.h.b16 %v3330
      %v3416 = vunpack.c.l.b16 %v3331
      %v3417 = vunpack.c.h.b16 %v3331
      %v3418 = vunpack.c.l.b16 %v3332
      %v3419 = vunpack.c.h.b16 %v3332
      %v3420 = vunpack.c.l.b16 %v3333
      %v3421 = vunpack.c.h.b16 %v3333
      %v3422 = vunpack.c.l.b16 %v3334
      %v3423 = vunpack.c.h.b16 %v3334
      %v3424 = vunpack.c.l.b16 %v3335
      %v3425 = vunpack.c.h.b16 %v3335
      %v3426 = vunpack.c.l.b16 %v3336
      %v3427 = vunpack.c.h.b16 %v3336
      %v3428 = vunpack.c.l.b16 %v3337
      %v3429 = vunpack.c.h.b16 %v3337
      %v3430 = vunpack.c.l.b16 %v3338
      %v3431 = vunpack.c.h.b16 %v3338
      %v3432 = vunpack.c.l.b16 %v3339
      %v3433 = vunpack.c.h.b16 %v3339
      %v3434 = vunpack.c.l.b16 %v3340
      %v3435 = vunpack.c.h.b16 %v3340
      %v3436 = vunpack.c.l.b16 %v3341
      %v3437 = vunpack.c.h.b16 %v3341
      %v3438 = vpack.c.b16 %v3374, %v3374
      %v3439 = vpack.c.b16 %v3375, %v3375
      %v3440 = vpack.c.b16 %v3376, %v3376
      %v3441 = vpack.c.b16 %v3377, %v3377
      %v3442 = vpack.c.b16 %v3378, %v3378
      %v3443 = vpack.c.b16 %v3379, %v3379
      %v3444 = vpack.c.b16 %v3380, %v3380
      %v3445 = vpack.c.b16 %v3381, %v3381
      %v3446 = vpack.c.b16 %v3382, %v3382
      %v3447 = vpack.c.b16 %v3383, %v3383
      %v3448 = vpack.c.b16 %v3384, %v3384
      %v3449 = vpack.c.b16 %v3385, %v3385
      %v3450 = vpack.c.b16 %v3386, %v3386
      %v3451 = vpack.c.b16 %v3387, %v3387
      %v3452 = vpack.c.b16 %v3388, %v3388
      %v3453 = vpack.c.b16 %v3389, %v3389
      %v3454 = vpack.c.b16 %v3390, %v3390
      %v3455 = vpack.c.b16 %v3391, %v3391
      %v3456 = vpack.c.b16 %v3392, %v3392
      %v3457 = vpack.c.b16 %v3393, %v3393
      %v3458 = vpack.c.b16 %v3394, %v3394
      %v3459 = vpack.c.b16 %v3395, %v3395
      %v3460 = vpack.c.b16 %v3396, %v3396
      %v3461 = vpack.c.b16 %v3397, %v3397
      %v3462 = vpack.c.b16 %v3398, %v3398
      %v3463 = vpack.c.b16 %v3399, %v3399
      %v3464 = vpack.c.b16 %v3400, %v3400
      %v3465 = vpack.c.b16 %v3401, %v3401
      %v3466 = vpack.c.b16 %v3402, %v3402
      %v3467 = vpack.c.b16 %v3403, %v3403
      %v3468 = vpack.c.b16 %v3404, %v3404
      %v3469 = vpack.c.b16 %v3405, %v3405
      %v3470 = vpack.c.b16 %v3406, %v3406
      %v3471 = vpack.c.b16 %v3407, %v3407
      %v3472 = vpack.c.b16 %v3408, %v3408
      %v3473 = vpack.c.b16 %v3409, %v3409
      %v3474 = vpack.c.b16 %v3410, %v3410
      %v3475 = vpack.c.b16 %v3411, %v3411
      %v3476 = vpack.c.b16 %v3412, %v3412
      %v3477 = vpack.c.b16 %v3413, %v3413
      %v3478 = vpack.c.b16 %v3414, %v3414
      %v3479 = vpack.c.b16 %v3415, %v3415
      %v3480 = vpack.c.b16 %v3416, %v3416
      %v3481 = vpack.c.b16 %v3417, %v3417
      %v3482 = vpack.c.b16 %v3418, %v3418
      %v3483 = vpack.c.b16 %v3419, %v3419
      %v3484 = vpack.c.b16 %v3420, %v3420
      %v3485 = vpack.c.b16 %v3421, %v3421
      %v3486 = vpack.c.b16 %v3422, %v3422
      %v3487 = vpack.c.b16 %v3423, %v3423
      %v3488 = vpack.c.b16 %v3424, %v3424
      %v3489 = vpack.c.b16 %v3425, %v3425
      %v3490 = vpack.c.b16 %v3426, %v3426
      %v3491 = vpack.c.b16 %v3427, %v3427
      %v3492 = vpack.c.b16 %v3428, %v3428
      %v3493 = vpack.c.b16 %v3429, %v3429
      %v3494 = vpack.c.b16 %v3430, %v3430
      %v3495 = vpack.c.b16 %v3431, %v3431
      %v3496 = vpack.c.b16 %v3432, %v3432
      %v3497 = vpack.c.b16 %v3433, %v3433
      %v3498 = vpack.c.b16 %v3434, %v3434
      %v3499 = vpack.c.b16 %v3435, %v3435
      %v3500 = vpack.c.b16 %v3436, %v3436
      %v3501 = vpack.c.b16 %v3437, %v3437
      %3566 = vst [vmem:[%s7] sm:$0xf] %v3438
      %3567 = vst [vmem:[%s7 + $0x4] sm:$0xf] %v3439
      %3568 = vst [vmem:[%s7 + $0x8] sm:$0xf] %v3440
      %3569 = vst [vmem:[%s7 + $0xc] sm:$0xf] %v3441
      %3570 = vst [vmem:[%s7 + $0x10] sm:$0xf] %v3442
      %3571 = vst [vmem:[%s7 + $0x14] sm:$0xf] %v3443
      %3572 = vst [vmem:[%s7 + $0x18] sm:$0xf] %v3444
      %3573 = vst [vmem:[%s7 + $0x1c] sm:$0xf] %v3445
      %3574 = vst [vmem:[%s7 + $0x20] sm:$0xf] %v3446
      %3575 = vst [vmem:[%s7 + $0x24] sm:$0xf] %v3447
      %3576 = vst [vmem:[%s7 + $0x28] sm:$0xf] %v3448
      %3577 = vst [vmem:[%s7 + $0x2c] sm:$0xf] %v3449
      %3578 = vst [vmem:[%s7 + $0x30] sm:$0xf] %v3450
      %3579 = vst [vmem:[%s7 + $0x34] sm:$0xf] %v3451
      %3580 = vst [vmem:[%s7 + $0x38] sm:$0xf] %v3452
      %3581 = vst [vmem:[%s7 + $0x3c] sm:$0xf] %v3453
      %3582 = vst [vmem:[%s7 + $0x40] sm:$0xf] %v3454
      %3583 = vst [vmem:[%s7 + $0x44] sm:$0xf] %v3455
      %3584 = vst [vmem:[%s7 + $0x48] sm:$0xf] %v3456
      %3585 = vst [vmem:[%s7 + $0x4c] sm:$0xf] %v3457
      %3586 = vst [vmem:[%s7 + $0x50] sm:$0xf] %v3458
      %3587 = vst [vmem:[%s7 + $0x54] sm:$0xf] %v3459
      %3588 = vst [vmem:[%s7 + $0x58] sm:$0xf] %v3460
      %3589 = vst [vmem:[%s7 + $0x5c] sm:$0xf] %v3461
      %3590 = vst [vmem:[%s7 + $0x60] sm:$0xf] %v3462
      %3591 = vst [vmem:[%s7 + $0x64] sm:$0xf] %v3463
      %3592 = vst [vmem:[%s7 + $0x68] sm:$0xf] %v3464
      %3593 = vst [vmem:[%s7 + $0x6c] sm:$0xf] %v3465
      %3594 = vst [vmem:[%s7 + $0x70] sm:$0xf] %v3466
      %3595 = vst [vmem:[%s7 + $0x74] sm:$0xf] %v3467
      %3596 = vst [vmem:[%s7 + $0x78] sm:$0xf] %v3468
      %3597 = vst [vmem:[%s7 + $0x7c] sm:$0xf] %v3469
      %3598 = vst [vmem:[%s7 + $0x80] sm:$0xf] %v3470
      %3599 = vst [vmem:[%s7 + $0x84] sm:$0xf] %v3471
      %3600 = vst [vmem:[%s7 + $0x88] sm:$0xf] %v3472
      %3601 = vst [vmem:[%s7 + $0x8c] sm:$0xf] %v3473
      %3602 = vst [vmem:[%s7 + $0x90] sm:$0xf] %v3474
      %3603 = vst [vmem:[%s7 + $0x94] sm:$0xf] %v3475
      %3604 = vst [vmem:[%s7 + $0x98] sm:$0xf] %v3476
      %3605 = vst [vmem:[%s7 + $0x9c] sm:$0xf] %v3477
      %3606 = vst [vmem:[%s7 + $0xa0] sm:$0xf] %v3478
      %3607 = vst [vmem:[%s7 + $0xa4] sm:$0xf] %v3479
      %3608 = vst [vmem:[%s7 + $0xa8] sm:$0xf] %v3480
      %3609 = vst [vmem:[%s7 + $0xac] sm:$0xf] %v3481
      %3610 = vst [vmem:[%s7 + $0xb0] sm:$0xf] %v3482
      %3611 = vst [vmem:[%s7 + $0xb4] sm:$0xf] %v3483
      %3612 = vst [vmem:[%s7 + $0xb8] sm:$0xf] %v3484
      %3613 = vst [vmem:[%s7 + $0xbc] sm:$0xf] %v3485
      %3614 = vst [vmem:[%s7 + $0xc0] sm:$0xf] %v3486
      %3615 = vst [vmem:[%s7 + $0xc4] sm:$0xf] %v3487
      %3616 = vst [vmem:[%s7 + $0xc8] sm:$0xf] %v3488
      %3617 = vst [vmem:[%s7 + $0xcc] sm:$0xf] %v3489
      %3618 = vst [vmem:[%s7 + $0xd0] sm:$0xf] %v3490
      %3619 = vst [vmem:[%s7 + $0xd4] sm:$0xf] %v3491
      %3620 = vst [vmem:[%s7 + $0xd8] sm:$0xf] %v3492
      %3621 = vst [vmem:[%s7 + $0xdc] sm:$0xf] %v3493
      %3622 = vst [vmem:[%s7 + $0xe0] sm:$0xf] %v3494
      %3623 = vst [vmem:[%s7 + $0xe4] sm:$0xf] %v3495
      %3624 = vst [vmem:[%s7 + $0xe8] sm:$0xf] %v3496
      %3625 = vst [vmem:[%s7 + $0xec] sm:$0xf] %v3497
      %3626 = vst [vmem:[%s7 + $0xf0] sm:$0xf] %v3498
      %3627 = vst [vmem:[%s7 + $0xf4] sm:$0xf] %v3499
      %3628 = vst [vmem:[%s7 + $0xf8] sm:$0xf] %v3500
      %3629 = vst [vmem:[%s7 + $0xfc] sm:$0xf] %v3501
      %v3630 = vmul.f32 %v3246, %v3246
      %v3631 = vmul.f32 %v3247, %v3247
      %v3632 = vmul.f32 %v3248, %v3248
      %v3633 = vmul.f32 %v3249, %v3249
      %v3634 = vmul.f32 %v3250, %v3250
      %v3635 = vmul.f32 %v3251, %v3251
      %v3636 = vmul.f32 %v3252, %v3252
      %v3637 = vmul.f32 %v3253, %v3253
      %v3638 = vmul.f32 %v3254, %v3254
      %v3639 = vmul.f32 %v3255, %v3255
      %v3640 = vmul.f32 %v3256, %v3256
      %v3641 = vmul.f32 %v3257, %v3257
      %v3642 = vmul.f32 %v3258, %v3258
      %v3643 = vmul.f32 %v3259, %v3259
      %v3644 = vmul.f32 %v3260, %v3260
      %v3645 = vmul.f32 %v3261, %v3261
      %v3646 = vmul.f32 %v3262, %v3262
      %v3647 = vmul.f32 %v3263, %v3263
      %v3648 = vmul.f32 %v3264, %v3264
      %v3649 = vmul.f32 %v3265, %v3265
      %v3650 = vmul.f32 %v3266, %v3266
      %v3651 = vmul.f32 %v3267, %v3267
      %v3652 = vmul.f32 %v3268, %v3268
      %v3653 = vmul.f32 %v3269, %v3269
      %v3654 = vmul.f32 %v3270, %v3270
      %v3655 = vmul.f32 %v3271, %v3271
      %v3656 = vmul.f32 %v3272, %v3272
      %v3657 = vmul.f32 %v3273, %v3273
      %v3658 = vmul.f32 %v3274, %v3274
      %v3659 = vmul.f32 %v3275, %v3275
      %v3660 = vmul.f32 %v3276, %v3276
      %v3661 = vmul.f32 %v3277, %v3277
      %v3662 = vmul.f32 %v3278, %v3278
      %v3663 = vmul.f32 %v3279, %v3279
      %v3664 = vmul.f32 %v3280, %v3280
      %v3665 = vmul.f32 %v3281, %v3281
      %v3666 = vmul.f32 %v3282, %v3282
      %v3667 = vmul.f32 %v3283, %v3283
      %v3668 = vmul.f32 %v3284, %v3284
      %v3669 = vmul.f32 %v3285, %v3285
      %v3670 = vmul.f32 %v3286, %v3286
      %v3671 = vmul.f32 %v3287, %v3287
      %v3672 = vmul.f32 %v3288, %v3288
      %v3673 = vmul.f32 %v3289, %v3289
      %v3674 = vmul.f32 %v3290, %v3290
      %v3675 = vmul.f32 %v3291, %v3291
      %v3676 = vmul.f32 %v3292, %v3292
      %v3677 = vmul.f32 %v3293, %v3293
      %v3678 = vmul.f32 %v3294, %v3294
      %v3679 = vmul.f32 %v3295, %v3295
      %v3680 = vmul.f32 %v3296, %v3296
      %v3681 = vmul.f32 %v3297, %v3297
      %v3682 = vmul.f32 %v3298, %v3298
      %v3683 = vmul.f32 %v3299, %v3299
      %v3684 = vmul.f32 %v3300, %v3300
      %v3685 = vmul.f32 %v3301, %v3301
      %v3686 = vmul.f32 %v3302, %v3302
      %v3687 = vmul.f32 %v3303, %v3303
      %v3688 = vmul.f32 %v3304, %v3304
      %v3689 = vmul.f32 %v3305, %v3305
      %v3690 = vmul.f32 %v3306, %v3306
      %v3691 = vmul.f32 %v3307, %v3307
      %v3692 = vmul.f32 %v3308, %v3308
      %v3693 = vmul.f32 %v3309, %v3309
      %3694 = vadd.xlane.f32.xlu0 %v3630
      %v3695 = vpop.xlane.xlu0 %3694
      %3696 = vadd.xlane.f32.xlu0 %v3631
      %v3697 = vpop.xlane.xlu0 %3696
      %3698 = vadd.xlane.f32.xlu0 %v3632
      %v3699 = vpop.xlane.xlu0 %3698
      %3700 = vadd.xlane.f32.xlu0 %v3633
      %v3701 = vpop.xlane.xlu0 %3700
      %3702 = vadd.xlane.f32.xlu0 %v3634
      %v3703 = vpop.xlane.xlu0 %3702
      %3704 = vadd.xlane.f32.xlu0 %v3635
      %v3705 = vpop.xlane.xlu0 %3704
      %3706 = vadd.xlane.f32.xlu0 %v3636
      %v3707 = vpop.xlane.xlu0 %3706
      %3708 = vadd.xlane.f32.xlu0 %v3637
      %v3709 = vpop.xlane.xlu0 %3708
      %3710 = vadd.xlane.f32.xlu0 %v3638
      %v3711 = vpop.xlane.xlu0 %3710
      %3712 = vadd.xlane.f32.xlu0 %v3639
      %v3713 = vpop.xlane.xlu0 %3712
      %3714 = vadd.xlane.f32.xlu0 %v3640
      %v3715 = vpop.xlane.xlu0 %3714
      %3716 = vadd.xlane.f32.xlu0 %v3641
      %v3717 = vpop.xlane.xlu0 %3716
      %3718 = vadd.xlane.f32.xlu0 %v3642
      %v3719 = vpop.xlane.xlu0 %3718
      %3720 = vadd.xlane.f32.xlu0 %v3643
      %v3721 = vpop.xlane.xlu0 %3720
      %3722 = vadd.xlane.f32.xlu0 %v3644
      %v3723 = vpop.xlane.xlu0 %3722
      %3724 = vadd.xlane.f32.xlu0 %v3645
      %v3725 = vpop.xlane.xlu0 %3724
      %3726 = vadd.xlane.f32.xlu0 %v3646
      %v3727 = vpop.xlane.xlu0 %3726
      %3728 = vadd.xlane.f32.xlu0 %v3647
      %v3729 = vpop.xlane.xlu0 %3728
      %3730 = vadd.xlane.f32.xlu0 %v3648
      %v3731 = vpop.xlane.xlu0 %3730
      %3732 = vadd.xlane.f32.xlu0 %v3649
      %v3733 = vpop.xlane.xlu0 %3732
      %3734 = vadd.xlane.f32.xlu0 %v3650
      %v3735 = vpop.xlane.xlu0 %3734
      %3736 = vadd.xlane.f32.xlu0 %v3651
      %v3737 = vpop.xlane.xlu0 %3736
      %3738 = vadd.xlane.f32.xlu0 %v3652
      %v3739 = vpop.xlane.xlu0 %3738
      %3740 = vadd.xlane.f32.xlu0 %v3653
      %v3741 = vpop.xlane.xlu0 %3740
      %3742 = vadd.xlane.f32.xlu0 %v3654
      %v3743 = vpop.xlane.xlu0 %3742
      %3744 = vadd.xlane.f32.xlu0 %v3655
      %v3745 = vpop.xlane.xlu0 %3744
      %3746 = vadd.xlane.f32.xlu0 %v3656
      %v3747 = vpop.xlane.xlu0 %3746
      %3748 = vadd.xlane.f32.xlu0 %v3657
      %v3749 = vpop.xlane.xlu0 %3748
      %3750 = vadd.xlane.f32.xlu0 %v3658
      %v3751 = vpop.xlane.xlu0 %3750
      %3752 = vadd.xlane.f32.xlu0 %v3659
      %v3753 = vpop.xlane.xlu0 %3752
      %3754 = vadd.xlane.f32.xlu0 %v3660
      %v3755 = vpop.xlane.xlu0 %3754
      %3756 = vadd.xlane.f32.xlu0 %v3661
      %v3757 = vpop.xlane.xlu0 %3756
      %3758 = vadd.xlane.f32.xlu0 %v3662
      %v3759 = vpop.xlane.xlu0 %3758
      %3760 = vadd.xlane.f32.xlu0 %v3663
      %v3761 = vpop.xlane.xlu0 %3760
      %3762 = vadd.xlane.f32.xlu0 %v3664
      %v3763 = vpop.xlane.xlu0 %3762
      %3764 = vadd.xlane.f32.xlu0 %v3665
      %v3765 = vpop.xlane.xlu0 %3764
      %3766 = vadd.xlane.f32.xlu0 %v3666
      %v3767 = vpop.xlane.xlu0 %3766
      %3768 = vadd.xlane.f32.xlu0 %v3667
      %v3769 = vpop.xlane.xlu0 %3768
      %3770 = vadd.xlane.f32.xlu0 %v3668
      %v3771 = vpop.xlane.xlu0 %3770
      %3772 = vadd.xlane.f32.xlu0 %v3669
      %v3773 = vpop.xlane.xlu0 %3772
      %3774 = vadd.xlane.f32.xlu0 %v3670
      %v3775 = vpop.xlane.xlu0 %3774
      %3776 = vadd.xlane.f32.xlu0 %v3671
      %v3777 = vpop.xlane.xlu0 %3776
      %3778 = vadd.xlane.f32.xlu0 %v3672
      %v3779 = vpop.xlane.xlu0 %3778
      %3780 = vadd.xlane.f32.xlu0 %v3673
      %v3781 = vpop.xlane.xlu0 %3780
      %3782 = vadd.xlane.f32.xlu0 %v3674
      %v3783 = vpop.xlane.xlu0 %3782
      %3784 = vadd.xlane.f32.xlu0 %v3675
      %v3785 = vpop.xlane.xlu0 %3784
      %3786 = vadd.xlane.f32.xlu0 %v3676
      %v3787 = vpop.xlane.xlu0 %3786
      %3788 = vadd.xlane.f32.xlu0 %v3677
      %v3789 = vpop.xlane.xlu0 %3788
      %3790 = vadd.xlane.f32.xlu0 %v3678
      %v3791 = vpop.xlane.xlu0 %3790
      %3792 = vadd.xlane.f32.xlu0 %v3679
      %v3793 = vpop.xlane.xlu0 %3792
      %3794 = vadd.xlane.f32.xlu0 %v3680
      %v3795 = vpop.xlane.xlu0 %3794
      %3796 = vadd.xlane.f32.xlu0 %v3681
      %v3797 = vpop.xlane.xlu0 %3796
      %3798 = vadd.xlane.f32.xlu0 %v3682
      %v3799 = vpop.xlane.xlu0 %3798
      %3800 = vadd.xlane.f32.xlu0 %v3683
      %v3801 = vpop.xlane.xlu0 %3800
      %3802 = vadd.xlane.f32.xlu0 %v3684
      %v3803 = vpop.xlane.xlu0 %3802
      %3804 = vadd.xlane.f32.xlu0 %v3685
      %v3805 = vpop.xlane.xlu0 %3804
      %3806 = vadd.xlane.f32.xlu0 %v3686
      %v3807 = vpop.xlane.xlu0 %3806
      %3808 = vadd.xlane.f32.xlu0 %v3687
      %v3809 = vpop.xlane.xlu0 %3808
      %3810 = vadd.xlane.f32.xlu0 %v3688
      %v3811 = vpop.xlane.xlu0 %3810
      %3812 = vadd.xlane.f32.xlu0 %v3689
      %v3813 = vpop.xlane.xlu0 %3812
      %3814 = vadd.xlane.f32.xlu0 %v3690
      %v3815 = vpop.xlane.xlu0 %3814
      %3816 = vadd.xlane.f32.xlu0 %v3691
      %v3817 = vpop.xlane.xlu0 %3816
      %3818 = vadd.xlane.f32.xlu0 %v3692
      %v3819 = vpop.xlane.xlu0 %3818
      %3820 = vadd.xlane.f32.xlu0 %v3693
      %v3821 = vpop.xlane.xlu0 %3820
      %v3822 = vmax.f32 %v3695, 1e-24
      %v3823 = vmax.f32 %v3697, 1e-24
      %v3824 = vmax.f32 %v3699, 1e-24
      %v3825 = vmax.f32 %v3701, 1e-24
      %v3826 = vmax.f32 %v3703, 1e-24
      %v3827 = vmax.f32 %v3705, 1e-24
      %v3828 = vmax.f32 %v3707, 1e-24
      %v3829 = vmax.f32 %v3709, 1e-24
      %v3830 = vmax.f32 %v3711, 1e-24
      %v3831 = vmax.f32 %v3713, 1e-24
      %v3832 = vmax.f32 %v3715, 1e-24
      %v3833 = vmax.f32 %v3717, 1e-24
      %v3834 = vmax.f32 %v3719, 1e-24
      %v3835 = vmax.f32 %v3721, 1e-24
      %v3836 = vmax.f32 %v3723, 1e-24
      %v3837 = vmax.f32 %v3725, 1e-24
      %v3838 = vmax.f32 %v3727, 1e-24
      %v3839 = vmax.f32 %v3729, 1e-24
      %v3840 = vmax.f32 %v3731, 1e-24
      %v3841 = vmax.f32 %v3733, 1e-24
      %v3842 = vmax.f32 %v3735, 1e-24
      %v3843 = vmax.f32 %v3737, 1e-24
      %v3844 = vmax.f32 %v3739, 1e-24
      %v3845 = vmax.f32 %v3741, 1e-24
      %v3846 = vmax.f32 %v3743, 1e-24
      %v3847 = vmax.f32 %v3745, 1e-24
      %v3848 = vmax.f32 %v3747, 1e-24
      %v3849 = vmax.f32 %v3749, 1e-24
      %v3850 = vmax.f32 %v3751, 1e-24
      %v3851 = vmax.f32 %v3753, 1e-24
      %v3852 = vmax.f32 %v3755, 1e-24
      %v3853 = vmax.f32 %v3757, 1e-24
      %v3854 = vmax.f32 %v3759, 1e-24
      %v3855 = vmax.f32 %v3761, 1e-24
      %v3856 = vmax.f32 %v3763, 1e-24
      %v3857 = vmax.f32 %v3765, 1e-24
      %v3858 = vmax.f32 %v3767, 1e-24
      %v3859 = vmax.f32 %v3769, 1e-24
      %v3860 = vmax.f32 %v3771, 1e-24
      %v3861 = vmax.f32 %v3773, 1e-24
      %v3862 = vmax.f32 %v3775, 1e-24
      %v3863 = vmax.f32 %v3777, 1e-24
      %v3864 = vmax.f32 %v3779, 1e-24
      %v3865 = vmax.f32 %v3781, 1e-24
      %v3866 = vmax.f32 %v3783, 1e-24
      %v3867 = vmax.f32 %v3785, 1e-24
      %v3868 = vmax.f32 %v3787, 1e-24
      %v3869 = vmax.f32 %v3789, 1e-24
      %v3870 = vmax.f32 %v3791, 1e-24
      %v3871 = vmax.f32 %v3793, 1e-24
      %v3872 = vmax.f32 %v3795, 1e-24
      %v3873 = vmax.f32 %v3797, 1e-24
      %v3874 = vmax.f32 %v3799, 1e-24
      %v3875 = vmax.f32 %v3801, 1e-24
      %v3876 = vmax.f32 %v3803, 1e-24
      %v3877 = vmax.f32 %v3805, 1e-24
      %v3878 = vmax.f32 %v3807, 1e-24
      %v3879 = vmax.f32 %v3809, 1e-24
      %v3880 = vmax.f32 %v3811, 1e-24
      %v3881 = vmax.f32 %v3813, 1e-24
      %v3882 = vmax.f32 %v3815, 1e-24
      %v3883 = vmax.f32 %v3817, 1e-24
      %v3884 = vmax.f32 %v3819, 1e-24
      %v3885 = vmax.f32 %v3821, 1e-24
      %v3886 = vrsqrt.pop %v3822
      %v3887 = vrsqrt.pop %v3823
      %v3888 = vrsqrt.pop %v3824
      %v3889 = vrsqrt.pop %v3825
      %v3890 = vrsqrt.pop %v3826
      %v3891 = vrsqrt.pop %v3827
      %v3892 = vrsqrt.pop %v3828
      %v3893 = vrsqrt.pop %v3829
      %v3894 = vrsqrt.pop %v3830
      %v3895 = vrsqrt.pop %v3831
      %v3896 = vrsqrt.pop %v3832
      %v3897 = vrsqrt.pop %v3833
      %v3898 = vrsqrt.pop %v3834
      %v3899 = vrsqrt.pop %v3835
      %v3900 = vrsqrt.pop %v3836
      %v3901 = vrsqrt.pop %v3837
      %v3902 = vrsqrt.pop %v3838
      %v3903 = vrsqrt.pop %v3839
      %v3904 = vrsqrt.pop %v3840
      %v3905 = vrsqrt.pop %v3841
      %v3906 = vrsqrt.pop %v3842
      %v3907 = vrsqrt.pop %v3843
      %v3908 = vrsqrt.pop %v3844
      %v3909 = vrsqrt.pop %v3845
      %v3910 = vrsqrt.pop %v3846
      %v3911 = vrsqrt.pop %v3847
      %v3912 = vrsqrt.pop %v3848
      %v3913 = vrsqrt.pop %v3849
      %v3914 = vrsqrt.pop %v3850
      %v3915 = vrsqrt.pop %v3851
      %v3916 = vrsqrt.pop %v3852
      %v3917 = vrsqrt.pop %v3853
      %v3918 = vrsqrt.pop %v3854
      %v3919 = vrsqrt.pop %v3855
      %v3920 = vrsqrt.pop %v3856
      %v3921 = vrsqrt.pop %v3857
      %v3922 = vrsqrt.pop %v3858
      %v3923 = vrsqrt.pop %v3859
      %v3924 = vrsqrt.pop %v3860
      %v3925 = vrsqrt.pop %v3861
      %v3926 = vrsqrt.pop %v3862
      %v3927 = vrsqrt.pop %v3863
      %v3928 = vrsqrt.pop %v3864
      %v3929 = vrsqrt.pop %v3865
      %v3930 = vrsqrt.pop %v3866
      %v3931 = vrsqrt.pop %v3867
      %v3932 = vrsqrt.pop %v3868
      %v3933 = vrsqrt.pop %v3869
      %v3934 = vrsqrt.pop %v3870
      %v3935 = vrsqrt.pop %v3871
      %v3936 = vrsqrt.pop %v3872
      %v3937 = vrsqrt.pop %v3873
      %v3938 = vrsqrt.pop %v3874
      %v3939 = vrsqrt.pop %v3875
      %v3940 = vrsqrt.pop %v3876
      %v3941 = vrsqrt.pop %v3877
      %v3942 = vrsqrt.pop %v3878
      %v3943 = vrsqrt.pop %v3879
      %v3944 = vrsqrt.pop %v3880
      %v3945 = vrsqrt.pop %v3881
      %v3946 = vrsqrt.pop %v3882
      %v3947 = vrsqrt.pop %v3883
      %v3948 = vrsqrt.pop %v3884
      %v3949 = vrsqrt.pop %v3885
      %v3950 = vmul.f32 %v3246, %v3886
      %v3951 = vmul.f32 %v3247, %v3887
      %v3952 = vmul.f32 %v3248, %v3888
      %v3953 = vmul.f32 %v3249, %v3889
      %v3954 = vmul.f32 %v3250, %v3890
      %v3955 = vmul.f32 %v3251, %v3891
      %v3956 = vmul.f32 %v3252, %v3892
      %v3957 = vmul.f32 %v3253, %v3893
      %v3958 = vmul.f32 %v3254, %v3894
      %v3959 = vmul.f32 %v3255, %v3895
      %v3960 = vmul.f32 %v3256, %v3896
      %v3961 = vmul.f32 %v3257, %v3897
      %v3962 = vmul.f32 %v3258, %v3898
      %v3963 = vmul.f32 %v3259, %v3899
      %v3964 = vmul.f32 %v3260, %v3900
      %v3965 = vmul.f32 %v3261, %v3901
      %v3966 = vmul.f32 %v3262, %v3902
      %v3967 = vmul.f32 %v3263, %v3903
      %v3968 = vmul.f32 %v3264, %v3904
      %v3969 = vmul.f32 %v3265, %v3905
      %v3970 = vmul.f32 %v3266, %v3906
      %v3971 = vmul.f32 %v3267, %v3907
      %v3972 = vmul.f32 %v3268, %v3908
      %v3973 = vmul.f32 %v3269, %v3909
      %v3974 = vmul.f32 %v3270, %v3910
      %v3975 = vmul.f32 %v3271, %v3911
      %v3976 = vmul.f32 %v3272, %v3912
      %v3977 = vmul.f32 %v3273, %v3913
      %v3978 = vmul.f32 %v3274, %v3914
      %v3979 = vmul.f32 %v3275, %v3915
      %v3980 = vmul.f32 %v3276, %v3916
      %v3981 = vmul.f32 %v3277, %v3917
      %v3982 = vmul.f32 %v3278, %v3918
      %v3983 = vmul.f32 %v3279, %v3919
      %v3984 = vmul.f32 %v3280, %v3920
      %v3985 = vmul.f32 %v3281, %v3921
      %v3986 = vmul.f32 %v3282, %v3922
      %v3987 = vmul.f32 %v3283, %v3923
      %v3988 = vmul.f32 %v3284, %v3924
      %v3989 = vmul.f32 %v3285, %v3925
      %v3990 = vmul.f32 %v3286, %v3926
      %v3991 = vmul.f32 %v3287, %v3927
      %v3992 = vmul.f32 %v3288, %v3928
      %v3993 = vmul.f32 %v3289, %v3929
      %v3994 = vmul.f32 %v3290, %v3930
      %v3995 = vmul.f32 %v3291, %v3931
      %v3996 = vmul.f32 %v3292, %v3932
      %v3997 = vmul.f32 %v3293, %v3933
      %v3998 = vmul.f32 %v3294, %v3934
      %v3999 = vmul.f32 %v3295, %v3935
      %v4000 = vmul.f32 %v3296, %v3936
      %v4001 = vmul.f32 %v3297, %v3937
      %v4002 = vmul.f32 %v3298, %v3938
      %v4003 = vmul.f32 %v3299, %v3939
      %v4004 = vmul.f32 %v3300, %v3940
      %v4005 = vmul.f32 %v3301, %v3941
      %v4006 = vmul.f32 %v3302, %v3942
      %v4007 = vmul.f32 %v3303, %v3943
      %v4008 = vmul.f32 %v3304, %v3944
      %v4009 = vmul.f32 %v3305, %v3945
      %v4010 = vmul.f32 %v3306, %v3946
      %v4011 = vmul.f32 %v3307, %v3947
      %v4012 = vmul.f32 %v3308, %v3948
      %v4013 = vmul.f32 %v3309, %v3949
      %v4014 = vpack.c.bf16 %v3951, %v3950
      %v4015 = vpack.c.bf16 %v3953, %v3952
      %v4016 = vpack.c.bf16 %v3955, %v3954
      %v4017 = vpack.c.bf16 %v3957, %v3956
      %v4018 = vpack.c.bf16 %v3959, %v3958
      %v4019 = vpack.c.bf16 %v3961, %v3960
      %v4020 = vpack.c.bf16 %v3963, %v3962
      %v4021 = vpack.c.bf16 %v3965, %v3964
      %v4022 = vpack.c.bf16 %v3967, %v3966
      %v4023 = vpack.c.bf16 %v3969, %v3968
      %v4024 = vpack.c.bf16 %v3971, %v3970
      %v4025 = vpack.c.bf16 %v3973, %v3972
      %v4026 = vpack.c.bf16 %v3975, %v3974
      %v4027 = vpack.c.bf16 %v3977, %v3976
      %v4028 = vpack.c.bf16 %v3979, %v3978
      %v4029 = vpack.c.bf16 %v3981, %v3980
      %v4030 = vpack.c.bf16 %v3983, %v3982
      %v4031 = vpack.c.bf16 %v3985, %v3984
      %v4032 = vpack.c.bf16 %v3987, %v3986
      %v4033 = vpack.c.bf16 %v3989, %v3988
      %v4034 = vpack.c.bf16 %v3991, %v3990
      %v4035 = vpack.c.bf16 %v3993, %v3992
      %v4036 = vpack.c.bf16 %v3995, %v3994
      %v4037 = vpack.c.bf16 %v3997, %v3996
      %v4038 = vpack.c.bf16 %v3999, %v3998
      %v4039 = vpack.c.bf16 %v4001, %v4000
      %v4040 = vpack.c.bf16 %v4003, %v4002
      %v4041 = vpack.c.bf16 %v4005, %v4004
      %v4042 = vpack.c.bf16 %v4007, %v4006
      %v4043 = vpack.c.bf16 %v4009, %v4008
      %v4044 = vpack.c.bf16 %v4011, %v4010
      %v4045 = vpack.c.bf16 %v4013, %v4012
      %v4078 = vunpack.c.l.b16 %v4014
      %v4079 = vunpack.c.h.b16 %v4014
      %v4080 = vunpack.c.l.b16 %v4015
      %v4081 = vunpack.c.h.b16 %v4015
      %v4082 = vunpack.c.l.b16 %v4016
      %v4083 = vunpack.c.h.b16 %v4016
      %v4084 = vunpack.c.l.b16 %v4017
      %v4085 = vunpack.c.h.b16 %v4017
      %v4086 = vunpack.c.l.b16 %v4018
      %v4087 = vunpack.c.h.b16 %v4018
      %v4088 = vunpack.c.l.b16 %v4019
      %v4089 = vunpack.c.h.b16 %v4019
      %v4090 = vunpack.c.l.b16 %v4020
      %v4091 = vunpack.c.h.b16 %v4020
      %v4092 = vunpack.c.l.b16 %v4021
      %v4093 = vunpack.c.h.b16 %v4021
      %v4094 = vunpack.c.l.b16 %v4022
      %v4095 = vunpack.c.h.b16 %v4022
      %v4096 = vunpack.c.l.b16 %v4023
      %v4097 = vunpack.c.h.b16 %v4023
      %v4098 = vunpack.c.l.b16 %v4024
      %v4099 = vunpack.c.h.b16 %v4024
      %v4100 = vunpack.c.l.b16 %v4025
      %v4101 = vunpack.c.h.b16 %v4025
      %v4102 = vunpack.c.l.b16 %v4026
      %v4103 = vunpack.c.h.b16 %v4026
      %v4104 = vunpack.c.l.b16 %v4027
      %v4105 = vunpack.c.h.b16 %v4027
      %v4106 = vunpack.c.l.b16 %v4028
      %v4107 = vunpack.c.h.b16 %v4028
      %v4108 = vunpack.c.l.b16 %v4029
      %v4109 = vunpack.c.h.b16 %v4029
      %v4110 = vunpack.c.l.b16 %v4030
      %v4111 = vunpack.c.h.b16 %v4030
      %v4112 = vunpack.c.l.b16 %v4031
      %v4113 = vunpack.c.h.b16 %v4031
      %v4114 = vunpack.c.l.b16 %v4032
      %v4115 = vunpack.c.h.b16 %v4032
      %v4116 = vunpack.c.l.b16 %v4033
      %v4117 = vunpack.c.h.b16 %v4033
      %v4118 = vunpack.c.l.b16 %v4034
      %v4119 = vunpack.c.h.b16 %v4034
      %v4120 = vunpack.c.l.b16 %v4035
      %v4121 = vunpack.c.h.b16 %v4035
      %v4122 = vunpack.c.l.b16 %v4036
      %v4123 = vunpack.c.h.b16 %v4036
      %v4124 = vunpack.c.l.b16 %v4037
      %v4125 = vunpack.c.h.b16 %v4037
      %v4126 = vunpack.c.l.b16 %v4038
      %v4127 = vunpack.c.h.b16 %v4038
      %v4128 = vunpack.c.l.b16 %v4039
      %v4129 = vunpack.c.h.b16 %v4039
      %v4130 = vunpack.c.l.b16 %v4040
      %v4131 = vunpack.c.h.b16 %v4040
      %v4132 = vunpack.c.l.b16 %v4041
      %v4133 = vunpack.c.h.b16 %v4041
      %v4134 = vunpack.c.l.b16 %v4042
      %v4135 = vunpack.c.h.b16 %v4042
      %v4136 = vunpack.c.l.b16 %v4043
      %v4137 = vunpack.c.h.b16 %v4043
      %v4138 = vunpack.c.l.b16 %v4044
      %v4139 = vunpack.c.h.b16 %v4044
      %v4140 = vunpack.c.l.b16 %v4045
      %v4141 = vunpack.c.h.b16 %v4045
      %v4142 = vpack.c.b16 %v4078, %v4078
      %v4143 = vpack.c.b16 %v4079, %v4079
      %v4144 = vpack.c.b16 %v4080, %v4080
      %v4145 = vpack.c.b16 %v4081, %v4081
      %v4146 = vpack.c.b16 %v4082, %v4082
      %v4147 = vpack.c.b16 %v4083, %v4083
      %v4148 = vpack.c.b16 %v4084, %v4084
      %v4149 = vpack.c.b16 %v4085, %v4085
      %v4150 = vpack.c.b16 %v4086, %v4086
      %v4151 = vpack.c.b16 %v4087, %v4087
      %v4152 = vpack.c.b16 %v4088, %v4088
      %v4153 = vpack.c.b16 %v4089, %v4089
      %v4154 = vpack.c.b16 %v4090, %v4090
      %v4155 = vpack.c.b16 %v4091, %v4091
      %v4156 = vpack.c.b16 %v4092, %v4092
      %v4157 = vpack.c.b16 %v4093, %v4093
      %v4158 = vpack.c.b16 %v4094, %v4094
      %v4159 = vpack.c.b16 %v4095, %v4095
      %v4160 = vpack.c.b16 %v4096, %v4096
      %v4161 = vpack.c.b16 %v4097, %v4097
      %v4162 = vpack.c.b16 %v4098, %v4098
      %v4163 = vpack.c.b16 %v4099, %v4099
      %v4164 = vpack.c.b16 %v4100, %v4100
      %v4165 = vpack.c.b16 %v4101, %v4101
      %v4166 = vpack.c.b16 %v4102, %v4102
      %v4167 = vpack.c.b16 %v4103, %v4103
      %v4168 = vpack.c.b16 %v4104, %v4104
      %v4169 = vpack.c.b16 %v4105, %v4105
      %v4170 = vpack.c.b16 %v4106, %v4106
      %v4171 = vpack.c.b16 %v4107, %v4107
      %v4172 = vpack.c.b16 %v4108, %v4108
      %v4173 = vpack.c.b16 %v4109, %v4109
      %v4174 = vpack.c.b16 %v4110, %v4110
      %v4175 = vpack.c.b16 %v4111, %v4111
      %v4176 = vpack.c.b16 %v4112, %v4112
      %v4177 = vpack.c.b16 %v4113, %v4113
      %v4178 = vpack.c.b16 %v4114, %v4114
      %v4179 = vpack.c.b16 %v4115, %v4115
      %v4180 = vpack.c.b16 %v4116, %v4116
      %v4181 = vpack.c.b16 %v4117, %v4117
      %v4182 = vpack.c.b16 %v4118, %v4118
      %v4183 = vpack.c.b16 %v4119, %v4119
      %v4184 = vpack.c.b16 %v4120, %v4120
      %v4185 = vpack.c.b16 %v4121, %v4121
      %v4186 = vpack.c.b16 %v4122, %v4122
      %v4187 = vpack.c.b16 %v4123, %v4123
      %v4188 = vpack.c.b16 %v4124, %v4124
      %v4189 = vpack.c.b16 %v4125, %v4125
      %v4190 = vpack.c.b16 %v4126, %v4126
      %v4191 = vpack.c.b16 %v4127, %v4127
      %v4192 = vpack.c.b16 %v4128, %v4128
      %v4193 = vpack.c.b16 %v4129, %v4129
      %v4194 = vpack.c.b16 %v4130, %v4130
      %v4195 = vpack.c.b16 %v4131, %v4131
      %v4196 = vpack.c.b16 %v4132, %v4132
      %v4197 = vpack.c.b16 %v4133, %v4133
      %v4198 = vpack.c.b16 %v4134, %v4134
      %v4199 = vpack.c.b16 %v4135, %v4135
      %v4200 = vpack.c.b16 %v4136, %v4136
      %v4201 = vpack.c.b16 %v4137, %v4137
      %v4202 = vpack.c.b16 %v4138, %v4138
      %v4203 = vpack.c.b16 %v4139, %v4139
      %v4204 = vpack.c.b16 %v4140, %v4140
      %v4205 = vpack.c.b16 %v4141, %v4141
      %4270 = vst [vmem:[%s8] sm:$0xf] %v4142
      %4271 = vst [vmem:[%s8 + $0x4] sm:$0xf] %v4143
      %4272 = vst [vmem:[%s8 + $0x8] sm:$0xf] %v4144
      %4273 = vst [vmem:[%s8 + $0xc] sm:$0xf] %v4145
      %4274 = vst [vmem:[%s8 + $0x10] sm:$0xf] %v4146
      %4275 = vst [vmem:[%s8 + $0x14] sm:$0xf] %v4147
      %4276 = vst [vmem:[%s8 + $0x18] sm:$0xf] %v4148
      %4277 = vst [vmem:[%s8 + $0x1c] sm:$0xf] %v4149
      %4278 = vst [vmem:[%s8 + $0x20] sm:$0xf] %v4150
      %4279 = vst [vmem:[%s8 + $0x24] sm:$0xf] %v4151
      %4280 = vst [vmem:[%s8 + $0x28] sm:$0xf] %v4152
      %4281 = vst [vmem:[%s8 + $0x2c] sm:$0xf] %v4153
      %4282 = vst [vmem:[%s8 + $0x30] sm:$0xf] %v4154
      %4283 = vst [vmem:[%s8 + $0x34] sm:$0xf] %v4155
      %4284 = vst [vmem:[%s8 + $0x38] sm:$0xf] %v4156
      %4285 = vst [vmem:[%s8 + $0x3c] sm:$0xf] %v4157
      %4286 = vst [vmem:[%s8 + $0x40] sm:$0xf] %v4158
      %4287 = vst [vmem:[%s8 + $0x44] sm:$0xf] %v4159
      %4288 = vst [vmem:[%s8 + $0x48] sm:$0xf] %v4160
      %4289 = vst [vmem:[%s8 + $0x4c] sm:$0xf] %v4161
      %4290 = vst [vmem:[%s8 + $0x50] sm:$0xf] %v4162
      %4291 = vst [vmem:[%s8 + $0x54] sm:$0xf] %v4163
      %4292 = vst [vmem:[%s8 + $0x58] sm:$0xf] %v4164
      %4293 = vst [vmem:[%s8 + $0x5c] sm:$0xf] %v4165
      %4294 = vst [vmem:[%s8 + $0x60] sm:$0xf] %v4166
      %4295 = vst [vmem:[%s8 + $0x64] sm:$0xf] %v4167
      %4296 = vst [vmem:[%s8 + $0x68] sm:$0xf] %v4168
      %4297 = vst [vmem:[%s8 + $0x6c] sm:$0xf] %v4169
      %4298 = vst [vmem:[%s8 + $0x70] sm:$0xf] %v4170
      %4299 = vst [vmem:[%s8 + $0x74] sm:$0xf] %v4171
      %4300 = vst [vmem:[%s8 + $0x78] sm:$0xf] %v4172
      %4301 = vst [vmem:[%s8 + $0x7c] sm:$0xf] %v4173
      %4302 = vst [vmem:[%s8 + $0x80] sm:$0xf] %v4174
      %4303 = vst [vmem:[%s8 + $0x84] sm:$0xf] %v4175
      %4304 = vst [vmem:[%s8 + $0x88] sm:$0xf] %v4176
      %4305 = vst [vmem:[%s8 + $0x8c] sm:$0xf] %v4177
      %4306 = vst [vmem:[%s8 + $0x90] sm:$0xf] %v4178
      %4307 = vst [vmem:[%s8 + $0x94] sm:$0xf] %v4179
      %4308 = vst [vmem:[%s8 + $0x98] sm:$0xf] %v4180
      %4309 = vst [vmem:[%s8 + $0x9c] sm:$0xf] %v4181
      %4310 = vst [vmem:[%s8 + $0xa0] sm:$0xf] %v4182
      %4311 = vst [vmem:[%s8 + $0xa4] sm:$0xf] %v4183
      %4312 = vst [vmem:[%s8 + $0xa8] sm:$0xf] %v4184
      %4313 = vst [vmem:[%s8 + $0xac] sm:$0xf] %v4185
      %4314 = vst [vmem:[%s8 + $0xb0] sm:$0xf] %v4186
      %4315 = vst [vmem:[%s8 + $0xb4] sm:$0xf] %v4187
      %4316 = vst [vmem:[%s8 + $0xb8] sm:$0xf] %v4188
      %4317 = vst [vmem:[%s8 + $0xbc] sm:$0xf] %v4189
      %4318 = vst [vmem:[%s8 + $0xc0] sm:$0xf] %v4190
      %4319 = vst [vmem:[%s8 + $0xc4] sm:$0xf] %v4191
      %4320 = vst [vmem:[%s8 + $0xc8] sm:$0xf] %v4192
      %4321 = vst [vmem:[%s8 + $0xcc] sm:$0xf] %v4193
      %4322 = vst [vmem:[%s8 + $0xd0] sm:$0xf] %v4194
      %4323 = vst [vmem:[%s8 + $0xd4] sm:$0xf] %v4195
      %4324 = vst [vmem:[%s8 + $0xd8] sm:$0xf] %v4196
      %4325 = vst [vmem:[%s8 + $0xdc] sm:$0xf] %v4197
      %4326 = vst [vmem:[%s8 + $0xe0] sm:$0xf] %v4198
      %4327 = vst [vmem:[%s8 + $0xe4] sm:$0xf] %v4199
      %4328 = vst [vmem:[%s8 + $0xe8] sm:$0xf] %v4200
      %4329 = vst [vmem:[%s8 + $0xec] sm:$0xf] %v4201
      %4330 = vst [vmem:[%s8 + $0xf0] sm:$0xf] %v4202
      %4331 = vst [vmem:[%s8 + $0xf4] sm:$0xf] %v4203
      %4332 = vst [vmem:[%s8 + $0xf8] sm:$0xf] %v4204
      %4333 = vst [vmem:[%s8 + $0xfc] sm:$0xf] %v4205
    $region53: #{ngcf_forward.3} parent=1 // pred_fallthru
      _
    // Predicated region
    $region54: #{ngcf_forward.3} parent=1 // pred_check
      _
    $region55: #{ngcf_forward.3} parent=1 // pred_check_branch
      %4335 = sbr.rel (0) target = $region57
    $region56: #{ngcf_forward.3} parent=1 // pred_region
      _
    $region57: #{ngcf_forward.3} parent=1 // pred_fallthru
      _
    // Predicated region
    $region58: #{ngcf_forward.3} parent=1 // pred_check
      _
    $region59: #{ngcf_forward.3} parent=1 // pred_check_branch
      %4337 = sbr.rel (0) target = $region61
    $region60: #{ngcf_forward.3} parent=1 // pred_region
      _
    $region61: #{ngcf_forward.3} parent=1 // pred_fallthru
      _
    // Predicated region
    $region62: #{ngcf_forward.3} parent=1 // pred_check
      _
    $region63: #{ngcf_forward.3} parent=1 // pred_check_branch
      %4339 = sbr.rel (0) target = $region65
    $region64: #{ngcf_forward.3} parent=1 // pred_region
      _
    $region65: #{ngcf_forward.3} parent=1 // pred_fallthru
      _
    // Predicated region
    $region66: #{ngcf_forward.3} parent=1 // pred_check
      _
    $region67: #{ngcf_forward.3} parent=1 // pred_check_branch
      %4341 = sbr.rel (0) target = $region69
    $region68: #{ngcf_forward.3} parent=1 // pred_region
      _
    $region69: #{ngcf_forward.3} parent=1 // pred_fallthru
      _
    %4342 = vsyncpa [#allocation7], 1
    %4343 = vsyncpa [#allocation9], 1
    %4344 = vsyncpa [#allocation12], 1

// kernel: ngcf_forward.4
$region0: #{ngcf_forward.4}
  #allocation0 [shape = 'u32[]', space=smem, size = 0x4, offset = 0x4, fixed_abs, tag = 'smem constant byte address 0x4 - core index']
  #allocation1 [shape = 'u32[144,128]{1,0:T(1,128)}', space=vmem, size = 0x12000, scoped, tag = 'internal scratch']
  #allocation2 [shape = 'f32[512,128]{1,0:T(8,128)}', space=vmem, size = 0x40000, scoped, tag = 'scratch operand']
  #allocation3 [shape = 's32[1]{0}', space=sflag, size = 0x4, scoped, tag = 'scoped memory for ngcf_forward.4']
  #allocation4 [shape = 's32[1,1]{1,0:T(1,128)S(6)}', space=smem, size = 0x200, scoped, tag = 'prefetched SMEM operand 0']
  #allocation5 [shape = 's32[1]{0:T(128)S(6)}', space=smem, size = 0x200, scoped, tag = 'prefetched SMEM operand 1']
  %s0 = inlined_call_operand.<no memory space> [shape: s32[1,1], index: 0, kind: input, shape index: {}]
  %s1 = inlined_call_operand.<no memory space> [shape: s32[1], index: 1, kind: input, shape index: {}]
  %s2 = inlined_call_operand.vmem [shape: bf16[512,512], index: 2, kind: input, shape index: {}]
  %s3 = inlined_call_operand.vmem [shape: bf16[512,128], index: 3, kind: input, shape index: {}]
  %s4 = inlined_call_operand.vmem [shape: f32[128,128], index: 4, kind: input, shape index: {}]
  %s5 = inlined_call_operand.vmem [shape: f32[128,128], index: 5, kind: input, shape index: {}]
  %s6 = inlined_call_operand.vmem [shape: f32[1,128], index: 6, kind: input, shape index: {}]
  %s7 = inlined_call_operand.hbm [shape: bf16[512,128], index: 7, kind: output, shape index: {0}]
  %s8 = inlined_call_operand.vmem [shape: bf16[512,128], index: 8, kind: output, shape index: {1}]
  %9 = xla_tuple %s7, %s8
  %s10 = sld [smem:[#allocation0]]
  $region50: #{ngcf_forward.4} parent=0
    _
  %s12 = ssub.s32 1, %s10
  %s13 = scalar_select 0, %s12, %s10
  %14 = sst [smem:[#allocation4]] %s0
  %15 = sst [smem:[#allocation5]] %s1
  $region1: #{ngcf_forward.4} parent=0
    #allocation6 [shape = 'u8[131072]{0}', space=vmem, size = 0x20000, scoped, tag = 'output window, operand 0, single buffered']
    #allocation7 [shape = 's32[1]{0}', space=sflag, size = 0x4, scoped, tag = 'scoped memory for ngcf_forward.4']
    %16 = vsyncpa [#allocation7], 0
    // Predicated region
    $region2: #{ngcf_forward.4} parent=1 // pred_check
      _
    $region3: #{ngcf_forward.4} parent=1 // pred_check_branch
      %18 = sbr.rel (0) target = $region5
    $region4: #{ngcf_forward.4} parent=1 // pred_region
      %s19 = sadd.s32 0, 0
      %s20 = smul.u32 %s19, 128
      %s21 = sadd.s32 %s20, 0
      %s22 = sld [smem:[#allocation4 + %s21]]
      %s23 = smul.u32 4, %s22
      %p24 = scmp.lt.s32.totalorder %s23, 3
      %s25 = scalar_select %p24, %s23, 3
      %s26 = smul.addr %s25, 4
      %s27 = scalar_lea.vmem %s2, %s26
      %s28 = sadd.s32 0, 0
      %s29 = smul.u32 %s28, 128
      %s30 = sadd.s32 %s29, 0
      %s31 = sld [smem:[#allocation4 + %s30]]
      %s32 = smul.u32 4, %s31
    $region5: #{ngcf_forward.4} parent=1 // pred_fallthru
      _
    // Predicated region
    $region6: #{ngcf_forward.4} parent=1 // pred_check
      _
    $region7: #{ngcf_forward.4} parent=1 // pred_check_branch
      %34 = sbr.rel (0) target = $region9
    $region8: #{ngcf_forward.4} parent=1 // pred_region
      _
    $region9: #{ngcf_forward.4} parent=1 // pred_fallthru
      _
    // Predicated region
    $region10: #{ngcf_forward.4} parent=1 // pred_check
      _
    $region11: #{ngcf_forward.4} parent=1 // pred_check_branch
      %36 = sbr.rel (0) target = $region13
    $region12: #{ngcf_forward.4} parent=1 // pred_region
      _
    $region13: #{ngcf_forward.4} parent=1 // pred_fallthru
      _
    // Predicated region
    $region14: #{ngcf_forward.4} parent=1 // pred_check
      _
    $region15: #{ngcf_forward.4} parent=1 // pred_check_branch
      %38 = sbr.rel (0) target = $region17
    $region16: #{ngcf_forward.4} parent=1 // pred_region
      _
    $region17: #{ngcf_forward.4} parent=1 // pred_fallthru
      _
    // Predicated region
    $region18: #{ngcf_forward.4} parent=1 // pred_check
      _
    $region19: #{ngcf_forward.4} parent=1 // pred_check_branch
      %40 = sbr.rel (0) target = $region21
    $region20: #{ngcf_forward.4} parent=1 // pred_region
      _
    $region21: #{ngcf_forward.4} parent=1 // pred_fallthru
      _
    %s41 = sadd.s32 0, 0
    %s42 = smul.u32 %s41, 128
    %s43 = sadd.s32 %s42, 0
    %s44 = sld [smem:[#allocation4 + %s43]]
    %s45 = smul.u32 4, %s44
    %p46 = scmp.lt.s32.totalorder %s45, 3
    %s47 = scalar_select %p46, %s45, 3
    %s48 = smul.addr %s47, 4
    %s49 = scalar_lea.vmem %s2, %s48
    %s50 = sadd.s32 0, 0
    %s51 = smul.u32 %s50, 128
    %s52 = sadd.s32 %s51, 0
    %s53 = sld [smem:[#allocation4 + %s52]]
    %s54 = smul.u32 4, %s53
    %p55 = scmp.lt.s32.totalorder %s54, 3
    %s56 = scalar_select %p55, %s54, 3
    %s57 = smul.addr %s56, 4
    %s58 = scalar_lea.vmem %s2, %s57
    %s59 = sadd.s32 0, 0
    %s60 = smul.u32 %s59, 128
    %s61 = sadd.s32 %s60, 0
    %s62 = sld [smem:[#allocation4 + %s61]]
    %s63 = smul.u32 4, %s62
    %p65 = scmp.eq.s32.totalorder 0, 0
    // Predicated region
    $region22: #{ngcf_forward.4} parent=1 // pred_check
      %p66 = pneg %p65
    $region23: #{ngcf_forward.4} parent=1 // pred_check_branch
      %68 = sbr.rel (%p66) target = $region25
    $region24: #{ngcf_forward.4} parent=1 // pred_region
      %69 = vst [vmem:[#allocation2] sm:$0xff] 0.0
      %70 = vst [vmem:[#allocation2 + $0x8] sm:$0xff] 0.0
      %71 = vst [vmem:[#allocation2 + $0x10] sm:$0xff] 0.0
      %72 = vst [vmem:[#allocation2 + $0x18] sm:$0xff] 0.0
      %73 = vst [vmem:[#allocation2 + $0x20] sm:$0xff] 0.0
      %74 = vst [vmem:[#allocation2 + $0x28] sm:$0xff] 0.0
      %75 = vst [vmem:[#allocation2 + $0x30] sm:$0xff] 0.0
      %76 = vst [vmem:[#allocation2 + $0x38] sm:$0xff] 0.0
      %77 = vst [vmem:[#allocation2 + $0x40] sm:$0xff] 0.0
      %78 = vst [vmem:[#allocation2 + $0x48] sm:$0xff] 0.0
      %79 = vst [vmem:[#allocation2 + $0x50] sm:$0xff] 0.0
      %80 = vst [vmem:[#allocation2 + $0x58] sm:$0xff] 0.0
      %81 = vst [vmem:[#allocation2 + $0x60] sm:$0xff] 0.0
      %82 = vst [vmem:[#allocation2 + $0x68] sm:$0xff] 0.0
      %83 = vst [vmem:[#allocation2 + $0x70] sm:$0xff] 0.0
      %84 = vst [vmem:[#allocation2 + $0x78] sm:$0xff] 0.0
      %85 = vst [vmem:[#allocation2 + $0x80] sm:$0xff] 0.0
      %86 = vst [vmem:[#allocation2 + $0x88] sm:$0xff] 0.0
      %87 = vst [vmem:[#allocation2 + $0x90] sm:$0xff] 0.0
      %88 = vst [vmem:[#allocation2 + $0x98] sm:$0xff] 0.0
      %89 = vst [vmem:[#allocation2 + $0xa0] sm:$0xff] 0.0
      %90 = vst [vmem:[#allocation2 + $0xa8] sm:$0xff] 0.0
      %91 = vst [vmem:[#allocation2 + $0xb0] sm:$0xff] 0.0
      %92 = vst [vmem:[#allocation2 + $0xb8] sm:$0xff] 0.0
      %93 = vst [vmem:[#allocation2 + $0xc0] sm:$0xff] 0.0
      %94 = vst [vmem:[#allocation2 + $0xc8] sm:$0xff] 0.0
      %95 = vst [vmem:[#allocation2 + $0xd0] sm:$0xff] 0.0
      %96 = vst [vmem:[#allocation2 + $0xd8] sm:$0xff] 0.0
      %97 = vst [vmem:[#allocation2 + $0xe0] sm:$0xff] 0.0
      %98 = vst [vmem:[#allocation2 + $0xe8] sm:$0xff] 0.0
      %99 = vst [vmem:[#allocation2 + $0xf0] sm:$0xff] 0.0
      %100 = vst [vmem:[#allocation2 + $0xf8] sm:$0xff] 0.0
      %101 = vst [vmem:[#allocation2 + $0x100] sm:$0xff] 0.0
      %102 = vst [vmem:[#allocation2 + $0x108] sm:$0xff] 0.0
      %103 = vst [vmem:[#allocation2 + $0x110] sm:$0xff] 0.0
      %104 = vst [vmem:[#allocation2 + $0x118] sm:$0xff] 0.0
      %105 = vst [vmem:[#allocation2 + $0x120] sm:$0xff] 0.0
      %106 = vst [vmem:[#allocation2 + $0x128] sm:$0xff] 0.0
      %107 = vst [vmem:[#allocation2 + $0x130] sm:$0xff] 0.0
      %108 = vst [vmem:[#allocation2 + $0x138] sm:$0xff] 0.0
      %109 = vst [vmem:[#allocation2 + $0x140] sm:$0xff] 0.0
      %110 = vst [vmem:[#allocation2 + $0x148] sm:$0xff] 0.0
      %111 = vst [vmem:[#allocation2 + $0x150] sm:$0xff] 0.0
      %112 = vst [vmem:[#allocation2 + $0x158] sm:$0xff] 0.0
      %113 = vst [vmem:[#allocation2 + $0x160] sm:$0xff] 0.0
      %114 = vst [vmem:[#allocation2 + $0x168] sm:$0xff] 0.0
      %115 = vst [vmem:[#allocation2 + $0x170] sm:$0xff] 0.0
      %116 = vst [vmem:[#allocation2 + $0x178] sm:$0xff] 0.0
      %117 = vst [vmem:[#allocation2 + $0x180] sm:$0xff] 0.0
      %118 = vst [vmem:[#allocation2 + $0x188] sm:$0xff] 0.0
      %119 = vst [vmem:[#allocation2 + $0x190] sm:$0xff] 0.0
      %120 = vst [vmem:[#allocation2 + $0x198] sm:$0xff] 0.0
      %121 = vst [vmem:[#allocation2 + $0x1a0] sm:$0xff] 0.0
      %122 = vst [vmem:[#allocation2 + $0x1a8] sm:$0xff] 0.0
      %123 = vst [vmem:[#allocation2 + $0x1b0] sm:$0xff] 0.0
      %124 = vst [vmem:[#allocation2 + $0x1b8] sm:$0xff] 0.0
      %125 = vst [vmem:[#allocation2 + $0x1c0] sm:$0xff] 0.0
      %126 = vst [vmem:[#allocation2 + $0x1c8] sm:$0xff] 0.0
      %127 = vst [vmem:[#allocation2 + $0x1d0] sm:$0xff] 0.0
      %128 = vst [vmem:[#allocation2 + $0x1d8] sm:$0xff] 0.0
      %129 = vst [vmem:[#allocation2 + $0x1e0] sm:$0xff] 0.0
      %130 = vst [vmem:[#allocation2 + $0x1e8] sm:$0xff] 0.0
      %131 = vst [vmem:[#allocation2 + $0x1f0] sm:$0xff] 0.0
      %132 = vst [vmem:[#allocation2 + $0x1f8] sm:$0xff] 0.0
    $region25: #{ngcf_forward.4} parent=1 // pred_fallthru
      _
    %s133 = sld [smem:[#allocation5]]
    %p134 = scmp.lt.s32.totalorder 0, %s133
    // Predicated region
    $region26: #{ngcf_forward.4} parent=1 // pred_check
      %p135 = pneg %p134
    $region27: #{ngcf_forward.4} parent=1 // pred_check_branch
      %137 = sbr.rel (%p135) target = $region29
    $region28: #{ngcf_forward.4} parent=1 // pred_region
      %s138 = sadd.s32 0, 0
      %s139 = smul.u32 %s138, 128
      %s140 = sadd.s32 %s139, 0
      %s141 = sld [smem:[#allocation4 + %s140]]
      %s142 = smul.u32 %s141, 512
      %v143 = vld [vmem:[#allocation2] sm:$0xff]
      %v144 = vld [vmem:[#allocation2 + $0x8] sm:$0xff]
      %v145 = vld [vmem:[#allocation2 + $0x10] sm:$0xff]
      %v146 = vld [vmem:[#allocation2 + $0x18] sm:$0xff]
      %v147 = vld [vmem:[#allocation2 + $0x20] sm:$0xff]
      %v148 = vld [vmem:[#allocation2 + $0x28] sm:$0xff]
      %v149 = vld [vmem:[#allocation2 + $0x30] sm:$0xff]
      %v150 = vld [vmem:[#allocation2 + $0x38] sm:$0xff]
      %v151 = vld [vmem:[#allocation2 + $0x40] sm:$0xff]
      %v152 = vld [vmem:[#allocation2 + $0x48] sm:$0xff]
      %v153 = vld [vmem:[#allocation2 + $0x50] sm:$0xff]
      %v154 = vld [vmem:[#allocation2 + $0x58] sm:$0xff]
      %v155 = vld [vmem:[#allocation2 + $0x60] sm:$0xff]
      %v156 = vld [vmem:[#allocation2 + $0x68] sm:$0xff]
      %v157 = vld [vmem:[#allocation2 + $0x70] sm:$0xff]
      %v158 = vld [vmem:[#allocation2 + $0x78] sm:$0xff]
      %v159 = vld [vmem:[#allocation2 + $0x80] sm:$0xff]
      %v160 = vld [vmem:[#allocation2 + $0x88] sm:$0xff]
      %v161 = vld [vmem:[#allocation2 + $0x90] sm:$0xff]
      %v162 = vld [vmem:[#allocation2 + $0x98] sm:$0xff]
      %v163 = vld [vmem:[#allocation2 + $0xa0] sm:$0xff]
      %v164 = vld [vmem:[#allocation2 + $0xa8] sm:$0xff]
      %v165 = vld [vmem:[#allocation2 + $0xb0] sm:$0xff]
      %v166 = vld [vmem:[#allocation2 + $0xb8] sm:$0xff]
      %v167 = vld [vmem:[#allocation2 + $0xc0] sm:$0xff]
      %v168 = vld [vmem:[#allocation2 + $0xc8] sm:$0xff]
      %v169 = vld [vmem:[#allocation2 + $0xd0] sm:$0xff]
      %v170 = vld [vmem:[#allocation2 + $0xd8] sm:$0xff]
      %v171 = vld [vmem:[#allocation2 + $0xe0] sm:$0xff]
      %v172 = vld [vmem:[#allocation2 + $0xe8] sm:$0xff]
      %v173 = vld [vmem:[#allocation2 + $0xf0] sm:$0xff]
      %v174 = vld [vmem:[#allocation2 + $0xf8] sm:$0xff]
      %v175 = vld [vmem:[#allocation2 + $0x100] sm:$0xff]
      %v176 = vld [vmem:[#allocation2 + $0x108] sm:$0xff]
      %v177 = vld [vmem:[#allocation2 + $0x110] sm:$0xff]
      %v178 = vld [vmem:[#allocation2 + $0x118] sm:$0xff]
      %v179 = vld [vmem:[#allocation2 + $0x120] sm:$0xff]
      %v180 = vld [vmem:[#allocation2 + $0x128] sm:$0xff]
      %v181 = vld [vmem:[#allocation2 + $0x130] sm:$0xff]
      %v182 = vld [vmem:[#allocation2 + $0x138] sm:$0xff]
      %v183 = vld [vmem:[#allocation2 + $0x140] sm:$0xff]
      %v184 = vld [vmem:[#allocation2 + $0x148] sm:$0xff]
      %v185 = vld [vmem:[#allocation2 + $0x150] sm:$0xff]
      %v186 = vld [vmem:[#allocation2 + $0x158] sm:$0xff]
      %v187 = vld [vmem:[#allocation2 + $0x160] sm:$0xff]
      %v188 = vld [vmem:[#allocation2 + $0x168] sm:$0xff]
      %v189 = vld [vmem:[#allocation2 + $0x170] sm:$0xff]
      %v190 = vld [vmem:[#allocation2 + $0x178] sm:$0xff]
      %v191 = vld [vmem:[#allocation2 + $0x180] sm:$0xff]
      %v192 = vld [vmem:[#allocation2 + $0x188] sm:$0xff]
      %v193 = vld [vmem:[#allocation2 + $0x190] sm:$0xff]
      %v194 = vld [vmem:[#allocation2 + $0x198] sm:$0xff]
      %v195 = vld [vmem:[#allocation2 + $0x1a0] sm:$0xff]
      %v196 = vld [vmem:[#allocation2 + $0x1a8] sm:$0xff]
      %v197 = vld [vmem:[#allocation2 + $0x1b0] sm:$0xff]
      %v198 = vld [vmem:[#allocation2 + $0x1b8] sm:$0xff]
      %v199 = vld [vmem:[#allocation2 + $0x1c0] sm:$0xff]
      %v200 = vld [vmem:[#allocation2 + $0x1c8] sm:$0xff]
      %v201 = vld [vmem:[#allocation2 + $0x1d0] sm:$0xff]
      %v202 = vld [vmem:[#allocation2 + $0x1d8] sm:$0xff]
      %v203 = vld [vmem:[#allocation2 + $0x1e0] sm:$0xff]
      %v204 = vld [vmem:[#allocation2 + $0x1e8] sm:$0xff]
      %v205 = vld [vmem:[#allocation2 + $0x1f0] sm:$0xff]
      %v206 = vld [vmem:[#allocation2 + $0x1f8] sm:$0xff]
      %v207 = vld [vmem:[%s58] sm:$0xff]
      %v208 = vld [vmem:[%s58 + $0x8] sm:$0xff]
      %v209 = vld [vmem:[%s58 + $0x10] sm:$0xff]
      %v210 = vld [vmem:[%s58 + $0x18] sm:$0xff]
      %v211 = vld [vmem:[%s58 + $0x20] sm:$0xff]
      %v212 = vld [vmem:[%s58 + $0x28] sm:$0xff]
      %v213 = vld [vmem:[%s58 + $0x30] sm:$0xff]
      %v214 = vld [vmem:[%s58 + $0x38] sm:$0xff]
      %v215 = vld [vmem:[%s58 + $0x40] sm:$0xff]
      %v216 = vld [vmem:[%s58 + $0x48] sm:$0xff]
      %v217 = vld [vmem:[%s58 + $0x50] sm:$0xff]
      %v218 = vld [vmem:[%s58 + $0x58] sm:$0xff]
      %v219 = vld [vmem:[%s58 + $0x60] sm:$0xff]
      %v220 = vld [vmem:[%s58 + $0x68] sm:$0xff]
      %v221 = vld [vmem:[%s58 + $0x70] sm:$0xff]
      %v222 = vld [vmem:[%s58 + $0x78] sm:$0xff]
      %v223 = vld [vmem:[%s58 + $0x80] sm:$0xff]
      %v224 = vld [vmem:[%s58 + $0x88] sm:$0xff]
      %v225 = vld [vmem:[%s58 + $0x90] sm:$0xff]
      %v226 = vld [vmem:[%s58 + $0x98] sm:$0xff]
      %v227 = vld [vmem:[%s58 + $0xa0] sm:$0xff]
      %v228 = vld [vmem:[%s58 + $0xa8] sm:$0xff]
      %v229 = vld [vmem:[%s58 + $0xb0] sm:$0xff]
      %v230 = vld [vmem:[%s58 + $0xb8] sm:$0xff]
      %v231 = vld [vmem:[%s58 + $0xc0] sm:$0xff]
      %v232 = vld [vmem:[%s58 + $0xc8] sm:$0xff]
      %v233 = vld [vmem:[%s58 + $0xd0] sm:$0xff]
      %v234 = vld [vmem:[%s58 + $0xd8] sm:$0xff]
      %v235 = vld [vmem:[%s58 + $0xe0] sm:$0xff]
      %v236 = vld [vmem:[%s58 + $0xe8] sm:$0xff]
      %v237 = vld [vmem:[%s58 + $0xf0] sm:$0xff]
      %v238 = vld [vmem:[%s58 + $0xf8] sm:$0xff]
      %v239 = vld [vmem:[%s58 + $0x100] sm:$0xff]
      %v240 = vld [vmem:[%s58 + $0x108] sm:$0xff]
      %v241 = vld [vmem:[%s58 + $0x110] sm:$0xff]
      %v242 = vld [vmem:[%s58 + $0x118] sm:$0xff]
      %v243 = vld [vmem:[%s58 + $0x120] sm:$0xff]
      %v244 = vld [vmem:[%s58 + $0x128] sm:$0xff]
      %v245 = vld [vmem:[%s58 + $0x130] sm:$0xff]
      %v246 = vld [vmem:[%s58 + $0x138] sm:$0xff]
      %v247 = vld [vmem:[%s58 + $0x140] sm:$0xff]
      %v248 = vld [vmem:[%s58 + $0x148] sm:$0xff]
      %v249 = vld [vmem:[%s58 + $0x150] sm:$0xff]
      %v250 = vld [vmem:[%s58 + $0x158] sm:$0xff]
      %v251 = vld [vmem:[%s58 + $0x160] sm:$0xff]
      %v252 = vld [vmem:[%s58 + $0x168] sm:$0xff]
      %v253 = vld [vmem:[%s58 + $0x170] sm:$0xff]
      %v254 = vld [vmem:[%s58 + $0x178] sm:$0xff]
      %v255 = vld [vmem:[%s58 + $0x180] sm:$0xff]
      %v256 = vld [vmem:[%s58 + $0x188] sm:$0xff]
      %v257 = vld [vmem:[%s58 + $0x190] sm:$0xff]
      %v258 = vld [vmem:[%s58 + $0x198] sm:$0xff]
      %v259 = vld [vmem:[%s58 + $0x1a0] sm:$0xff]
      %v260 = vld [vmem:[%s58 + $0x1a8] sm:$0xff]
      %v261 = vld [vmem:[%s58 + $0x1b0] sm:$0xff]
      %v262 = vld [vmem:[%s58 + $0x1b8] sm:$0xff]
      %v263 = vld [vmem:[%s58 + $0x1c0] sm:$0xff]
      %v264 = vld [vmem:[%s58 + $0x1c8] sm:$0xff]
      %v265 = vld [vmem:[%s58 + $0x1d0] sm:$0xff]
      %v266 = vld [vmem:[%s58 + $0x1d8] sm:$0xff]
      %v267 = vld [vmem:[%s58 + $0x1e0] sm:$0xff]
      %v268 = vld [vmem:[%s58 + $0x1e8] sm:$0xff]
      %v269 = vld [vmem:[%s58 + $0x1f0] sm:$0xff]
      %v270 = vld [vmem:[%s58 + $0x1f8] sm:$0xff]
      %v271 = vld [vmem:[%s58 + $0x200] sm:$0xff]
      %v272 = vld [vmem:[%s58 + $0x208] sm:$0xff]
      %v273 = vld [vmem:[%s58 + $0x210] sm:$0xff]
      %v274 = vld [vmem:[%s58 + $0x218] sm:$0xff]
      %v275 = vld [vmem:[%s58 + $0x220] sm:$0xff]
      %v276 = vld [vmem:[%s58 + $0x228] sm:$0xff]
      %v277 = vld [vmem:[%s58 + $0x230] sm:$0xff]
      %v278 = vld [vmem:[%s58 + $0x238] sm:$0xff]
      %v279 = vld [vmem:[%s58 + $0x240] sm:$0xff]
      %v280 = vld [vmem:[%s58 + $0x248] sm:$0xff]
      %v281 = vld [vmem:[%s58 + $0x250] sm:$0xff]
      %v282 = vld [vmem:[%s58 + $0x258] sm:$0xff]
      %v283 = vld [vmem:[%s58 + $0x260] sm:$0xff]
      %v284 = vld [vmem:[%s58 + $0x268] sm:$0xff]
      %v285 = vld [vmem:[%s58 + $0x270] sm:$0xff]
      %v286 = vld [vmem:[%s58 + $0x278] sm:$0xff]
      %v287 = vld [vmem:[%s58 + $0x280] sm:$0xff]
      %v288 = vld [vmem:[%s58 + $0x288] sm:$0xff]
      %v289 = vld [vmem:[%s58 + $0x290] sm:$0xff]
      %v290 = vld [vmem:[%s58 + $0x298] sm:$0xff]
      %v291 = vld [vmem:[%s58 + $0x2a0] sm:$0xff]
      %v292 = vld [vmem:[%s58 + $0x2a8] sm:$0xff]
      %v293 = vld [vmem:[%s58 + $0x2b0] sm:$0xff]
      %v294 = vld [vmem:[%s58 + $0x2b8] sm:$0xff]
      %v295 = vld [vmem:[%s58 + $0x2c0] sm:$0xff]
      %v296 = vld [vmem:[%s58 + $0x2c8] sm:$0xff]
      %v297 = vld [vmem:[%s58 + $0x2d0] sm:$0xff]
      %v298 = vld [vmem:[%s58 + $0x2d8] sm:$0xff]
      %v299 = vld [vmem:[%s58 + $0x2e0] sm:$0xff]
      %v300 = vld [vmem:[%s58 + $0x2e8] sm:$0xff]
      %v301 = vld [vmem:[%s58 + $0x2f0] sm:$0xff]
      %v302 = vld [vmem:[%s58 + $0x2f8] sm:$0xff]
      %v303 = vld [vmem:[%s58 + $0x300] sm:$0xff]
      %v304 = vld [vmem:[%s58 + $0x308] sm:$0xff]
      %v305 = vld [vmem:[%s58 + $0x310] sm:$0xff]
      %v306 = vld [vmem:[%s58 + $0x318] sm:$0xff]
      %v307 = vld [vmem:[%s58 + $0x320] sm:$0xff]
      %v308 = vld [vmem:[%s58 + $0x328] sm:$0xff]
      %v309 = vld [vmem:[%s58 + $0x330] sm:$0xff]
      %v310 = vld [vmem:[%s58 + $0x338] sm:$0xff]
      %v311 = vld [vmem:[%s58 + $0x340] sm:$0xff]
      %v312 = vld [vmem:[%s58 + $0x348] sm:$0xff]
      %v313 = vld [vmem:[%s58 + $0x350] sm:$0xff]
      %v314 = vld [vmem:[%s58 + $0x358] sm:$0xff]
      %v315 = vld [vmem:[%s58 + $0x360] sm:$0xff]
      %v316 = vld [vmem:[%s58 + $0x368] sm:$0xff]
      %v317 = vld [vmem:[%s58 + $0x370] sm:$0xff]
      %v318 = vld [vmem:[%s58 + $0x378] sm:$0xff]
      %v319 = vld [vmem:[%s58 + $0x380] sm:$0xff]
      %v320 = vld [vmem:[%s58 + $0x388] sm:$0xff]
      %v321 = vld [vmem:[%s58 + $0x390] sm:$0xff]
      %v322 = vld [vmem:[%s58 + $0x398] sm:$0xff]
      %v323 = vld [vmem:[%s58 + $0x3a0] sm:$0xff]
      %v324 = vld [vmem:[%s58 + $0x3a8] sm:$0xff]
      %v325 = vld [vmem:[%s58 + $0x3b0] sm:$0xff]
      %v326 = vld [vmem:[%s58 + $0x3b8] sm:$0xff]
      %v327 = vld [vmem:[%s58 + $0x3c0] sm:$0xff]
      %v328 = vld [vmem:[%s58 + $0x3c8] sm:$0xff]
      %v329 = vld [vmem:[%s58 + $0x3d0] sm:$0xff]
      %v330 = vld [vmem:[%s58 + $0x3d8] sm:$0xff]
      %v331 = vld [vmem:[%s58 + $0x3e0] sm:$0xff]
      %v332 = vld [vmem:[%s58 + $0x3e8] sm:$0xff]
      %v333 = vld [vmem:[%s58 + $0x3f0] sm:$0xff]
      %v334 = vld [vmem:[%s58 + $0x3f8] sm:$0xff]
      %s335 = sshra.s32 %s142, 3
      %s336 = sand.u32 %s142, 7
      %s337 = smul.addr %s335, 4
      %s338 = scalar_lea.vmem %s3, %s337
      %v339 = vld [vmem:[%s338] sm:$0xf]
      %v340 = vld [vmem:[%s338 + $0x4] sm:$0xf]
      %v341 = vld [vmem:[%s338 + $0x8] sm:$0xf]
      %v342 = vld [vmem:[%s338 + $0xc] sm:$0xf]
      %v343 = vld [vmem:[%s338 + $0x10] sm:$0xf]
      %v344 = vld [vmem:[%s338 + $0x14] sm:$0xf]
      %v345 = vld [vmem:[%s338 + $0x18] sm:$0xf]
      %v346 = vld [vmem:[%s338 + $0x1c] sm:$0xf]
      %v347 = vld [vmem:[%s338 + $0x20] sm:$0xf]
      %v348 = vld [vmem:[%s338 + $0x24] sm:$0xf]
      %v349 = vld [vmem:[%s338 + $0x28] sm:$0xf]
      %v350 = vld [vmem:[%s338 + $0x2c] sm:$0xf]
      %v351 = vld [vmem:[%s338 + $0x30] sm:$0xf]
      %v352 = vld [vmem:[%s338 + $0x34] sm:$0xf]
      %v353 = vld [vmem:[%s338 + $0x38] sm:$0xf]
      %v354 = vld [vmem:[%s338 + $0x3c] sm:$0xf]
      %v355 = vld [vmem:[%s338 + $0x40] sm:$0xf]
      %v356 = vld [vmem:[%s338 + $0x44] sm:$0xf]
      %v357 = vld [vmem:[%s338 + $0x48] sm:$0xf]
      %v358 = vld [vmem:[%s338 + $0x4c] sm:$0xf]
      %v359 = vld [vmem:[%s338 + $0x50] sm:$0xf]
      %v360 = vld [vmem:[%s338 + $0x54] sm:$0xf]
      %v361 = vld [vmem:[%s338 + $0x58] sm:$0xf]
      %v362 = vld [vmem:[%s338 + $0x5c] sm:$0xf]
      %v363 = vld [vmem:[%s338 + $0x60] sm:$0xf]
      %v364 = vld [vmem:[%s338 + $0x64] sm:$0xf]
      %v365 = vld [vmem:[%s338 + $0x68] sm:$0xf]
      %v366 = vld [vmem:[%s338 + $0x6c] sm:$0xf]
      %v367 = vld [vmem:[%s338 + $0x70] sm:$0xf]
      %v368 = vld [vmem:[%s338 + $0x74] sm:$0xf]
      %v369 = vld [vmem:[%s338 + $0x78] sm:$0xf]
      %v370 = vld [vmem:[%s338 + $0x7c] sm:$0xf]
      %v371 = vld [vmem:[%s338 + $0x80] sm:$0xf]
      %v372 = vld [vmem:[%s338 + $0x84] sm:$0xf]
      %v373 = vld [vmem:[%s338 + $0x88] sm:$0xf]
      %v374 = vld [vmem:[%s338 + $0x8c] sm:$0xf]
      %v375 = vld [vmem:[%s338 + $0x90] sm:$0xf]
      %v376 = vld [vmem:[%s338 + $0x94] sm:$0xf]
      %v377 = vld [vmem:[%s338 + $0x98] sm:$0xf]
      %v378 = vld [vmem:[%s338 + $0x9c] sm:$0xf]
      %v379 = vld [vmem:[%s338 + $0xa0] sm:$0xf]
      %v380 = vld [vmem:[%s338 + $0xa4] sm:$0xf]
      %v381 = vld [vmem:[%s338 + $0xa8] sm:$0xf]
      %v382 = vld [vmem:[%s338 + $0xac] sm:$0xf]
      %v383 = vld [vmem:[%s338 + $0xb0] sm:$0xf]
      %v384 = vld [vmem:[%s338 + $0xb4] sm:$0xf]
      %v385 = vld [vmem:[%s338 + $0xb8] sm:$0xf]
      %v386 = vld [vmem:[%s338 + $0xbc] sm:$0xf]
      %v387 = vld [vmem:[%s338 + $0xc0] sm:$0xf]
      %v388 = vld [vmem:[%s338 + $0xc4] sm:$0xf]
      %v389 = vld [vmem:[%s338 + $0xc8] sm:$0xf]
      %v390 = vld [vmem:[%s338 + $0xcc] sm:$0xf]
      %v391 = vld [vmem:[%s338 + $0xd0] sm:$0xf]
      %v392 = vld [vmem:[%s338 + $0xd4] sm:$0xf]
      %v393 = vld [vmem:[%s338 + $0xd8] sm:$0xf]
      %v394 = vld [vmem:[%s338 + $0xdc] sm:$0xf]
      %v395 = vld [vmem:[%s338 + $0xe0] sm:$0xf]
      %v396 = vld [vmem:[%s338 + $0xe4] sm:$0xf]
      %v397 = vld [vmem:[%s338 + $0xe8] sm:$0xf]
      %v398 = vld [vmem:[%s338 + $0xec] sm:$0xf]
      %v399 = vld [vmem:[%s338 + $0xf0] sm:$0xf]
      %v400 = vld [vmem:[%s338 + $0xf4] sm:$0xf]
      %v401 = vld [vmem:[%s338 + $0xf8] sm:$0xf]
      %v402 = vld [vmem:[%s338 + $0xfc] sm:$0xf]
      %v531 = vunpack.c.l.b16 %v207
      %v532 = vunpack.c.h.b16 %v207
      %v533 = vunpack.c.l.b16 %v208
      %v534 = vunpack.c.h.b16 %v208
      %v535 = vunpack.c.l.b16 %v209
      %v536 = vunpack.c.h.b16 %v209
      %v537 = vunpack.c.l.b16 %v210
      %v538 = vunpack.c.h.b16 %v210
      %v539 = vunpack.c.l.b16 %v211
      %v540 = vunpack.c.h.b16 %v211
      %v541 = vunpack.c.l.b16 %v212
      %v542 = vunpack.c.h.b16 %v212
      %v543 = vunpack.c.l.b16 %v213
      %v544 = vunpack.c.h.b16 %v213
      %v545 = vunpack.c.l.b16 %v214
      %v546 = vunpack.c.h.b16 %v214
      %v547 = vunpack.c.l.b16 %v215
      %v548 = vunpack.c.h.b16 %v215
      %v549 = vunpack.c.l.b16 %v216
      %v550 = vunpack.c.h.b16 %v216
      %v551 = vunpack.c.l.b16 %v217
      %v552 = vunpack.c.h.b16 %v217
      %v553 = vunpack.c.l.b16 %v218
      %v554 = vunpack.c.h.b16 %v218
      %v555 = vunpack.c.l.b16 %v219
      %v556 = vunpack.c.h.b16 %v219
      %v557 = vunpack.c.l.b16 %v220
      %v558 = vunpack.c.h.b16 %v220
      %v559 = vunpack.c.l.b16 %v221
      %v560 = vunpack.c.h.b16 %v221
      %v561 = vunpack.c.l.b16 %v222
      %v562 = vunpack.c.h.b16 %v222
      %v563 = vunpack.c.l.b16 %v223
      %v564 = vunpack.c.h.b16 %v223
      %v565 = vunpack.c.l.b16 %v224
      %v566 = vunpack.c.h.b16 %v224
      %v567 = vunpack.c.l.b16 %v225
      %v568 = vunpack.c.h.b16 %v225
      %v569 = vunpack.c.l.b16 %v226
      %v570 = vunpack.c.h.b16 %v226
      %v571 = vunpack.c.l.b16 %v227
      %v572 = vunpack.c.h.b16 %v227
      %v573 = vunpack.c.l.b16 %v228
      %v574 = vunpack.c.h.b16 %v228
      %v575 = vunpack.c.l.b16 %v229
      %v576 = vunpack.c.h.b16 %v229
      %v577 = vunpack.c.l.b16 %v230
      %v578 = vunpack.c.h.b16 %v230
      %v579 = vunpack.c.l.b16 %v231
      %v580 = vunpack.c.h.b16 %v231
      %v581 = vunpack.c.l.b16 %v232
      %v582 = vunpack.c.h.b16 %v232
      %v583 = vunpack.c.l.b16 %v233
      %v584 = vunpack.c.h.b16 %v233
      %v585 = vunpack.c.l.b16 %v234
      %v586 = vunpack.c.h.b16 %v234
      %v587 = vunpack.c.l.b16 %v235
      %v588 = vunpack.c.h.b16 %v235
      %v589 = vunpack.c.l.b16 %v236
      %v590 = vunpack.c.h.b16 %v236
      %v591 = vunpack.c.l.b16 %v237
      %v592 = vunpack.c.h.b16 %v237
      %v593 = vunpack.c.l.b16 %v238
      %v594 = vunpack.c.h.b16 %v238
      %v595 = vunpack.c.l.b16 %v239
      %v596 = vunpack.c.h.b16 %v239
      %v597 = vunpack.c.l.b16 %v240
      %v598 = vunpack.c.h.b16 %v240
      %v599 = vunpack.c.l.b16 %v241
      %v600 = vunpack.c.h.b16 %v241
      %v601 = vunpack.c.l.b16 %v242
      %v602 = vunpack.c.h.b16 %v242
      %v603 = vunpack.c.l.b16 %v243
      %v604 = vunpack.c.h.b16 %v243
      %v605 = vunpack.c.l.b16 %v244
      %v606 = vunpack.c.h.b16 %v244
      %v607 = vunpack.c.l.b16 %v245
      %v608 = vunpack.c.h.b16 %v245
      %v609 = vunpack.c.l.b16 %v246
      %v610 = vunpack.c.h.b16 %v246
      %v611 = vunpack.c.l.b16 %v247
      %v612 = vunpack.c.h.b16 %v247
      %v613 = vunpack.c.l.b16 %v248
      %v614 = vunpack.c.h.b16 %v248
      %v615 = vunpack.c.l.b16 %v249
      %v616 = vunpack.c.h.b16 %v249
      %v617 = vunpack.c.l.b16 %v250
      %v618 = vunpack.c.h.b16 %v250
      %v619 = vunpack.c.l.b16 %v251
      %v620 = vunpack.c.h.b16 %v251
      %v621 = vunpack.c.l.b16 %v252
      %v622 = vunpack.c.h.b16 %v252
      %v623 = vunpack.c.l.b16 %v253
      %v624 = vunpack.c.h.b16 %v253
      %v625 = vunpack.c.l.b16 %v254
      %v626 = vunpack.c.h.b16 %v254
      %v627 = vunpack.c.l.b16 %v255
      %v628 = vunpack.c.h.b16 %v255
      %v629 = vunpack.c.l.b16 %v256
      %v630 = vunpack.c.h.b16 %v256
      %v631 = vunpack.c.l.b16 %v257
      %v632 = vunpack.c.h.b16 %v257
      %v633 = vunpack.c.l.b16 %v258
      %v634 = vunpack.c.h.b16 %v258
      %v635 = vunpack.c.l.b16 %v259
      %v636 = vunpack.c.h.b16 %v259
      %v637 = vunpack.c.l.b16 %v260
      %v638 = vunpack.c.h.b16 %v260
      %v639 = vunpack.c.l.b16 %v261
      %v640 = vunpack.c.h.b16 %v261
      %v641 = vunpack.c.l.b16 %v262
      %v642 = vunpack.c.h.b16 %v262
      %v643 = vunpack.c.l.b16 %v263
      %v644 = vunpack.c.h.b16 %v263
      %v645 = vunpack.c.l.b16 %v264
      %v646 = vunpack.c.h.b16 %v264
      %v647 = vunpack.c.l.b16 %v265
      %v648 = vunpack.c.h.b16 %v265
      %v649 = vunpack.c.l.b16 %v266
      %v650 = vunpack.c.h.b16 %v266
      %v651 = vunpack.c.l.b16 %v267
      %v652 = vunpack.c.h.b16 %v267
      %v653 = vunpack.c.l.b16 %v268
      %v654 = vunpack.c.h.b16 %v268
      %v655 = vunpack.c.l.b16 %v269
      %v656 = vunpack.c.h.b16 %v269
      %v657 = vunpack.c.l.b16 %v270
      %v658 = vunpack.c.h.b16 %v270
      %v659 = vunpack.c.l.b16 %v271
      %v660 = vunpack.c.h.b16 %v271
      %v661 = vunpack.c.l.b16 %v272
      %v662 = vunpack.c.h.b16 %v272
      %v663 = vunpack.c.l.b16 %v273
      %v664 = vunpack.c.h.b16 %v273
      %v665 = vunpack.c.l.b16 %v274
      %v666 = vunpack.c.h.b16 %v274
      %v667 = vunpack.c.l.b16 %v275
      %v668 = vunpack.c.h.b16 %v275
      %v669 = vunpack.c.l.b16 %v276
      %v670 = vunpack.c.h.b16 %v276
      %v671 = vunpack.c.l.b16 %v277
      %v672 = vunpack.c.h.b16 %v277
      %v673 = vunpack.c.l.b16 %v278
      %v674 = vunpack.c.h.b16 %v278
      %v675 = vunpack.c.l.b16 %v279
      %v676 = vunpack.c.h.b16 %v279
      %v677 = vunpack.c.l.b16 %v280
      %v678 = vunpack.c.h.b16 %v280
      %v679 = vunpack.c.l.b16 %v281
      %v680 = vunpack.c.h.b16 %v281
      %v681 = vunpack.c.l.b16 %v282
      %v682 = vunpack.c.h.b16 %v282
      %v683 = vunpack.c.l.b16 %v283
      %v684 = vunpack.c.h.b16 %v283
      %v685 = vunpack.c.l.b16 %v284
      %v686 = vunpack.c.h.b16 %v284
      %v687 = vunpack.c.l.b16 %v285
      %v688 = vunpack.c.h.b16 %v285
      %v689 = vunpack.c.l.b16 %v286
      %v690 = vunpack.c.h.b16 %v286
      %v691 = vunpack.c.l.b16 %v287
      %v692 = vunpack.c.h.b16 %v287
      %v693 = vunpack.c.l.b16 %v288
      %v694 = vunpack.c.h.b16 %v288
      %v695 = vunpack.c.l.b16 %v289
      %v696 = vunpack.c.h.b16 %v289
      %v697 = vunpack.c.l.b16 %v290
      %v698 = vunpack.c.h.b16 %v290
      %v699 = vunpack.c.l.b16 %v291
      %v700 = vunpack.c.h.b16 %v291
      %v701 = vunpack.c.l.b16 %v292
      %v702 = vunpack.c.h.b16 %v292
      %v703 = vunpack.c.l.b16 %v293
      %v704 = vunpack.c.h.b16 %v293
      %v705 = vunpack.c.l.b16 %v294
      %v706 = vunpack.c.h.b16 %v294
      %v707 = vunpack.c.l.b16 %v295
      %v708 = vunpack.c.h.b16 %v295
      %v709 = vunpack.c.l.b16 %v296
      %v710 = vunpack.c.h.b16 %v296
      %v711 = vunpack.c.l.b16 %v297
      %v712 = vunpack.c.h.b16 %v297
      %v713 = vunpack.c.l.b16 %v298
      %v714 = vunpack.c.h.b16 %v298
      %v715 = vunpack.c.l.b16 %v299
      %v716 = vunpack.c.h.b16 %v299
      %v717 = vunpack.c.l.b16 %v300
      %v718 = vunpack.c.h.b16 %v300
      %v719 = vunpack.c.l.b16 %v301
      %v720 = vunpack.c.h.b16 %v301
      %v721 = vunpack.c.l.b16 %v302
      %v722 = vunpack.c.h.b16 %v302
      %v723 = vunpack.c.l.b16 %v303
      %v724 = vunpack.c.h.b16 %v303
      %v725 = vunpack.c.l.b16 %v304
      %v726 = vunpack.c.h.b16 %v304
      %v727 = vunpack.c.l.b16 %v305
      %v728 = vunpack.c.h.b16 %v305
      %v729 = vunpack.c.l.b16 %v306
      %v730 = vunpack.c.h.b16 %v306
      %v731 = vunpack.c.l.b16 %v307
      %v732 = vunpack.c.h.b16 %v307
      %v733 = vunpack.c.l.b16 %v308
      %v734 = vunpack.c.h.b16 %v308
      %v735 = vunpack.c.l.b16 %v309
      %v736 = vunpack.c.h.b16 %v309
      %v737 = vunpack.c.l.b16 %v310
      %v738 = vunpack.c.h.b16 %v310
      %v739 = vunpack.c.l.b16 %v311
      %v740 = vunpack.c.h.b16 %v311
      %v741 = vunpack.c.l.b16 %v312
      %v742 = vunpack.c.h.b16 %v312
      %v743 = vunpack.c.l.b16 %v313
      %v744 = vunpack.c.h.b16 %v313
      %v745 = vunpack.c.l.b16 %v314
      %v746 = vunpack.c.h.b16 %v314
      %v747 = vunpack.c.l.b16 %v315
      %v748 = vunpack.c.h.b16 %v315
      %v749 = vunpack.c.l.b16 %v316
      %v750 = vunpack.c.h.b16 %v316
      %v751 = vunpack.c.l.b16 %v317
      %v752 = vunpack.c.h.b16 %v317
      %v753 = vunpack.c.l.b16 %v318
      %v754 = vunpack.c.h.b16 %v318
      %v755 = vunpack.c.l.b16 %v319
      %v756 = vunpack.c.h.b16 %v319
      %v757 = vunpack.c.l.b16 %v320
      %v758 = vunpack.c.h.b16 %v320
      %v759 = vunpack.c.l.b16 %v321
      %v760 = vunpack.c.h.b16 %v321
      %v761 = vunpack.c.l.b16 %v322
      %v762 = vunpack.c.h.b16 %v322
      %v763 = vunpack.c.l.b16 %v323
      %v764 = vunpack.c.h.b16 %v323
      %v765 = vunpack.c.l.b16 %v324
      %v766 = vunpack.c.h.b16 %v324
      %v767 = vunpack.c.l.b16 %v325
      %v768 = vunpack.c.h.b16 %v325
      %v769 = vunpack.c.l.b16 %v326
      %v770 = vunpack.c.h.b16 %v326
      %v771 = vunpack.c.l.b16 %v327
      %v772 = vunpack.c.h.b16 %v327
      %v773 = vunpack.c.l.b16 %v328
      %v774 = vunpack.c.h.b16 %v328
      %v775 = vunpack.c.l.b16 %v329
      %v776 = vunpack.c.h.b16 %v329
      %v777 = vunpack.c.l.b16 %v330
      %v778 = vunpack.c.h.b16 %v330
      %v779 = vunpack.c.l.b16 %v331
      %v780 = vunpack.c.h.b16 %v331
      %v781 = vunpack.c.l.b16 %v332
      %v782 = vunpack.c.h.b16 %v332
      %v783 = vunpack.c.l.b16 %v333
      %v784 = vunpack.c.h.b16 %v333
      %v785 = vunpack.c.l.b16 %v334
      %v786 = vunpack.c.h.b16 %v334
      %v787 = vpack.c.b16 %v535, %v531
      %v788 = vpack.c.b16 %v536, %v532
      %v789 = vpack.c.b16 %v537, %v533
      %v790 = vpack.c.b16 %v538, %v534
      %v791 = vpack.c.b16 %v543, %v539
      %v792 = vpack.c.b16 %v544, %v540
      %v793 = vpack.c.b16 %v545, %v541
      %v794 = vpack.c.b16 %v546, %v542
      %v795 = vpack.c.b16 %v551, %v547
      %v796 = vpack.c.b16 %v552, %v548
      %v797 = vpack.c.b16 %v553, %v549
      %v798 = vpack.c.b16 %v554, %v550
      %v799 = vpack.c.b16 %v559, %v555
      %v800 = vpack.c.b16 %v560, %v556
      %v801 = vpack.c.b16 %v561, %v557
      %v802 = vpack.c.b16 %v562, %v558
      %v803 = vpack.c.b16 %v567, %v563
      %v804 = vpack.c.b16 %v568, %v564
      %v805 = vpack.c.b16 %v569, %v565
      %v806 = vpack.c.b16 %v570, %v566
      %v807 = vpack.c.b16 %v575, %v571
      %v808 = vpack.c.b16 %v576, %v572
      %v809 = vpack.c.b16 %v577, %v573
      %v810 = vpack.c.b16 %v578, %v574
      %v811 = vpack.c.b16 %v583, %v579
      %v812 = vpack.c.b16 %v584, %v580
      %v813 = vpack.c.b16 %v585, %v581
      %v814 = vpack.c.b16 %v586, %v582
      %v815 = vpack.c.b16 %v591, %v587
      %v816 = vpack.c.b16 %v592, %v588
      %v817 = vpack.c.b16 %v593, %v589
      %v818 = vpack.c.b16 %v594, %v590
      %v819 = vpack.c.b16 %v599, %v595
      %v820 = vpack.c.b16 %v600, %v596
      %v821 = vpack.c.b16 %v601, %v597
      %v822 = vpack.c.b16 %v602, %v598
      %v823 = vpack.c.b16 %v607, %v603
      %v824 = vpack.c.b16 %v608, %v604
      %v825 = vpack.c.b16 %v609, %v605
      %v826 = vpack.c.b16 %v610, %v606
      %v827 = vpack.c.b16 %v615, %v611
      %v828 = vpack.c.b16 %v616, %v612
      %v829 = vpack.c.b16 %v617, %v613
      %v830 = vpack.c.b16 %v618, %v614
      %v831 = vpack.c.b16 %v623, %v619
      %v832 = vpack.c.b16 %v624, %v620
      %v833 = vpack.c.b16 %v625, %v621
      %v834 = vpack.c.b16 %v626, %v622
      %v835 = vpack.c.b16 %v631, %v627
      %v836 = vpack.c.b16 %v632, %v628
      %v837 = vpack.c.b16 %v633, %v629
      %v838 = vpack.c.b16 %v634, %v630
      %v839 = vpack.c.b16 %v639, %v635
      %v840 = vpack.c.b16 %v640, %v636
      %v841 = vpack.c.b16 %v641, %v637
      %v842 = vpack.c.b16 %v642, %v638
      %v843 = vpack.c.b16 %v647, %v643
      %v844 = vpack.c.b16 %v648, %v644
      %v845 = vpack.c.b16 %v649, %v645
      %v846 = vpack.c.b16 %v650, %v646
      %v847 = vpack.c.b16 %v655, %v651
      %v848 = vpack.c.b16 %v656, %v652
      %v849 = vpack.c.b16 %v657, %v653
      %v850 = vpack.c.b16 %v658, %v654
      %v851 = vpack.c.b16 %v663, %v659
      %v852 = vpack.c.b16 %v664, %v660
      %v853 = vpack.c.b16 %v665, %v661
      %v854 = vpack.c.b16 %v666, %v662
      %v855 = vpack.c.b16 %v671, %v667
      %v856 = vpack.c.b16 %v672, %v668
      %v857 = vpack.c.b16 %v673, %v669
      %v858 = vpack.c.b16 %v674, %v670
      %v859 = vpack.c.b16 %v679, %v675
      %v860 = vpack.c.b16 %v680, %v676
      %v861 = vpack.c.b16 %v681, %v677
      %v862 = vpack.c.b16 %v682, %v678
      %v863 = vpack.c.b16 %v687, %v683
      %v864 = vpack.c.b16 %v688, %v684
      %v865 = vpack.c.b16 %v689, %v685
      %v866 = vpack.c.b16 %v690, %v686
      %v867 = vpack.c.b16 %v695, %v691
      %v868 = vpack.c.b16 %v696, %v692
      %v869 = vpack.c.b16 %v697, %v693
      %v870 = vpack.c.b16 %v698, %v694
      %v871 = vpack.c.b16 %v703, %v699
      %v872 = vpack.c.b16 %v704, %v700
      %v873 = vpack.c.b16 %v705, %v701
      %v874 = vpack.c.b16 %v706, %v702
      %v875 = vpack.c.b16 %v711, %v707
      %v876 = vpack.c.b16 %v712, %v708
      %v877 = vpack.c.b16 %v713, %v709
      %v878 = vpack.c.b16 %v714, %v710
      %v879 = vpack.c.b16 %v719, %v715
      %v880 = vpack.c.b16 %v720, %v716
      %v881 = vpack.c.b16 %v721, %v717
      %v882 = vpack.c.b16 %v722, %v718
      %v883 = vpack.c.b16 %v727, %v723
      %v884 = vpack.c.b16 %v728, %v724
      %v885 = vpack.c.b16 %v729, %v725
      %v886 = vpack.c.b16 %v730, %v726
      %v887 = vpack.c.b16 %v735, %v731
      %v888 = vpack.c.b16 %v736, %v732
      %v889 = vpack.c.b16 %v737, %v733
      %v890 = vpack.c.b16 %v738, %v734
      %v891 = vpack.c.b16 %v743, %v739
      %v892 = vpack.c.b16 %v744, %v740
      %v893 = vpack.c.b16 %v745, %v741
      %v894 = vpack.c.b16 %v746, %v742
      %v895 = vpack.c.b16 %v751, %v747
      %v896 = vpack.c.b16 %v752, %v748
      %v897 = vpack.c.b16 %v753, %v749
      %v898 = vpack.c.b16 %v754, %v750
      %v899 = vpack.c.b16 %v759, %v755
      %v900 = vpack.c.b16 %v760, %v756
      %v901 = vpack.c.b16 %v761, %v757
      %v902 = vpack.c.b16 %v762, %v758
      %v903 = vpack.c.b16 %v767, %v763
      %v904 = vpack.c.b16 %v768, %v764
      %v905 = vpack.c.b16 %v769, %v765
      %v906 = vpack.c.b16 %v770, %v766
      %v907 = vpack.c.b16 %v775, %v771
      %v908 = vpack.c.b16 %v776, %v772
      %v909 = vpack.c.b16 %v777, %v773
      %v910 = vpack.c.b16 %v778, %v774
      %v911 = vpack.c.b16 %v783, %v779
      %v912 = vpack.c.b16 %v784, %v780
      %v913 = vpack.c.b16 %v785, %v781
      %v914 = vpack.c.b16 %v786, %v782
      %v1107 = vunpack.c.l.b16 %v339
      %v1108 = vunpack.c.l.b16 %v340
      %v1109 = vunpack.c.l.b16 %v341
      %v1110 = vunpack.c.l.b16 %v342
      %v1111 = vunpack.c.l.b16 %v343
      %v1112 = vunpack.c.l.b16 %v344
      %v1113 = vunpack.c.l.b16 %v345
      %v1114 = vunpack.c.l.b16 %v346
      %v1115 = vunpack.c.l.b16 %v347
      %v1116 = vunpack.c.l.b16 %v348
      %v1117 = vunpack.c.l.b16 %v349
      %v1118 = vunpack.c.l.b16 %v350
      %v1119 = vunpack.c.l.b16 %v351
      %v1120 = vunpack.c.l.b16 %v352
      %v1121 = vunpack.c.l.b16 %v353
      %v1122 = vunpack.c.l.b16 %v354
      %v1123 = vunpack.c.l.b16 %v355
      %v1124 = vunpack.c.l.b16 %v356
      %v1125 = vunpack.c.l.b16 %v357
      %v1126 = vunpack.c.l.b16 %v358
      %v1127 = vunpack.c.l.b16 %v359
      %v1128 = vunpack.c.l.b16 %v360
      %v1129 = vunpack.c.l.b16 %v361
      %v1130 = vunpack.c.l.b16 %v362
      %v1131 = vunpack.c.l.b16 %v363
      %v1132 = vunpack.c.l.b16 %v364
      %v1133 = vunpack.c.l.b16 %v365
      %v1134 = vunpack.c.l.b16 %v366
      %v1135 = vunpack.c.l.b16 %v367
      %v1136 = vunpack.c.l.b16 %v368
      %v1137 = vunpack.c.l.b16 %v369
      %v1138 = vunpack.c.l.b16 %v370
      %v1139 = vunpack.c.l.b16 %v371
      %v1140 = vunpack.c.l.b16 %v372
      %v1141 = vunpack.c.l.b16 %v373
      %v1142 = vunpack.c.l.b16 %v374
      %v1143 = vunpack.c.l.b16 %v375
      %v1144 = vunpack.c.l.b16 %v376
      %v1145 = vunpack.c.l.b16 %v377
      %v1146 = vunpack.c.l.b16 %v378
      %v1147 = vunpack.c.l.b16 %v379
      %v1148 = vunpack.c.l.b16 %v380
      %v1149 = vunpack.c.l.b16 %v381
      %v1150 = vunpack.c.l.b16 %v382
      %v1151 = vunpack.c.l.b16 %v383
      %v1152 = vunpack.c.l.b16 %v384
      %v1153 = vunpack.c.l.b16 %v385
      %v1154 = vunpack.c.l.b16 %v386
      %v1155 = vunpack.c.l.b16 %v387
      %v1156 = vunpack.c.l.b16 %v388
      %v1157 = vunpack.c.l.b16 %v389
      %v1158 = vunpack.c.l.b16 %v390
      %v1159 = vunpack.c.l.b16 %v391
      %v1160 = vunpack.c.l.b16 %v392
      %v1161 = vunpack.c.l.b16 %v393
      %v1162 = vunpack.c.l.b16 %v394
      %v1163 = vunpack.c.l.b16 %v395
      %v1164 = vunpack.c.l.b16 %v396
      %v1165 = vunpack.c.l.b16 %v397
      %v1166 = vunpack.c.l.b16 %v398
      %v1167 = vunpack.c.l.b16 %v399
      %v1168 = vunpack.c.l.b16 %v400
      %v1169 = vunpack.c.l.b16 %v401
      %v1170 = vunpack.c.l.b16 %v402
      %v1171 = vpack.c.b16 %v1108, %v1107
      %v1172 = vpack.c.b16 %v1110, %v1109
      %v1173 = vpack.c.b16 %v1112, %v1111
      %v1174 = vpack.c.b16 %v1114, %v1113
      %v1175 = vpack.c.b16 %v1116, %v1115
      %v1176 = vpack.c.b16 %v1118, %v1117
      %v1177 = vpack.c.b16 %v1120, %v1119
      %v1178 = vpack.c.b16 %v1122, %v1121
      %v1179 = vpack.c.b16 %v1124, %v1123
      %v1180 = vpack.c.b16 %v1126, %v1125
      %v1181 = vpack.c.b16 %v1128, %v1127
      %v1182 = vpack.c.b16 %v1130, %v1129
      %v1183 = vpack.c.b16 %v1132, %v1131
      %v1184 = vpack.c.b16 %v1134, %v1133
      %v1185 = vpack.c.b16 %v1136, %v1135
      %v1186 = vpack.c.b16 %v1138, %v1137
      %v1187 = vpack.c.b16 %v1140, %v1139
      %v1188 = vpack.c.b16 %v1142, %v1141
      %v1189 = vpack.c.b16 %v1144, %v1143
      %v1190 = vpack.c.b16 %v1146, %v1145
      %v1191 = vpack.c.b16 %v1148, %v1147
      %v1192 = vpack.c.b16 %v1150, %v1149
      %v1193 = vpack.c.b16 %v1152, %v1151
      %v1194 = vpack.c.b16 %v1154, %v1153
      %v1195 = vpack.c.b16 %v1156, %v1155
      %v1196 = vpack.c.b16 %v1158, %v1157
      %v1197 = vpack.c.b16 %v1160, %v1159
      %v1198 = vpack.c.b16 %v1162, %v1161
      %v1199 = vpack.c.b16 %v1164, %v1163
      %v1200 = vpack.c.b16 %v1166, %v1165
      %v1201 = vpack.c.b16 %v1168, %v1167
      %v1202 = vpack.c.b16 %v1170, %v1169
      %1235 = vmatprep.subr.bf16.mxu0 0
      %1236 = vmatpush1.bf16.msra.mxu0 %v1178
      %1237 = vmatprep.subr.bf16.mxu0 0
      %1238 = vmatpush1.bf16.msra.mxu0 %v1177
      %1239 = vmatprep.subr.bf16.mxu0 0
      %1240 = vmatpush1.bf16.msra.mxu0 %v1176
      %1241 = vmatprep.subr.bf16.mxu0 0
      %1242 = vmatpush1.bf16.msra.mxu0 %v1175
      %1243 = vmatprep.subr.bf16.mxu0 0
      %1244 = vmatpush1.bf16.msra.mxu0 %v1174
      %1245 = vmatprep.subr.bf16.mxu0 0
      %1246 = vmatpush1.bf16.msra.mxu0 %v1173
      %1247 = vmatprep.subr.bf16.mxu0 0
      %1248 = vmatpush1.bf16.msra.mxu0 %v1172
      %1249 = vmatprep.subr.bf16.mxu0 0
      %1250 = vmatpush1.bf16.msra.mxu0 %v1171
      %1251 = vmatprep.subr.bf16.mxu0 0
      %1252 = vmatpush2.bf16.msra.mxu0 %v1186
      %1253 = vmatprep.subr.bf16.mxu0 0
      %1254 = vmatpush2.bf16.msra.mxu0 %v1185
      %1255 = vmatprep.subr.bf16.mxu0 0
      %1256 = vmatpush2.bf16.msra.mxu0 %v1184
      %1257 = vmatprep.subr.bf16.mxu0 0
      %1258 = vmatpush2.bf16.msra.mxu0 %v1183
      %1259 = vmatprep.subr.bf16.mxu0 0
      %1260 = vmatpush2.bf16.msra.mxu0 %v1182
      %1261 = vmatprep.subr.bf16.mxu0 0
      %1262 = vmatpush2.bf16.msra.mxu0 %v1181
      %1263 = vmatprep.subr.bf16.mxu0 0
      %1264 = vmatpush2.bf16.msra.mxu0 %v1180
      %1265 = vmatprep.subr.bf16.mxu0 0
      %1266 = vmatpush2.bf16.msra.mxu0 %v1179
      %1267 = vmatprep.mubr.bf16.mxu0 %v788
      %1268 = vmatmul.mubr.bf16.gmra.mxu0 %v787
      %v1269 = vpop.f32.mrf.mxu0
      %v1270 = vadd.f32 0.0, %v1269
      %v1271 = vpop.f32.mrf.mxu0
      %v1272 = vpop.f32.mrf.mxu0
      %v1273 = vadd.f32 0.0, %v1272
      %v1274 = vpop.f32.mrf.mxu0
      %1275 = vmatprep.mubr.bf16.mxu0 %v792
      %1276 = vmatmul.mubr.bf16.gmra.mxu0 %v791
      %v1277 = vpop.f32.mrf.mxu0
      %v1278 = vadd.f32 0.0, %v1277
      %v1279 = vpop.f32.mrf.mxu0
      %v1280 = vpop.f32.mrf.mxu0
      %v1281 = vadd.f32 0.0, %v1280
      %v1282 = vpop.f32.mrf.mxu0
      %1283 = vmatprep.mubr.bf16.mxu0 %v796
      %1284 = vmatmul.mubr.bf16.gmra.mxu0 %v795
      %v1285 = vpop.f32.mrf.mxu0
      %v1286 = vadd.f32 0.0, %v1285
      %v1287 = vpop.f32.mrf.mxu0
      %v1288 = vpop.f32.mrf.mxu0
      %v1289 = vadd.f32 0.0, %v1288
      %v1290 = vpop.f32.mrf.mxu0
      %1291 = vmatprep.mubr.bf16.mxu0 %v800
      %1292 = vmatmul.mubr.bf16.gmra.mxu0 %v799
      %v1293 = vpop.f32.mrf.mxu0
      %v1294 = vadd.f32 0.0, %v1293
      %v1295 = vpop.f32.mrf.mxu0
      %v1296 = vpop.f32.mrf.mxu0
      %v1297 = vadd.f32 0.0, %v1296
      %v1298 = vpop.f32.mrf.mxu0
      %1299 = vmatprep.mubr.bf16.mxu0 %v804
      %1300 = vmatmul.mubr.bf16.gmra.mxu0 %v803
      %v1301 = vpop.f32.mrf.mxu0
      %v1302 = vadd.f32 0.0, %v1301
      %v1303 = vpop.f32.mrf.mxu0
      %v1304 = vpop.f32.mrf.mxu0
      %v1305 = vadd.f32 0.0, %v1304
      %v1306 = vpop.f32.mrf.mxu0
      %1307 = vmatprep.mubr.bf16.mxu0 %v808
      %1308 = vmatmul.mubr.bf16.gmra.mxu0 %v807
      %v1309 = vpop.f32.mrf.mxu0
      %v1310 = vadd.f32 0.0, %v1309
      %v1311 = vpop.f32.mrf.mxu0
      %v1312 = vpop.f32.mrf.mxu0
      %v1313 = vadd.f32 0.0, %v1312
      %v1314 = vpop.f32.mrf.mxu0
      %1315 = vmatprep.mubr.bf16.mxu0 %v812
      %1316 = vmatmul.mubr.bf16.gmra.mxu0 %v811
      %v1317 = vpop.f32.mrf.mxu0
      %v1318 = vadd.f32 0.0, %v1317
      %v1319 = vpop.f32.mrf.mxu0
      %v1320 = vpop.f32.mrf.mxu0
      %v1321 = vadd.f32 0.0, %v1320
      %v1322 = vpop.f32.mrf.mxu0
      %1323 = vmatprep.mubr.bf16.mxu0 %v816
      %1324 = vmatmul.mubr.bf16.gmra.mxu0 %v815
      %v1325 = vpop.f32.mrf.mxu0
      %v1326 = vadd.f32 0.0, %v1325
      %v1327 = vpop.f32.mrf.mxu0
      %v1328 = vpop.f32.mrf.mxu0
      %v1329 = vadd.f32 0.0, %v1328
      %v1330 = vpop.f32.mrf.mxu0
      %1331 = vmatprep.mubr.bf16.mxu0 %v820
      %1332 = vmatmul.mubr.bf16.gmra.mxu0 %v819
      %v1333 = vpop.f32.mrf.mxu0
      %v1334 = vadd.f32 0.0, %v1333
      %v1335 = vpop.f32.mrf.mxu0
      %v1336 = vpop.f32.mrf.mxu0
      %v1337 = vadd.f32 0.0, %v1336
      %v1338 = vpop.f32.mrf.mxu0
      %1339 = vmatprep.mubr.bf16.mxu0 %v824
      %1340 = vmatmul.mubr.bf16.gmra.mxu0 %v823
      %v1341 = vpop.f32.mrf.mxu0
      %v1342 = vadd.f32 0.0, %v1341
      %v1343 = vpop.f32.mrf.mxu0
      %v1344 = vpop.f32.mrf.mxu0
      %v1345 = vadd.f32 0.0, %v1344
      %v1346 = vpop.f32.mrf.mxu0
      %1347 = vmatprep.mubr.bf16.mxu0 %v828
      %1348 = vmatmul.mubr.bf16.gmra.mxu0 %v827
      %v1349 = vpop.f32.mrf.mxu0
      %v1350 = vadd.f32 0.0, %v1349
      %v1351 = vpop.f32.mrf.mxu0
      %v1352 = vpop.f32.mrf.mxu0
      %v1353 = vadd.f32 0.0, %v1352
      %v1354 = vpop.f32.mrf.mxu0
      %1355 = vmatprep.mubr.bf16.mxu0 %v832
      %1356 = vmatmul.mubr.bf16.gmra.mxu0 %v831
      %v1357 = vpop.f32.mrf.mxu0
      %v1358 = vadd.f32 0.0, %v1357
      %v1359 = vpop.f32.mrf.mxu0
      %v1360 = vpop.f32.mrf.mxu0
      %v1361 = vadd.f32 0.0, %v1360
      %v1362 = vpop.f32.mrf.mxu0
      %1363 = vmatprep.mubr.bf16.mxu0 %v836
      %1364 = vmatmul.mubr.bf16.gmra.mxu0 %v835
      %v1365 = vpop.f32.mrf.mxu0
      %v1366 = vadd.f32 0.0, %v1365
      %v1367 = vpop.f32.mrf.mxu0
      %v1368 = vpop.f32.mrf.mxu0
      %v1369 = vadd.f32 0.0, %v1368
      %v1370 = vpop.f32.mrf.mxu0
      %1371 = vmatprep.mubr.bf16.mxu0 %v840
      %1372 = vmatmul.mubr.bf16.gmra.mxu0 %v839
      %v1373 = vpop.f32.mrf.mxu0
      %v1374 = vadd.f32 0.0, %v1373
      %v1375 = vpop.f32.mrf.mxu0
      %v1376 = vpop.f32.mrf.mxu0
      %v1377 = vadd.f32 0.0, %v1376
      %v1378 = vpop.f32.mrf.mxu0
      %1379 = vmatprep.mubr.bf16.mxu0 %v844
      %1380 = vmatmul.mubr.bf16.gmra.mxu0 %v843
      %v1381 = vpop.f32.mrf.mxu0
      %v1382 = vadd.f32 0.0, %v1381
      %v1383 = vpop.f32.mrf.mxu0
      %v1384 = vpop.f32.mrf.mxu0
      %v1385 = vadd.f32 0.0, %v1384
      %v1386 = vpop.f32.mrf.mxu0
      %1387 = vmatprep.mubr.bf16.mxu0 %v848
      %1388 = vmatmul.mubr.bf16.gmra.mxu0 %v847
      %v1389 = vpop.f32.mrf.mxu0
      %v1390 = vadd.f32 0.0, %v1389
      %v1391 = vpop.f32.mrf.mxu0
      %v1392 = vpop.f32.mrf.mxu0
      %v1393 = vadd.f32 0.0, %v1392
      %v1394 = vpop.f32.mrf.mxu0
      %1395 = vmatprep.mubr.bf16.mxu0 %v852
      %1396 = vmatmul.mubr.bf16.gmra.mxu0 %v851
      %v1397 = vpop.f32.mrf.mxu0
      %v1398 = vadd.f32 0.0, %v1397
      %v1399 = vpop.f32.mrf.mxu0
      %v1400 = vpop.f32.mrf.mxu0
      %v1401 = vadd.f32 0.0, %v1400
      %v1402 = vpop.f32.mrf.mxu0
      %1403 = vmatprep.mubr.bf16.mxu0 %v856
      %1404 = vmatmul.mubr.bf16.gmra.mxu0 %v855
      %v1405 = vpop.f32.mrf.mxu0
      %v1406 = vadd.f32 0.0, %v1405
      %v1407 = vpop.f32.mrf.mxu0
      %v1408 = vpop.f32.mrf.mxu0
      %v1409 = vadd.f32 0.0, %v1408
      %v1410 = vpop.f32.mrf.mxu0
      %1411 = vmatprep.mubr.bf16.mxu0 %v860
      %1412 = vmatmul.mubr.bf16.gmra.mxu0 %v859
      %v1413 = vpop.f32.mrf.mxu0
      %v1414 = vadd.f32 0.0, %v1413
      %v1415 = vpop.f32.mrf.mxu0
      %v1416 = vpop.f32.mrf.mxu0
      %v1417 = vadd.f32 0.0, %v1416
      %v1418 = vpop.f32.mrf.mxu0
      %1419 = vmatprep.mubr.bf16.mxu0 %v864
      %1420 = vmatmul.mubr.bf16.gmra.mxu0 %v863
      %v1421 = vpop.f32.mrf.mxu0
      %v1422 = vadd.f32 0.0, %v1421
      %v1423 = vpop.f32.mrf.mxu0
      %v1424 = vpop.f32.mrf.mxu0
      %v1425 = vadd.f32 0.0, %v1424
      %v1426 = vpop.f32.mrf.mxu0
      %1427 = vmatprep.mubr.bf16.mxu0 %v868
      %1428 = vmatmul.mubr.bf16.gmra.mxu0 %v867
      %v1429 = vpop.f32.mrf.mxu0
      %v1430 = vadd.f32 0.0, %v1429
      %v1431 = vpop.f32.mrf.mxu0
      %v1432 = vpop.f32.mrf.mxu0
      %v1433 = vadd.f32 0.0, %v1432
      %v1434 = vpop.f32.mrf.mxu0
      %1435 = vmatprep.mubr.bf16.mxu0 %v872
      %1436 = vmatmul.mubr.bf16.gmra.mxu0 %v871
      %v1437 = vpop.f32.mrf.mxu0
      %v1438 = vadd.f32 0.0, %v1437
      %v1439 = vpop.f32.mrf.mxu0
      %v1440 = vpop.f32.mrf.mxu0
      %v1441 = vadd.f32 0.0, %v1440
      %v1442 = vpop.f32.mrf.mxu0
      %1443 = vmatprep.mubr.bf16.mxu0 %v876
      %1444 = vmatmul.mubr.bf16.gmra.mxu0 %v875
      %v1445 = vpop.f32.mrf.mxu0
      %v1446 = vadd.f32 0.0, %v1445
      %v1447 = vpop.f32.mrf.mxu0
      %v1448 = vpop.f32.mrf.mxu0
      %v1449 = vadd.f32 0.0, %v1448
      %v1450 = vpop.f32.mrf.mxu0
      %1451 = vmatprep.mubr.bf16.mxu0 %v880
      %1452 = vmatmul.mubr.bf16.gmra.mxu0 %v879
      %v1453 = vpop.f32.mrf.mxu0
      %v1454 = vadd.f32 0.0, %v1453
      %v1455 = vpop.f32.mrf.mxu0
      %v1456 = vpop.f32.mrf.mxu0
      %v1457 = vadd.f32 0.0, %v1456
      %v1458 = vpop.f32.mrf.mxu0
      %1459 = vmatprep.mubr.bf16.mxu0 %v884
      %1460 = vmatmul.mubr.bf16.gmra.mxu0 %v883
      %v1461 = vpop.f32.mrf.mxu0
      %v1462 = vadd.f32 0.0, %v1461
      %v1463 = vpop.f32.mrf.mxu0
      %v1464 = vpop.f32.mrf.mxu0
      %v1465 = vadd.f32 0.0, %v1464
      %v1466 = vpop.f32.mrf.mxu0
      %1467 = vmatprep.mubr.bf16.mxu0 %v888
      %1468 = vmatmul.mubr.bf16.gmra.mxu0 %v887
      %v1469 = vpop.f32.mrf.mxu0
      %v1470 = vadd.f32 0.0, %v1469
      %v1471 = vpop.f32.mrf.mxu0
      %v1472 = vpop.f32.mrf.mxu0
      %v1473 = vadd.f32 0.0, %v1472
      %v1474 = vpop.f32.mrf.mxu0
      %1475 = vmatprep.mubr.bf16.mxu0 %v892
      %1476 = vmatmul.mubr.bf16.gmra.mxu0 %v891
      %v1477 = vpop.f32.mrf.mxu0
      %v1478 = vadd.f32 0.0, %v1477
      %v1479 = vpop.f32.mrf.mxu0
      %v1480 = vpop.f32.mrf.mxu0
      %v1481 = vadd.f32 0.0, %v1480
      %v1482 = vpop.f32.mrf.mxu0
      %1483 = vmatprep.mubr.bf16.mxu0 %v896
      %1484 = vmatmul.mubr.bf16.gmra.mxu0 %v895
      %v1485 = vpop.f32.mrf.mxu0
      %v1486 = vadd.f32 0.0, %v1485
      %v1487 = vpop.f32.mrf.mxu0
      %v1488 = vpop.f32.mrf.mxu0
      %v1489 = vadd.f32 0.0, %v1488
      %v1490 = vpop.f32.mrf.mxu0
      %1491 = vmatprep.mubr.bf16.mxu0 %v900
      %1492 = vmatmul.mubr.bf16.gmra.mxu0 %v899
      %v1493 = vpop.f32.mrf.mxu0
      %v1494 = vadd.f32 0.0, %v1493
      %v1495 = vpop.f32.mrf.mxu0
      %v1496 = vpop.f32.mrf.mxu0
      %v1497 = vadd.f32 0.0, %v1496
      %v1498 = vpop.f32.mrf.mxu0
      %1499 = vmatprep.mubr.bf16.mxu0 %v904
      %1500 = vmatmul.mubr.bf16.gmra.mxu0 %v903
      %v1501 = vpop.f32.mrf.mxu0
      %v1502 = vadd.f32 0.0, %v1501
      %v1503 = vpop.f32.mrf.mxu0
      %v1504 = vpop.f32.mrf.mxu0
      %v1505 = vadd.f32 0.0, %v1504
      %v1506 = vpop.f32.mrf.mxu0
      %1507 = vmatprep.mubr.bf16.mxu0 %v908
      %1508 = vmatmul.mubr.bf16.gmra.mxu0 %v907
      %v1509 = vpop.f32.mrf.mxu0
      %v1510 = vadd.f32 0.0, %v1509
      %v1511 = vpop.f32.mrf.mxu0
      %v1512 = vpop.f32.mrf.mxu0
      %v1513 = vadd.f32 0.0, %v1512
      %v1514 = vpop.f32.mrf.mxu0
      %1515 = vmatprep.mubr.bf16.mxu0 %v912
      %1516 = vmatmul.mubr.bf16.gmra.mxu0 %v911
      %v1517 = vpop.f32.mrf.mxu0
      %v1518 = vadd.f32 0.0, %v1517
      %v1519 = vpop.f32.mrf.mxu0
      %v1520 = vpop.f32.mrf.mxu0
      %v1521 = vadd.f32 0.0, %v1520
      %v1522 = vpop.f32.mrf.mxu0
      %1523 = vdwg.mxu0
      %1524 = vmatprep.subr.bf16.mxu0 0
      %1525 = vmatpush1.bf16.msra.mxu0 %v1194
      %1526 = vmatprep.subr.bf16.mxu0 0
      %1527 = vmatpush1.bf16.msra.mxu0 %v1193
      %1528 = vmatprep.subr.bf16.mxu0 0
      %1529 = vmatpush1.bf16.msra.mxu0 %v1192
      %1530 = vmatprep.subr.bf16.mxu0 0
      %1531 = vmatpush1.bf16.msra.mxu0 %v1191
      %1532 = vmatprep.subr.bf16.mxu0 0
      %1533 = vmatpush1.bf16.msra.mxu0 %v1190
      %1534 = vmatprep.subr.bf16.mxu0 0
      %1535 = vmatpush1.bf16.msra.mxu0 %v1189
      %1536 = vmatprep.subr.bf16.mxu0 0
      %1537 = vmatpush1.bf16.msra.mxu0 %v1188
      %1538 = vmatprep.subr.bf16.mxu0 0
      %1539 = vmatpush1.bf16.msra.mxu0 %v1187
      %1540 = vmatprep.subr.bf16.mxu0 0
      %1541 = vmatpush2.bf16.msra.mxu0 %v1202
      %1542 = vmatprep.subr.bf16.mxu0 0
      %1543 = vmatpush2.bf16.msra.mxu0 %v1201
      %1544 = vmatprep.subr.bf16.mxu0 0
      %1545 = vmatpush2.bf16.msra.mxu0 %v1200
      %1546 = vmatprep.subr.bf16.mxu0 0
      %1547 = vmatpush2.bf16.msra.mxu0 %v1199
      %1548 = vmatprep.subr.bf16.mxu0 0
      %1549 = vmatpush2.bf16.msra.mxu0 %v1198
      %1550 = vmatprep.subr.bf16.mxu0 0
      %1551 = vmatpush2.bf16.msra.mxu0 %v1197
      %1552 = vmatprep.subr.bf16.mxu0 0
      %1553 = vmatpush2.bf16.msra.mxu0 %v1196
      %1554 = vmatprep.subr.bf16.mxu0 0
      %1555 = vmatpush2.bf16.msra.mxu0 %v1195
      %1556 = vmatprep.mubr.bf16.mxu0 %v790
      %1557 = vmatmul.mubr.bf16.gmra.mxu0 %v789
      %v1558 = vpop.f32.mrf.mxu0
      %v1559 = vadd.f32 %v1270, %v1558
      %v1560 = vpop.f32.mrf.mxu0
      %v1561 = vpop.f32.mrf.mxu0
      %v1562 = vadd.f32 %v1273, %v1561
      %v1563 = vpop.f32.mrf.mxu0
      %1564 = vmatprep.mubr.bf16.mxu0 %v794
      %1565 = vmatmul.mubr.bf16.gmra.mxu0 %v793
      %v1566 = vpop.f32.mrf.mxu0
      %v1567 = vadd.f32 %v1278, %v1566
      %v1568 = vpop.f32.mrf.mxu0
      %v1569 = vpop.f32.mrf.mxu0
      %v1570 = vadd.f32 %v1281, %v1569
      %v1571 = vpop.f32.mrf.mxu0
      %1572 = vmatprep.mubr.bf16.mxu0 %v798
      %1573 = vmatmul.mubr.bf16.gmra.mxu0 %v797
      %v1574 = vpop.f32.mrf.mxu0
      %v1575 = vadd.f32 %v1286, %v1574
      %v1576 = vpop.f32.mrf.mxu0
      %v1577 = vpop.f32.mrf.mxu0
      %v1578 = vadd.f32 %v1289, %v1577
      %v1579 = vpop.f32.mrf.mxu0
      %1580 = vmatprep.mubr.bf16.mxu0 %v802
      %1581 = vmatmul.mubr.bf16.gmra.mxu0 %v801
      %v1582 = vpop.f32.mrf.mxu0
      %v1583 = vadd.f32 %v1294, %v1582
      %v1584 = vpop.f32.mrf.mxu0
      %v1585 = vpop.f32.mrf.mxu0
      %v1586 = vadd.f32 %v1297, %v1585
      %v1587 = vpop.f32.mrf.mxu0
      %1588 = vmatprep.mubr.bf16.mxu0 %v806
      %1589 = vmatmul.mubr.bf16.gmra.mxu0 %v805
      %v1590 = vpop.f32.mrf.mxu0
      %v1591 = vadd.f32 %v1302, %v1590
      %v1592 = vpop.f32.mrf.mxu0
      %v1593 = vpop.f32.mrf.mxu0
      %v1594 = vadd.f32 %v1305, %v1593
      %v1595 = vpop.f32.mrf.mxu0
      %1596 = vmatprep.mubr.bf16.mxu0 %v810
      %1597 = vmatmul.mubr.bf16.gmra.mxu0 %v809
      %v1598 = vpop.f32.mrf.mxu0
      %v1599 = vadd.f32 %v1310, %v1598
      %v1600 = vpop.f32.mrf.mxu0
      %v1601 = vpop.f32.mrf.mxu0
      %v1602 = vadd.f32 %v1313, %v1601
      %v1603 = vpop.f32.mrf.mxu0
      %1604 = vmatprep.mubr.bf16.mxu0 %v814
      %1605 = vmatmul.mubr.bf16.gmra.mxu0 %v813
      %v1606 = vpop.f32.mrf.mxu0
      %v1607 = vadd.f32 %v1318, %v1606
      %v1608 = vpop.f32.mrf.mxu0
      %v1609 = vpop.f32.mrf.mxu0
      %v1610 = vadd.f32 %v1321, %v1609
      %v1611 = vpop.f32.mrf.mxu0
      %1612 = vmatprep.mubr.bf16.mxu0 %v818
      %1613 = vmatmul.mubr.bf16.gmra.mxu0 %v817
      %v1614 = vpop.f32.mrf.mxu0
      %v1615 = vadd.f32 %v1326, %v1614
      %v1616 = vpop.f32.mrf.mxu0
      %v1617 = vpop.f32.mrf.mxu0
      %v1618 = vadd.f32 %v1329, %v1617
      %v1619 = vpop.f32.mrf.mxu0
      %1620 = vmatprep.mubr.bf16.mxu0 %v822
      %1621 = vmatmul.mubr.bf16.gmra.mxu0 %v821
      %v1622 = vpop.f32.mrf.mxu0
      %v1623 = vadd.f32 %v1334, %v1622
      %v1624 = vpop.f32.mrf.mxu0
      %v1625 = vpop.f32.mrf.mxu0
      %v1626 = vadd.f32 %v1337, %v1625
      %v1627 = vpop.f32.mrf.mxu0
      %1628 = vmatprep.mubr.bf16.mxu0 %v826
      %1629 = vmatmul.mubr.bf16.gmra.mxu0 %v825
      %v1630 = vpop.f32.mrf.mxu0
      %v1631 = vadd.f32 %v1342, %v1630
      %v1632 = vpop.f32.mrf.mxu0
      %v1633 = vpop.f32.mrf.mxu0
      %v1634 = vadd.f32 %v1345, %v1633
      %v1635 = vpop.f32.mrf.mxu0
      %1636 = vmatprep.mubr.bf16.mxu0 %v830
      %1637 = vmatmul.mubr.bf16.gmra.mxu0 %v829
      %v1638 = vpop.f32.mrf.mxu0
      %v1639 = vadd.f32 %v1350, %v1638
      %v1640 = vpop.f32.mrf.mxu0
      %v1641 = vpop.f32.mrf.mxu0
      %v1642 = vadd.f32 %v1353, %v1641
      %v1643 = vpop.f32.mrf.mxu0
      %1644 = vmatprep.mubr.bf16.mxu0 %v834
      %1645 = vmatmul.mubr.bf16.gmra.mxu0 %v833
      %v1646 = vpop.f32.mrf.mxu0
      %v1647 = vadd.f32 %v1358, %v1646
      %v1648 = vpop.f32.mrf.mxu0
      %v1649 = vpop.f32.mrf.mxu0
      %v1650 = vadd.f32 %v1361, %v1649
      %v1651 = vpop.f32.mrf.mxu0
      %1652 = vmatprep.mubr.bf16.mxu0 %v838
      %1653 = vmatmul.mubr.bf16.gmra.mxu0 %v837
      %v1654 = vpop.f32.mrf.mxu0
      %v1655 = vadd.f32 %v1366, %v1654
      %v1656 = vpop.f32.mrf.mxu0
      %v1657 = vpop.f32.mrf.mxu0
      %v1658 = vadd.f32 %v1369, %v1657
      %v1659 = vpop.f32.mrf.mxu0
      %1660 = vmatprep.mubr.bf16.mxu0 %v842
      %1661 = vmatmul.mubr.bf16.gmra.mxu0 %v841
      %v1662 = vpop.f32.mrf.mxu0
      %v1663 = vadd.f32 %v1374, %v1662
      %v1664 = vpop.f32.mrf.mxu0
      %v1665 = vpop.f32.mrf.mxu0
      %v1666 = vadd.f32 %v1377, %v1665
      %v1667 = vpop.f32.mrf.mxu0
      %1668 = vmatprep.mubr.bf16.mxu0 %v846
      %1669 = vmatmul.mubr.bf16.gmra.mxu0 %v845
      %v1670 = vpop.f32.mrf.mxu0
      %v1671 = vadd.f32 %v1382, %v1670
      %v1672 = vpop.f32.mrf.mxu0
      %v1673 = vpop.f32.mrf.mxu0
      %v1674 = vadd.f32 %v1385, %v1673
      %v1675 = vpop.f32.mrf.mxu0
      %1676 = vmatprep.mubr.bf16.mxu0 %v850
      %1677 = vmatmul.mubr.bf16.gmra.mxu0 %v849
      %v1678 = vpop.f32.mrf.mxu0
      %v1679 = vadd.f32 %v1390, %v1678
      %v1680 = vpop.f32.mrf.mxu0
      %v1681 = vpop.f32.mrf.mxu0
      %v1682 = vadd.f32 %v1393, %v1681
      %v1683 = vpop.f32.mrf.mxu0
      %1684 = vmatprep.mubr.bf16.mxu0 %v854
      %1685 = vmatmul.mubr.bf16.gmra.mxu0 %v853
      %v1686 = vpop.f32.mrf.mxu0
      %v1687 = vadd.f32 %v1398, %v1686
      %v1688 = vpop.f32.mrf.mxu0
      %v1689 = vpop.f32.mrf.mxu0
      %v1690 = vadd.f32 %v1401, %v1689
      %v1691 = vpop.f32.mrf.mxu0
      %1692 = vmatprep.mubr.bf16.mxu0 %v858
      %1693 = vmatmul.mubr.bf16.gmra.mxu0 %v857
      %v1694 = vpop.f32.mrf.mxu0
      %v1695 = vadd.f32 %v1406, %v1694
      %v1696 = vpop.f32.mrf.mxu0
      %v1697 = vpop.f32.mrf.mxu0
      %v1698 = vadd.f32 %v1409, %v1697
      %v1699 = vpop.f32.mrf.mxu0
      %1700 = vmatprep.mubr.bf16.mxu0 %v862
      %1701 = vmatmul.mubr.bf16.gmra.mxu0 %v861
      %v1702 = vpop.f32.mrf.mxu0
      %v1703 = vadd.f32 %v1414, %v1702
      %v1704 = vpop.f32.mrf.mxu0
      %v1705 = vpop.f32.mrf.mxu0
      %v1706 = vadd.f32 %v1417, %v1705
      %v1707 = vpop.f32.mrf.mxu0
      %1708 = vmatprep.mubr.bf16.mxu0 %v866
      %1709 = vmatmul.mubr.bf16.gmra.mxu0 %v865
      %v1710 = vpop.f32.mrf.mxu0
      %v1711 = vadd.f32 %v1422, %v1710
      %v1712 = vpop.f32.mrf.mxu0
      %v1713 = vpop.f32.mrf.mxu0
      %v1714 = vadd.f32 %v1425, %v1713
      %v1715 = vpop.f32.mrf.mxu0
      %1716 = vmatprep.mubr.bf16.mxu0 %v870
      %1717 = vmatmul.mubr.bf16.gmra.mxu0 %v869
      %v1718 = vpop.f32.mrf.mxu0
      %v1719 = vadd.f32 %v1430, %v1718
      %v1720 = vpop.f32.mrf.mxu0
      %v1721 = vpop.f32.mrf.mxu0
      %v1722 = vadd.f32 %v1433, %v1721
      %v1723 = vpop.f32.mrf.mxu0
      %1724 = vmatprep.mubr.bf16.mxu0 %v874
      %1725 = vmatmul.mubr.bf16.gmra.mxu0 %v873
      %v1726 = vpop.f32.mrf.mxu0
      %v1727 = vadd.f32 %v1438, %v1726
      %v1728 = vpop.f32.mrf.mxu0
      %v1729 = vpop.f32.mrf.mxu0
      %v1730 = vadd.f32 %v1441, %v1729
      %v1731 = vpop.f32.mrf.mxu0
      %1732 = vmatprep.mubr.bf16.mxu0 %v878
      %1733 = vmatmul.mubr.bf16.gmra.mxu0 %v877
      %v1734 = vpop.f32.mrf.mxu0
      %v1735 = vadd.f32 %v1446, %v1734
      %v1736 = vpop.f32.mrf.mxu0
      %v1737 = vpop.f32.mrf.mxu0
      %v1738 = vadd.f32 %v1449, %v1737
      %v1739 = vpop.f32.mrf.mxu0
      %1740 = vmatprep.mubr.bf16.mxu0 %v882
      %1741 = vmatmul.mubr.bf16.gmra.mxu0 %v881
      %v1742 = vpop.f32.mrf.mxu0
      %v1743 = vadd.f32 %v1454, %v1742
      %v1744 = vpop.f32.mrf.mxu0
      %v1745 = vpop.f32.mrf.mxu0
      %v1746 = vadd.f32 %v1457, %v1745
      %v1747 = vpop.f32.mrf.mxu0
      %1748 = vmatprep.mubr.bf16.mxu0 %v886
      %1749 = vmatmul.mubr.bf16.gmra.mxu0 %v885
      %v1750 = vpop.f32.mrf.mxu0
      %v1751 = vadd.f32 %v1462, %v1750
      %v1752 = vpop.f32.mrf.mxu0
      %v1753 = vpop.f32.mrf.mxu0
      %v1754 = vadd.f32 %v1465, %v1753
      %v1755 = vpop.f32.mrf.mxu0
      %1756 = vmatprep.mubr.bf16.mxu0 %v890
      %1757 = vmatmul.mubr.bf16.gmra.mxu0 %v889
      %v1758 = vpop.f32.mrf.mxu0
      %v1759 = vadd.f32 %v1470, %v1758
      %v1760 = vpop.f32.mrf.mxu0
      %v1761 = vpop.f32.mrf.mxu0
      %v1762 = vadd.f32 %v1473, %v1761
      %v1763 = vpop.f32.mrf.mxu0
      %1764 = vmatprep.mubr.bf16.mxu0 %v894
      %1765 = vmatmul.mubr.bf16.gmra.mxu0 %v893
      %v1766 = vpop.f32.mrf.mxu0
      %v1767 = vadd.f32 %v1478, %v1766
      %v1768 = vpop.f32.mrf.mxu0
      %v1769 = vpop.f32.mrf.mxu0
      %v1770 = vadd.f32 %v1481, %v1769
      %v1771 = vpop.f32.mrf.mxu0
      %1772 = vmatprep.mubr.bf16.mxu0 %v898
      %1773 = vmatmul.mubr.bf16.gmra.mxu0 %v897
      %v1774 = vpop.f32.mrf.mxu0
      %v1775 = vadd.f32 %v1486, %v1774
      %v1776 = vpop.f32.mrf.mxu0
      %v1777 = vpop.f32.mrf.mxu0
      %v1778 = vadd.f32 %v1489, %v1777
      %v1779 = vpop.f32.mrf.mxu0
      %1780 = vmatprep.mubr.bf16.mxu0 %v902
      %1781 = vmatmul.mubr.bf16.gmra.mxu0 %v901
      %v1782 = vpop.f32.mrf.mxu0
      %v1783 = vadd.f32 %v1494, %v1782
      %v1784 = vpop.f32.mrf.mxu0
      %v1785 = vpop.f32.mrf.mxu0
      %v1786 = vadd.f32 %v1497, %v1785
      %v1787 = vpop.f32.mrf.mxu0
      %1788 = vmatprep.mubr.bf16.mxu0 %v906
      %1789 = vmatmul.mubr.bf16.gmra.mxu0 %v905
      %v1790 = vpop.f32.mrf.mxu0
      %v1791 = vadd.f32 %v1502, %v1790
      %v1792 = vpop.f32.mrf.mxu0
      %v1793 = vpop.f32.mrf.mxu0
      %v1794 = vadd.f32 %v1505, %v1793
      %v1795 = vpop.f32.mrf.mxu0
      %1796 = vmatprep.mubr.bf16.mxu0 %v910
      %1797 = vmatmul.mubr.bf16.gmra.mxu0 %v909
      %v1798 = vpop.f32.mrf.mxu0
      %v1799 = vadd.f32 %v1510, %v1798
      %v1800 = vpop.f32.mrf.mxu0
      %v1801 = vpop.f32.mrf.mxu0
      %v1802 = vadd.f32 %v1513, %v1801
      %v1803 = vpop.f32.mrf.mxu0
      %1804 = vmatprep.mubr.bf16.mxu0 %v914
      %1805 = vmatmul.mubr.bf16.gmra.mxu0 %v913
      %v1806 = vpop.f32.mrf.mxu0
      %v1807 = vadd.f32 %v1518, %v1806
      %v1808 = vpop.f32.mrf.mxu0
      %v1809 = vpop.f32.mrf.mxu0
      %v1810 = vadd.f32 %v1521, %v1809
      %v1811 = vpop.f32.mrf.mxu0
      %1812 = vdwg.mxu0
      %v1813 = vadd.f32 %v143, %v1559
      %v1814 = vadd.f32 %v144, %v1562
      %v1815 = vadd.f32 %v145, %v1567
      %v1816 = vadd.f32 %v146, %v1570
      %v1817 = vadd.f32 %v147, %v1575
      %v1818 = vadd.f32 %v148, %v1578
      %v1819 = vadd.f32 %v149, %v1583
      %v1820 = vadd.f32 %v150, %v1586
      %v1821 = vadd.f32 %v151, %v1591
      %v1822 = vadd.f32 %v152, %v1594
      %v1823 = vadd.f32 %v153, %v1599
      %v1824 = vadd.f32 %v154, %v1602
      %v1825 = vadd.f32 %v155, %v1607
      %v1826 = vadd.f32 %v156, %v1610
      %v1827 = vadd.f32 %v157, %v1615
      %v1828 = vadd.f32 %v158, %v1618
      %v1829 = vadd.f32 %v159, %v1623
      %v1830 = vadd.f32 %v160, %v1626
      %v1831 = vadd.f32 %v161, %v1631
      %v1832 = vadd.f32 %v162, %v1634
      %v1833 = vadd.f32 %v163, %v1639
      %v1834 = vadd.f32 %v164, %v1642
      %v1835 = vadd.f32 %v165, %v1647
      %v1836 = vadd.f32 %v166, %v1650
      %v1837 = vadd.f32 %v167, %v1655
      %v1838 = vadd.f32 %v168, %v1658
      %v1839 = vadd.f32 %v169, %v1663
      %v1840 = vadd.f32 %v170, %v1666
      %v1841 = vadd.f32 %v171, %v1671
      %v1842 = vadd.f32 %v172, %v1674
      %v1843 = vadd.f32 %v173, %v1679
      %v1844 = vadd.f32 %v174, %v1682
      %v1845 = vadd.f32 %v175, %v1687
      %v1846 = vadd.f32 %v176, %v1690
      %v1847 = vadd.f32 %v177, %v1695
      %v1848 = vadd.f32 %v178, %v1698
      %v1849 = vadd.f32 %v179, %v1703
      %v1850 = vadd.f32 %v180, %v1706
      %v1851 = vadd.f32 %v181, %v1711
      %v1852 = vadd.f32 %v182, %v1714
      %v1853 = vadd.f32 %v183, %v1719
      %v1854 = vadd.f32 %v184, %v1722
      %v1855 = vadd.f32 %v185, %v1727
      %v1856 = vadd.f32 %v186, %v1730
      %v1857 = vadd.f32 %v187, %v1735
      %v1858 = vadd.f32 %v188, %v1738
      %v1859 = vadd.f32 %v189, %v1743
      %v1860 = vadd.f32 %v190, %v1746
      %v1861 = vadd.f32 %v191, %v1751
      %v1862 = vadd.f32 %v192, %v1754
      %v1863 = vadd.f32 %v193, %v1759
      %v1864 = vadd.f32 %v194, %v1762
      %v1865 = vadd.f32 %v195, %v1767
      %v1866 = vadd.f32 %v196, %v1770
      %v1867 = vadd.f32 %v197, %v1775
      %v1868 = vadd.f32 %v198, %v1778
      %v1869 = vadd.f32 %v199, %v1783
      %v1870 = vadd.f32 %v200, %v1786
      %v1871 = vadd.f32 %v201, %v1791
      %v1872 = vadd.f32 %v202, %v1794
      %v1873 = vadd.f32 %v203, %v1799
      %v1874 = vadd.f32 %v204, %v1802
      %v1875 = vadd.f32 %v205, %v1807
      %v1876 = vadd.f32 %v206, %v1810
      %1877 = vst [vmem:[#allocation2] sm:$0xff] %v1813
      %1878 = vst [vmem:[#allocation2 + $0x8] sm:$0xff] %v1814
      %1879 = vst [vmem:[#allocation2 + $0x10] sm:$0xff] %v1815
      %1880 = vst [vmem:[#allocation2 + $0x18] sm:$0xff] %v1816
      %1881 = vst [vmem:[#allocation2 + $0x20] sm:$0xff] %v1817
      %1882 = vst [vmem:[#allocation2 + $0x28] sm:$0xff] %v1818
      %1883 = vst [vmem:[#allocation2 + $0x30] sm:$0xff] %v1819
      %1884 = vst [vmem:[#allocation2 + $0x38] sm:$0xff] %v1820
      %1885 = vst [vmem:[#allocation2 + $0x40] sm:$0xff] %v1821
      %1886 = vst [vmem:[#allocation2 + $0x48] sm:$0xff] %v1822
      %1887 = vst [vmem:[#allocation2 + $0x50] sm:$0xff] %v1823
      %1888 = vst [vmem:[#allocation2 + $0x58] sm:$0xff] %v1824
      %1889 = vst [vmem:[#allocation2 + $0x60] sm:$0xff] %v1825
      %1890 = vst [vmem:[#allocation2 + $0x68] sm:$0xff] %v1826
      %1891 = vst [vmem:[#allocation2 + $0x70] sm:$0xff] %v1827
      %1892 = vst [vmem:[#allocation2 + $0x78] sm:$0xff] %v1828
      %1893 = vst [vmem:[#allocation2 + $0x80] sm:$0xff] %v1829
      %1894 = vst [vmem:[#allocation2 + $0x88] sm:$0xff] %v1830
      %1895 = vst [vmem:[#allocation2 + $0x90] sm:$0xff] %v1831
      %1896 = vst [vmem:[#allocation2 + $0x98] sm:$0xff] %v1832
      %1897 = vst [vmem:[#allocation2 + $0xa0] sm:$0xff] %v1833
      %1898 = vst [vmem:[#allocation2 + $0xa8] sm:$0xff] %v1834
      %1899 = vst [vmem:[#allocation2 + $0xb0] sm:$0xff] %v1835
      %1900 = vst [vmem:[#allocation2 + $0xb8] sm:$0xff] %v1836
      %1901 = vst [vmem:[#allocation2 + $0xc0] sm:$0xff] %v1837
      %1902 = vst [vmem:[#allocation2 + $0xc8] sm:$0xff] %v1838
      %1903 = vst [vmem:[#allocation2 + $0xd0] sm:$0xff] %v1839
      %1904 = vst [vmem:[#allocation2 + $0xd8] sm:$0xff] %v1840
      %1905 = vst [vmem:[#allocation2 + $0xe0] sm:$0xff] %v1841
      %1906 = vst [vmem:[#allocation2 + $0xe8] sm:$0xff] %v1842
      %1907 = vst [vmem:[#allocation2 + $0xf0] sm:$0xff] %v1843
      %1908 = vst [vmem:[#allocation2 + $0xf8] sm:$0xff] %v1844
      %1909 = vst [vmem:[#allocation2 + $0x100] sm:$0xff] %v1845
      %1910 = vst [vmem:[#allocation2 + $0x108] sm:$0xff] %v1846
      %1911 = vst [vmem:[#allocation2 + $0x110] sm:$0xff] %v1847
      %1912 = vst [vmem:[#allocation2 + $0x118] sm:$0xff] %v1848
      %1913 = vst [vmem:[#allocation2 + $0x120] sm:$0xff] %v1849
      %1914 = vst [vmem:[#allocation2 + $0x128] sm:$0xff] %v1850
      %1915 = vst [vmem:[#allocation2 + $0x130] sm:$0xff] %v1851
      %1916 = vst [vmem:[#allocation2 + $0x138] sm:$0xff] %v1852
      %1917 = vst [vmem:[#allocation2 + $0x140] sm:$0xff] %v1853
      %1918 = vst [vmem:[#allocation2 + $0x148] sm:$0xff] %v1854
      %1919 = vst [vmem:[#allocation2 + $0x150] sm:$0xff] %v1855
      %1920 = vst [vmem:[#allocation2 + $0x158] sm:$0xff] %v1856
      %1921 = vst [vmem:[#allocation2 + $0x160] sm:$0xff] %v1857
      %1922 = vst [vmem:[#allocation2 + $0x168] sm:$0xff] %v1858
      %1923 = vst [vmem:[#allocation2 + $0x170] sm:$0xff] %v1859
      %1924 = vst [vmem:[#allocation2 + $0x178] sm:$0xff] %v1860
      %1925 = vst [vmem:[#allocation2 + $0x180] sm:$0xff] %v1861
      %1926 = vst [vmem:[#allocation2 + $0x188] sm:$0xff] %v1862
      %1927 = vst [vmem:[#allocation2 + $0x190] sm:$0xff] %v1863
      %1928 = vst [vmem:[#allocation2 + $0x198] sm:$0xff] %v1864
      %1929 = vst [vmem:[#allocation2 + $0x1a0] sm:$0xff] %v1865
      %1930 = vst [vmem:[#allocation2 + $0x1a8] sm:$0xff] %v1866
      %1931 = vst [vmem:[#allocation2 + $0x1b0] sm:$0xff] %v1867
      %1932 = vst [vmem:[#allocation2 + $0x1b8] sm:$0xff] %v1868
      %1933 = vst [vmem:[#allocation2 + $0x1c0] sm:$0xff] %v1869
      %1934 = vst [vmem:[#allocation2 + $0x1c8] sm:$0xff] %v1870
      %1935 = vst [vmem:[#allocation2 + $0x1d0] sm:$0xff] %v1871
      %1936 = vst [vmem:[#allocation2 + $0x1d8] sm:$0xff] %v1872
      %1937 = vst [vmem:[#allocation2 + $0x1e0] sm:$0xff] %v1873
      %1938 = vst [vmem:[#allocation2 + $0x1e8] sm:$0xff] %v1874
      %1939 = vst [vmem:[#allocation2 + $0x1f0] sm:$0xff] %v1875
      %1940 = vst [vmem:[#allocation2 + $0x1f8] sm:$0xff] %v1876
    $region29: #{ngcf_forward.4} parent=1 // pred_fallthru
      _
    // Predicated region
    $region30: #{ngcf_forward.4} parent=1 // pred_check
      %p1941 = pneg %p65
    $region31: #{ngcf_forward.4} parent=1 // pred_check_branch
      %1943 = sbr.rel (%p1941) target = $region33
    $region32: #{ngcf_forward.4} parent=1 // pred_region
      %v1944 = vld [vmem:[#allocation2] sm:$0xff]
      %v1945 = vld [vmem:[#allocation2 + $0x8] sm:$0xff]
      %v1946 = vld [vmem:[#allocation2 + $0x10] sm:$0xff]
      %v1947 = vld [vmem:[#allocation2 + $0x18] sm:$0xff]
      %v1948 = vld [vmem:[#allocation2 + $0x20] sm:$0xff]
      %v1949 = vld [vmem:[#allocation2 + $0x28] sm:$0xff]
      %v1950 = vld [vmem:[#allocation2 + $0x30] sm:$0xff]
      %v1951 = vld [vmem:[#allocation2 + $0x38] sm:$0xff]
      %v1952 = vld [vmem:[#allocation2 + $0x40] sm:$0xff]
      %v1953 = vld [vmem:[#allocation2 + $0x48] sm:$0xff]
      %v1954 = vld [vmem:[#allocation2 + $0x50] sm:$0xff]
      %v1955 = vld [vmem:[#allocation2 + $0x58] sm:$0xff]
      %v1956 = vld [vmem:[#allocation2 + $0x60] sm:$0xff]
      %v1957 = vld [vmem:[#allocation2 + $0x68] sm:$0xff]
      %v1958 = vld [vmem:[#allocation2 + $0x70] sm:$0xff]
      %v1959 = vld [vmem:[#allocation2 + $0x78] sm:$0xff]
      %v1960 = vld [vmem:[#allocation2 + $0x80] sm:$0xff]
      %v1961 = vld [vmem:[#allocation2 + $0x88] sm:$0xff]
      %v1962 = vld [vmem:[#allocation2 + $0x90] sm:$0xff]
      %v1963 = vld [vmem:[#allocation2 + $0x98] sm:$0xff]
      %v1964 = vld [vmem:[#allocation2 + $0xa0] sm:$0xff]
      %v1965 = vld [vmem:[#allocation2 + $0xa8] sm:$0xff]
      %v1966 = vld [vmem:[#allocation2 + $0xb0] sm:$0xff]
      %v1967 = vld [vmem:[#allocation2 + $0xb8] sm:$0xff]
      %v1968 = vld [vmem:[#allocation2 + $0xc0] sm:$0xff]
      %v1969 = vld [vmem:[#allocation2 + $0xc8] sm:$0xff]
      %v1970 = vld [vmem:[#allocation2 + $0xd0] sm:$0xff]
      %v1971 = vld [vmem:[#allocation2 + $0xd8] sm:$0xff]
      %v1972 = vld [vmem:[#allocation2 + $0xe0] sm:$0xff]
      %v1973 = vld [vmem:[#allocation2 + $0xe8] sm:$0xff]
      %v1974 = vld [vmem:[#allocation2 + $0xf0] sm:$0xff]
      %v1975 = vld [vmem:[#allocation2 + $0xf8] sm:$0xff]
      %v1976 = vld [vmem:[#allocation2 + $0x100] sm:$0xff]
      %v1977 = vld [vmem:[#allocation2 + $0x108] sm:$0xff]
      %v1978 = vld [vmem:[#allocation2 + $0x110] sm:$0xff]
      %v1979 = vld [vmem:[#allocation2 + $0x118] sm:$0xff]
      %v1980 = vld [vmem:[#allocation2 + $0x120] sm:$0xff]
      %v1981 = vld [vmem:[#allocation2 + $0x128] sm:$0xff]
      %v1982 = vld [vmem:[#allocation2 + $0x130] sm:$0xff]
      %v1983 = vld [vmem:[#allocation2 + $0x138] sm:$0xff]
      %v1984 = vld [vmem:[#allocation2 + $0x140] sm:$0xff]
      %v1985 = vld [vmem:[#allocation2 + $0x148] sm:$0xff]
      %v1986 = vld [vmem:[#allocation2 + $0x150] sm:$0xff]
      %v1987 = vld [vmem:[#allocation2 + $0x158] sm:$0xff]
      %v1988 = vld [vmem:[#allocation2 + $0x160] sm:$0xff]
      %v1989 = vld [vmem:[#allocation2 + $0x168] sm:$0xff]
      %v1990 = vld [vmem:[#allocation2 + $0x170] sm:$0xff]
      %v1991 = vld [vmem:[#allocation2 + $0x178] sm:$0xff]
      %v1992 = vld [vmem:[#allocation2 + $0x180] sm:$0xff]
      %v1993 = vld [vmem:[#allocation2 + $0x188] sm:$0xff]
      %v1994 = vld [vmem:[#allocation2 + $0x190] sm:$0xff]
      %v1995 = vld [vmem:[#allocation2 + $0x198] sm:$0xff]
      %v1996 = vld [vmem:[#allocation2 + $0x1a0] sm:$0xff]
      %v1997 = vld [vmem:[#allocation2 + $0x1a8] sm:$0xff]
      %v1998 = vld [vmem:[#allocation2 + $0x1b0] sm:$0xff]
      %v1999 = vld [vmem:[#allocation2 + $0x1b8] sm:$0xff]
      %v2000 = vld [vmem:[#allocation2 + $0x1c0] sm:$0xff]
      %v2001 = vld [vmem:[#allocation2 + $0x1c8] sm:$0xff]
      %v2002 = vld [vmem:[#allocation2 + $0x1d0] sm:$0xff]
      %v2003 = vld [vmem:[#allocation2 + $0x1d8] sm:$0xff]
      %v2004 = vld [vmem:[#allocation2 + $0x1e0] sm:$0xff]
      %v2005 = vld [vmem:[#allocation2 + $0x1e8] sm:$0xff]
      %v2006 = vld [vmem:[#allocation2 + $0x1f0] sm:$0xff]
      %v2007 = vld [vmem:[#allocation2 + $0x1f8] sm:$0xff]
      %s2008 = smul.u32 0, 512
      %s2009 = sshra.s32 %s2008, 3
      %s2010 = sand.u32 %s2008, 7
      %s2011 = smul.addr %s2009, 4
      %s2012 = scalar_lea.vmem %s3, %s2011
      %v2013 = vld [vmem:[%s2012] sm:$0xf]
      %v2014 = vld [vmem:[%s2012 + $0x4] sm:$0xf]
      %v2015 = vld [vmem:[%s2012 + $0x8] sm:$0xf]
      %v2016 = vld [vmem:[%s2012 + $0xc] sm:$0xf]
      %v2017 = vld [vmem:[%s2012 + $0x10] sm:$0xf]
      %v2018 = vld [vmem:[%s2012 + $0x14] sm:$0xf]
      %v2019 = vld [vmem:[%s2012 + $0x18] sm:$0xf]
      %v2020 = vld [vmem:[%s2012 + $0x1c] sm:$0xf]
      %v2021 = vld [vmem:[%s2012 + $0x20] sm:$0xf]
      %v2022 = vld [vmem:[%s2012 + $0x24] sm:$0xf]
      %v2023 = vld [vmem:[%s2012 + $0x28] sm:$0xf]
      %v2024 = vld [vmem:[%s2012 + $0x2c] sm:$0xf]
      %v2025 = vld [vmem:[%s2012 + $0x30] sm:$0xf]
      %v2026 = vld [vmem:[%s2012 + $0x34] sm:$0xf]
      %v2027 = vld [vmem:[%s2012 + $0x38] sm:$0xf]
      %v2028 = vld [vmem:[%s2012 + $0x3c] sm:$0xf]
      %v2029 = vld [vmem:[%s2012 + $0x40] sm:$0xf]
      %v2030 = vld [vmem:[%s2012 + $0x44] sm:$0xf]
      %v2031 = vld [vmem:[%s2012 + $0x48] sm:$0xf]
      %v2032 = vld [vmem:[%s2012 + $0x4c] sm:$0xf]
      %v2033 = vld [vmem:[%s2012 + $0x50] sm:$0xf]
      %v2034 = vld [vmem:[%s2012 + $0x54] sm:$0xf]
      %v2035 = vld [vmem:[%s2012 + $0x58] sm:$0xf]
      %v2036 = vld [vmem:[%s2012 + $0x5c] sm:$0xf]
      %v2037 = vld [vmem:[%s2012 + $0x60] sm:$0xf]
      %v2038 = vld [vmem:[%s2012 + $0x64] sm:$0xf]
      %v2039 = vld [vmem:[%s2012 + $0x68] sm:$0xf]
      %v2040 = vld [vmem:[%s2012 + $0x6c] sm:$0xf]
      %v2041 = vld [vmem:[%s2012 + $0x70] sm:$0xf]
      %v2042 = vld [vmem:[%s2012 + $0x74] sm:$0xf]
      %v2043 = vld [vmem:[%s2012 + $0x78] sm:$0xf]
      %v2044 = vld [vmem:[%s2012 + $0x7c] sm:$0xf]
      %v2045 = vld [vmem:[%s2012 + $0x80] sm:$0xf]
      %v2046 = vld [vmem:[%s2012 + $0x84] sm:$0xf]
      %v2047 = vld [vmem:[%s2012 + $0x88] sm:$0xf]
      %v2048 = vld [vmem:[%s2012 + $0x8c] sm:$0xf]
      %v2049 = vld [vmem:[%s2012 + $0x90] sm:$0xf]
      %v2050 = vld [vmem:[%s2012 + $0x94] sm:$0xf]
      %v2051 = vld [vmem:[%s2012 + $0x98] sm:$0xf]
      %v2052 = vld [vmem:[%s2012 + $0x9c] sm:$0xf]
      %v2053 = vld [vmem:[%s2012 + $0xa0] sm:$0xf]
      %v2054 = vld [vmem:[%s2012 + $0xa4] sm:$0xf]
      %v2055 = vld [vmem:[%s2012 + $0xa8] sm:$0xf]
      %v2056 = vld [vmem:[%s2012 + $0xac] sm:$0xf]
      %v2057 = vld [vmem:[%s2012 + $0xb0] sm:$0xf]
      %v2058 = vld [vmem:[%s2012 + $0xb4] sm:$0xf]
      %v2059 = vld [vmem:[%s2012 + $0xb8] sm:$0xf]
      %v2060 = vld [vmem:[%s2012 + $0xbc] sm:$0xf]
      %v2061 = vld [vmem:[%s2012 + $0xc0] sm:$0xf]
      %v2062 = vld [vmem:[%s2012 + $0xc4] sm:$0xf]
      %v2063 = vld [vmem:[%s2012 + $0xc8] sm:$0xf]
      %v2064 = vld [vmem:[%s2012 + $0xcc] sm:$0xf]
      %v2065 = vld [vmem:[%s2012 + $0xd0] sm:$0xf]
      %v2066 = vld [vmem:[%s2012 + $0xd4] sm:$0xf]
      %v2067 = vld [vmem:[%s2012 + $0xd8] sm:$0xf]
      %v2068 = vld [vmem:[%s2012 + $0xdc] sm:$0xf]
      %v2069 = vld [vmem:[%s2012 + $0xe0] sm:$0xf]
      %v2070 = vld [vmem:[%s2012 + $0xe4] sm:$0xf]
      %v2071 = vld [vmem:[%s2012 + $0xe8] sm:$0xf]
      %v2072 = vld [vmem:[%s2012 + $0xec] sm:$0xf]
      %v2073 = vld [vmem:[%s2012 + $0xf0] sm:$0xf]
      %v2074 = vld [vmem:[%s2012 + $0xf4] sm:$0xf]
      %v2075 = vld [vmem:[%s2012 + $0xf8] sm:$0xf]
      %v2076 = vld [vmem:[%s2012 + $0xfc] sm:$0xf]
      %v2077 = vunpack.c.l.bf16 %v2013
      %v2078 = vunpack.c.l.bf16 %v2014
      %v2079 = vunpack.c.l.bf16 %v2015
      %v2080 = vunpack.c.l.bf16 %v2016
      %v2081 = vunpack.c.l.bf16 %v2017
      %v2082 = vunpack.c.l.bf16 %v2018
      %v2083 = vunpack.c.l.bf16 %v2019
      %v2084 = vunpack.c.l.bf16 %v2020
      %v2085 = vunpack.c.l.bf16 %v2021
      %v2086 = vunpack.c.l.bf16 %v2022
      %v2087 = vunpack.c.l.bf16 %v2023
      %v2088 = vunpack.c.l.bf16 %v2024
      %v2089 = vunpack.c.l.bf16 %v2025
      %v2090 = vunpack.c.l.bf16 %v2026
      %v2091 = vunpack.c.l.bf16 %v2027
      %v2092 = vunpack.c.l.bf16 %v2028
      %v2093 = vunpack.c.l.bf16 %v2029
      %v2094 = vunpack.c.l.bf16 %v2030
      %v2095 = vunpack.c.l.bf16 %v2031
      %v2096 = vunpack.c.l.bf16 %v2032
      %v2097 = vunpack.c.l.bf16 %v2033
      %v2098 = vunpack.c.l.bf16 %v2034
      %v2099 = vunpack.c.l.bf16 %v2035
      %v2100 = vunpack.c.l.bf16 %v2036
      %v2101 = vunpack.c.l.bf16 %v2037
      %v2102 = vunpack.c.l.bf16 %v2038
      %v2103 = vunpack.c.l.bf16 %v2039
      %v2104 = vunpack.c.l.bf16 %v2040
      %v2105 = vunpack.c.l.bf16 %v2041
      %v2106 = vunpack.c.l.bf16 %v2042
      %v2107 = vunpack.c.l.bf16 %v2043
      %v2108 = vunpack.c.l.bf16 %v2044
      %v2109 = vunpack.c.l.bf16 %v2045
      %v2110 = vunpack.c.l.bf16 %v2046
      %v2111 = vunpack.c.l.bf16 %v2047
      %v2112 = vunpack.c.l.bf16 %v2048
      %v2113 = vunpack.c.l.bf16 %v2049
      %v2114 = vunpack.c.l.bf16 %v2050
      %v2115 = vunpack.c.l.bf16 %v2051
      %v2116 = vunpack.c.l.bf16 %v2052
      %v2117 = vunpack.c.l.bf16 %v2053
      %v2118 = vunpack.c.l.bf16 %v2054
      %v2119 = vunpack.c.l.bf16 %v2055
      %v2120 = vunpack.c.l.bf16 %v2056
      %v2121 = vunpack.c.l.bf16 %v2057
      %v2122 = vunpack.c.l.bf16 %v2058
      %v2123 = vunpack.c.l.bf16 %v2059
      %v2124 = vunpack.c.l.bf16 %v2060
      %v2125 = vunpack.c.l.bf16 %v2061
      %v2126 = vunpack.c.l.bf16 %v2062
      %v2127 = vunpack.c.l.bf16 %v2063
      %v2128 = vunpack.c.l.bf16 %v2064
      %v2129 = vunpack.c.l.bf16 %v2065
      %v2130 = vunpack.c.l.bf16 %v2066
      %v2131 = vunpack.c.l.bf16 %v2067
      %v2132 = vunpack.c.l.bf16 %v2068
      %v2133 = vunpack.c.l.bf16 %v2069
      %v2134 = vunpack.c.l.bf16 %v2070
      %v2135 = vunpack.c.l.bf16 %v2071
      %v2136 = vunpack.c.l.bf16 %v2072
      %v2137 = vunpack.c.l.bf16 %v2073
      %v2138 = vunpack.c.l.bf16 %v2074
      %v2139 = vunpack.c.l.bf16 %v2075
      %v2140 = vunpack.c.l.bf16 %v2076
      %v2141 = vld [vmem:[%s4] sm:$0xff]
      %v2142 = vld [vmem:[%s4 + $0x8] sm:$0xff]
      %v2143 = vld [vmem:[%s4 + $0x10] sm:$0xff]
      %v2144 = vld [vmem:[%s4 + $0x18] sm:$0xff]
      %v2145 = vld [vmem:[%s4 + $0x20] sm:$0xff]
      %v2146 = vld [vmem:[%s4 + $0x28] sm:$0xff]
      %v2147 = vld [vmem:[%s4 + $0x30] sm:$0xff]
      %v2148 = vld [vmem:[%s4 + $0x38] sm:$0xff]
      %v2149 = vld [vmem:[%s4 + $0x40] sm:$0xff]
      %v2150 = vld [vmem:[%s4 + $0x48] sm:$0xff]
      %v2151 = vld [vmem:[%s4 + $0x50] sm:$0xff]
      %v2152 = vld [vmem:[%s4 + $0x58] sm:$0xff]
      %v2153 = vld [vmem:[%s4 + $0x60] sm:$0xff]
      %v2154 = vld [vmem:[%s4 + $0x68] sm:$0xff]
      %v2155 = vld [vmem:[%s4 + $0x70] sm:$0xff]
      %v2156 = vld [vmem:[%s4 + $0x78] sm:$0xff]
      %v2157 = vmul.f32 %v2077, %v1944
      %v2158 = vmul.f32 %v2078, %v1945
      %v2159 = vmul.f32 %v2079, %v1946
      %v2160 = vmul.f32 %v2080, %v1947
      %v2161 = vmul.f32 %v2081, %v1948
      %v2162 = vmul.f32 %v2082, %v1949
      %v2163 = vmul.f32 %v2083, %v1950
      %v2164 = vmul.f32 %v2084, %v1951
      %v2165 = vmul.f32 %v2085, %v1952
      %v2166 = vmul.f32 %v2086, %v1953
      %v2167 = vmul.f32 %v2087, %v1954
      %v2168 = vmul.f32 %v2088, %v1955
      %v2169 = vmul.f32 %v2089, %v1956
      %v2170 = vmul.f32 %v2090, %v1957
      %v2171 = vmul.f32 %v2091, %v1958
      %v2172 = vmul.f32 %v2092, %v1959
      %v2173 = vmul.f32 %v2093, %v1960
      %v2174 = vmul.f32 %v2094, %v1961
      %v2175 = vmul.f32 %v2095, %v1962
      %v2176 = vmul.f32 %v2096, %v1963
      %v2177 = vmul.f32 %v2097, %v1964
      %v2178 = vmul.f32 %v2098, %v1965
      %v2179 = vmul.f32 %v2099, %v1966
      %v2180 = vmul.f32 %v2100, %v1967
      %v2181 = vmul.f32 %v2101, %v1968
      %v2182 = vmul.f32 %v2102, %v1969
      %v2183 = vmul.f32 %v2103, %v1970
      %v2184 = vmul.f32 %v2104, %v1971
      %v2185 = vmul.f32 %v2105, %v1972
      %v2186 = vmul.f32 %v2106, %v1973
      %v2187 = vmul.f32 %v2107, %v1974
      %v2188 = vmul.f32 %v2108, %v1975
      %v2189 = vmul.f32 %v2109, %v1976
      %v2190 = vmul.f32 %v2110, %v1977
      %v2191 = vmul.f32 %v2111, %v1978
      %v2192 = vmul.f32 %v2112, %v1979
      %v2193 = vmul.f32 %v2113, %v1980
      %v2194 = vmul.f32 %v2114, %v1981
      %v2195 = vmul.f32 %v2115, %v1982
      %v2196 = vmul.f32 %v2116, %v1983
      %v2197 = vmul.f32 %v2117, %v1984
      %v2198 = vmul.f32 %v2118, %v1985
      %v2199 = vmul.f32 %v2119, %v1986
      %v2200 = vmul.f32 %v2120, %v1987
      %v2201 = vmul.f32 %v2121, %v1988
      %v2202 = vmul.f32 %v2122, %v1989
      %v2203 = vmul.f32 %v2123, %v1990
      %v2204 = vmul.f32 %v2124, %v1991
      %v2205 = vmul.f32 %v2125, %v1992
      %v2206 = vmul.f32 %v2126, %v1993
      %v2207 = vmul.f32 %v2127, %v1994
      %v2208 = vmul.f32 %v2128, %v1995
      %v2209 = vmul.f32 %v2129, %v1996
      %v2210 = vmul.f32 %v2130, %v1997
      %v2211 = vmul.f32 %v2131, %v1998
      %v2212 = vmul.f32 %v2132, %v1999
      %v2213 = vmul.f32 %v2133, %v2000
      %v2214 = vmul.f32 %v2134, %v2001
      %v2215 = vmul.f32 %v2135, %v2002
      %v2216 = vmul.f32 %v2136, %v2003
      %v2217 = vmul.f32 %v2137, %v2004
      %v2218 = vmul.f32 %v2138, %v2005
      %v2219 = vmul.f32 %v2139, %v2006
      %v2220 = vmul.f32 %v2140, %v2007
      %v2221 = vld [vmem:[%s5] sm:$0xff]
      %v2222 = vld [vmem:[%s5 + $0x8] sm:$0xff]
      %v2223 = vld [vmem:[%s5 + $0x10] sm:$0xff]
      %v2224 = vld [vmem:[%s5 + $0x18] sm:$0xff]
      %v2225 = vld [vmem:[%s5 + $0x20] sm:$0xff]
      %v2226 = vld [vmem:[%s5 + $0x28] sm:$0xff]
      %v2227 = vld [vmem:[%s5 + $0x30] sm:$0xff]
      %v2228 = vld [vmem:[%s5 + $0x38] sm:$0xff]
      %v2229 = vld [vmem:[%s5 + $0x40] sm:$0xff]
      %v2230 = vld [vmem:[%s5 + $0x48] sm:$0xff]
      %v2231 = vld [vmem:[%s5 + $0x50] sm:$0xff]
      %v2232 = vld [vmem:[%s5 + $0x58] sm:$0xff]
      %v2233 = vld [vmem:[%s5 + $0x60] sm:$0xff]
      %v2234 = vld [vmem:[%s5 + $0x68] sm:$0xff]
      %v2235 = vld [vmem:[%s5 + $0x70] sm:$0xff]
      %v2236 = vld [vmem:[%s5 + $0x78] sm:$0xff]
      %2237 = vmatprep.subr.mxu0 0.0
      %2238 = vmatpush1.msra.mxu0 %v2236
      %2239 = vmatprep.subr.mxu0 0.0
      %2240 = vmatpush1.msra.mxu0 %v2235
      %2241 = vmatprep.subr.mxu0 0.0
      %2242 = vmatpush1.msra.mxu0 %v2234
      %2243 = vmatprep.subr.mxu0 0.0
      %2244 = vmatpush1.msra.mxu0 %v2233
      %2245 = vmatprep.subr.mxu0 0.0
      %2246 = vmatpush1.msra.mxu0 %v2232
      %2247 = vmatprep.subr.mxu0 0.0
      %2248 = vmatpush1.msra.mxu0 %v2231
      %2249 = vmatprep.subr.mxu0 0.0
      %2250 = vmatpush1.msra.mxu0 %v2230
      %2251 = vmatprep.subr.mxu0 0.0
      %2252 = vmatpush1.msra.mxu0 %v2229
      %2253 = vmatprep.subr.mxu0 0.0
      %2254 = vmatpush1.msra.mxu0 %v2228
      %2255 = vmatprep.subr.mxu0 0.0
      %2256 = vmatpush1.msra.mxu0 %v2227
      %2257 = vmatprep.subr.mxu0 0.0
      %2258 = vmatpush1.msra.mxu0 %v2226
      %2259 = vmatprep.subr.mxu0 0.0
      %2260 = vmatpush1.msra.mxu0 %v2225
      %2261 = vmatprep.subr.mxu0 0.0
      %2262 = vmatpush1.msra.mxu0 %v2224
      %2263 = vmatprep.subr.mxu0 0.0
      %2264 = vmatpush1.msra.mxu0 %v2223
      %2265 = vmatprep.subr.mxu0 0.0
      %2266 = vmatpush1.msra.mxu0 %v2222
      %2267 = vmatprep.subr.mxu0 0.0
      %2268 = vmatpush1.msra.mxu0 %v2221
      %2269 = vmatprep.subr.mxu0 0.0
      %2270 = vmatpush2.msra.mxu0 0.0
      %2271 = vmatprep.subr.mxu0 0.0
      %2272 = vmatpush2.msra.mxu0 0.0
      %2273 = vmatprep.subr.mxu0 0.0
      %2274 = vmatpush2.msra.mxu0 0.0
      %2275 = vmatprep.subr.mxu0 0.0
      %2276 = vmatpush2.msra.mxu0 0.0
      %2277 = vmatprep.subr.mxu0 0.0
      %2278 = vmatpush2.msra.mxu0 0.0
      %2279 = vmatprep.subr.mxu0 0.0
      %2280 = vmatpush2.msra.mxu0 0.0
      %2281 = vmatprep.subr.mxu0 0.0
      %2282 = vmatpush2.msra.mxu0 0.0
      %2283 = vmatprep.subr.mxu0 0.0
      %2284 = vmatpush2.msra.mxu0 0.0
      %2285 = vmatprep.subr.mxu0 0.0
      %2286 = vmatpush2.msra.mxu0 0.0
      %2287 = vmatprep.subr.mxu0 0.0
      %2288 = vmatpush2.msra.mxu0 0.0
      %2289 = vmatprep.subr.mxu0 0.0
      %2290 = vmatpush2.msra.mxu0 0.0
      %2291 = vmatprep.subr.mxu0 0.0
      %2292 = vmatpush2.msra.mxu0 0.0
      %2293 = vmatprep.subr.mxu0 0.0
      %2294 = vmatpush2.msra.mxu0 0.0
      %2295 = vmatprep.subr.mxu0 0.0
      %2296 = vmatpush2.msra.mxu0 0.0
      %2297 = vmatprep.subr.mxu0 0.0
      %2298 = vmatpush2.msra.mxu0 0.0
      %2299 = vmatprep.subr.mxu0 0.0
      %2300 = vmatpush2.msra.mxu0 0.0
      %2301 = vmatprep.mubr.f32.mxu0 0.0
      %2302 = vmatmul.mubr.f32.gmra.mxu0 %v2157
      %v2303 = vpop.f32.mrf.mxu0
      %v2304 = vadd.f32 0.0, %v2303
      %v2305 = vpop.f32.mrf.mxu0
      %2306 = vmatprep.mubr.f32.mxu0 0.0
      %2307 = vmatmul.mubr.f32.gmra.mxu0 %v2158
      %v2308 = vpop.f32.mrf.mxu0
      %v2309 = vadd.f32 0.0, %v2308
      %v2310 = vpop.f32.mrf.mxu0
      %2311 = vmatprep.mubr.f32.mxu0 0.0
      %2312 = vmatmul.mubr.f32.gmra.mxu0 %v2159
      %v2313 = vpop.f32.mrf.mxu0
      %v2314 = vadd.f32 0.0, %v2313
      %v2315 = vpop.f32.mrf.mxu0
      %2316 = vmatprep.mubr.f32.mxu0 0.0
      %2317 = vmatmul.mubr.f32.gmra.mxu0 %v2160
      %v2318 = vpop.f32.mrf.mxu0
      %v2319 = vadd.f32 0.0, %v2318
      %v2320 = vpop.f32.mrf.mxu0
      %2321 = vmatprep.mubr.f32.mxu0 0.0
      %2322 = vmatmul.mubr.f32.gmra.mxu0 %v2161
      %v2323 = vpop.f32.mrf.mxu0
      %v2324 = vadd.f32 0.0, %v2323
      %v2325 = vpop.f32.mrf.mxu0
      %2326 = vmatprep.mubr.f32.mxu0 0.0
      %2327 = vmatmul.mubr.f32.gmra.mxu0 %v2162
      %v2328 = vpop.f32.mrf.mxu0
      %v2329 = vadd.f32 0.0, %v2328
      %v2330 = vpop.f32.mrf.mxu0
      %2331 = vmatprep.mubr.f32.mxu0 0.0
      %2332 = vmatmul.mubr.f32.gmra.mxu0 %v2163
      %v2333 = vpop.f32.mrf.mxu0
      %v2334 = vadd.f32 0.0, %v2333
      %v2335 = vpop.f32.mrf.mxu0
      %2336 = vmatprep.mubr.f32.mxu0 0.0
      %2337 = vmatmul.mubr.f32.gmra.mxu0 %v2164
      %v2338 = vpop.f32.mrf.mxu0
      %v2339 = vadd.f32 0.0, %v2338
      %v2340 = vpop.f32.mrf.mxu0
      %2341 = vmatprep.mubr.f32.mxu0 0.0
      %2342 = vmatmul.mubr.f32.gmra.mxu0 %v2165
      %v2343 = vpop.f32.mrf.mxu0
      %v2344 = vadd.f32 0.0, %v2343
      %v2345 = vpop.f32.mrf.mxu0
      %2346 = vmatprep.mubr.f32.mxu0 0.0
      %2347 = vmatmul.mubr.f32.gmra.mxu0 %v2166
      %v2348 = vpop.f32.mrf.mxu0
      %v2349 = vadd.f32 0.0, %v2348
      %v2350 = vpop.f32.mrf.mxu0
      %2351 = vmatprep.mubr.f32.mxu0 0.0
      %2352 = vmatmul.mubr.f32.gmra.mxu0 %v2167
      %v2353 = vpop.f32.mrf.mxu0
      %v2354 = vadd.f32 0.0, %v2353
      %v2355 = vpop.f32.mrf.mxu0
      %2356 = vmatprep.mubr.f32.mxu0 0.0
      %2357 = vmatmul.mubr.f32.gmra.mxu0 %v2168
      %v2358 = vpop.f32.mrf.mxu0
      %v2359 = vadd.f32 0.0, %v2358
      %v2360 = vpop.f32.mrf.mxu0
      %2361 = vmatprep.mubr.f32.mxu0 0.0
      %2362 = vmatmul.mubr.f32.gmra.mxu0 %v2169
      %v2363 = vpop.f32.mrf.mxu0
      %v2364 = vadd.f32 0.0, %v2363
      %v2365 = vpop.f32.mrf.mxu0
      %2366 = vmatprep.mubr.f32.mxu0 0.0
      %2367 = vmatmul.mubr.f32.gmra.mxu0 %v2170
      %v2368 = vpop.f32.mrf.mxu0
      %v2369 = vadd.f32 0.0, %v2368
      %v2370 = vpop.f32.mrf.mxu0
      %2371 = vmatprep.mubr.f32.mxu0 0.0
      %2372 = vmatmul.mubr.f32.gmra.mxu0 %v2171
      %v2373 = vpop.f32.mrf.mxu0
      %v2374 = vadd.f32 0.0, %v2373
      %v2375 = vpop.f32.mrf.mxu0
      %2376 = vmatprep.mubr.f32.mxu0 0.0
      %2377 = vmatmul.mubr.f32.gmra.mxu0 %v2172
      %v2378 = vpop.f32.mrf.mxu0
      %v2379 = vadd.f32 0.0, %v2378
      %v2380 = vpop.f32.mrf.mxu0
      %2381 = vmatprep.mubr.f32.mxu0 0.0
      %2382 = vmatmul.mubr.f32.gmra.mxu0 %v2173
      %v2383 = vpop.f32.mrf.mxu0
      %v2384 = vadd.f32 0.0, %v2383
      %v2385 = vpop.f32.mrf.mxu0
      %2386 = vmatprep.mubr.f32.mxu0 0.0
      %2387 = vmatmul.mubr.f32.gmra.mxu0 %v2174
      %v2388 = vpop.f32.mrf.mxu0
      %v2389 = vadd.f32 0.0, %v2388
      %v2390 = vpop.f32.mrf.mxu0
      %2391 = vmatprep.mubr.f32.mxu0 0.0
      %2392 = vmatmul.mubr.f32.gmra.mxu0 %v2175
      %v2393 = vpop.f32.mrf.mxu0
      %v2394 = vadd.f32 0.0, %v2393
      %v2395 = vpop.f32.mrf.mxu0
      %2396 = vmatprep.mubr.f32.mxu0 0.0
      %2397 = vmatmul.mubr.f32.gmra.mxu0 %v2176
      %v2398 = vpop.f32.mrf.mxu0
      %v2399 = vadd.f32 0.0, %v2398
      %v2400 = vpop.f32.mrf.mxu0
      %2401 = vmatprep.mubr.f32.mxu0 0.0
      %2402 = vmatmul.mubr.f32.gmra.mxu0 %v2177
      %v2403 = vpop.f32.mrf.mxu0
      %v2404 = vadd.f32 0.0, %v2403
      %v2405 = vpop.f32.mrf.mxu0
      %2406 = vmatprep.mubr.f32.mxu0 0.0
      %2407 = vmatmul.mubr.f32.gmra.mxu0 %v2178
      %v2408 = vpop.f32.mrf.mxu0
      %v2409 = vadd.f32 0.0, %v2408
      %v2410 = vpop.f32.mrf.mxu0
      %2411 = vmatprep.mubr.f32.mxu0 0.0
      %2412 = vmatmul.mubr.f32.gmra.mxu0 %v2179
      %v2413 = vpop.f32.mrf.mxu0
      %v2414 = vadd.f32 0.0, %v2413
      %v2415 = vpop.f32.mrf.mxu0
      %2416 = vmatprep.mubr.f32.mxu0 0.0
      %2417 = vmatmul.mubr.f32.gmra.mxu0 %v2180
      %v2418 = vpop.f32.mrf.mxu0
      %v2419 = vadd.f32 0.0, %v2418
      %v2420 = vpop.f32.mrf.mxu0
      %2421 = vmatprep.mubr.f32.mxu0 0.0
      %2422 = vmatmul.mubr.f32.gmra.mxu0 %v2181
      %v2423 = vpop.f32.mrf.mxu0
      %v2424 = vadd.f32 0.0, %v2423
      %v2425 = vpop.f32.mrf.mxu0
      %2426 = vmatprep.mubr.f32.mxu0 0.0
      %2427 = vmatmul.mubr.f32.gmra.mxu0 %v2182
      %v2428 = vpop.f32.mrf.mxu0
      %v2429 = vadd.f32 0.0, %v2428
      %v2430 = vpop.f32.mrf.mxu0
      %2431 = vmatprep.mubr.f32.mxu0 0.0
      %2432 = vmatmul.mubr.f32.gmra.mxu0 %v2183
      %v2433 = vpop.f32.mrf.mxu0
      %v2434 = vadd.f32 0.0, %v2433
      %v2435 = vpop.f32.mrf.mxu0
      %2436 = vmatprep.mubr.f32.mxu0 0.0
      %2437 = vmatmul.mubr.f32.gmra.mxu0 %v2184
      %v2438 = vpop.f32.mrf.mxu0
      %v2439 = vadd.f32 0.0, %v2438
      %v2440 = vpop.f32.mrf.mxu0
      %2441 = vmatprep.mubr.f32.mxu0 0.0
      %2442 = vmatmul.mubr.f32.gmra.mxu0 %v2185
      %v2443 = vpop.f32.mrf.mxu0
      %v2444 = vadd.f32 0.0, %v2443
      %v2445 = vpop.f32.mrf.mxu0
      %2446 = vmatprep.mubr.f32.mxu0 0.0
      %2447 = vmatmul.mubr.f32.gmra.mxu0 %v2186
      %v2448 = vpop.f32.mrf.mxu0
      %v2449 = vadd.f32 0.0, %v2448
      %v2450 = vpop.f32.mrf.mxu0
      %2451 = vmatprep.mubr.f32.mxu0 0.0
      %2452 = vmatmul.mubr.f32.gmra.mxu0 %v2187
      %v2453 = vpop.f32.mrf.mxu0
      %v2454 = vadd.f32 0.0, %v2453
      %v2455 = vpop.f32.mrf.mxu0
      %2456 = vmatprep.mubr.f32.mxu0 0.0
      %2457 = vmatmul.mubr.f32.gmra.mxu0 %v2188
      %v2458 = vpop.f32.mrf.mxu0
      %v2459 = vadd.f32 0.0, %v2458
      %v2460 = vpop.f32.mrf.mxu0
      %2461 = vmatprep.mubr.f32.mxu0 0.0
      %2462 = vmatmul.mubr.f32.gmra.mxu0 %v2189
      %v2463 = vpop.f32.mrf.mxu0
      %v2464 = vadd.f32 0.0, %v2463
      %v2465 = vpop.f32.mrf.mxu0
      %2466 = vmatprep.mubr.f32.mxu0 0.0
      %2467 = vmatmul.mubr.f32.gmra.mxu0 %v2190
      %v2468 = vpop.f32.mrf.mxu0
      %v2469 = vadd.f32 0.0, %v2468
      %v2470 = vpop.f32.mrf.mxu0
      %2471 = vmatprep.mubr.f32.mxu0 0.0
      %2472 = vmatmul.mubr.f32.gmra.mxu0 %v2191
      %v2473 = vpop.f32.mrf.mxu0
      %v2474 = vadd.f32 0.0, %v2473
      %v2475 = vpop.f32.mrf.mxu0
      %2476 = vmatprep.mubr.f32.mxu0 0.0
      %2477 = vmatmul.mubr.f32.gmra.mxu0 %v2192
      %v2478 = vpop.f32.mrf.mxu0
      %v2479 = vadd.f32 0.0, %v2478
      %v2480 = vpop.f32.mrf.mxu0
      %2481 = vmatprep.mubr.f32.mxu0 0.0
      %2482 = vmatmul.mubr.f32.gmra.mxu0 %v2193
      %v2483 = vpop.f32.mrf.mxu0
      %v2484 = vadd.f32 0.0, %v2483
      %v2485 = vpop.f32.mrf.mxu0
      %2486 = vmatprep.mubr.f32.mxu0 0.0
      %2487 = vmatmul.mubr.f32.gmra.mxu0 %v2194
      %v2488 = vpop.f32.mrf.mxu0
      %v2489 = vadd.f32 0.0, %v2488
      %v2490 = vpop.f32.mrf.mxu0
      %2491 = vmatprep.mubr.f32.mxu0 0.0
      %2492 = vmatmul.mubr.f32.gmra.mxu0 %v2195
      %v2493 = vpop.f32.mrf.mxu0
      %v2494 = vadd.f32 0.0, %v2493
      %v2495 = vpop.f32.mrf.mxu0
      %2496 = vmatprep.mubr.f32.mxu0 0.0
      %2497 = vmatmul.mubr.f32.gmra.mxu0 %v2196
      %v2498 = vpop.f32.mrf.mxu0
      %v2499 = vadd.f32 0.0, %v2498
      %v2500 = vpop.f32.mrf.mxu0
      %2501 = vmatprep.mubr.f32.mxu0 0.0
      %2502 = vmatmul.mubr.f32.gmra.mxu0 %v2197
      %v2503 = vpop.f32.mrf.mxu0
      %v2504 = vadd.f32 0.0, %v2503
      %v2505 = vpop.f32.mrf.mxu0
      %2506 = vmatprep.mubr.f32.mxu0 0.0
      %2507 = vmatmul.mubr.f32.gmra.mxu0 %v2198
      %v2508 = vpop.f32.mrf.mxu0
      %v2509 = vadd.f32 0.0, %v2508
      %v2510 = vpop.f32.mrf.mxu0
      %2511 = vmatprep.mubr.f32.mxu0 0.0
      %2512 = vmatmul.mubr.f32.gmra.mxu0 %v2199
      %v2513 = vpop.f32.mrf.mxu0
      %v2514 = vadd.f32 0.0, %v2513
      %v2515 = vpop.f32.mrf.mxu0
      %2516 = vmatprep.mubr.f32.mxu0 0.0
      %2517 = vmatmul.mubr.f32.gmra.mxu0 %v2200
      %v2518 = vpop.f32.mrf.mxu0
      %v2519 = vadd.f32 0.0, %v2518
      %v2520 = vpop.f32.mrf.mxu0
      %2521 = vmatprep.mubr.f32.mxu0 0.0
      %2522 = vmatmul.mubr.f32.gmra.mxu0 %v2201
      %v2523 = vpop.f32.mrf.mxu0
      %v2524 = vadd.f32 0.0, %v2523
      %v2525 = vpop.f32.mrf.mxu0
      %2526 = vmatprep.mubr.f32.mxu0 0.0
      %2527 = vmatmul.mubr.f32.gmra.mxu0 %v2202
      %v2528 = vpop.f32.mrf.mxu0
      %v2529 = vadd.f32 0.0, %v2528
      %v2530 = vpop.f32.mrf.mxu0
      %2531 = vmatprep.mubr.f32.mxu0 0.0
      %2532 = vmatmul.mubr.f32.gmra.mxu0 %v2203
      %v2533 = vpop.f32.mrf.mxu0
      %v2534 = vadd.f32 0.0, %v2533
      %v2535 = vpop.f32.mrf.mxu0
      %2536 = vmatprep.mubr.f32.mxu0 0.0
      %2537 = vmatmul.mubr.f32.gmra.mxu0 %v2204
      %v2538 = vpop.f32.mrf.mxu0
      %v2539 = vadd.f32 0.0, %v2538
      %v2540 = vpop.f32.mrf.mxu0
      %2541 = vmatprep.mubr.f32.mxu0 0.0
      %2542 = vmatmul.mubr.f32.gmra.mxu0 %v2205
      %v2543 = vpop.f32.mrf.mxu0
      %v2544 = vadd.f32 0.0, %v2543
      %v2545 = vpop.f32.mrf.mxu0
      %2546 = vmatprep.mubr.f32.mxu0 0.0
      %2547 = vmatmul.mubr.f32.gmra.mxu0 %v2206
      %v2548 = vpop.f32.mrf.mxu0
      %v2549 = vadd.f32 0.0, %v2548
      %v2550 = vpop.f32.mrf.mxu0
      %2551 = vmatprep.mubr.f32.mxu0 0.0
      %2552 = vmatmul.mubr.f32.gmra.mxu0 %v2207
      %v2553 = vpop.f32.mrf.mxu0
      %v2554 = vadd.f32 0.0, %v2553
      %v2555 = vpop.f32.mrf.mxu0
      %2556 = vmatprep.mubr.f32.mxu0 0.0
      %2557 = vmatmul.mubr.f32.gmra.mxu0 %v2208
      %v2558 = vpop.f32.mrf.mxu0
      %v2559 = vadd.f32 0.0, %v2558
      %v2560 = vpop.f32.mrf.mxu0
      %2561 = vmatprep.mubr.f32.mxu0 0.0
      %2562 = vmatmul.mubr.f32.gmra.mxu0 %v2209
      %v2563 = vpop.f32.mrf.mxu0
      %v2564 = vadd.f32 0.0, %v2563
      %v2565 = vpop.f32.mrf.mxu0
      %2566 = vmatprep.mubr.f32.mxu0 0.0
      %2567 = vmatmul.mubr.f32.gmra.mxu0 %v2210
      %v2568 = vpop.f32.mrf.mxu0
      %v2569 = vadd.f32 0.0, %v2568
      %v2570 = vpop.f32.mrf.mxu0
      %2571 = vmatprep.mubr.f32.mxu0 0.0
      %2572 = vmatmul.mubr.f32.gmra.mxu0 %v2211
      %v2573 = vpop.f32.mrf.mxu0
      %v2574 = vadd.f32 0.0, %v2573
      %v2575 = vpop.f32.mrf.mxu0
      %2576 = vmatprep.mubr.f32.mxu0 0.0
      %2577 = vmatmul.mubr.f32.gmra.mxu0 %v2212
      %v2578 = vpop.f32.mrf.mxu0
      %v2579 = vadd.f32 0.0, %v2578
      %v2580 = vpop.f32.mrf.mxu0
      %2581 = vmatprep.mubr.f32.mxu0 0.0
      %2582 = vmatmul.mubr.f32.gmra.mxu0 %v2213
      %v2583 = vpop.f32.mrf.mxu0
      %v2584 = vadd.f32 0.0, %v2583
      %v2585 = vpop.f32.mrf.mxu0
      %2586 = vmatprep.mubr.f32.mxu0 0.0
      %2587 = vmatmul.mubr.f32.gmra.mxu0 %v2214
      %v2588 = vpop.f32.mrf.mxu0
      %v2589 = vadd.f32 0.0, %v2588
      %v2590 = vpop.f32.mrf.mxu0
      %2591 = vmatprep.mubr.f32.mxu0 0.0
      %2592 = vmatmul.mubr.f32.gmra.mxu0 %v2215
      %v2593 = vpop.f32.mrf.mxu0
      %v2594 = vadd.f32 0.0, %v2593
      %v2595 = vpop.f32.mrf.mxu0
      %2596 = vmatprep.mubr.f32.mxu0 0.0
      %2597 = vmatmul.mubr.f32.gmra.mxu0 %v2216
      %v2598 = vpop.f32.mrf.mxu0
      %v2599 = vadd.f32 0.0, %v2598
      %v2600 = vpop.f32.mrf.mxu0
      %2601 = vmatprep.mubr.f32.mxu0 0.0
      %2602 = vmatmul.mubr.f32.gmra.mxu0 %v2217
      %v2603 = vpop.f32.mrf.mxu0
      %v2604 = vadd.f32 0.0, %v2603
      %v2605 = vpop.f32.mrf.mxu0
      %2606 = vmatprep.mubr.f32.mxu0 0.0
      %2607 = vmatmul.mubr.f32.gmra.mxu0 %v2218
      %v2608 = vpop.f32.mrf.mxu0
      %v2609 = vadd.f32 0.0, %v2608
      %v2610 = vpop.f32.mrf.mxu0
      %2611 = vmatprep.mubr.f32.mxu0 0.0
      %2612 = vmatmul.mubr.f32.gmra.mxu0 %v2219
      %v2613 = vpop.f32.mrf.mxu0
      %v2614 = vadd.f32 0.0, %v2613
      %v2615 = vpop.f32.mrf.mxu0
      %2616 = vmatprep.mubr.f32.mxu0 0.0
      %2617 = vmatmul.mubr.f32.gmra.mxu0 %v2220
      %v2618 = vpop.f32.mrf.mxu0
      %v2619 = vadd.f32 0.0, %v2618
      %v2620 = vpop.f32.mrf.mxu0
      %2621 = vdwg.mxu0
      %2622 = vmatprep.subr.mxu0 0.0
      %2623 = vmatpush1.msra.mxu0 %v2156
      %2624 = vmatprep.subr.mxu0 0.0
      %2625 = vmatpush1.msra.mxu0 %v2155
      %2626 = vmatprep.subr.mxu0 0.0
      %2627 = vmatpush1.msra.mxu0 %v2154
      %2628 = vmatprep.subr.mxu0 0.0
      %2629 = vmatpush1.msra.mxu0 %v2153
      %2630 = vmatprep.subr.mxu0 0.0
      %2631 = vmatpush1.msra.mxu0 %v2152
      %2632 = vmatprep.subr.mxu0 0.0
      %2633 = vmatpush1.msra.mxu0 %v2151
      %2634 = vmatprep.subr.mxu0 0.0
      %2635 = vmatpush1.msra.mxu0 %v2150
      %2636 = vmatprep.subr.mxu0 0.0
      %2637 = vmatpush1.msra.mxu0 %v2149
      %2638 = vmatprep.subr.mxu0 0.0
      %2639 = vmatpush1.msra.mxu0 %v2148
      %2640 = vmatprep.subr.mxu0 0.0
      %2641 = vmatpush1.msra.mxu0 %v2147
      %2642 = vmatprep.subr.mxu0 0.0
      %2643 = vmatpush1.msra.mxu0 %v2146
      %2644 = vmatprep.subr.mxu0 0.0
      %2645 = vmatpush1.msra.mxu0 %v2145
      %2646 = vmatprep.subr.mxu0 0.0
      %2647 = vmatpush1.msra.mxu0 %v2144
      %2648 = vmatprep.subr.mxu0 0.0
      %2649 = vmatpush1.msra.mxu0 %v2143
      %2650 = vmatprep.subr.mxu0 0.0
      %2651 = vmatpush1.msra.mxu0 %v2142
      %2652 = vmatprep.subr.mxu0 0.0
      %2653 = vmatpush1.msra.mxu0 %v2141
      %2654 = vmatprep.subr.mxu0 0.0
      %2655 = vmatpush2.msra.mxu0 0.0
      %2656 = vmatprep.subr.mxu0 0.0
      %2657 = vmatpush2.msra.mxu0 0.0
      %2658 = vmatprep.subr.mxu0 0.0
      %2659 = vmatpush2.msra.mxu0 0.0
      %2660 = vmatprep.subr.mxu0 0.0
      %2661 = vmatpush2.msra.mxu0 0.0
      %2662 = vmatprep.subr.mxu0 0.0
      %2663 = vmatpush2.msra.mxu0 0.0
      %2664 = vmatprep.subr.mxu0 0.0
      %2665 = vmatpush2.msra.mxu0 0.0
      %2666 = vmatprep.subr.mxu0 0.0
      %2667 = vmatpush2.msra.mxu0 0.0
      %2668 = vmatprep.subr.mxu0 0.0
      %2669 = vmatpush2.msra.mxu0 0.0
      %2670 = vmatprep.subr.mxu0 0.0
      %2671 = vmatpush2.msra.mxu0 0.0
      %2672 = vmatprep.subr.mxu0 0.0
      %2673 = vmatpush2.msra.mxu0 0.0
      %2674 = vmatprep.subr.mxu0 0.0
      %2675 = vmatpush2.msra.mxu0 0.0
      %2676 = vmatprep.subr.mxu0 0.0
      %2677 = vmatpush2.msra.mxu0 0.0
      %2678 = vmatprep.subr.mxu0 0.0
      %2679 = vmatpush2.msra.mxu0 0.0
      %2680 = vmatprep.subr.mxu0 0.0
      %2681 = vmatpush2.msra.mxu0 0.0
      %2682 = vmatprep.subr.mxu0 0.0
      %2683 = vmatpush2.msra.mxu0 0.0
      %2684 = vmatprep.subr.mxu0 0.0
      %2685 = vmatpush2.msra.mxu0 0.0
      %2686 = vmatprep.mubr.f32.mxu0 0.0
      %2687 = vmatmul.mubr.f32.gmra.mxu0 %v1944
      %v2688 = vpop.f32.mrf.mxu0
      %v2689 = vadd.f32 %v2304, %v2688
      %v2690 = vpop.f32.mrf.mxu0
      %2691 = vmatprep.mubr.f32.mxu0 0.0
      %2692 = vmatmul.mubr.f32.gmra.mxu0 %v1945
      %v2693 = vpop.f32.mrf.mxu0
      %v2694 = vadd.f32 %v2309, %v2693
      %v2695 = vpop.f32.mrf.mxu0
      %2696 = vmatprep.mubr.f32.mxu0 0.0
      %2697 = vmatmul.mubr.f32.gmra.mxu0 %v1946
      %v2698 = vpop.f32.mrf.mxu0
      %v2699 = vadd.f32 %v2314, %v2698
      %v2700 = vpop.f32.mrf.mxu0
      %2701 = vmatprep.mubr.f32.mxu0 0.0
      %2702 = vmatmul.mubr.f32.gmra.mxu0 %v1947
      %v2703 = vpop.f32.mrf.mxu0
      %v2704 = vadd.f32 %v2319, %v2703
      %v2705 = vpop.f32.mrf.mxu0
      %2706 = vmatprep.mubr.f32.mxu0 0.0
      %2707 = vmatmul.mubr.f32.gmra.mxu0 %v1948
      %v2708 = vpop.f32.mrf.mxu0
      %v2709 = vadd.f32 %v2324, %v2708
      %v2710 = vpop.f32.mrf.mxu0
      %2711 = vmatprep.mubr.f32.mxu0 0.0
      %2712 = vmatmul.mubr.f32.gmra.mxu0 %v1949
      %v2713 = vpop.f32.mrf.mxu0
      %v2714 = vadd.f32 %v2329, %v2713
      %v2715 = vpop.f32.mrf.mxu0
      %2716 = vmatprep.mubr.f32.mxu0 0.0
      %2717 = vmatmul.mubr.f32.gmra.mxu0 %v1950
      %v2718 = vpop.f32.mrf.mxu0
      %v2719 = vadd.f32 %v2334, %v2718
      %v2720 = vpop.f32.mrf.mxu0
      %2721 = vmatprep.mubr.f32.mxu0 0.0
      %2722 = vmatmul.mubr.f32.gmra.mxu0 %v1951
      %v2723 = vpop.f32.mrf.mxu0
      %v2724 = vadd.f32 %v2339, %v2723
      %v2725 = vpop.f32.mrf.mxu0
      %2726 = vmatprep.mubr.f32.mxu0 0.0
      %2727 = vmatmul.mubr.f32.gmra.mxu0 %v1952
      %v2728 = vpop.f32.mrf.mxu0
      %v2729 = vadd.f32 %v2344, %v2728
      %v2730 = vpop.f32.mrf.mxu0
      %2731 = vmatprep.mubr.f32.mxu0 0.0
      %2732 = vmatmul.mubr.f32.gmra.mxu0 %v1953
      %v2733 = vpop.f32.mrf.mxu0
      %v2734 = vadd.f32 %v2349, %v2733
      %v2735 = vpop.f32.mrf.mxu0
      %2736 = vmatprep.mubr.f32.mxu0 0.0
      %2737 = vmatmul.mubr.f32.gmra.mxu0 %v1954
      %v2738 = vpop.f32.mrf.mxu0
      %v2739 = vadd.f32 %v2354, %v2738
      %v2740 = vpop.f32.mrf.mxu0
      %2741 = vmatprep.mubr.f32.mxu0 0.0
      %2742 = vmatmul.mubr.f32.gmra.mxu0 %v1955
      %v2743 = vpop.f32.mrf.mxu0
      %v2744 = vadd.f32 %v2359, %v2743
      %v2745 = vpop.f32.mrf.mxu0
      %2746 = vmatprep.mubr.f32.mxu0 0.0
      %2747 = vmatmul.mubr.f32.gmra.mxu0 %v1956
      %v2748 = vpop.f32.mrf.mxu0
      %v2749 = vadd.f32 %v2364, %v2748
      %v2750 = vpop.f32.mrf.mxu0
      %2751 = vmatprep.mubr.f32.mxu0 0.0
      %2752 = vmatmul.mubr.f32.gmra.mxu0 %v1957
      %v2753 = vpop.f32.mrf.mxu0
      %v2754 = vadd.f32 %v2369, %v2753
      %v2755 = vpop.f32.mrf.mxu0
      %2756 = vmatprep.mubr.f32.mxu0 0.0
      %2757 = vmatmul.mubr.f32.gmra.mxu0 %v1958
      %v2758 = vpop.f32.mrf.mxu0
      %v2759 = vadd.f32 %v2374, %v2758
      %v2760 = vpop.f32.mrf.mxu0
      %2761 = vmatprep.mubr.f32.mxu0 0.0
      %2762 = vmatmul.mubr.f32.gmra.mxu0 %v1959
      %v2763 = vpop.f32.mrf.mxu0
      %v2764 = vadd.f32 %v2379, %v2763
      %v2765 = vpop.f32.mrf.mxu0
      %2766 = vmatprep.mubr.f32.mxu0 0.0
      %2767 = vmatmul.mubr.f32.gmra.mxu0 %v1960
      %v2768 = vpop.f32.mrf.mxu0
      %v2769 = vadd.f32 %v2384, %v2768
      %v2770 = vpop.f32.mrf.mxu0
      %2771 = vmatprep.mubr.f32.mxu0 0.0
      %2772 = vmatmul.mubr.f32.gmra.mxu0 %v1961
      %v2773 = vpop.f32.mrf.mxu0
      %v2774 = vadd.f32 %v2389, %v2773
      %v2775 = vpop.f32.mrf.mxu0
      %2776 = vmatprep.mubr.f32.mxu0 0.0
      %2777 = vmatmul.mubr.f32.gmra.mxu0 %v1962
      %v2778 = vpop.f32.mrf.mxu0
      %v2779 = vadd.f32 %v2394, %v2778
      %v2780 = vpop.f32.mrf.mxu0
      %2781 = vmatprep.mubr.f32.mxu0 0.0
      %2782 = vmatmul.mubr.f32.gmra.mxu0 %v1963
      %v2783 = vpop.f32.mrf.mxu0
      %v2784 = vadd.f32 %v2399, %v2783
      %v2785 = vpop.f32.mrf.mxu0
      %2786 = vmatprep.mubr.f32.mxu0 0.0
      %2787 = vmatmul.mubr.f32.gmra.mxu0 %v1964
      %v2788 = vpop.f32.mrf.mxu0
      %v2789 = vadd.f32 %v2404, %v2788
      %v2790 = vpop.f32.mrf.mxu0
      %2791 = vmatprep.mubr.f32.mxu0 0.0
      %2792 = vmatmul.mubr.f32.gmra.mxu0 %v1965
      %v2793 = vpop.f32.mrf.mxu0
      %v2794 = vadd.f32 %v2409, %v2793
      %v2795 = vpop.f32.mrf.mxu0
      %2796 = vmatprep.mubr.f32.mxu0 0.0
      %2797 = vmatmul.mubr.f32.gmra.mxu0 %v1966
      %v2798 = vpop.f32.mrf.mxu0
      %v2799 = vadd.f32 %v2414, %v2798
      %v2800 = vpop.f32.mrf.mxu0
      %2801 = vmatprep.mubr.f32.mxu0 0.0
      %2802 = vmatmul.mubr.f32.gmra.mxu0 %v1967
      %v2803 = vpop.f32.mrf.mxu0
      %v2804 = vadd.f32 %v2419, %v2803
      %v2805 = vpop.f32.mrf.mxu0
      %2806 = vmatprep.mubr.f32.mxu0 0.0
      %2807 = vmatmul.mubr.f32.gmra.mxu0 %v1968
      %v2808 = vpop.f32.mrf.mxu0
      %v2809 = vadd.f32 %v2424, %v2808
      %v2810 = vpop.f32.mrf.mxu0
      %2811 = vmatprep.mubr.f32.mxu0 0.0
      %2812 = vmatmul.mubr.f32.gmra.mxu0 %v1969
      %v2813 = vpop.f32.mrf.mxu0
      %v2814 = vadd.f32 %v2429, %v2813
      %v2815 = vpop.f32.mrf.mxu0
      %2816 = vmatprep.mubr.f32.mxu0 0.0
      %2817 = vmatmul.mubr.f32.gmra.mxu0 %v1970
      %v2818 = vpop.f32.mrf.mxu0
      %v2819 = vadd.f32 %v2434, %v2818
      %v2820 = vpop.f32.mrf.mxu0
      %2821 = vmatprep.mubr.f32.mxu0 0.0
      %2822 = vmatmul.mubr.f32.gmra.mxu0 %v1971
      %v2823 = vpop.f32.mrf.mxu0
      %v2824 = vadd.f32 %v2439, %v2823
      %v2825 = vpop.f32.mrf.mxu0
      %2826 = vmatprep.mubr.f32.mxu0 0.0
      %2827 = vmatmul.mubr.f32.gmra.mxu0 %v1972
      %v2828 = vpop.f32.mrf.mxu0
      %v2829 = vadd.f32 %v2444, %v2828
      %v2830 = vpop.f32.mrf.mxu0
      %2831 = vmatprep.mubr.f32.mxu0 0.0
      %2832 = vmatmul.mubr.f32.gmra.mxu0 %v1973
      %v2833 = vpop.f32.mrf.mxu0
      %v2834 = vadd.f32 %v2449, %v2833
      %v2835 = vpop.f32.mrf.mxu0
      %2836 = vmatprep.mubr.f32.mxu0 0.0
      %2837 = vmatmul.mubr.f32.gmra.mxu0 %v1974
      %v2838 = vpop.f32.mrf.mxu0
      %v2839 = vadd.f32 %v2454, %v2838
      %v2840 = vpop.f32.mrf.mxu0
      %2841 = vmatprep.mubr.f32.mxu0 0.0
      %2842 = vmatmul.mubr.f32.gmra.mxu0 %v1975
      %v2843 = vpop.f32.mrf.mxu0
      %v2844 = vadd.f32 %v2459, %v2843
      %v2845 = vpop.f32.mrf.mxu0
      %2846 = vmatprep.mubr.f32.mxu0 0.0
      %2847 = vmatmul.mubr.f32.gmra.mxu0 %v1976
      %v2848 = vpop.f32.mrf.mxu0
      %v2849 = vadd.f32 %v2464, %v2848
      %v2850 = vpop.f32.mrf.mxu0
      %2851 = vmatprep.mubr.f32.mxu0 0.0
      %2852 = vmatmul.mubr.f32.gmra.mxu0 %v1977
      %v2853 = vpop.f32.mrf.mxu0
      %v2854 = vadd.f32 %v2469, %v2853
      %v2855 = vpop.f32.mrf.mxu0
      %2856 = vmatprep.mubr.f32.mxu0 0.0
      %2857 = vmatmul.mubr.f32.gmra.mxu0 %v1978
      %v2858 = vpop.f32.mrf.mxu0
      %v2859 = vadd.f32 %v2474, %v2858
      %v2860 = vpop.f32.mrf.mxu0
      %2861 = vmatprep.mubr.f32.mxu0 0.0
      %2862 = vmatmul.mubr.f32.gmra.mxu0 %v1979
      %v2863 = vpop.f32.mrf.mxu0
      %v2864 = vadd.f32 %v2479, %v2863
      %v2865 = vpop.f32.mrf.mxu0
      %2866 = vmatprep.mubr.f32.mxu0 0.0
      %2867 = vmatmul.mubr.f32.gmra.mxu0 %v1980
      %v2868 = vpop.f32.mrf.mxu0
      %v2869 = vadd.f32 %v2484, %v2868
      %v2870 = vpop.f32.mrf.mxu0
      %2871 = vmatprep.mubr.f32.mxu0 0.0
      %2872 = vmatmul.mubr.f32.gmra.mxu0 %v1981
      %v2873 = vpop.f32.mrf.mxu0
      %v2874 = vadd.f32 %v2489, %v2873
      %v2875 = vpop.f32.mrf.mxu0
      %2876 = vmatprep.mubr.f32.mxu0 0.0
      %2877 = vmatmul.mubr.f32.gmra.mxu0 %v1982
      %v2878 = vpop.f32.mrf.mxu0
      %v2879 = vadd.f32 %v2494, %v2878
      %v2880 = vpop.f32.mrf.mxu0
      %2881 = vmatprep.mubr.f32.mxu0 0.0
      %2882 = vmatmul.mubr.f32.gmra.mxu0 %v1983
      %v2883 = vpop.f32.mrf.mxu0
      %v2884 = vadd.f32 %v2499, %v2883
      %v2885 = vpop.f32.mrf.mxu0
      %2886 = vmatprep.mubr.f32.mxu0 0.0
      %2887 = vmatmul.mubr.f32.gmra.mxu0 %v1984
      %v2888 = vpop.f32.mrf.mxu0
      %v2889 = vadd.f32 %v2504, %v2888
      %v2890 = vpop.f32.mrf.mxu0
      %2891 = vmatprep.mubr.f32.mxu0 0.0
      %2892 = vmatmul.mubr.f32.gmra.mxu0 %v1985
      %v2893 = vpop.f32.mrf.mxu0
      %v2894 = vadd.f32 %v2509, %v2893
      %v2895 = vpop.f32.mrf.mxu0
      %2896 = vmatprep.mubr.f32.mxu0 0.0
      %2897 = vmatmul.mubr.f32.gmra.mxu0 %v1986
      %v2898 = vpop.f32.mrf.mxu0
      %v2899 = vadd.f32 %v2514, %v2898
      %v2900 = vpop.f32.mrf.mxu0
      %2901 = vmatprep.mubr.f32.mxu0 0.0
      %2902 = vmatmul.mubr.f32.gmra.mxu0 %v1987
      %v2903 = vpop.f32.mrf.mxu0
      %v2904 = vadd.f32 %v2519, %v2903
      %v2905 = vpop.f32.mrf.mxu0
      %2906 = vmatprep.mubr.f32.mxu0 0.0
      %2907 = vmatmul.mubr.f32.gmra.mxu0 %v1988
      %v2908 = vpop.f32.mrf.mxu0
      %v2909 = vadd.f32 %v2524, %v2908
      %v2910 = vpop.f32.mrf.mxu0
      %2911 = vmatprep.mubr.f32.mxu0 0.0
      %2912 = vmatmul.mubr.f32.gmra.mxu0 %v1989
      %v2913 = vpop.f32.mrf.mxu0
      %v2914 = vadd.f32 %v2529, %v2913
      %v2915 = vpop.f32.mrf.mxu0
      %2916 = vmatprep.mubr.f32.mxu0 0.0
      %2917 = vmatmul.mubr.f32.gmra.mxu0 %v1990
      %v2918 = vpop.f32.mrf.mxu0
      %v2919 = vadd.f32 %v2534, %v2918
      %v2920 = vpop.f32.mrf.mxu0
      %2921 = vmatprep.mubr.f32.mxu0 0.0
      %2922 = vmatmul.mubr.f32.gmra.mxu0 %v1991
      %v2923 = vpop.f32.mrf.mxu0
      %v2924 = vadd.f32 %v2539, %v2923
      %v2925 = vpop.f32.mrf.mxu0
      %2926 = vmatprep.mubr.f32.mxu0 0.0
      %2927 = vmatmul.mubr.f32.gmra.mxu0 %v1992
      %v2928 = vpop.f32.mrf.mxu0
      %v2929 = vadd.f32 %v2544, %v2928
      %v2930 = vpop.f32.mrf.mxu0
      %2931 = vmatprep.mubr.f32.mxu0 0.0
      %2932 = vmatmul.mubr.f32.gmra.mxu0 %v1993
      %v2933 = vpop.f32.mrf.mxu0
      %v2934 = vadd.f32 %v2549, %v2933
      %v2935 = vpop.f32.mrf.mxu0
      %2936 = vmatprep.mubr.f32.mxu0 0.0
      %2937 = vmatmul.mubr.f32.gmra.mxu0 %v1994
      %v2938 = vpop.f32.mrf.mxu0
      %v2939 = vadd.f32 %v2554, %v2938
      %v2940 = vpop.f32.mrf.mxu0
      %2941 = vmatprep.mubr.f32.mxu0 0.0
      %2942 = vmatmul.mubr.f32.gmra.mxu0 %v1995
      %v2943 = vpop.f32.mrf.mxu0
      %v2944 = vadd.f32 %v2559, %v2943
      %v2945 = vpop.f32.mrf.mxu0
      %2946 = vmatprep.mubr.f32.mxu0 0.0
      %2947 = vmatmul.mubr.f32.gmra.mxu0 %v1996
      %v2948 = vpop.f32.mrf.mxu0
      %v2949 = vadd.f32 %v2564, %v2948
      %v2950 = vpop.f32.mrf.mxu0
      %2951 = vmatprep.mubr.f32.mxu0 0.0
      %2952 = vmatmul.mubr.f32.gmra.mxu0 %v1997
      %v2953 = vpop.f32.mrf.mxu0
      %v2954 = vadd.f32 %v2569, %v2953
      %v2955 = vpop.f32.mrf.mxu0
      %2956 = vmatprep.mubr.f32.mxu0 0.0
      %2957 = vmatmul.mubr.f32.gmra.mxu0 %v1998
      %v2958 = vpop.f32.mrf.mxu0
      %v2959 = vadd.f32 %v2574, %v2958
      %v2960 = vpop.f32.mrf.mxu0
      %2961 = vmatprep.mubr.f32.mxu0 0.0
      %2962 = vmatmul.mubr.f32.gmra.mxu0 %v1999
      %v2963 = vpop.f32.mrf.mxu0
      %v2964 = vadd.f32 %v2579, %v2963
      %v2965 = vpop.f32.mrf.mxu0
      %2966 = vmatprep.mubr.f32.mxu0 0.0
      %2967 = vmatmul.mubr.f32.gmra.mxu0 %v2000
      %v2968 = vpop.f32.mrf.mxu0
      %v2969 = vadd.f32 %v2584, %v2968
      %v2970 = vpop.f32.mrf.mxu0
      %2971 = vmatprep.mubr.f32.mxu0 0.0
      %2972 = vmatmul.mubr.f32.gmra.mxu0 %v2001
      %v2973 = vpop.f32.mrf.mxu0
      %v2974 = vadd.f32 %v2589, %v2973
      %v2975 = vpop.f32.mrf.mxu0
      %2976 = vmatprep.mubr.f32.mxu0 0.0
      %2977 = vmatmul.mubr.f32.gmra.mxu0 %v2002
      %v2978 = vpop.f32.mrf.mxu0
      %v2979 = vadd.f32 %v2594, %v2978
      %v2980 = vpop.f32.mrf.mxu0
      %2981 = vmatprep.mubr.f32.mxu0 0.0
      %2982 = vmatmul.mubr.f32.gmra.mxu0 %v2003
      %v2983 = vpop.f32.mrf.mxu0
      %v2984 = vadd.f32 %v2599, %v2983
      %v2985 = vpop.f32.mrf.mxu0
      %2986 = vmatprep.mubr.f32.mxu0 0.0
      %2987 = vmatmul.mubr.f32.gmra.mxu0 %v2004
      %v2988 = vpop.f32.mrf.mxu0
      %v2989 = vadd.f32 %v2604, %v2988
      %v2990 = vpop.f32.mrf.mxu0
      %2991 = vmatprep.mubr.f32.mxu0 0.0
      %2992 = vmatmul.mubr.f32.gmra.mxu0 %v2005
      %v2993 = vpop.f32.mrf.mxu0
      %v2994 = vadd.f32 %v2609, %v2993
      %v2995 = vpop.f32.mrf.mxu0
      %2996 = vmatprep.mubr.f32.mxu0 0.0
      %2997 = vmatmul.mubr.f32.gmra.mxu0 %v2006
      %v2998 = vpop.f32.mrf.mxu0
      %v2999 = vadd.f32 %v2614, %v2998
      %v3000 = vpop.f32.mrf.mxu0
      %3001 = vmatprep.mubr.f32.mxu0 0.0
      %3002 = vmatmul.mubr.f32.gmra.mxu0 %v2007
      %v3003 = vpop.f32.mrf.mxu0
      %v3004 = vadd.f32 %v2619, %v3003
      %v3005 = vpop.f32.mrf.mxu0
      %3006 = vdwg.mxu0
      %v3007 = vld [vmem:[%s6] sm:$0x1]
      %v3009 = vlaneseq
      %v3010 = vshrl.u32 %v3009, 7
      %v3011 = vsub.s32 0, %v3010
      %v3012 = vrot.slane %v3007, %v3011
      %v3014 = vadd.f32 %v2689, %v3012
      %v3015 = vadd.f32 %v2694, %v3012
      %v3016 = vadd.f32 %v2699, %v3012
      %v3017 = vadd.f32 %v2704, %v3012
      %v3018 = vadd.f32 %v2709, %v3012
      %v3019 = vadd.f32 %v2714, %v3012
      %v3020 = vadd.f32 %v2719, %v3012
      %v3021 = vadd.f32 %v2724, %v3012
      %v3022 = vadd.f32 %v2729, %v3012
      %v3023 = vadd.f32 %v2734, %v3012
      %v3024 = vadd.f32 %v2739, %v3012
      %v3025 = vadd.f32 %v2744, %v3012
      %v3026 = vadd.f32 %v2749, %v3012
      %v3027 = vadd.f32 %v2754, %v3012
      %v3028 = vadd.f32 %v2759, %v3012
      %v3029 = vadd.f32 %v2764, %v3012
      %v3030 = vadd.f32 %v2769, %v3012
      %v3031 = vadd.f32 %v2774, %v3012
      %v3032 = vadd.f32 %v2779, %v3012
      %v3033 = vadd.f32 %v2784, %v3012
      %v3034 = vadd.f32 %v2789, %v3012
      %v3035 = vadd.f32 %v2794, %v3012
      %v3036 = vadd.f32 %v2799, %v3012
      %v3037 = vadd.f32 %v2804, %v3012
      %v3038 = vadd.f32 %v2809, %v3012
      %v3039 = vadd.f32 %v2814, %v3012
      %v3040 = vadd.f32 %v2819, %v3012
      %v3041 = vadd.f32 %v2824, %v3012
      %v3042 = vadd.f32 %v2829, %v3012
      %v3043 = vadd.f32 %v2834, %v3012
      %v3044 = vadd.f32 %v2839, %v3012
      %v3045 = vadd.f32 %v2844, %v3012
      %v3046 = vadd.f32 %v2849, %v3012
      %v3047 = vadd.f32 %v2854, %v3012
      %v3048 = vadd.f32 %v2859, %v3012
      %v3049 = vadd.f32 %v2864, %v3012
      %v3050 = vadd.f32 %v2869, %v3012
      %v3051 = vadd.f32 %v2874, %v3012
      %v3052 = vadd.f32 %v2879, %v3012
      %v3053 = vadd.f32 %v2884, %v3012
      %v3054 = vadd.f32 %v2889, %v3012
      %v3055 = vadd.f32 %v2894, %v3012
      %v3056 = vadd.f32 %v2899, %v3012
      %v3057 = vadd.f32 %v2904, %v3012
      %v3058 = vadd.f32 %v2909, %v3012
      %v3059 = vadd.f32 %v2914, %v3012
      %v3060 = vadd.f32 %v2919, %v3012
      %v3061 = vadd.f32 %v2924, %v3012
      %v3062 = vadd.f32 %v2929, %v3012
      %v3063 = vadd.f32 %v2934, %v3012
      %v3064 = vadd.f32 %v2939, %v3012
      %v3065 = vadd.f32 %v2944, %v3012
      %v3066 = vadd.f32 %v2949, %v3012
      %v3067 = vadd.f32 %v2954, %v3012
      %v3068 = vadd.f32 %v2959, %v3012
      %v3069 = vadd.f32 %v2964, %v3012
      %v3070 = vadd.f32 %v2969, %v3012
      %v3071 = vadd.f32 %v2974, %v3012
      %v3072 = vadd.f32 %v2979, %v3012
      %v3073 = vadd.f32 %v2984, %v3012
      %v3074 = vadd.f32 %v2989, %v3012
      %v3075 = vadd.f32 %v2994, %v3012
      %v3076 = vadd.f32 %v2999, %v3012
      %v3077 = vadd.f32 %v3004, %v3012
      %vm3078 = vcmp.ge.f32.partialorder %v3014, 0.0
      %vm3079 = vcmp.ge.f32.partialorder %v3015, 0.0
      %vm3080 = vcmp.ge.f32.partialorder %v3016, 0.0
      %vm3081 = vcmp.ge.f32.partialorder %v3017, 0.0
      %vm3082 = vcmp.ge.f32.partialorder %v3018, 0.0
      %vm3083 = vcmp.ge.f32.partialorder %v3019, 0.0
      %vm3084 = vcmp.ge.f32.partialorder %v3020, 0.0
      %vm3085 = vcmp.ge.f32.partialorder %v3021, 0.0
      %vm3086 = vcmp.ge.f32.partialorder %v3022, 0.0
      %vm3087 = vcmp.ge.f32.partialorder %v3023, 0.0
      %vm3088 = vcmp.ge.f32.partialorder %v3024, 0.0
      %vm3089 = vcmp.ge.f32.partialorder %v3025, 0.0
      %vm3090 = vcmp.ge.f32.partialorder %v3026, 0.0
      %vm3091 = vcmp.ge.f32.partialorder %v3027, 0.0
      %vm3092 = vcmp.ge.f32.partialorder %v3028, 0.0
      %vm3093 = vcmp.ge.f32.partialorder %v3029, 0.0
      %vm3094 = vcmp.ge.f32.partialorder %v3030, 0.0
      %vm3095 = vcmp.ge.f32.partialorder %v3031, 0.0
      %vm3096 = vcmp.ge.f32.partialorder %v3032, 0.0
      %vm3097 = vcmp.ge.f32.partialorder %v3033, 0.0
      %vm3098 = vcmp.ge.f32.partialorder %v3034, 0.0
      %vm3099 = vcmp.ge.f32.partialorder %v3035, 0.0
      %vm3100 = vcmp.ge.f32.partialorder %v3036, 0.0
      %vm3101 = vcmp.ge.f32.partialorder %v3037, 0.0
      %vm3102 = vcmp.ge.f32.partialorder %v3038, 0.0
      %vm3103 = vcmp.ge.f32.partialorder %v3039, 0.0
      %vm3104 = vcmp.ge.f32.partialorder %v3040, 0.0
      %vm3105 = vcmp.ge.f32.partialorder %v3041, 0.0
      %vm3106 = vcmp.ge.f32.partialorder %v3042, 0.0
      %vm3107 = vcmp.ge.f32.partialorder %v3043, 0.0
      %vm3108 = vcmp.ge.f32.partialorder %v3044, 0.0
      %vm3109 = vcmp.ge.f32.partialorder %v3045, 0.0
      %vm3110 = vcmp.ge.f32.partialorder %v3046, 0.0
      %vm3111 = vcmp.ge.f32.partialorder %v3047, 0.0
      %vm3112 = vcmp.ge.f32.partialorder %v3048, 0.0
      %vm3113 = vcmp.ge.f32.partialorder %v3049, 0.0
      %vm3114 = vcmp.ge.f32.partialorder %v3050, 0.0
      %vm3115 = vcmp.ge.f32.partialorder %v3051, 0.0
      %vm3116 = vcmp.ge.f32.partialorder %v3052, 0.0
      %vm3117 = vcmp.ge.f32.partialorder %v3053, 0.0
      %vm3118 = vcmp.ge.f32.partialorder %v3054, 0.0
      %vm3119 = vcmp.ge.f32.partialorder %v3055, 0.0
      %vm3120 = vcmp.ge.f32.partialorder %v3056, 0.0
      %vm3121 = vcmp.ge.f32.partialorder %v3057, 0.0
      %vm3122 = vcmp.ge.f32.partialorder %v3058, 0.0
      %vm3123 = vcmp.ge.f32.partialorder %v3059, 0.0
      %vm3124 = vcmp.ge.f32.partialorder %v3060, 0.0
      %vm3125 = vcmp.ge.f32.partialorder %v3061, 0.0
      %vm3126 = vcmp.ge.f32.partialorder %v3062, 0.0
      %vm3127 = vcmp.ge.f32.partialorder %v3063, 0.0
      %vm3128 = vcmp.ge.f32.partialorder %v3064, 0.0
      %vm3129 = vcmp.ge.f32.partialorder %v3065, 0.0
      %vm3130 = vcmp.ge.f32.partialorder %v3066, 0.0
      %vm3131 = vcmp.ge.f32.partialorder %v3067, 0.0
      %vm3132 = vcmp.ge.f32.partialorder %v3068, 0.0
      %vm3133 = vcmp.ge.f32.partialorder %v3069, 0.0
      %vm3134 = vcmp.ge.f32.partialorder %v3070, 0.0
      %vm3135 = vcmp.ge.f32.partialorder %v3071, 0.0
      %vm3136 = vcmp.ge.f32.partialorder %v3072, 0.0
      %vm3137 = vcmp.ge.f32.partialorder %v3073, 0.0
      %vm3138 = vcmp.ge.f32.partialorder %v3074, 0.0
      %vm3139 = vcmp.ge.f32.partialorder %v3075, 0.0
      %vm3140 = vcmp.ge.f32.partialorder %v3076, 0.0
      %vm3141 = vcmp.ge.f32.partialorder %v3077, 0.0
      %v3142 = vmul.f32 %v3014, 0.2
      %v3143 = vmul.f32 %v3015, 0.2
      %v3144 = vmul.f32 %v3016, 0.2
      %v3145 = vmul.f32 %v3017, 0.2
      %v3146 = vmul.f32 %v3018, 0.2
      %v3147 = vmul.f32 %v3019, 0.2
      %v3148 = vmul.f32 %v3020, 0.2
      %v3149 = vmul.f32 %v3021, 0.2
      %v3150 = vmul.f32 %v3022, 0.2
      %v3151 = vmul.f32 %v3023, 0.2
      %v3152 = vmul.f32 %v3024, 0.2
      %v3153 = vmul.f32 %v3025, 0.2
      %v3154 = vmul.f32 %v3026, 0.2
      %v3155 = vmul.f32 %v3027, 0.2
      %v3156 = vmul.f32 %v3028, 0.2
      %v3157 = vmul.f32 %v3029, 0.2
      %v3158 = vmul.f32 %v3030, 0.2
      %v3159 = vmul.f32 %v3031, 0.2
      %v3160 = vmul.f32 %v3032, 0.2
      %v3161 = vmul.f32 %v3033, 0.2
      %v3162 = vmul.f32 %v3034, 0.2
      %v3163 = vmul.f32 %v3035, 0.2
      %v3164 = vmul.f32 %v3036, 0.2
      %v3165 = vmul.f32 %v3037, 0.2
      %v3166 = vmul.f32 %v3038, 0.2
      %v3167 = vmul.f32 %v3039, 0.2
      %v3168 = vmul.f32 %v3040, 0.2
      %v3169 = vmul.f32 %v3041, 0.2
      %v3170 = vmul.f32 %v3042, 0.2
      %v3171 = vmul.f32 %v3043, 0.2
      %v3172 = vmul.f32 %v3044, 0.2
      %v3173 = vmul.f32 %v3045, 0.2
      %v3174 = vmul.f32 %v3046, 0.2
      %v3175 = vmul.f32 %v3047, 0.2
      %v3176 = vmul.f32 %v3048, 0.2
      %v3177 = vmul.f32 %v3049, 0.2
      %v3178 = vmul.f32 %v3050, 0.2
      %v3179 = vmul.f32 %v3051, 0.2
      %v3180 = vmul.f32 %v3052, 0.2
      %v3181 = vmul.f32 %v3053, 0.2
      %v3182 = vmul.f32 %v3054, 0.2
      %v3183 = vmul.f32 %v3055, 0.2
      %v3184 = vmul.f32 %v3056, 0.2
      %v3185 = vmul.f32 %v3057, 0.2
      %v3186 = vmul.f32 %v3058, 0.2
      %v3187 = vmul.f32 %v3059, 0.2
      %v3188 = vmul.f32 %v3060, 0.2
      %v3189 = vmul.f32 %v3061, 0.2
      %v3190 = vmul.f32 %v3062, 0.2
      %v3191 = vmul.f32 %v3063, 0.2
      %v3192 = vmul.f32 %v3064, 0.2
      %v3193 = vmul.f32 %v3065, 0.2
      %v3194 = vmul.f32 %v3066, 0.2
      %v3195 = vmul.f32 %v3067, 0.2
      %v3196 = vmul.f32 %v3068, 0.2
      %v3197 = vmul.f32 %v3069, 0.2
      %v3198 = vmul.f32 %v3070, 0.2
      %v3199 = vmul.f32 %v3071, 0.2
      %v3200 = vmul.f32 %v3072, 0.2
      %v3201 = vmul.f32 %v3073, 0.2
      %v3202 = vmul.f32 %v3074, 0.2
      %v3203 = vmul.f32 %v3075, 0.2
      %v3204 = vmul.f32 %v3076, 0.2
      %v3205 = vmul.f32 %v3077, 0.2
      %v3206 = vsel %vm3078, %v3014, %v3142
      %v3207 = vsel %vm3079, %v3015, %v3143
      %v3208 = vsel %vm3080, %v3016, %v3144
      %v3209 = vsel %vm3081, %v3017, %v3145
      %v3210 = vsel %vm3082, %v3018, %v3146
      %v3211 = vsel %vm3083, %v3019, %v3147
      %v3212 = vsel %vm3084, %v3020, %v3148
      %v3213 = vsel %vm3085, %v3021, %v3149
      %v3214 = vsel %vm3086, %v3022, %v3150
      %v3215 = vsel %vm3087, %v3023, %v3151
      %v3216 = vsel %vm3088, %v3024, %v3152
      %v3217 = vsel %vm3089, %v3025, %v3153
      %v3218 = vsel %vm3090, %v3026, %v3154
      %v3219 = vsel %vm3091, %v3027, %v3155
      %v3220 = vsel %vm3092, %v3028, %v3156
      %v3221 = vsel %vm3093, %v3029, %v3157
      %v3222 = vsel %vm3094, %v3030, %v3158
      %v3223 = vsel %vm3095, %v3031, %v3159
      %v3224 = vsel %vm3096, %v3032, %v3160
      %v3225 = vsel %vm3097, %v3033, %v3161
      %v3226 = vsel %vm3098, %v3034, %v3162
      %v3227 = vsel %vm3099, %v3035, %v3163
      %v3228 = vsel %vm3100, %v3036, %v3164
      %v3229 = vsel %vm3101, %v3037, %v3165
      %v3230 = vsel %vm3102, %v3038, %v3166
      %v3231 = vsel %vm3103, %v3039, %v3167
      %v3232 = vsel %vm3104, %v3040, %v3168
      %v3233 = vsel %vm3105, %v3041, %v3169
      %v3234 = vsel %vm3106, %v3042, %v3170
      %v3235 = vsel %vm3107, %v3043, %v3171
      %v3236 = vsel %vm3108, %v3044, %v3172
      %v3237 = vsel %vm3109, %v3045, %v3173
      %v3238 = vsel %vm3110, %v3046, %v3174
      %v3239 = vsel %vm3111, %v3047, %v3175
      %v3240 = vsel %vm3112, %v3048, %v3176
      %v3241 = vsel %vm3113, %v3049, %v3177
      %v3242 = vsel %vm3114, %v3050, %v3178
      %v3243 = vsel %vm3115, %v3051, %v3179
      %v3244 = vsel %vm3116, %v3052, %v3180
      %v3245 = vsel %vm3117, %v3053, %v3181
      %v3246 = vsel %vm3118, %v3054, %v3182
      %v3247 = vsel %vm3119, %v3055, %v3183
      %v3248 = vsel %vm3120, %v3056, %v3184
      %v3249 = vsel %vm3121, %v3057, %v3185
      %v3250 = vsel %vm3122, %v3058, %v3186
      %v3251 = vsel %vm3123, %v3059, %v3187
      %v3252 = vsel %vm3124, %v3060, %v3188
      %v3253 = vsel %vm3125, %v3061, %v3189
      %v3254 = vsel %vm3126, %v3062, %v3190
      %v3255 = vsel %vm3127, %v3063, %v3191
      %v3256 = vsel %vm3128, %v3064, %v3192
      %v3257 = vsel %vm3129, %v3065, %v3193
      %v3258 = vsel %vm3130, %v3066, %v3194
      %v3259 = vsel %vm3131, %v3067, %v3195
      %v3260 = vsel %vm3132, %v3068, %v3196
      %v3261 = vsel %vm3133, %v3069, %v3197
      %v3262 = vsel %vm3134, %v3070, %v3198
      %v3263 = vsel %vm3135, %v3071, %v3199
      %v3264 = vsel %vm3136, %v3072, %v3200
      %v3265 = vsel %vm3137, %v3073, %v3201
      %v3266 = vsel %vm3138, %v3074, %v3202
      %v3267 = vsel %vm3139, %v3075, %v3203
      %v3268 = vsel %vm3140, %v3076, %v3204
      %v3269 = vsel %vm3141, %v3077, %v3205
      %v3270 = vpack.c.bf16 %v3207, %v3206
      %v3271 = vpack.c.bf16 %v3209, %v3208
      %v3272 = vpack.c.bf16 %v3211, %v3210
      %v3273 = vpack.c.bf16 %v3213, %v3212
      %v3274 = vpack.c.bf16 %v3215, %v3214
      %v3275 = vpack.c.bf16 %v3217, %v3216
      %v3276 = vpack.c.bf16 %v3219, %v3218
      %v3277 = vpack.c.bf16 %v3221, %v3220
      %v3278 = vpack.c.bf16 %v3223, %v3222
      %v3279 = vpack.c.bf16 %v3225, %v3224
      %v3280 = vpack.c.bf16 %v3227, %v3226
      %v3281 = vpack.c.bf16 %v3229, %v3228
      %v3282 = vpack.c.bf16 %v3231, %v3230
      %v3283 = vpack.c.bf16 %v3233, %v3232
      %v3284 = vpack.c.bf16 %v3235, %v3234
      %v3285 = vpack.c.bf16 %v3237, %v3236
      %v3286 = vpack.c.bf16 %v3239, %v3238
      %v3287 = vpack.c.bf16 %v3241, %v3240
      %v3288 = vpack.c.bf16 %v3243, %v3242
      %v3289 = vpack.c.bf16 %v3245, %v3244
      %v3290 = vpack.c.bf16 %v3247, %v3246
      %v3291 = vpack.c.bf16 %v3249, %v3248
      %v3292 = vpack.c.bf16 %v3251, %v3250
      %v3293 = vpack.c.bf16 %v3253, %v3252
      %v3294 = vpack.c.bf16 %v3255, %v3254
      %v3295 = vpack.c.bf16 %v3257, %v3256
      %v3296 = vpack.c.bf16 %v3259, %v3258
      %v3297 = vpack.c.bf16 %v3261, %v3260
      %v3298 = vpack.c.bf16 %v3263, %v3262
      %v3299 = vpack.c.bf16 %v3265, %v3264
      %v3300 = vpack.c.bf16 %v3267, %v3266
      %v3301 = vpack.c.bf16 %v3269, %v3268
      %v3334 = vunpack.c.l.b16 %v3270
      %v3335 = vunpack.c.h.b16 %v3270
      %v3336 = vunpack.c.l.b16 %v3271
      %v3337 = vunpack.c.h.b16 %v3271
      %v3338 = vunpack.c.l.b16 %v3272
      %v3339 = vunpack.c.h.b16 %v3272
      %v3340 = vunpack.c.l.b16 %v3273
      %v3341 = vunpack.c.h.b16 %v3273
      %v3342 = vunpack.c.l.b16 %v3274
      %v3343 = vunpack.c.h.b16 %v3274
      %v3344 = vunpack.c.l.b16 %v3275
      %v3345 = vunpack.c.h.b16 %v3275
      %v3346 = vunpack.c.l.b16 %v3276
      %v3347 = vunpack.c.h.b16 %v3276
      %v3348 = vunpack.c.l.b16 %v3277
      %v3349 = vunpack.c.h.b16 %v3277
      %v3350 = vunpack.c.l.b16 %v3278
      %v3351 = vunpack.c.h.b16 %v3278
      %v3352 = vunpack.c.l.b16 %v3279
      %v3353 = vunpack.c.h.b16 %v3279
      %v3354 = vunpack.c.l.b16 %v3280
      %v3355 = vunpack.c.h.b16 %v3280
      %v3356 = vunpack.c.l.b16 %v3281
      %v3357 = vunpack.c.h.b16 %v3281
      %v3358 = vunpack.c.l.b16 %v3282
      %v3359 = vunpack.c.h.b16 %v3282
      %v3360 = vunpack.c.l.b16 %v3283
      %v3361 = vunpack.c.h.b16 %v3283
      %v3362 = vunpack.c.l.b16 %v3284
      %v3363 = vunpack.c.h.b16 %v3284
      %v3364 = vunpack.c.l.b16 %v3285
      %v3365 = vunpack.c.h.b16 %v3285
      %v3366 = vunpack.c.l.b16 %v3286
      %v3367 = vunpack.c.h.b16 %v3286
      %v3368 = vunpack.c.l.b16 %v3287
      %v3369 = vunpack.c.h.b16 %v3287
      %v3370 = vunpack.c.l.b16 %v3288
      %v3371 = vunpack.c.h.b16 %v3288
      %v3372 = vunpack.c.l.b16 %v3289
      %v3373 = vunpack.c.h.b16 %v3289
      %v3374 = vunpack.c.l.b16 %v3290
      %v3375 = vunpack.c.h.b16 %v3290
      %v3376 = vunpack.c.l.b16 %v3291
      %v3377 = vunpack.c.h.b16 %v3291
      %v3378 = vunpack.c.l.b16 %v3292
      %v3379 = vunpack.c.h.b16 %v3292
      %v3380 = vunpack.c.l.b16 %v3293
      %v3381 = vunpack.c.h.b16 %v3293
      %v3382 = vunpack.c.l.b16 %v3294
      %v3383 = vunpack.c.h.b16 %v3294
      %v3384 = vunpack.c.l.b16 %v3295
      %v3385 = vunpack.c.h.b16 %v3295
      %v3386 = vunpack.c.l.b16 %v3296
      %v3387 = vunpack.c.h.b16 %v3296
      %v3388 = vunpack.c.l.b16 %v3297
      %v3389 = vunpack.c.h.b16 %v3297
      %v3390 = vunpack.c.l.b16 %v3298
      %v3391 = vunpack.c.h.b16 %v3298
      %v3392 = vunpack.c.l.b16 %v3299
      %v3393 = vunpack.c.h.b16 %v3299
      %v3394 = vunpack.c.l.b16 %v3300
      %v3395 = vunpack.c.h.b16 %v3300
      %v3396 = vunpack.c.l.b16 %v3301
      %v3397 = vunpack.c.h.b16 %v3301
      %v3398 = vpack.c.b16 %v3334, %v3334
      %v3399 = vpack.c.b16 %v3335, %v3335
      %v3400 = vpack.c.b16 %v3336, %v3336
      %v3401 = vpack.c.b16 %v3337, %v3337
      %v3402 = vpack.c.b16 %v3338, %v3338
      %v3403 = vpack.c.b16 %v3339, %v3339
      %v3404 = vpack.c.b16 %v3340, %v3340
      %v3405 = vpack.c.b16 %v3341, %v3341
      %v3406 = vpack.c.b16 %v3342, %v3342
      %v3407 = vpack.c.b16 %v3343, %v3343
      %v3408 = vpack.c.b16 %v3344, %v3344
      %v3409 = vpack.c.b16 %v3345, %v3345
      %v3410 = vpack.c.b16 %v3346, %v3346
      %v3411 = vpack.c.b16 %v3347, %v3347
      %v3412 = vpack.c.b16 %v3348, %v3348
      %v3413 = vpack.c.b16 %v3349, %v3349
      %v3414 = vpack.c.b16 %v3350, %v3350
      %v3415 = vpack.c.b16 %v3351, %v3351
      %v3416 = vpack.c.b16 %v3352, %v3352
      %v3417 = vpack.c.b16 %v3353, %v3353
      %v3418 = vpack.c.b16 %v3354, %v3354
      %v3419 = vpack.c.b16 %v3355, %v3355
      %v3420 = vpack.c.b16 %v3356, %v3356
      %v3421 = vpack.c.b16 %v3357, %v3357
      %v3422 = vpack.c.b16 %v3358, %v3358
      %v3423 = vpack.c.b16 %v3359, %v3359
      %v3424 = vpack.c.b16 %v3360, %v3360
      %v3425 = vpack.c.b16 %v3361, %v3361
      %v3426 = vpack.c.b16 %v3362, %v3362
      %v3427 = vpack.c.b16 %v3363, %v3363
      %v3428 = vpack.c.b16 %v3364, %v3364
      %v3429 = vpack.c.b16 %v3365, %v3365
      %v3430 = vpack.c.b16 %v3366, %v3366
      %v3431 = vpack.c.b16 %v3367, %v3367
      %v3432 = vpack.c.b16 %v3368, %v3368
      %v3433 = vpack.c.b16 %v3369, %v3369
      %v3434 = vpack.c.b16 %v3370, %v3370
      %v3435 = vpack.c.b16 %v3371, %v3371
      %v3436 = vpack.c.b16 %v3372, %v3372
      %v3437 = vpack.c.b16 %v3373, %v3373
      %v3438 = vpack.c.b16 %v3374, %v3374
      %v3439 = vpack.c.b16 %v3375, %v3375
      %v3440 = vpack.c.b16 %v3376, %v3376
      %v3441 = vpack.c.b16 %v3377, %v3377
      %v3442 = vpack.c.b16 %v3378, %v3378
      %v3443 = vpack.c.b16 %v3379, %v3379
      %v3444 = vpack.c.b16 %v3380, %v3380
      %v3445 = vpack.c.b16 %v3381, %v3381
      %v3446 = vpack.c.b16 %v3382, %v3382
      %v3447 = vpack.c.b16 %v3383, %v3383
      %v3448 = vpack.c.b16 %v3384, %v3384
      %v3449 = vpack.c.b16 %v3385, %v3385
      %v3450 = vpack.c.b16 %v3386, %v3386
      %v3451 = vpack.c.b16 %v3387, %v3387
      %v3452 = vpack.c.b16 %v3388, %v3388
      %v3453 = vpack.c.b16 %v3389, %v3389
      %v3454 = vpack.c.b16 %v3390, %v3390
      %v3455 = vpack.c.b16 %v3391, %v3391
      %v3456 = vpack.c.b16 %v3392, %v3392
      %v3457 = vpack.c.b16 %v3393, %v3393
      %v3458 = vpack.c.b16 %v3394, %v3394
      %v3459 = vpack.c.b16 %v3395, %v3395
      %v3460 = vpack.c.b16 %v3396, %v3396
      %v3461 = vpack.c.b16 %v3397, %v3397
      %3526 = vst [vmem:[#allocation6] sm:$0xf] %v3398
      %3527 = vst [vmem:[#allocation6 + $0x4] sm:$0xf] %v3399
      %3528 = vst [vmem:[#allocation6 + $0x8] sm:$0xf] %v3400
      %3529 = vst [vmem:[#allocation6 + $0xc] sm:$0xf] %v3401
      %3530 = vst [vmem:[#allocation6 + $0x10] sm:$0xf] %v3402
      %3531 = vst [vmem:[#allocation6 + $0x14] sm:$0xf] %v3403
      %3532 = vst [vmem:[#allocation6 + $0x18] sm:$0xf] %v3404
      %3533 = vst [vmem:[#allocation6 + $0x1c] sm:$0xf] %v3405
      %3534 = vst [vmem:[#allocation6 + $0x20] sm:$0xf] %v3406
      %3535 = vst [vmem:[#allocation6 + $0x24] sm:$0xf] %v3407
      %3536 = vst [vmem:[#allocation6 + $0x28] sm:$0xf] %v3408
      %3537 = vst [vmem:[#allocation6 + $0x2c] sm:$0xf] %v3409
      %3538 = vst [vmem:[#allocation6 + $0x30] sm:$0xf] %v3410
      %3539 = vst [vmem:[#allocation6 + $0x34] sm:$0xf] %v3411
      %3540 = vst [vmem:[#allocation6 + $0x38] sm:$0xf] %v3412
      %3541 = vst [vmem:[#allocation6 + $0x3c] sm:$0xf] %v3413
      %3542 = vst [vmem:[#allocation6 + $0x40] sm:$0xf] %v3414
      %3543 = vst [vmem:[#allocation6 + $0x44] sm:$0xf] %v3415
      %3544 = vst [vmem:[#allocation6 + $0x48] sm:$0xf] %v3416
      %3545 = vst [vmem:[#allocation6 + $0x4c] sm:$0xf] %v3417
      %3546 = vst [vmem:[#allocation6 + $0x50] sm:$0xf] %v3418
      %3547 = vst [vmem:[#allocation6 + $0x54] sm:$0xf] %v3419
      %3548 = vst [vmem:[#allocation6 + $0x58] sm:$0xf] %v3420
      %3549 = vst [vmem:[#allocation6 + $0x5c] sm:$0xf] %v3421
      %3550 = vst [vmem:[#allocation6 + $0x60] sm:$0xf] %v3422
      %3551 = vst [vmem:[#allocation6 + $0x64] sm:$0xf] %v3423
      %3552 = vst [vmem:[#allocation6 + $0x68] sm:$0xf] %v3424
      %3553 = vst [vmem:[#allocation6 + $0x6c] sm:$0xf] %v3425
      %3554 = vst [vmem:[#allocation6 + $0x70] sm:$0xf] %v3426
      %3555 = vst [vmem:[#allocation6 + $0x74] sm:$0xf] %v3427
      %3556 = vst [vmem:[#allocation6 + $0x78] sm:$0xf] %v3428
      %3557 = vst [vmem:[#allocation6 + $0x7c] sm:$0xf] %v3429
      %3558 = vst [vmem:[#allocation6 + $0x80] sm:$0xf] %v3430
      %3559 = vst [vmem:[#allocation6 + $0x84] sm:$0xf] %v3431
      %3560 = vst [vmem:[#allocation6 + $0x88] sm:$0xf] %v3432
      %3561 = vst [vmem:[#allocation6 + $0x8c] sm:$0xf] %v3433
      %3562 = vst [vmem:[#allocation6 + $0x90] sm:$0xf] %v3434
      %3563 = vst [vmem:[#allocation6 + $0x94] sm:$0xf] %v3435
      %3564 = vst [vmem:[#allocation6 + $0x98] sm:$0xf] %v3436
      %3565 = vst [vmem:[#allocation6 + $0x9c] sm:$0xf] %v3437
      %3566 = vst [vmem:[#allocation6 + $0xa0] sm:$0xf] %v3438
      %3567 = vst [vmem:[#allocation6 + $0xa4] sm:$0xf] %v3439
      %3568 = vst [vmem:[#allocation6 + $0xa8] sm:$0xf] %v3440
      %3569 = vst [vmem:[#allocation6 + $0xac] sm:$0xf] %v3441
      %3570 = vst [vmem:[#allocation6 + $0xb0] sm:$0xf] %v3442
      %3571 = vst [vmem:[#allocation6 + $0xb4] sm:$0xf] %v3443
      %3572 = vst [vmem:[#allocation6 + $0xb8] sm:$0xf] %v3444
      %3573 = vst [vmem:[#allocation6 + $0xbc] sm:$0xf] %v3445
      %3574 = vst [vmem:[#allocation6 + $0xc0] sm:$0xf] %v3446
      %3575 = vst [vmem:[#allocation6 + $0xc4] sm:$0xf] %v3447
      %3576 = vst [vmem:[#allocation6 + $0xc8] sm:$0xf] %v3448
      %3577 = vst [vmem:[#allocation6 + $0xcc] sm:$0xf] %v3449
      %3578 = vst [vmem:[#allocation6 + $0xd0] sm:$0xf] %v3450
      %3579 = vst [vmem:[#allocation6 + $0xd4] sm:$0xf] %v3451
      %3580 = vst [vmem:[#allocation6 + $0xd8] sm:$0xf] %v3452
      %3581 = vst [vmem:[#allocation6 + $0xdc] sm:$0xf] %v3453
      %3582 = vst [vmem:[#allocation6 + $0xe0] sm:$0xf] %v3454
      %3583 = vst [vmem:[#allocation6 + $0xe4] sm:$0xf] %v3455
      %3584 = vst [vmem:[#allocation6 + $0xe8] sm:$0xf] %v3456
      %3585 = vst [vmem:[#allocation6 + $0xec] sm:$0xf] %v3457
      %3586 = vst [vmem:[#allocation6 + $0xf0] sm:$0xf] %v3458
      %3587 = vst [vmem:[#allocation6 + $0xf4] sm:$0xf] %v3459
      %3588 = vst [vmem:[#allocation6 + $0xf8] sm:$0xf] %v3460
      %3589 = vst [vmem:[#allocation6 + $0xfc] sm:$0xf] %v3461
      %v3590 = vmul.f32 %v3206, %v3206
      %v3591 = vmul.f32 %v3207, %v3207
      %v3592 = vmul.f32 %v3208, %v3208
      %v3593 = vmul.f32 %v3209, %v3209
      %v3594 = vmul.f32 %v3210, %v3210
      %v3595 = vmul.f32 %v3211, %v3211
      %v3596 = vmul.f32 %v3212, %v3212
      %v3597 = vmul.f32 %v3213, %v3213
      %v3598 = vmul.f32 %v3214, %v3214
      %v3599 = vmul.f32 %v3215, %v3215
      %v3600 = vmul.f32 %v3216, %v3216
      %v3601 = vmul.f32 %v3217, %v3217
      %v3602 = vmul.f32 %v3218, %v3218
      %v3603 = vmul.f32 %v3219, %v3219
      %v3604 = vmul.f32 %v3220, %v3220
      %v3605 = vmul.f32 %v3221, %v3221
      %v3606 = vmul.f32 %v3222, %v3222
      %v3607 = vmul.f32 %v3223, %v3223
      %v3608 = vmul.f32 %v3224, %v3224
      %v3609 = vmul.f32 %v3225, %v3225
      %v3610 = vmul.f32 %v3226, %v3226
      %v3611 = vmul.f32 %v3227, %v3227
      %v3612 = vmul.f32 %v3228, %v3228
      %v3613 = vmul.f32 %v3229, %v3229
      %v3614 = vmul.f32 %v3230, %v3230
      %v3615 = vmul.f32 %v3231, %v3231
      %v3616 = vmul.f32 %v3232, %v3232
      %v3617 = vmul.f32 %v3233, %v3233
      %v3618 = vmul.f32 %v3234, %v3234
      %v3619 = vmul.f32 %v3235, %v3235
      %v3620 = vmul.f32 %v3236, %v3236
      %v3621 = vmul.f32 %v3237, %v3237
      %v3622 = vmul.f32 %v3238, %v3238
      %v3623 = vmul.f32 %v3239, %v3239
      %v3624 = vmul.f32 %v3240, %v3240
      %v3625 = vmul.f32 %v3241, %v3241
      %v3626 = vmul.f32 %v3242, %v3242
      %v3627 = vmul.f32 %v3243, %v3243
      %v3628 = vmul.f32 %v3244, %v3244
      %v3629 = vmul.f32 %v3245, %v3245
      %v3630 = vmul.f32 %v3246, %v3246
      %v3631 = vmul.f32 %v3247, %v3247
      %v3632 = vmul.f32 %v3248, %v3248
      %v3633 = vmul.f32 %v3249, %v3249
      %v3634 = vmul.f32 %v3250, %v3250
      %v3635 = vmul.f32 %v3251, %v3251
      %v3636 = vmul.f32 %v3252, %v3252
      %v3637 = vmul.f32 %v3253, %v3253
      %v3638 = vmul.f32 %v3254, %v3254
      %v3639 = vmul.f32 %v3255, %v3255
      %v3640 = vmul.f32 %v3256, %v3256
      %v3641 = vmul.f32 %v3257, %v3257
      %v3642 = vmul.f32 %v3258, %v3258
      %v3643 = vmul.f32 %v3259, %v3259
      %v3644 = vmul.f32 %v3260, %v3260
      %v3645 = vmul.f32 %v3261, %v3261
      %v3646 = vmul.f32 %v3262, %v3262
      %v3647 = vmul.f32 %v3263, %v3263
      %v3648 = vmul.f32 %v3264, %v3264
      %v3649 = vmul.f32 %v3265, %v3265
      %v3650 = vmul.f32 %v3266, %v3266
      %v3651 = vmul.f32 %v3267, %v3267
      %v3652 = vmul.f32 %v3268, %v3268
      %v3653 = vmul.f32 %v3269, %v3269
      %3654 = vadd.xlane.f32.xlu0 %v3590
      %v3655 = vpop.xlane.xlu0 %3654
      %3656 = vadd.xlane.f32.xlu0 %v3591
      %v3657 = vpop.xlane.xlu0 %3656
      %3658 = vadd.xlane.f32.xlu0 %v3592
      %v3659 = vpop.xlane.xlu0 %3658
      %3660 = vadd.xlane.f32.xlu0 %v3593
      %v3661 = vpop.xlane.xlu0 %3660
      %3662 = vadd.xlane.f32.xlu0 %v3594
      %v3663 = vpop.xlane.xlu0 %3662
      %3664 = vadd.xlane.f32.xlu0 %v3595
      %v3665 = vpop.xlane.xlu0 %3664
      %3666 = vadd.xlane.f32.xlu0 %v3596
      %v3667 = vpop.xlane.xlu0 %3666
      %3668 = vadd.xlane.f32.xlu0 %v3597
      %v3669 = vpop.xlane.xlu0 %3668
      %3670 = vadd.xlane.f32.xlu0 %v3598
      %v3671 = vpop.xlane.xlu0 %3670
      %3672 = vadd.xlane.f32.xlu0 %v3599
      %v3673 = vpop.xlane.xlu0 %3672
      %3674 = vadd.xlane.f32.xlu0 %v3600
      %v3675 = vpop.xlane.xlu0 %3674
      %3676 = vadd.xlane.f32.xlu0 %v3601
      %v3677 = vpop.xlane.xlu0 %3676
      %3678 = vadd.xlane.f32.xlu0 %v3602
      %v3679 = vpop.xlane.xlu0 %3678
      %3680 = vadd.xlane.f32.xlu0 %v3603
      %v3681 = vpop.xlane.xlu0 %3680
      %3682 = vadd.xlane.f32.xlu0 %v3604
      %v3683 = vpop.xlane.xlu0 %3682
      %3684 = vadd.xlane.f32.xlu0 %v3605
      %v3685 = vpop.xlane.xlu0 %3684
      %3686 = vadd.xlane.f32.xlu0 %v3606
      %v3687 = vpop.xlane.xlu0 %3686
      %3688 = vadd.xlane.f32.xlu0 %v3607
      %v3689 = vpop.xlane.xlu0 %3688
      %3690 = vadd.xlane.f32.xlu0 %v3608
      %v3691 = vpop.xlane.xlu0 %3690
      %3692 = vadd.xlane.f32.xlu0 %v3609
      %v3693 = vpop.xlane.xlu0 %3692
      %3694 = vadd.xlane.f32.xlu0 %v3610
      %v3695 = vpop.xlane.xlu0 %3694
      %3696 = vadd.xlane.f32.xlu0 %v3611
      %v3697 = vpop.xlane.xlu0 %3696
      %3698 = vadd.xlane.f32.xlu0 %v3612
      %v3699 = vpop.xlane.xlu0 %3698
      %3700 = vadd.xlane.f32.xlu0 %v3613
      %v3701 = vpop.xlane.xlu0 %3700
      %3702 = vadd.xlane.f32.xlu0 %v3614
      %v3703 = vpop.xlane.xlu0 %3702
      %3704 = vadd.xlane.f32.xlu0 %v3615
      %v3705 = vpop.xlane.xlu0 %3704
      %3706 = vadd.xlane.f32.xlu0 %v3616
      %v3707 = vpop.xlane.xlu0 %3706
      %3708 = vadd.xlane.f32.xlu0 %v3617
      %v3709 = vpop.xlane.xlu0 %3708
      %3710 = vadd.xlane.f32.xlu0 %v3618
      %v3711 = vpop.xlane.xlu0 %3710
      %3712 = vadd.xlane.f32.xlu0 %v3619
      %v3713 = vpop.xlane.xlu0 %3712
      %3714 = vadd.xlane.f32.xlu0 %v3620
      %v3715 = vpop.xlane.xlu0 %3714
      %3716 = vadd.xlane.f32.xlu0 %v3621
      %v3717 = vpop.xlane.xlu0 %3716
      %3718 = vadd.xlane.f32.xlu0 %v3622
      %v3719 = vpop.xlane.xlu0 %3718
      %3720 = vadd.xlane.f32.xlu0 %v3623
      %v3721 = vpop.xlane.xlu0 %3720
      %3722 = vadd.xlane.f32.xlu0 %v3624
      %v3723 = vpop.xlane.xlu0 %3722
      %3724 = vadd.xlane.f32.xlu0 %v3625
      %v3725 = vpop.xlane.xlu0 %3724
      %3726 = vadd.xlane.f32.xlu0 %v3626
      %v3727 = vpop.xlane.xlu0 %3726
      %3728 = vadd.xlane.f32.xlu0 %v3627
      %v3729 = vpop.xlane.xlu0 %3728
      %3730 = vadd.xlane.f32.xlu0 %v3628
      %v3731 = vpop.xlane.xlu0 %3730
      %3732 = vadd.xlane.f32.xlu0 %v3629
      %v3733 = vpop.xlane.xlu0 %3732
      %3734 = vadd.xlane.f32.xlu0 %v3630
      %v3735 = vpop.xlane.xlu0 %3734
      %3736 = vadd.xlane.f32.xlu0 %v3631
      %v3737 = vpop.xlane.xlu0 %3736
      %3738 = vadd.xlane.f32.xlu0 %v3632
      %v3739 = vpop.xlane.xlu0 %3738
      %3740 = vadd.xlane.f32.xlu0 %v3633
      %v3741 = vpop.xlane.xlu0 %3740
      %3742 = vadd.xlane.f32.xlu0 %v3634
      %v3743 = vpop.xlane.xlu0 %3742
      %3744 = vadd.xlane.f32.xlu0 %v3635
      %v3745 = vpop.xlane.xlu0 %3744
      %3746 = vadd.xlane.f32.xlu0 %v3636
      %v3747 = vpop.xlane.xlu0 %3746
      %3748 = vadd.xlane.f32.xlu0 %v3637
      %v3749 = vpop.xlane.xlu0 %3748
      %3750 = vadd.xlane.f32.xlu0 %v3638
      %v3751 = vpop.xlane.xlu0 %3750
      %3752 = vadd.xlane.f32.xlu0 %v3639
      %v3753 = vpop.xlane.xlu0 %3752
      %3754 = vadd.xlane.f32.xlu0 %v3640
      %v3755 = vpop.xlane.xlu0 %3754
      %3756 = vadd.xlane.f32.xlu0 %v3641
      %v3757 = vpop.xlane.xlu0 %3756
      %3758 = vadd.xlane.f32.xlu0 %v3642
      %v3759 = vpop.xlane.xlu0 %3758
      %3760 = vadd.xlane.f32.xlu0 %v3643
      %v3761 = vpop.xlane.xlu0 %3760
      %3762 = vadd.xlane.f32.xlu0 %v3644
      %v3763 = vpop.xlane.xlu0 %3762
      %3764 = vadd.xlane.f32.xlu0 %v3645
      %v3765 = vpop.xlane.xlu0 %3764
      %3766 = vadd.xlane.f32.xlu0 %v3646
      %v3767 = vpop.xlane.xlu0 %3766
      %3768 = vadd.xlane.f32.xlu0 %v3647
      %v3769 = vpop.xlane.xlu0 %3768
      %3770 = vadd.xlane.f32.xlu0 %v3648
      %v3771 = vpop.xlane.xlu0 %3770
      %3772 = vadd.xlane.f32.xlu0 %v3649
      %v3773 = vpop.xlane.xlu0 %3772
      %3774 = vadd.xlane.f32.xlu0 %v3650
      %v3775 = vpop.xlane.xlu0 %3774
      %3776 = vadd.xlane.f32.xlu0 %v3651
      %v3777 = vpop.xlane.xlu0 %3776
      %3778 = vadd.xlane.f32.xlu0 %v3652
      %v3779 = vpop.xlane.xlu0 %3778
      %3780 = vadd.xlane.f32.xlu0 %v3653
      %v3781 = vpop.xlane.xlu0 %3780
      %v3782 = vmax.f32 %v3655, 1e-24
      %v3783 = vmax.f32 %v3657, 1e-24
      %v3784 = vmax.f32 %v3659, 1e-24
      %v3785 = vmax.f32 %v3661, 1e-24
      %v3786 = vmax.f32 %v3663, 1e-24
      %v3787 = vmax.f32 %v3665, 1e-24
      %v3788 = vmax.f32 %v3667, 1e-24
      %v3789 = vmax.f32 %v3669, 1e-24
      %v3790 = vmax.f32 %v3671, 1e-24
      %v3791 = vmax.f32 %v3673, 1e-24
      %v3792 = vmax.f32 %v3675, 1e-24
      %v3793 = vmax.f32 %v3677, 1e-24
      %v3794 = vmax.f32 %v3679, 1e-24
      %v3795 = vmax.f32 %v3681, 1e-24
      %v3796 = vmax.f32 %v3683, 1e-24
      %v3797 = vmax.f32 %v3685, 1e-24
      %v3798 = vmax.f32 %v3687, 1e-24
      %v3799 = vmax.f32 %v3689, 1e-24
      %v3800 = vmax.f32 %v3691, 1e-24
      %v3801 = vmax.f32 %v3693, 1e-24
      %v3802 = vmax.f32 %v3695, 1e-24
      %v3803 = vmax.f32 %v3697, 1e-24
      %v3804 = vmax.f32 %v3699, 1e-24
      %v3805 = vmax.f32 %v3701, 1e-24
      %v3806 = vmax.f32 %v3703, 1e-24
      %v3807 = vmax.f32 %v3705, 1e-24
      %v3808 = vmax.f32 %v3707, 1e-24
      %v3809 = vmax.f32 %v3709, 1e-24
      %v3810 = vmax.f32 %v3711, 1e-24
      %v3811 = vmax.f32 %v3713, 1e-24
      %v3812 = vmax.f32 %v3715, 1e-24
      %v3813 = vmax.f32 %v3717, 1e-24
      %v3814 = vmax.f32 %v3719, 1e-24
      %v3815 = vmax.f32 %v3721, 1e-24
      %v3816 = vmax.f32 %v3723, 1e-24
      %v3817 = vmax.f32 %v3725, 1e-24
      %v3818 = vmax.f32 %v3727, 1e-24
      %v3819 = vmax.f32 %v3729, 1e-24
      %v3820 = vmax.f32 %v3731, 1e-24
      %v3821 = vmax.f32 %v3733, 1e-24
      %v3822 = vmax.f32 %v3735, 1e-24
      %v3823 = vmax.f32 %v3737, 1e-24
      %v3824 = vmax.f32 %v3739, 1e-24
      %v3825 = vmax.f32 %v3741, 1e-24
      %v3826 = vmax.f32 %v3743, 1e-24
      %v3827 = vmax.f32 %v3745, 1e-24
      %v3828 = vmax.f32 %v3747, 1e-24
      %v3829 = vmax.f32 %v3749, 1e-24
      %v3830 = vmax.f32 %v3751, 1e-24
      %v3831 = vmax.f32 %v3753, 1e-24
      %v3832 = vmax.f32 %v3755, 1e-24
      %v3833 = vmax.f32 %v3757, 1e-24
      %v3834 = vmax.f32 %v3759, 1e-24
      %v3835 = vmax.f32 %v3761, 1e-24
      %v3836 = vmax.f32 %v3763, 1e-24
      %v3837 = vmax.f32 %v3765, 1e-24
      %v3838 = vmax.f32 %v3767, 1e-24
      %v3839 = vmax.f32 %v3769, 1e-24
      %v3840 = vmax.f32 %v3771, 1e-24
      %v3841 = vmax.f32 %v3773, 1e-24
      %v3842 = vmax.f32 %v3775, 1e-24
      %v3843 = vmax.f32 %v3777, 1e-24
      %v3844 = vmax.f32 %v3779, 1e-24
      %v3845 = vmax.f32 %v3781, 1e-24
      %v3846 = vrsqrt.pop %v3782
      %v3847 = vrsqrt.pop %v3783
      %v3848 = vrsqrt.pop %v3784
      %v3849 = vrsqrt.pop %v3785
      %v3850 = vrsqrt.pop %v3786
      %v3851 = vrsqrt.pop %v3787
      %v3852 = vrsqrt.pop %v3788
      %v3853 = vrsqrt.pop %v3789
      %v3854 = vrsqrt.pop %v3790
      %v3855 = vrsqrt.pop %v3791
      %v3856 = vrsqrt.pop %v3792
      %v3857 = vrsqrt.pop %v3793
      %v3858 = vrsqrt.pop %v3794
      %v3859 = vrsqrt.pop %v3795
      %v3860 = vrsqrt.pop %v3796
      %v3861 = vrsqrt.pop %v3797
      %v3862 = vrsqrt.pop %v3798
      %v3863 = vrsqrt.pop %v3799
      %v3864 = vrsqrt.pop %v3800
      %v3865 = vrsqrt.pop %v3801
      %v3866 = vrsqrt.pop %v3802
      %v3867 = vrsqrt.pop %v3803
      %v3868 = vrsqrt.pop %v3804
      %v3869 = vrsqrt.pop %v3805
      %v3870 = vrsqrt.pop %v3806
      %v3871 = vrsqrt.pop %v3807
      %v3872 = vrsqrt.pop %v3808
      %v3873 = vrsqrt.pop %v3809
      %v3874 = vrsqrt.pop %v3810
      %v3875 = vrsqrt.pop %v3811
      %v3876 = vrsqrt.pop %v3812
      %v3877 = vrsqrt.pop %v3813
      %v3878 = vrsqrt.pop %v3814
      %v3879 = vrsqrt.pop %v3815
      %v3880 = vrsqrt.pop %v3816
      %v3881 = vrsqrt.pop %v3817
      %v3882 = vrsqrt.pop %v3818
      %v3883 = vrsqrt.pop %v3819
      %v3884 = vrsqrt.pop %v3820
      %v3885 = vrsqrt.pop %v3821
      %v3886 = vrsqrt.pop %v3822
      %v3887 = vrsqrt.pop %v3823
      %v3888 = vrsqrt.pop %v3824
      %v3889 = vrsqrt.pop %v3825
      %v3890 = vrsqrt.pop %v3826
      %v3891 = vrsqrt.pop %v3827
      %v3892 = vrsqrt.pop %v3828
      %v3893 = vrsqrt.pop %v3829
      %v3894 = vrsqrt.pop %v3830
      %v3895 = vrsqrt.pop %v3831
      %v3896 = vrsqrt.pop %v3832
      %v3897 = vrsqrt.pop %v3833
      %v3898 = vrsqrt.pop %v3834
      %v3899 = vrsqrt.pop %v3835
      %v3900 = vrsqrt.pop %v3836
      %v3901 = vrsqrt.pop %v3837
      %v3902 = vrsqrt.pop %v3838
      %v3903 = vrsqrt.pop %v3839
      %v3904 = vrsqrt.pop %v3840
      %v3905 = vrsqrt.pop %v3841
      %v3906 = vrsqrt.pop %v3842
      %v3907 = vrsqrt.pop %v3843
      %v3908 = vrsqrt.pop %v3844
      %v3909 = vrsqrt.pop %v3845
      %v3910 = vmul.f32 %v3206, %v3846
      %v3911 = vmul.f32 %v3207, %v3847
      %v3912 = vmul.f32 %v3208, %v3848
      %v3913 = vmul.f32 %v3209, %v3849
      %v3914 = vmul.f32 %v3210, %v3850
      %v3915 = vmul.f32 %v3211, %v3851
      %v3916 = vmul.f32 %v3212, %v3852
      %v3917 = vmul.f32 %v3213, %v3853
      %v3918 = vmul.f32 %v3214, %v3854
      %v3919 = vmul.f32 %v3215, %v3855
      %v3920 = vmul.f32 %v3216, %v3856
      %v3921 = vmul.f32 %v3217, %v3857
      %v3922 = vmul.f32 %v3218, %v3858
      %v3923 = vmul.f32 %v3219, %v3859
      %v3924 = vmul.f32 %v3220, %v3860
      %v3925 = vmul.f32 %v3221, %v3861
      %v3926 = vmul.f32 %v3222, %v3862
      %v3927 = vmul.f32 %v3223, %v3863
      %v3928 = vmul.f32 %v3224, %v3864
      %v3929 = vmul.f32 %v3225, %v3865
      %v3930 = vmul.f32 %v3226, %v3866
      %v3931 = vmul.f32 %v3227, %v3867
      %v3932 = vmul.f32 %v3228, %v3868
      %v3933 = vmul.f32 %v3229, %v3869
      %v3934 = vmul.f32 %v3230, %v3870
      %v3935 = vmul.f32 %v3231, %v3871
      %v3936 = vmul.f32 %v3232, %v3872
      %v3937 = vmul.f32 %v3233, %v3873
      %v3938 = vmul.f32 %v3234, %v3874
      %v3939 = vmul.f32 %v3235, %v3875
      %v3940 = vmul.f32 %v3236, %v3876
      %v3941 = vmul.f32 %v3237, %v3877
      %v3942 = vmul.f32 %v3238, %v3878
      %v3943 = vmul.f32 %v3239, %v3879
      %v3944 = vmul.f32 %v3240, %v3880
      %v3945 = vmul.f32 %v3241, %v3881
      %v3946 = vmul.f32 %v3242, %v3882
      %v3947 = vmul.f32 %v3243, %v3883
      %v3948 = vmul.f32 %v3244, %v3884
      %v3949 = vmul.f32 %v3245, %v3885
      %v3950 = vmul.f32 %v3246, %v3886
      %v3951 = vmul.f32 %v3247, %v3887
      %v3952 = vmul.f32 %v3248, %v3888
      %v3953 = vmul.f32 %v3249, %v3889
      %v3954 = vmul.f32 %v3250, %v3890
      %v3955 = vmul.f32 %v3251, %v3891
      %v3956 = vmul.f32 %v3252, %v3892
      %v3957 = vmul.f32 %v3253, %v3893
      %v3958 = vmul.f32 %v3254, %v3894
      %v3959 = vmul.f32 %v3255, %v3895
      %v3960 = vmul.f32 %v3256, %v3896
      %v3961 = vmul.f32 %v3257, %v3897
      %v3962 = vmul.f32 %v3258, %v3898
      %v3963 = vmul.f32 %v3259, %v3899
      %v3964 = vmul.f32 %v3260, %v3900
      %v3965 = vmul.f32 %v3261, %v3901
      %v3966 = vmul.f32 %v3262, %v3902
      %v3967 = vmul.f32 %v3263, %v3903
      %v3968 = vmul.f32 %v3264, %v3904
      %v3969 = vmul.f32 %v3265, %v3905
      %v3970 = vmul.f32 %v3266, %v3906
      %v3971 = vmul.f32 %v3267, %v3907
      %v3972 = vmul.f32 %v3268, %v3908
      %v3973 = vmul.f32 %v3269, %v3909
      %v3974 = vpack.c.bf16 %v3911, %v3910
      %v3975 = vpack.c.bf16 %v3913, %v3912
      %v3976 = vpack.c.bf16 %v3915, %v3914
      %v3977 = vpack.c.bf16 %v3917, %v3916
      %v3978 = vpack.c.bf16 %v3919, %v3918
      %v3979 = vpack.c.bf16 %v3921, %v3920
      %v3980 = vpack.c.bf16 %v3923, %v3922
      %v3981 = vpack.c.bf16 %v3925, %v3924
      %v3982 = vpack.c.bf16 %v3927, %v3926
      %v3983 = vpack.c.bf16 %v3929, %v3928
      %v3984 = vpack.c.bf16 %v3931, %v3930
      %v3985 = vpack.c.bf16 %v3933, %v3932
      %v3986 = vpack.c.bf16 %v3935, %v3934
      %v3987 = vpack.c.bf16 %v3937, %v3936
      %v3988 = vpack.c.bf16 %v3939, %v3938
      %v3989 = vpack.c.bf16 %v3941, %v3940
      %v3990 = vpack.c.bf16 %v3943, %v3942
      %v3991 = vpack.c.bf16 %v3945, %v3944
      %v3992 = vpack.c.bf16 %v3947, %v3946
      %v3993 = vpack.c.bf16 %v3949, %v3948
      %v3994 = vpack.c.bf16 %v3951, %v3950
      %v3995 = vpack.c.bf16 %v3953, %v3952
      %v3996 = vpack.c.bf16 %v3955, %v3954
      %v3997 = vpack.c.bf16 %v3957, %v3956
      %v3998 = vpack.c.bf16 %v3959, %v3958
      %v3999 = vpack.c.bf16 %v3961, %v3960
      %v4000 = vpack.c.bf16 %v3963, %v3962
      %v4001 = vpack.c.bf16 %v3965, %v3964
      %v4002 = vpack.c.bf16 %v3967, %v3966
      %v4003 = vpack.c.bf16 %v3969, %v3968
      %v4004 = vpack.c.bf16 %v3971, %v3970
      %v4005 = vpack.c.bf16 %v3973, %v3972
      %v4038 = vunpack.c.l.b16 %v3974
      %v4039 = vunpack.c.h.b16 %v3974
      %v4040 = vunpack.c.l.b16 %v3975
      %v4041 = vunpack.c.h.b16 %v3975
      %v4042 = vunpack.c.l.b16 %v3976
      %v4043 = vunpack.c.h.b16 %v3976
      %v4044 = vunpack.c.l.b16 %v3977
      %v4045 = vunpack.c.h.b16 %v3977
      %v4046 = vunpack.c.l.b16 %v3978
      %v4047 = vunpack.c.h.b16 %v3978
      %v4048 = vunpack.c.l.b16 %v3979
      %v4049 = vunpack.c.h.b16 %v3979
      %v4050 = vunpack.c.l.b16 %v3980
      %v4051 = vunpack.c.h.b16 %v3980
      %v4052 = vunpack.c.l.b16 %v3981
      %v4053 = vunpack.c.h.b16 %v3981
      %v4054 = vunpack.c.l.b16 %v3982
      %v4055 = vunpack.c.h.b16 %v3982
      %v4056 = vunpack.c.l.b16 %v3983
      %v4057 = vunpack.c.h.b16 %v3983
      %v4058 = vunpack.c.l.b16 %v3984
      %v4059 = vunpack.c.h.b16 %v3984
      %v4060 = vunpack.c.l.b16 %v3985
      %v4061 = vunpack.c.h.b16 %v3985
      %v4062 = vunpack.c.l.b16 %v3986
      %v4063 = vunpack.c.h.b16 %v3986
      %v4064 = vunpack.c.l.b16 %v3987
      %v4065 = vunpack.c.h.b16 %v3987
      %v4066 = vunpack.c.l.b16 %v3988
      %v4067 = vunpack.c.h.b16 %v3988
      %v4068 = vunpack.c.l.b16 %v3989
      %v4069 = vunpack.c.h.b16 %v3989
      %v4070 = vunpack.c.l.b16 %v3990
      %v4071 = vunpack.c.h.b16 %v3990
      %v4072 = vunpack.c.l.b16 %v3991
      %v4073 = vunpack.c.h.b16 %v3991
      %v4074 = vunpack.c.l.b16 %v3992
      %v4075 = vunpack.c.h.b16 %v3992
      %v4076 = vunpack.c.l.b16 %v3993
      %v4077 = vunpack.c.h.b16 %v3993
      %v4078 = vunpack.c.l.b16 %v3994
      %v4079 = vunpack.c.h.b16 %v3994
      %v4080 = vunpack.c.l.b16 %v3995
      %v4081 = vunpack.c.h.b16 %v3995
      %v4082 = vunpack.c.l.b16 %v3996
      %v4083 = vunpack.c.h.b16 %v3996
      %v4084 = vunpack.c.l.b16 %v3997
      %v4085 = vunpack.c.h.b16 %v3997
      %v4086 = vunpack.c.l.b16 %v3998
      %v4087 = vunpack.c.h.b16 %v3998
      %v4088 = vunpack.c.l.b16 %v3999
      %v4089 = vunpack.c.h.b16 %v3999
      %v4090 = vunpack.c.l.b16 %v4000
      %v4091 = vunpack.c.h.b16 %v4000
      %v4092 = vunpack.c.l.b16 %v4001
      %v4093 = vunpack.c.h.b16 %v4001
      %v4094 = vunpack.c.l.b16 %v4002
      %v4095 = vunpack.c.h.b16 %v4002
      %v4096 = vunpack.c.l.b16 %v4003
      %v4097 = vunpack.c.h.b16 %v4003
      %v4098 = vunpack.c.l.b16 %v4004
      %v4099 = vunpack.c.h.b16 %v4004
      %v4100 = vunpack.c.l.b16 %v4005
      %v4101 = vunpack.c.h.b16 %v4005
      %v4102 = vpack.c.b16 %v4038, %v4038
      %v4103 = vpack.c.b16 %v4039, %v4039
      %v4104 = vpack.c.b16 %v4040, %v4040
      %v4105 = vpack.c.b16 %v4041, %v4041
      %v4106 = vpack.c.b16 %v4042, %v4042
      %v4107 = vpack.c.b16 %v4043, %v4043
      %v4108 = vpack.c.b16 %v4044, %v4044
      %v4109 = vpack.c.b16 %v4045, %v4045
      %v4110 = vpack.c.b16 %v4046, %v4046
      %v4111 = vpack.c.b16 %v4047, %v4047
      %v4112 = vpack.c.b16 %v4048, %v4048
      %v4113 = vpack.c.b16 %v4049, %v4049
      %v4114 = vpack.c.b16 %v4050, %v4050
      %v4115 = vpack.c.b16 %v4051, %v4051
      %v4116 = vpack.c.b16 %v4052, %v4052
      %v4117 = vpack.c.b16 %v4053, %v4053
      %v4118 = vpack.c.b16 %v4054, %v4054
      %v4119 = vpack.c.b16 %v4055, %v4055
      %v4120 = vpack.c.b16 %v4056, %v4056
      %v4121 = vpack.c.b16 %v4057, %v4057
      %v4122 = vpack.c.b16 %v4058, %v4058
      %v4123 = vpack.c.b16 %v4059, %v4059
      %v4124 = vpack.c.b16 %v4060, %v4060
      %v4125 = vpack.c.b16 %v4061, %v4061
      %v4126 = vpack.c.b16 %v4062, %v4062
      %v4127 = vpack.c.b16 %v4063, %v4063
      %v4128 = vpack.c.b16 %v4064, %v4064
      %v4129 = vpack.c.b16 %v4065, %v4065
      %v4130 = vpack.c.b16 %v4066, %v4066
      %v4131 = vpack.c.b16 %v4067, %v4067
      %v4132 = vpack.c.b16 %v4068, %v4068
      %v4133 = vpack.c.b16 %v4069, %v4069
      %v4134 = vpack.c.b16 %v4070, %v4070
      %v4135 = vpack.c.b16 %v4071, %v4071
      %v4136 = vpack.c.b16 %v4072, %v4072
      %v4137 = vpack.c.b16 %v4073, %v4073
      %v4138 = vpack.c.b16 %v4074, %v4074
      %v4139 = vpack.c.b16 %v4075, %v4075
      %v4140 = vpack.c.b16 %v4076, %v4076
      %v4141 = vpack.c.b16 %v4077, %v4077
      %v4142 = vpack.c.b16 %v4078, %v4078
      %v4143 = vpack.c.b16 %v4079, %v4079
      %v4144 = vpack.c.b16 %v4080, %v4080
      %v4145 = vpack.c.b16 %v4081, %v4081
      %v4146 = vpack.c.b16 %v4082, %v4082
      %v4147 = vpack.c.b16 %v4083, %v4083
      %v4148 = vpack.c.b16 %v4084, %v4084
      %v4149 = vpack.c.b16 %v4085, %v4085
      %v4150 = vpack.c.b16 %v4086, %v4086
      %v4151 = vpack.c.b16 %v4087, %v4087
      %v4152 = vpack.c.b16 %v4088, %v4088
      %v4153 = vpack.c.b16 %v4089, %v4089
      %v4154 = vpack.c.b16 %v4090, %v4090
      %v4155 = vpack.c.b16 %v4091, %v4091
      %v4156 = vpack.c.b16 %v4092, %v4092
      %v4157 = vpack.c.b16 %v4093, %v4093
      %v4158 = vpack.c.b16 %v4094, %v4094
      %v4159 = vpack.c.b16 %v4095, %v4095
      %v4160 = vpack.c.b16 %v4096, %v4096
      %v4161 = vpack.c.b16 %v4097, %v4097
      %v4162 = vpack.c.b16 %v4098, %v4098
      %v4163 = vpack.c.b16 %v4099, %v4099
      %v4164 = vpack.c.b16 %v4100, %v4100
      %v4165 = vpack.c.b16 %v4101, %v4101
      %4230 = vst [vmem:[%s8] sm:$0xf] %v4102
      %4231 = vst [vmem:[%s8 + $0x4] sm:$0xf] %v4103
      %4232 = vst [vmem:[%s8 + $0x8] sm:$0xf] %v4104
      %4233 = vst [vmem:[%s8 + $0xc] sm:$0xf] %v4105
      %4234 = vst [vmem:[%s8 + $0x10] sm:$0xf] %v4106
      %4235 = vst [vmem:[%s8 + $0x14] sm:$0xf] %v4107
      %4236 = vst [vmem:[%s8 + $0x18] sm:$0xf] %v4108
      %4237 = vst [vmem:[%s8 + $0x1c] sm:$0xf] %v4109
      %4238 = vst [vmem:[%s8 + $0x20] sm:$0xf] %v4110
      %4239 = vst [vmem:[%s8 + $0x24] sm:$0xf] %v4111
      %4240 = vst [vmem:[%s8 + $0x28] sm:$0xf] %v4112
      %4241 = vst [vmem:[%s8 + $0x2c] sm:$0xf] %v4113
      %4242 = vst [vmem:[%s8 + $0x30] sm:$0xf] %v4114
      %4243 = vst [vmem:[%s8 + $0x34] sm:$0xf] %v4115
      %4244 = vst [vmem:[%s8 + $0x38] sm:$0xf] %v4116
      %4245 = vst [vmem:[%s8 + $0x3c] sm:$0xf] %v4117
      %4246 = vst [vmem:[%s8 + $0x40] sm:$0xf] %v4118
      %4247 = vst [vmem:[%s8 + $0x44] sm:$0xf] %v4119
      %4248 = vst [vmem:[%s8 + $0x48] sm:$0xf] %v4120
      %4249 = vst [vmem:[%s8 + $0x4c] sm:$0xf] %v4121
      %4250 = vst [vmem:[%s8 + $0x50] sm:$0xf] %v4122
      %4251 = vst [vmem:[%s8 + $0x54] sm:$0xf] %v4123
      %4252 = vst [vmem:[%s8 + $0x58] sm:$0xf] %v4124
      %4253 = vst [vmem:[%s8 + $0x5c] sm:$0xf] %v4125
      %4254 = vst [vmem:[%s8 + $0x60] sm:$0xf] %v4126
      %4255 = vst [vmem:[%s8 + $0x64] sm:$0xf] %v4127
      %4256 = vst [vmem:[%s8 + $0x68] sm:$0xf] %v4128
      %4257 = vst [vmem:[%s8 + $0x6c] sm:$0xf] %v4129
      %4258 = vst [vmem:[%s8 + $0x70] sm:$0xf] %v4130
      %4259 = vst [vmem:[%s8 + $0x74] sm:$0xf] %v4131
      %4260 = vst [vmem:[%s8 + $0x78] sm:$0xf] %v4132
      %4261 = vst [vmem:[%s8 + $0x7c] sm:$0xf] %v4133
      %4262 = vst [vmem:[%s8 + $0x80] sm:$0xf] %v4134
      %4263 = vst [vmem:[%s8 + $0x84] sm:$0xf] %v4135
      %4264 = vst [vmem:[%s8 + $0x88] sm:$0xf] %v4136
      %4265 = vst [vmem:[%s8 + $0x8c] sm:$0xf] %v4137
      %4266 = vst [vmem:[%s8 + $0x90] sm:$0xf] %v4138
      %4267 = vst [vmem:[%s8 + $0x94] sm:$0xf] %v4139
      %4268 = vst [vmem:[%s8 + $0x98] sm:$0xf] %v4140
      %4269 = vst [vmem:[%s8 + $0x9c] sm:$0xf] %v4141
      %4270 = vst [vmem:[%s8 + $0xa0] sm:$0xf] %v4142
      %4271 = vst [vmem:[%s8 + $0xa4] sm:$0xf] %v4143
      %4272 = vst [vmem:[%s8 + $0xa8] sm:$0xf] %v4144
      %4273 = vst [vmem:[%s8 + $0xac] sm:$0xf] %v4145
      %4274 = vst [vmem:[%s8 + $0xb0] sm:$0xf] %v4146
      %4275 = vst [vmem:[%s8 + $0xb4] sm:$0xf] %v4147
      %4276 = vst [vmem:[%s8 + $0xb8] sm:$0xf] %v4148
      %4277 = vst [vmem:[%s8 + $0xbc] sm:$0xf] %v4149
      %4278 = vst [vmem:[%s8 + $0xc0] sm:$0xf] %v4150
      %4279 = vst [vmem:[%s8 + $0xc4] sm:$0xf] %v4151
      %4280 = vst [vmem:[%s8 + $0xc8] sm:$0xf] %v4152
      %4281 = vst [vmem:[%s8 + $0xcc] sm:$0xf] %v4153
      %4282 = vst [vmem:[%s8 + $0xd0] sm:$0xf] %v4154
      %4283 = vst [vmem:[%s8 + $0xd4] sm:$0xf] %v4155
      %4284 = vst [vmem:[%s8 + $0xd8] sm:$0xf] %v4156
      %4285 = vst [vmem:[%s8 + $0xdc] sm:$0xf] %v4157
      %4286 = vst [vmem:[%s8 + $0xe0] sm:$0xf] %v4158
      %4287 = vst [vmem:[%s8 + $0xe4] sm:$0xf] %v4159
      %4288 = vst [vmem:[%s8 + $0xe8] sm:$0xf] %v4160
      %4289 = vst [vmem:[%s8 + $0xec] sm:$0xf] %v4161
      %4290 = vst [vmem:[%s8 + $0xf0] sm:$0xf] %v4162
      %4291 = vst [vmem:[%s8 + $0xf4] sm:$0xf] %v4163
      %4292 = vst [vmem:[%s8 + $0xf8] sm:$0xf] %v4164
      %4293 = vst [vmem:[%s8 + $0xfc] sm:$0xf] %v4165
    $region33: #{ngcf_forward.4} parent=1 // pred_fallthru
      _
    // Predicated region
    $region34: #{ngcf_forward.4} parent=1 // pred_check
      _
    $region35: #{ngcf_forward.4} parent=1 // pred_check_branch
      %4295 = sbr.rel (0) target = $region37
    $region36: #{ngcf_forward.4} parent=1 // pred_region
      %s4297 = ssub.s32 4096, 4096
      %4298 = vsyncadd [#allocation7], %s4297
      %s4299 = sshll.u32 [#allocation6], 4
      %s4300 = int_to_ptr.vmem [resolvable:$true] %s4299
      %4305 = dma.vmem_to_hbm [thread:$0]  %s4300, 4096, %s7, [#allocation7], 64, 64, 4
    $region37: #{ngcf_forward.4} parent=1 // pred_fallthru
      _
    // Predicated region
    $region38: #{ngcf_forward.4} parent=1 // pred_check
      _
    $region39: #{ngcf_forward.4} parent=1 // pred_check_branch
      %4307 = sbr.rel (0) target = $region41
    $region40: #{ngcf_forward.4} parent=1 // pred_region
      _
    $region41: #{ngcf_forward.4} parent=1 // pred_fallthru
      _
    // Predicated region
    $region42: #{ngcf_forward.4} parent=1 // pred_check
      _
    $region43: #{ngcf_forward.4} parent=1 // pred_check_branch
      %4309 = sbr.rel (0) target = $region45
    $region44: #{ngcf_forward.4} parent=1 // pred_region
      %4310 = dma.done [#allocation7], 4096
    $region45: #{ngcf_forward.4} parent=1 // pred_fallthru
      _
    // Predicated region
    $region46: #{ngcf_forward.4} parent=1 // pred_check
      _
    $region47: #{ngcf_forward.4} parent=1 // pred_check_branch
      %4312 = sbr.rel (0) target = $region49
    $region48: #{ngcf_forward.4} parent=1 // pred_region
      _
    $region49: #{ngcf_forward.4} parent=1 // pred_fallthru
      _
    %4313 = vsyncpa [#allocation7], 1

</llo_original>
